<compile_context>
chip_gen: v6e
topology: v6e:2x2x1
jax: 0.10.0
libtpu: 0.0.40
codegen_flags: <defaults>
</compile_context>

<pallas_src>
import functools

import jax
import jax.numpy as jnp
from jax import lax
from jax.experimental import pallas as pl
from jax.experimental.pallas import tpu as pltpu


_BN_EPS = 1e-5
_TM_MAX = 256   # stem conv (M=512) -> 2 parallel M-blocks (v7x megacore);
                # all other convs have M <= 128 -> single block.


def _round_up(x, m):
    return (x + m - 1) // m * m


def _pick_tile(dim, max_tile, align):
    """`dim` is a multiple of `align`; return the largest tile <= max_tile that
    is a multiple of `align` and divides `dim` exactly."""
    if dim <= max_tile:
        return dim
    n_units = dim // align
    for div in range(2, n_units + 1):
        if n_units % div == 0 and (n_units // div) * align <= max_tile:
            return (n_units // div) * align
    return align


# ----------------------------------------------------------------------------
# Pallas kernels
# ----------------------------------------------------------------------------
def _conv_matmul_kernel(*refs, relu_cols, has_residual):
    """Single-shot conv-as-matmul tile (K collapsed to one step).

    bf16 x-tile @ bf16 w-tile with f32 accumulation on the MXU, then an f32
    epilogue (optional residual add, full or per-lane-masked ReLU), bf16 store.
    `relu_cols` is a Python static: 0 = no ReLU; >= lane count = full ReLU;
    otherwise ReLU only on lanes [0, relu_cols) (the conv1 half of a fused
    conv1+downsample pack)."""
    if has_residual:
        x_ref, w_ref, r_ref, o_ref = refs
    else:
        x_ref, w_ref, o_ref = refs

    y = jnp.dot(x_ref[...], w_ref[...], preferred_element_type=jnp.float32)
    if has_residual:
        y = y + r_ref[...].astype(jnp.float32)
    n_lanes = y.shape[-1]
    if relu_cols >= n_lanes:
        y = jnp.maximum(y, 0.0)
    elif relu_cols > 0:
        col = lax.broadcasted_iota(jnp.int32, y.shape, 1)
        y = jnp.where(col < relu_cols, jnp.maximum(y, 0.0), y)
    o_ref[...] = y.astype(o_ref.dtype)


def fused_conv_matmul(x2d, w2d, relu_cols, residual2d=None):
    """x2d: (M, K) bf16 im2col patches, w2d: (K, N) BN-folded weights,
    residual2d: (M, N) bf16 or None.  Returns (M, N) bf16.

    K is never tiled (max padded K here is 1152, so the bf16 x-tile + w-tile
    stay well under 1 MiB), so the grid is 1-D over M and the kernel writes
    its output tile directly from a single MXU matmul."""
    M, K = x2d.shape
    _, N = w2d.shape

    Mp = _round_up(M, 16)     # 16: bf16 sublane packing
    Kp = _round_up(K, 128)
    Np = _round_up(N, 128)
    tm = _pick_tile(Mp, _TM_MAX, 16)

    # If ReLU covers every real output column, extend it to the (zero) padded
    # lanes too so the kernel takes the cheap unmasked path.
    if relu_cols >= N:
        relu_cols = Np

    xp = jnp.pad(x2d.astype(jnp.bfloat16), ((0, Mp - M), (0, Kp - K)))
    wp = jnp.pad(w2d.astype(jnp.bfloat16), ((0, Kp - K), (0, Np - N)))

    has_residual = residual2d is not None
    inputs = [xp, wp]
    in_specs = [
        pl.BlockSpec((tm, Kp), lambda i: (i, 0)),
        pl.BlockSpec((Kp, Np), lambda i: (0, 0)),
    ]
    bytes_accessed = Mp * Kp * 2 + Kp * Np * 2 + Mp * Np * 2
    if has_residual:
        rp = jnp.pad(residual2d.astype(jnp.bfloat16),
                     ((0, Mp - M), (0, Np - N)))
        inputs.append(rp)
        in_specs.append(pl.BlockSpec((tm, Np), lambda i: (i, 0)))
        bytes_accessed += Mp * Np * 2

    kernel = functools.partial(_conv_matmul_kernel, relu_cols=relu_cols,
                               has_residual=has_residual)
    out = pl.pallas_call(
        kernel,
        out_shape=jax.ShapeDtypeStruct((Mp, Np), jnp.bfloat16),
        grid=(Mp // tm,),
        in_specs=in_specs,
        out_specs=pl.BlockSpec((tm, Np), lambda i: (i, 0)),
        compiler_params=pltpu.CompilerParams(
            dimension_semantics=("parallel",)),
        cost_estimate=pl.CostEstimate(
            flops=2 * Mp * Np * Kp,
            transcendentals=0,
            bytes_accessed=bytes_accessed),
    )(*inputs)
    return out[:M, :N]


def _maxpool_kernel(x_ref, o_ref, *, ho, wo):
    """3x3 / stride-2 / pad-1 max pool, whole (padded) map in VMEM.

    x_ref is (Hp, Wp, N, C) with both pooled dims (Hp, Wp) as MAJOR dims, so
    the stride-2 subsampling is expressed as free major-dim reshapes + static
    slices — no 9-tap HBM stack, no strided loads.
      window max at w = max(x[2w], x[2w+1], x[2w+2])
                      = max(pair_max[w], even[w+1]),  pair_max[k] = max(x[2k], x[2k+1])
    """
    x = x_ref[...]                                   # (Hp, Wp, N, C)
    hp, wp, n, c = x.shape
    # --- W direction ---
    xw = x.reshape(hp, wp // 2, 2, n, c)
    ew, ow = xw[:, :, 0], xw[:, :, 1]                # even / odd columns
    pw = jnp.maximum(ew, ow)
    mw = jnp.maximum(pw[:, :wo], ew[:, 1:wo + 1])    # (Hp, Wo, N, C)
    # --- H direction ---
    xh = mw.reshape(hp // 2, 2, wo, n, c)
    eh, oh = xh[:, 0], xh[:, 1]
    ph = jnp.maximum(eh, oh)
    o_ref[...] = jnp.maximum(ph[:ho], eh[1:ho + 1])  # (Ho, Wo, N, C)


def maxpool_3x3_s2_p1(x):
    """x: (N, H, W, C) NHWC (H, W even) -> (N, H//2, W//2, C)."""
    N, H, W, C = x.shape
    assert H % 2 == 0 and W % 2 == 0, "maxpool kernel assumes even H, W"
    Ho, Wo = H // 2, W // 2
    # (H, W, N, C): both pooled dims become major dims; (N, C) stays as the
    # (sublane, lane) tile so in-kernel reshapes never touch the tiled dims.
    xt = jnp.transpose(x, (1, 2, 0, 3))
    xp = jnp.pad(xt, ((1, 1), (1, 1), (0, 0), (0, 0)),
                 constant_values=-jnp.inf)
    out = pl.pallas_call(
        functools.partial(_maxpool_kernel, ho=Ho, wo=Wo),
        out_shape=jax.ShapeDtypeStruct((Ho, Wo, N, C), x.dtype),
        grid=(1,),
        in_specs=[pl.BlockSpec((H + 2, W + 2, N, C), lambda i: (0, 0, 0, 0))],
        out_specs=pl.BlockSpec((Ho, Wo, N, C), lambda i: (0, 0, 0, 0)),
    )(xp)
    return jnp.transpose(out, (2, 0, 1, 3))          # back to NHWC


# ----------------------------------------------------------------------------
# JAX glue: im2col, conv+BN wrappers, BasicBlock, model
# ----------------------------------------------------------------------------
def im2col(x, kh, kw, stride, pad):
    """x: (N,H,W,C) -> patches (N*Ho*Wo, KH*KW*C) in (kh, kw, cin) order."""
    N, H, W, C = x.shape
    Ho = (H + 2 * pad - kh) // stride + 1
    Wo = (W + 2 * pad - kw) // stride + 1
    xp = jnp.pad(x, ((0, 0), (pad, pad), (pad, pad), (0, 0)))
    cols = [
        xp[:, i:i + stride * (Ho - 1) + 1:stride,
              j:j + stride * (Wo - 1) + 1:stride, :]
        for i in range(kh) for j in range(kw)
    ]
    patches = jnp.concatenate(cols, axis=-1)         # (N, Ho, Wo, kh*kw*C)
    return patches.reshape(N * Ho * Wo, kh * kw * C), (N, Ho, Wo)


def _bn_fold_scale():
    # eval-mode BN with torchvision defaults: mean=0, var=1, gamma=1, beta=0.
    return 1.0 / jnp.sqrt(1.0 + _BN_EPS)


def conv_bn(x_nhwc, w_oihw, stride, pad, relu, residual_nhwc=None):
    cout, cin, kh, kw = w_oihw.shape
    cols, (N, Ho, Wo) = im2col(x_nhwc, kh, kw, stride, pad)
    # OIHW -> (KH, KW, I, O) -> (KH*KW*I, O), matching the im2col column order.
    w2d = jnp.transpose(w_oihw, (2, 3, 1, 0)).reshape(kh * kw * cin, cout)
    w2d = w2d * _bn_fold_scale()
    res2d = None
    if residual_nhwc is not None:
        res2d = residual_nhwc.reshape(N * Ho * Wo, cout)
    out = fused_conv_matmul(cols, w2d, relu_cols=cout if relu else 0,
                            residual2d=res2d)
    return out.reshape(N, Ho, Wo, cout)


def conv_bn_fused_down(x_nhwc, w3_oihw, w1_oihw, stride):
    """Pack conv1(3x3, stride s, pad 1, +BN+ReLU) and downsample(1x1, stride s,
    +BN) into ONE matmul.  The 1x1 conv samples exactly the centre tap of the
    3x3 im2col window, so its weights go on the centre-tap rows of K; the
    epilogue ReLU is masked to the conv1 lanes only."""
    cout1, cin, kh, kw = w3_oihw.shape
    coutd = w1_oihw.shape[0]
    cols, (N, Ho, Wo) = im2col(x_nhwc, kh, kw, stride, pad=1)
    w3 = jnp.transpose(w3_oihw, (2, 3, 1, 0)).reshape(kh * kw * cin, cout1)
    w1 = w1_oihw.reshape(coutd, cin).T                      # (cin, coutd)
    wf = jnp.zeros((kh * kw * cin, cout1 + coutd), jnp.float32)
    wf = wf.at[:, :cout1].set(w3)
    centre = (kh // 2) * kw + (kw // 2)
    wf = wf.at[centre * cin:(centre + 1) * cin, cout1:].set(w1)
    wf = wf * _bn_fold_scale()
    out = fused_conv_matmul(cols, wf, relu_cols=cout1)
    out = out.reshape(N, Ho, Wo, cout1 + coutd)
    return out[..., :cout1], out[..., cout1:]               # (main, identity)


def basic_block(x, blk, stride):
    """torchvision BasicBlock: conv3x3(s)-BN-ReLU, conv3x3-BN, +shortcut, ReLU."""
    if "down_w" in blk:
        out, identity = conv_bn_fused_down(x, blk["conv1_w"], blk["down_w"],
                                           stride)
    else:
        identity = x
        out = conv_bn(x, blk["conv1_w"], stride=stride, pad=1, relu=True)
    out = conv_bn(out, blk["conv2_w"], stride=1, pad=1, relu=True,
                  residual_nhwc=identity)
    return out


_STAGE_PLANES = [64, 64, 128, 128, 128]
_STAGE_STRIDES = [1, 2, 2, 2, 2]


def build_params(key, layers):
    keys = iter(jax.random.split(key, 128))
    params = {"conv1_w": jax.random.normal(next(keys), (64, 3, 7, 7),
                                           jnp.float32) * 0.05,
              "layers": []}
    inplanes = 64
    for planes, blocks, stride in zip(_STAGE_PLANES, layers, _STAGE_STRIDES):
        stage = []
        for b in range(blocks):
            s = stride if b == 0 else 1
            blk = {
                "conv1_w": jax.random.normal(next(keys), (planes, inplanes, 3, 3),
                                             jnp.float32) * 0.05,
                "conv2_w": jax.random.normal(next(keys), (planes, planes, 3, 3),
                                             jnp.float32) * 0.05,
            }
            if s != 1 or inplanes != planes:
                blk["down_w"] = jax.random.normal(next(keys),
                                                  (planes, inplanes, 1, 1),
                                                  jnp.float32) * 0.05
            inplanes = planes
            stage.append(blk)
        params["layers"].append(stage)
    return params


def student_resnet_forward(params, x_nchw):
    x = jnp.transpose(x_nchw, (0, 2, 3, 1)).astype(jnp.bfloat16)  # NCHW->NHWC, bf16
    x = conv_bn(x, params["conv1_w"], stride=2, pad=3, relu=True)  # conv1+bn1+relu
    x = maxpool_3x3_s2_p1(x)                                       # maxpool
    for stage, s0 in zip(params["layers"], _STAGE_STRIDES):        # layer1..layer5
        for b, blk in enumerate(stage):
            x = basic_block(x, blk, s0 if b == 0 else 1)
    x = jnp.transpose(x, (0, 3, 1, 2))                             # NHWC -> NCHW
    return x.reshape(x.shape[0], -1).astype(jnp.float32)           # x.view(N, -1)


if __name__ == "__main__":
    key = jax.random.PRNGKey(0)
    k_params, k_x = jax.random.split(key)

    layers = [1, 1, 1, 1, 1]  # one BasicBlock per stage (small, deterministic)
    params = build_params(k_params, layers)

    # conv1 expects 3 input channels; 32x32 spatial keeps all 5 stages valid.
    x = jax.random.normal(k_x, (2, 3, 32, 32), jnp.float32)

    forward = jax.jit(student_resnet_forward)
    out = forward(params, x)
    out = jax.block_until_ready(out)
    assert out.shape == (2, 128), out.shape
    assert jnp.all(jnp.isfinite(out))
    print("KERNEL_OK")
</pallas_src>

<mosaic_0001>
module attributes {stable_mosaic.version = 11 : i64} {
  func.func @_conv_matmul_kernel(%arg0: i32, %arg1: memref<256x256xbf16, #tpu.memory_space<vmem>>, %arg2: memref<256x128xbf16, #tpu.memory_space<vmem>>, %arg3: memref<256x128xbf16, #tpu.memory_space<vmem>>) attributes {dimension_semantics = [#tpu.dimension_semantics<parallel>], iteration_bounds = array<i64: 2>, scalar_prefetch = 0 : i64, scratch_operands = 0 : i64, tpu.core_type = #tpu.core_type<tc>, window_params = [{transform_indices = @transform_0, window_bounds = array<i64: 256, 256>}, {pipeline_mode = #tpu.pipeline_mode<synchronous>, transform_indices = @transform_1, window_bounds = array<i64: 256, 128>}, {transform_indices = @transform_2, window_bounds = array<i64: 256, 128>}]} {
    %c0 = arith.constant 0 : index
    %c0_0 = arith.constant 0 : index
    %0 = vector.load %arg1[%c0, %c0_0] : memref<256x256xbf16, #tpu.memory_space<vmem>>, vector<256x256xbf16>
    %c0_1 = arith.constant 0 : index
    %c0_2 = arith.constant 0 : index
    %1 = vector.load %arg2[%c0_1, %c0_2] : memref<256x128xbf16, #tpu.memory_space<vmem>>, vector<256x128xbf16>
    %cst = arith.constant dense<0.000000e+00> : vector<256x128xf32>
    %2 = tpu.matmul %0, %1, %cst {dimension_numbers = #tpu.dot_dimension_numbers<[1], [0], [0], [1], [0, 0, 1, 1], [], []>} : vector<256x256xbf16>, vector<256x128xbf16>, vector<256x128xf32> -> vector<256x128xf32>
    %cst_3 = arith.constant 0.000000e+00 : f32
    %3 = vector.broadcast %cst_3 : f32 to vector<256x128xf32>
    %4 = arith.maximumf %2, %3 : vector<256x128xf32>
    %5 = arith.truncf %4 : vector<256x128xf32> to vector<256x128xbf16>
    %c0_4 = arith.constant 0 : index
    %c0_5 = arith.constant 0 : index
    %6 = vector.load %arg3[%c0_4, %c0_5] : memref<256x128xbf16, #tpu.memory_space<vmem>>, vector<256x128xbf16>
    tpu.vector_store %arg3[%c0_4, %c0_5], %5 {strides = array<i32>} : memref<256x128xbf16, #tpu.memory_space<vmem>>, vector<256x128xbf16>,
    return
  }
  func.func @transform_0(%arg0: i32) -> (i32, i32) {
    %c0_i32 = arith.constant 0 : i32
    %c0_i32_0 = arith.constant 0 : i32
    return %arg0, %c0_i32 : i32, i32
  }
  func.func @transform_1(%arg0: i32) -> (i32, i32) {
    %c0_i32 = arith.constant 0 : i32
    %c0_i32_0 = arith.constant 0 : i32
    %c0_i32_1 = arith.constant 0 : i32
    return %c0_i32, %c0_i32_0 : i32, i32
  }
  func.func @transform_2(%arg0: i32) -> (i32, i32) {
    %c0_i32 = arith.constant 0 : i32
    %c0_i32_0 = arith.constant 0 : i32
    return %arg0, %c0_i32 : i32, i32
  }
}

module attributes {stable_mosaic.version = 11 : i64} {
  func.func @_maxpool_kernel(%arg0: i32, %arg1: memref<18x18x2x64xbf16, #tpu.memory_space<vmem>>, %arg2: memref<8x8x2x64xbf16, #tpu.memory_space<vmem>>) attributes {dimension_semantics = [#tpu.dimension_semantics<arbitrary>], iteration_bounds = array<i64: 1>, scalar_prefetch = 0 : i64, scratch_operands = 0 : i64, tpu.core_type = #tpu.core_type<tc>, window_params = [{pipeline_mode = #tpu.pipeline_mode<synchronous>, transform_indices = @transform_0, window_bounds = array<i64: 18, 18, 2, 64>}, {pipeline_mode = #tpu.pipeline_mode<synchronous>, transform_indices = @transform_1, window_bounds = array<i64: 8, 8, 2, 64>}]} {
    %c0 = arith.constant 0 : index
    %c0_0 = arith.constant 0 : index
    %c0_1 = arith.constant 0 : index
    %c0_2 = arith.constant 0 : index
    %0 = vector.load %arg1[%c0, %c0_0, %c0_1, %c0_2] : memref<18x18x2x64xbf16, #tpu.memory_space<vmem>>, vector<18x18x2x64xbf16>
    %1 = vector.shape_cast %0 : vector<18x18x2x64xbf16> to vector<18x9x2x2x64xbf16>
    %2 = vector.extract_strided_slice %1 {offsets = [0, 0, 0, 0, 0], sizes = [18, 9, 1, 2, 64], strides = [1, 1, 1, 1, 1]} : vector<18x9x2x2x64xbf16> to vector<18x9x1x2x64xbf16>
    %3 = vector.shape_cast %2 : vector<18x9x1x2x64xbf16> to vector<18x9x2x64xbf16>
    %4 = vector.extract_strided_slice %1 {offsets = [0, 0, 1, 0, 0], sizes = [18, 9, 1, 2, 64], strides = [1, 1, 1, 1, 1]} : vector<18x9x2x2x64xbf16> to vector<18x9x1x2x64xbf16>
    %5 = vector.shape_cast %4 : vector<18x9x1x2x64xbf16> to vector<18x9x2x64xbf16>
    %6 = arith.maximumf %3, %5 : vector<18x9x2x64xbf16>
    %7 = vector.extract_strided_slice %6 {offsets = [0, 0, 0, 0], sizes = [18, 8, 2, 64], strides = [1, 1, 1, 1]} : vector<18x9x2x64xbf16> to vector<18x8x2x64xbf16>
    %8 = vector.extract_strided_slice %3 {offsets = [0, 1, 0, 0], sizes = [18, 8, 2, 64], strides = [1, 1, 1, 1]} : vector<18x9x2x64xbf16> to vector<18x8x2x64xbf16>
    %9 = arith.maximumf %7, %8 : vector<18x8x2x64xbf16>
    %10 = vector.shape_cast %9 : vector<18x8x2x64xbf16> to vector<9x2x8x2x64xbf16>
    %11 = vector.extract_strided_slice %10 {offsets = [0, 0, 0, 0, 0], sizes = [9, 1, 8, 2, 64], strides = [1, 1, 1, 1, 1]} : vector<9x2x8x2x64xbf16> to vector<9x1x8x2x64xbf16>
    %12 = vector.shape_cast %11 : vector<9x1x8x2x64xbf16> to vector<9x8x2x64xbf16>
    %13 = vector.extract_strided_slice %10 {offsets = [0, 1, 0, 0, 0], sizes = [9, 1, 8, 2, 64], strides = [1, 1, 1, 1, 1]} : vector<9x2x8x2x64xbf16> to vector<9x1x8x2x64xbf16>
    %14 = vector.shape_cast %13 : vector<9x1x8x2x64xbf16> to vector<9x8x2x64xbf16>
    %15 = arith.maximumf %12, %14 : vector<9x8x2x64xbf16>
    %16 = vector.extract_strided_slice %15 {offsets = [0, 0, 0, 0], sizes = [8, 8, 2, 64], strides = [1, 1, 1, 1]} : vector<9x8x2x64xbf16> to vector<8x8x2x64xbf16>
    %17 = vector.extract_strided_slice %12 {offsets = [1, 0, 0, 0], sizes = [8, 8, 2, 64], strides = [1, 1, 1, 1]} : vector<9x8x2x64xbf16> to vector<8x8x2x64xbf16>
    %18 = arith.maximumf %16, %17 : vector<8x8x2x64xbf16>
    %c0_3 = arith.constant 0 : index
    %c0_4 = arith.constant 0 : index
    %c0_5 = arith.constant 0 : index
    %c0_6 = arith.constant 0 : index
    %19 = vector.load %arg2[%c0_3, %c0_4, %c0_5, %c0_6] : memref<8x8x2x64xbf16, #tpu.memory_space<vmem>>, vector<8x8x2x64xbf16>
    tpu.vector_store %arg2[%c0_3, %c0_4, %c0_5, %c0_6], %18 {strides = array<i32>} : memref<8x8x2x64xbf16, #tpu.memory_space<vmem>>, vector<8x8x2x64xbf16>,
    return
  }
  func.func @transform_0(%arg0: i32) -> (i32, i32, i32, i32) {
    %c0_i32 = arith.constant 0 : i32
    %c0_i32_0 = arith.constant 0 : i32
    %c0_i32_1 = arith.constant 0 : i32
    %c0_i32_2 = arith.constant 0 : i32
    %c0_i32_3 = arith.constant 0 : i32
    return %c0_i32, %c0_i32_0, %c0_i32_1, %c0_i32_2 : i32, i32, i32, i32
  }
  func.func @transform_1(%arg0: i32) -> (i32, i32, i32, i32) {
    %c0_i32 = arith.constant 0 : i32
    %c0_i32_0 = arith.constant 0 : i32
    %c0_i32_1 = arith.constant 0 : i32
    %c0_i32_2 = arith.constant 0 : i32
    %c0_i32_3 = arith.constant 0 : i32
    return %c0_i32, %c0_i32_0, %c0_i32_1, %c0_i32_2 : i32, i32, i32, i32
  }
}

module attributes {stable_mosaic.version = 11 : i64} {
  func.func @_conv_matmul_kernel(%arg0: i32, %arg1: memref<128x640xbf16, #tpu.memory_space<vmem>>, %arg2: memref<640x128xbf16, #tpu.memory_space<vmem>>, %arg3: memref<128x128xbf16, #tpu.memory_space<vmem>>) attributes {dimension_semantics = [#tpu.dimension_semantics<parallel>], iteration_bounds = array<i64: 1>, scalar_prefetch = 0 : i64, scratch_operands = 0 : i64, tpu.core_type = #tpu.core_type<tc>, window_params = [{transform_indices = @transform_0, window_bounds = array<i64: 128, 640>}, {pipeline_mode = #tpu.pipeline_mode<synchronous>, transform_indices = @transform_1, window_bounds = array<i64: 640, 128>}, {transform_indices = @transform_2, window_bounds = array<i64: 128, 128>}]} {
    %c0 = arith.constant 0 : index
    %c0_0 = arith.constant 0 : index
    %0 = vector.load %arg1[%c0, %c0_0] : memref<128x640xbf16, #tpu.memory_space<vmem>>, vector<128x640xbf16>
    %c0_1 = arith.constant 0 : index
    %c0_2 = arith.constant 0 : index
    %1 = vector.load %arg2[%c0_1, %c0_2] : memref<640x128xbf16, #tpu.memory_space<vmem>>, vector<640x128xbf16>
    %cst = arith.constant dense<0.000000e+00> : vector<128x128xf32>
    %2 = tpu.matmul %0, %1, %cst {dimension_numbers = #tpu.dot_dimension_numbers<[1], [0], [0], [1], [0, 0, 1, 1], [], []>} : vector<128x640xbf16>, vector<640x128xbf16>, vector<128x128xf32> -> vector<128x128xf32>
    %cst_3 = arith.constant 0.000000e+00 : f32
    %3 = vector.broadcast %cst_3 : f32 to vector<128x128xf32>
    %4 = arith.maximumf %2, %3 : vector<128x128xf32>
    %5 = arith.truncf %4 : vector<128x128xf32> to vector<128x128xbf16>
    %c0_4 = arith.constant 0 : index
    %c0_5 = arith.constant 0 : index
    %6 = vector.load %arg3[%c0_4, %c0_5] : memref<128x128xbf16, #tpu.memory_space<vmem>>, vector<128x128xbf16>
    tpu.vector_store %arg3[%c0_4, %c0_5], %5 {strides = array<i32>} : memref<128x128xbf16, #tpu.memory_space<vmem>>, vector<128x128xbf16>,
    return
  }
  func.func @transform_0(%arg0: i32) -> (i32, i32) {
    %c0_i32 = arith.constant 0 : i32
    %c0_i32_0 = arith.constant 0 : i32
    return %arg0, %c0_i32 : i32, i32
  }
  func.func @transform_1(%arg0: i32) -> (i32, i32) {
    %c0_i32 = arith.constant 0 : i32
    %c0_i32_0 = arith.constant 0 : i32
    %c0_i32_1 = arith.constant 0 : i32
    return %c0_i32, %c0_i32_0 : i32, i32
  }
  func.func @transform_2(%arg0: i32) -> (i32, i32) {
    %c0_i32 = arith.constant 0 : i32
    %c0_i32_0 = arith.constant 0 : i32
    return %arg0, %c0_i32 : i32, i32
  }
}

module attributes {stable_mosaic.version = 11 : i64} {
  func.func @_conv_matmul_kernel(%arg0: i32, %arg1: memref<128x640xbf16, #tpu.memory_space<vmem>>, %arg2: memref<640x128xbf16, #tpu.memory_space<vmem>>, %arg3: memref<128x128xbf16, #tpu.memory_space<vmem>>, %arg4: memref<128x128xbf16, #tpu.memory_space<vmem>>) attributes {dimension_semantics = [#tpu.dimension_semantics<parallel>], iteration_bounds = array<i64: 1>, scalar_prefetch = 0 : i64, scratch_operands = 0 : i64, tpu.core_type = #tpu.core_type<tc>, window_params = [{transform_indices = @transform_0, window_bounds = array<i64: 128, 640>}, {pipeline_mode = #tpu.pipeline_mode<synchronous>, transform_indices = @transform_1, window_bounds = array<i64: 640, 128>}, {transform_indices = @transform_2, window_bounds = array<i64: 128, 128>}, {transform_indices = @transform_3, window_bounds = array<i64: 128, 128>}]} {
    %c0 = arith.constant 0 : index
    %c0_0 = arith.constant 0 : index
    %0 = vector.load %arg1[%c0, %c0_0] : memref<128x640xbf16, #tpu.memory_space<vmem>>, vector<128x640xbf16>
    %c0_1 = arith.constant 0 : index
    %c0_2 = arith.constant 0 : index
    %1 = vector.load %arg2[%c0_1, %c0_2] : memref<640x128xbf16, #tpu.memory_space<vmem>>, vector<640x128xbf16>
    %cst = arith.constant dense<0.000000e+00> : vector<128x128xf32>
    %2 = tpu.matmul %0, %1, %cst {dimension_numbers = #tpu.dot_dimension_numbers<[1], [0], [0], [1], [0, 0, 1, 1], [], []>} : vector<128x640xbf16>, vector<640x128xbf16>, vector<128x128xf32> -> vector<128x128xf32>
    %c0_3 = arith.constant 0 : index
    %c0_4 = arith.constant 0 : index
    %3 = vector.load %arg3[%c0_3, %c0_4] : memref<128x128xbf16, #tpu.memory_space<vmem>>, vector<128x128xbf16>
    %4 = arith.extf %3 : vector<128x128xbf16> to vector<128x128xf32>
    %5 = arith.addf %2, %4 : vector<128x128xf32>
    %cst_5 = arith.constant 0.000000e+00 : f32
    %6 = vector.broadcast %cst_5 : f32 to vector<128x128xf32>
    %7 = arith.maximumf %5, %6 : vector<128x128xf32>
    %8 = arith.truncf %7 : vector<128x128xf32> to vector<128x128xbf16>
    %c0_6 = arith.constant 0 : index
    %c0_7 = arith.constant 0 : index
    %9 = vector.load %arg4[%c0_6, %c0_7] : memref<128x128xbf16, #tpu.memory_space<vmem>>, vector<128x128xbf16>
    tpu.vector_store %arg4[%c0_6, %c0_7], %8 {strides = array<i32>} : memref<128x128xbf16, #tpu.memory_space<vmem>>, vector<128x128xbf16>,
    return
  }
  func.func @transform_0(%arg0: i32) -> (i32, i32) {
    %c0_i32 = arith.constant 0 : i32
    %c0_i32_0 = arith.constant 0 : i32
    return %arg0, %c0_i32 : i32, i32
  }
  func.func @transform_1(%arg0: i32) -> (i32, i32) {
    %c0_i32 = arith.constant 0 : i32
    %c0_i32_0 = arith.constant 0 : i32
    %c0_i32_1 = arith.constant 0 : i32
    return %c0_i32, %c0_i32_0 : i32, i32
  }
  func.func @transform_2(%arg0: i32) -> (i32, i32) {
    %c0_i32 = arith.constant 0 : i32
    %c0_i32_0 = arith.constant 0 : i32
    return %arg0, %c0_i32 : i32, i32
  }
  func.func @transform_3(%arg0: i32) -> (i32, i32) {
    %c0_i32 = arith.constant 0 : i32
    %c0_i32_0 = arith.constant 0 : i32
    return %arg0, %c0_i32 : i32, i32
  }
}

module attributes {stable_mosaic.version = 11 : i64} {
  func.func @_conv_matmul_kernel(%arg0: i32, %arg1: memref<32x640xbf16, #tpu.memory_space<vmem>>, %arg2: memref<640x128xbf16, #tpu.memory_space<vmem>>, %arg3: memref<32x128xbf16, #tpu.memory_space<vmem>>) attributes {dimension_semantics = [#tpu.dimension_semantics<parallel>], iteration_bounds = array<i64: 1>, scalar_prefetch = 0 : i64, scratch_operands = 0 : i64, tpu.core_type = #tpu.core_type<tc>, window_params = [{transform_indices = @transform_0, window_bounds = array<i64: 32, 640>}, {pipeline_mode = #tpu.pipeline_mode<synchronous>, transform_indices = @transform_1, window_bounds = array<i64: 640, 128>}, {transform_indices = @transform_2, window_bounds = array<i64: 32, 128>}]} {
    %c0 = arith.constant 0 : index
    %c0_0 = arith.constant 0 : index
    %0 = vector.load %arg1[%c0, %c0_0] : memref<32x640xbf16, #tpu.memory_space<vmem>>, vector<32x640xbf16>
    %c0_1 = arith.constant 0 : index
    %c0_2 = arith.constant 0 : index
    %1 = vector.load %arg2[%c0_1, %c0_2] : memref<640x128xbf16, #tpu.memory_space<vmem>>, vector<640x128xbf16>
    %cst = arith.constant dense<0.000000e+00> : vector<32x128xf32>
    %2 = tpu.matmul %0, %1, %cst {dimension_numbers = #tpu.dot_dimension_numbers<[1], [0], [0], [1], [0, 0, 1, 1], [], []>} : vector<32x640xbf16>, vector<640x128xbf16>, vector<32x128xf32> -> vector<32x128xf32>
    %3 = tpu.iota {dimensions = array<i32: 1>} : vector<32x128xi32>
    %c64_i32 = arith.constant 64 : i32
    %4 = vector.broadcast %c64_i32 : i32 to vector<32x128xi32>
    %5 = arith.cmpi slt, %3, %4 : vector<32x128xi32>
    %cst_3 = arith.constant 0.000000e+00 : f32
    %6 = vector.broadcast %cst_3 : f32 to vector<32x128xf32>
    %7 = arith.maximumf %2, %6 : vector<32x128xf32>
    %8 = arith.select %5, %7, %2 : vector<32x128xi1>, vector<32x128xf32>
    %9 = arith.truncf %8 : vector<32x128xf32> to vector<32x128xbf16>
    %c0_4 = arith.constant 0 : index
    %c0_5 = arith.constant 0 : index
    %10 = vector.load %arg3[%c0_4, %c0_5] : memref<32x128xbf16, #tpu.memory_space<vmem>>, vector<32x128xbf16>
    tpu.vector_store %arg3[%c0_4, %c0_5], %9 {strides = array<i32>} : memref<32x128xbf16, #tpu.memory_space<vmem>>, vector<32x128xbf16>,
    return
  }
  func.func @transform_0(%arg0: i32) -> (i32, i32) {
    %c0_i32 = arith.constant 0 : i32
    %c0_i32_0 = arith.constant 0 : i32
    return %arg0, %c0_i32 : i32, i32
  }
  func.func @transform_1(%arg0: i32) -> (i32, i32) {
    %c0_i32 = arith.constant 0 : i32
    %c0_i32_0 = arith.constant 0 : i32
    %c0_i32_1 = arith.constant 0 : i32
    return %c0_i32, %c0_i32_0 : i32, i32
  }
  func.func @transform_2(%arg0: i32) -> (i32, i32) {
    %c0_i32 = arith.constant 0 : i32
    %c0_i32_0 = arith.constant 0 : i32
    return %arg0, %c0_i32 : i32, i32
  }
}

module attributes {stable_mosaic.version = 11 : i64} {
  func.func @_conv_matmul_kernel(%arg0: i32, %arg1: memref<32x640xbf16, #tpu.memory_space<vmem>>, %arg2: memref<640x128xbf16, #tpu.memory_space<vmem>>, %arg3: memref<32x128xbf16, #tpu.memory_space<vmem>>, %arg4: memref<32x128xbf16, #tpu.memory_space<vmem>>) attributes {dimension_semantics = [#tpu.dimension_semantics<parallel>], iteration_bounds = array<i64: 1>, scalar_prefetch = 0 : i64, scratch_operands = 0 : i64, tpu.core_type = #tpu.core_type<tc>, window_params = [{transform_indices = @transform_0, window_bounds = array<i64: 32, 640>}, {pipeline_mode = #tpu.pipeline_mode<synchronous>, transform_indices = @transform_1, window_bounds = array<i64: 640, 128>}, {transform_indices = @transform_2, window_bounds = array<i64: 32, 128>}, {transform_indices = @transform_3, window_bounds = array<i64: 32, 128>}]} {
    %c0 = arith.constant 0 : index
    %c0_0 = arith.constant 0 : index
    %0 = vector.load %arg1[%c0, %c0_0] : memref<32x640xbf16, #tpu.memory_space<vmem>>, vector<32x640xbf16>
    %c0_1 = arith.constant 0 : index
    %c0_2 = arith.constant 0 : index
    %1 = vector.load %arg2[%c0_1, %c0_2] : memref<640x128xbf16, #tpu.memory_space<vmem>>, vector<640x128xbf16>
    %cst = arith.constant dense<0.000000e+00> : vector<32x128xf32>
    %2 = tpu.matmul %0, %1, %cst {dimension_numbers = #tpu.dot_dimension_numbers<[1], [0], [0], [1], [0, 0, 1, 1], [], []>} : vector<32x640xbf16>, vector<640x128xbf16>, vector<32x128xf32> -> vector<32x128xf32>
    %c0_3 = arith.constant 0 : index
    %c0_4 = arith.constant 0 : index
    %3 = vector.load %arg3[%c0_3, %c0_4] : memref<32x128xbf16, #tpu.memory_space<vmem>>, vector<32x128xbf16>
    %4 = arith.extf %3 : vector<32x128xbf16> to vector<32x128xf32>
    %5 = arith.addf %2, %4 : vector<32x128xf32>
    %cst_5 = arith.constant 0.000000e+00 : f32
    %6 = vector.broadcast %cst_5 : f32 to vector<32x128xf32>
    %7 = arith.maximumf %5, %6 : vector<32x128xf32>
    %8 = arith.truncf %7 : vector<32x128xf32> to vector<32x128xbf16>
    %c0_6 = arith.constant 0 : index
    %c0_7 = arith.constant 0 : index
    %9 = vector.load %arg4[%c0_6, %c0_7] : memref<32x128xbf16, #tpu.memory_space<vmem>>, vector<32x128xbf16>
    tpu.vector_store %arg4[%c0_6, %c0_7], %8 {strides = array<i32>} : memref<32x128xbf16, #tpu.memory_space<vmem>>, vector<32x128xbf16>,
    return
  }
  func.func @transform_0(%arg0: i32) -> (i32, i32) {
    %c0_i32 = arith.constant 0 : i32
    %c0_i32_0 = arith.constant 0 : i32
    return %arg0, %c0_i32 : i32, i32
  }
  func.func @transform_1(%arg0: i32) -> (i32, i32) {
    %c0_i32 = arith.constant 0 : i32
    %c0_i32_0 = arith.constant 0 : i32
    %c0_i32_1 = arith.constant 0 : i32
    return %c0_i32, %c0_i32_0 : i32, i32
  }
  func.func @transform_2(%arg0: i32) -> (i32, i32) {
    %c0_i32 = arith.constant 0 : i32
    %c0_i32_0 = arith.constant 0 : i32
    return %arg0, %c0_i32 : i32, i32
  }
  func.func @transform_3(%arg0: i32) -> (i32, i32) {
    %c0_i32 = arith.constant 0 : i32
    %c0_i32_0 = arith.constant 0 : i32
    return %arg0, %c0_i32 : i32, i32
  }
}

module attributes {stable_mosaic.version = 11 : i64} {
  func.func @_conv_matmul_kernel(%arg0: i32, %arg1: memref<16x640xbf16, #tpu.memory_space<vmem>>, %arg2: memref<640x256xbf16, #tpu.memory_space<vmem>>, %arg3: memref<16x256xbf16, #tpu.memory_space<vmem>>) attributes {dimension_semantics = [#tpu.dimension_semantics<parallel>], iteration_bounds = array<i64: 1>, scalar_prefetch = 0 : i64, scratch_operands = 0 : i64, tpu.core_type = #tpu.core_type<tc>, window_params = [{transform_indices = @transform_0, window_bounds = array<i64: 16, 640>}, {pipeline_mode = #tpu.pipeline_mode<synchronous>, transform_indices = @transform_1, window_bounds = array<i64: 640, 256>}, {transform_indices = @transform_2, window_bounds = array<i64: 16, 256>}]} {
    %c0 = arith.constant 0 : index
    %c0_0 = arith.constant 0 : index
    %0 = vector.load %arg1[%c0, %c0_0] : memref<16x640xbf16, #tpu.memory_space<vmem>>, vector<16x640xbf16>
    %c0_1 = arith.constant 0 : index
    %c0_2 = arith.constant 0 : index
    %1 = vector.load %arg2[%c0_1, %c0_2] : memref<640x256xbf16, #tpu.memory_space<vmem>>, vector<640x256xbf16>
    %cst = arith.constant dense<0.000000e+00> : vector<16x256xf32>
    %2 = tpu.matmul %0, %1, %cst {dimension_numbers = #tpu.dot_dimension_numbers<[1], [0], [0], [1], [0, 0, 1, 1], [], []>} : vector<16x640xbf16>, vector<640x256xbf16>, vector<16x256xf32> -> vector<16x256xf32>
    %3 = tpu.iota {dimensions = array<i32: 1>} : vector<16x256xi32>
    %c128_i32 = arith.constant 128 : i32
    %4 = vector.broadcast %c128_i32 : i32 to vector<16x256xi32>
    %5 = arith.cmpi slt, %3, %4 : vector<16x256xi32>
    %cst_3 = arith.constant 0.000000e+00 : f32
    %6 = vector.broadcast %cst_3 : f32 to vector<16x256xf32>
    %7 = arith.maximumf %2, %6 : vector<16x256xf32>
    %8 = arith.select %5, %7, %2 : vector<16x256xi1>, vector<16x256xf32>
    %9 = arith.truncf %8 : vector<16x256xf32> to vector<16x256xbf16>
    %c0_4 = arith.constant 0 : index
    %c0_5 = arith.constant 0 : index
    %10 = vector.load %arg3[%c0_4, %c0_5] : memref<16x256xbf16, #tpu.memory_space<vmem>>, vector<16x256xbf16>
    tpu.vector_store %arg3[%c0_4, %c0_5], %9 {strides = array<i32>} : memref<16x256xbf16, #tpu.memory_space<vmem>>, vector<16x256xbf16>,
    return
  }
  func.func @transform_0(%arg0: i32) -> (i32, i32) {
    %c0_i32 = arith.constant 0 : i32
    %c0_i32_0 = arith.constant 0 : i32
    return %arg0, %c0_i32 : i32, i32
  }
  func.func @transform_1(%arg0: i32) -> (i32, i32) {
    %c0_i32 = arith.constant 0 : i32
    %c0_i32_0 = arith.constant 0 : i32
    %c0_i32_1 = arith.constant 0 : i32
    return %c0_i32, %c0_i32_0 : i32, i32
  }
  func.func @transform_2(%arg0: i32) -> (i32, i32) {
    %c0_i32 = arith.constant 0 : i32
    %c0_i32_0 = arith.constant 0 : i32
    return %arg0, %c0_i32 : i32, i32
  }
}

module attributes {stable_mosaic.version = 11 : i64} {
  func.func @_conv_matmul_kernel(%arg0: i32, %arg1: memref<16x1152xbf16, #tpu.memory_space<vmem>>, %arg2: memref<1152x128xbf16, #tpu.memory_space<vmem>>, %arg3: memref<16x128xbf16, #tpu.memory_space<vmem>>, %arg4: memref<16x128xbf16, #tpu.memory_space<vmem>>) attributes {dimension_semantics = [#tpu.dimension_semantics<parallel>], iteration_bounds = array<i64: 1>, scalar_prefetch = 0 : i64, scratch_operands = 0 : i64, tpu.core_type = #tpu.core_type<tc>, window_params = [{transform_indices = @transform_0, window_bounds = array<i64: 16, 1152>}, {pipeline_mode = #tpu.pipeline_mode<synchronous>, transform_indices = @transform_1, window_bounds = array<i64: 1152, 128>}, {transform_indices = @transform_2, window_bounds = array<i64: 16, 128>}, {transform_indices = @transform_3, window_bounds = array<i64: 16, 128>}]} {
    %c0 = arith.constant 0 : index
    %c0_0 = arith.constant 0 : index
    %0 = vector.load %arg1[%c0, %c0_0] : memref<16x1152xbf16, #tpu.memory_space<vmem>>, vector<16x1152xbf16>
    %c0_1 = arith.constant 0 : index
    %c0_2 = arith.constant 0 : index
    %1 = vector.load %arg2[%c0_1, %c0_2] : memref<1152x128xbf16, #tpu.memory_space<vmem>>, vector<1152x128xbf16>
    %cst = arith.constant dense<0.000000e+00> : vector<16x128xf32>
    %2 = tpu.matmul %0, %1, %cst {dimension_numbers = #tpu.dot_dimension_numbers<[1], [0], [0], [1], [0, 0, 1, 1], [], []>} : vector<16x1152xbf16>, vector<1152x128xbf16>, vector<16x128xf32> -> vector<16x128xf32>
    %c0_3 = arith.constant 0 : index
    %c0_4 = arith.constant 0 : index
    %3 = vector.load %arg3[%c0_3, %c0_4] : memref<16x128xbf16, #tpu.memory_space<vmem>>, vector<16x128xbf16>
    %4 = arith.extf %3 : vector<16x128xbf16> to vector<16x128xf32>
    %5 = arith.addf %2, %4 : vector<16x128xf32>
    %cst_5 = arith.constant 0.000000e+00 : f32
    %6 = vector.broadcast %cst_5 : f32 to vector<16x128xf32>
    %7 = arith.maximumf %5, %6 : vector<16x128xf32>
    %8 = arith.truncf %7 : vector<16x128xf32> to vector<16x128xbf16>
    %c0_6 = arith.constant 0 : index
    %c0_7 = arith.constant 0 : index
    %9 = vector.load %arg4[%c0_6, %c0_7] : memref<16x128xbf16, #tpu.memory_space<vmem>>, vector<16x128xbf16>
    tpu.vector_store %arg4[%c0_6, %c0_7], %8 {strides = array<i32>} : memref<16x128xbf16, #tpu.memory_space<vmem>>, vector<16x128xbf16>,
    return
  }
  func.func @transform_0(%arg0: i32) -> (i32, i32) {
    %c0_i32 = arith.constant 0 : i32
    %c0_i32_0 = arith.constant 0 : i32
    return %arg0, %c0_i32 : i32, i32
  }
  func.func @transform_1(%arg0: i32) -> (i32, i32) {
    %c0_i32 = arith.constant 0 : i32
    %c0_i32_0 = arith.constant 0 : i32
    %c0_i32_1 = arith.constant 0 : i32
    return %c0_i32, %c0_i32_0 : i32, i32
  }
  func.func @transform_2(%arg0: i32) -> (i32, i32) {
    %c0_i32 = arith.constant 0 : i32
    %c0_i32_0 = arith.constant 0 : i32
    return %arg0, %c0_i32 : i32, i32
  }
  func.func @transform_3(%arg0: i32) -> (i32, i32) {
    %c0_i32 = arith.constant 0 : i32
    %c0_i32_0 = arith.constant 0 : i32
    return %arg0, %c0_i32 : i32, i32
  }
}

module attributes {stable_mosaic.version = 11 : i64} {
  func.func @_conv_matmul_kernel(%arg0: i32, %arg1: memref<16x1152xbf16, #tpu.memory_space<vmem>>, %arg2: memref<1152x256xbf16, #tpu.memory_space<vmem>>, %arg3: memref<16x256xbf16, #tpu.memory_space<vmem>>) attributes {dimension_semantics = [#tpu.dimension_semantics<parallel>], iteration_bounds = array<i64: 1>, scalar_prefetch = 0 : i64, scratch_operands = 0 : i64, tpu.core_type = #tpu.core_type<tc>, window_params = [{transform_indices = @transform_0, window_bounds = array<i64: 16, 1152>}, {pipeline_mode = #tpu.pipeline_mode<synchronous>, transform_indices = @transform_1, window_bounds = array<i64: 1152, 256>}, {transform_indices = @transform_2, window_bounds = array<i64: 16, 256>}]} {
    %c0 = arith.constant 0 : index
    %c0_0 = arith.constant 0 : index
    %0 = vector.load %arg1[%c0, %c0_0] : memref<16x1152xbf16, #tpu.memory_space<vmem>>, vector<16x1152xbf16>
    %c0_1 = arith.constant 0 : index
    %c0_2 = arith.constant 0 : index
    %1 = vector.load %arg2[%c0_1, %c0_2] : memref<1152x256xbf16, #tpu.memory_space<vmem>>, vector<1152x256xbf16>
    %cst = arith.constant dense<0.000000e+00> : vector<16x256xf32>
    %2 = tpu.matmul %0, %1, %cst {dimension_numbers = #tpu.dot_dimension_numbers<[1], [0], [0], [1], [0, 0, 1, 1], [], []>} : vector<16x1152xbf16>, vector<1152x256xbf16>, vector<16x256xf32> -> vector<16x256xf32>
    %3 = tpu.iota {dimensions = array<i32: 1>} : vector<16x256xi32>
    %c128_i32 = arith.constant 128 : i32
    %4 = vector.broadcast %c128_i32 : i32 to vector<16x256xi32>
    %5 = arith.cmpi slt, %3, %4 : vector<16x256xi32>
    %cst_3 = arith.constant 0.000000e+00 : f32
    %6 = vector.broadcast %cst_3 : f32 to vector<16x256xf32>
    %7 = arith.maximumf %2, %6 : vector<16x256xf32>
    %8 = arith.select %5, %7, %2 : vector<16x256xi1>, vector<16x256xf32>
    %9 = arith.truncf %8 : vector<16x256xf32> to vector<16x256xbf16>
    %c0_4 = arith.constant 0 : index
    %c0_5 = arith.constant 0 : index
    %10 = vector.load %arg3[%c0_4, %c0_5] : memref<16x256xbf16, #tpu.memory_space<vmem>>, vector<16x256xbf16>
    tpu.vector_store %arg3[%c0_4, %c0_5], %9 {strides = array<i32>} : memref<16x256xbf16, #tpu.memory_space<vmem>>, vector<16x256xbf16>,
    return
  }
  func.func @transform_0(%arg0: i32) -> (i32, i32) {
    %c0_i32 = arith.constant 0 : i32
    %c0_i32_0 = arith.constant 0 : i32
    return %arg0, %c0_i32 : i32, i32
  }
  func.func @transform_1(%arg0: i32) -> (i32, i32) {
    %c0_i32 = arith.constant 0 : i32
    %c0_i32_0 = arith.constant 0 : i32
    %c0_i32_1 = arith.constant 0 : i32
    return %c0_i32, %c0_i32_0 : i32, i32
  }
  func.func @transform_2(%arg0: i32) -> (i32, i32) {
    %c0_i32 = arith.constant 0 : i32
    %c0_i32_0 = arith.constant 0 : i32
    return %arg0, %c0_i32 : i32, i32
  }
}

</mosaic_0001>

<llo_original>
// kernel: student_resnet_forward.12
$region0: #{student_resnet_forward.12}
  #allocation0 [shape = 'u32[]', space=smem, size = 0x4, offset = 0x4, fixed_abs, tag = 'smem constant byte address 0x4 - core index']
  #allocation1 [shape = 'u32[144,128]{1,0:T(1,128)}', space=vmem, size = 0x12000, scoped, tag = 'internal scratch']
  %s0 = inlined_call_operand.vmem [shape: bf16[512,256], index: 0, kind: input, shape index: {}]
  %s1 = inlined_call_operand.vmem [shape: bf16[256,128], index: 1, kind: input, shape index: {}]
  %s2 = inlined_call_operand.vmem [shape: bf16[512,128], index: 2, kind: output, shape index: {}]
  %s3 = sld [smem:[#allocation0]]
  $region41: #{student_resnet_forward.12} parent=0
    _
  %s5 = ssub.s32 1, %s3
  %s6 = scalar_select 0, %s5, %s3
  loop: start=0, step=1, limit=4
  $region2: #{student_resnet_forward.12} parent=0 // loop_pre_header
    _
  $region3: #{student_resnet_forward.12} parent=0 // loop_header
    %s8 = sphi 0, %s12
    %p9 = scmp.ge.s32.totalorder %s8, 4
    %s18 = sphi 0, %s20
    %s21 = sphi 0, %s18
    %s22 = sphi 0, %s21
    %s38 = sphi 0, %s22
    %s42 = sphi 0, %s42
    %s44 = sphi 0, %s42
    %s45 = sphi 0, %s44
    %s59 = sphi 0, %s45
    %s65 = sphi 0, %s67
    %s68 = sphi 0, %s65
    %s69 = sphi 0, %s68
    %s85 = sphi 0, %s69
  $region4: #{student_resnet_forward.12} parent=0 // loop_header_branch
    %11 = sbr.rel (%p9) target = $region8
  $region5: #{student_resnet_forward.12} parent=0 // loop_body
    %s13 = ssub.s32 %s8, 1
    %s14 = ssub.s32 %s8, 2
    %s15 = sadd.s32 %s8, 1
    %s16 = ssub.s32 %s8, %s15
    %p17 = scmp.eq.s32.totalorder %s16, 0
    %s19 = sadd.s32 %s18, 1
    %s20 = scalar_select %p17, %s18, %s19
    %p23 = pneg %p17
    %p24 = scmp.eq.s32.totalorder %s8, 1
    %p25 = por %p23, %p24
    %p26 = scmp.ne.s32.totalorder %s18, %s21
    %p27 = scmp.eq.s32.totalorder %s8, 0
    %p28 = por %p26, %p27
    %p29 = scmp.ne.s32.totalorder %s18, %s21
    %p30 = scmp.eq.s32.totalorder %s13, 1
    %p31 = por %p29, %p30
    %p32 = scmp.ne.s32.totalorder %s21, %s22
    %p33 = scmp.eq.s32.totalorder %s13, 0
    %p34 = por %p32, %p33
    %p35 = scmp.ne.s32.totalorder %s21, %s22
    %p36 = scmp.eq.s32.totalorder %s14, 1
    %p37 = por %p35, %p36
    %p39 = scmp.ne.s32.totalorder %s22, %s38
    %p40 = scmp.eq.s32.totalorder %s14, 0
    %p41 = por %p39, %p40
    %s43 = sadd.s32 %s42, 1
    %p46 = scmp.eq.s32.totalorder %s8, 1
    %p47 = scmp.ne.s32.totalorder %s42, %s44
    %p48 = scmp.eq.s32.totalorder %s8, 0
    %p49 = por %p47, %p48
    %p50 = scmp.ne.s32.totalorder %s42, %s44
    %p51 = scmp.eq.s32.totalorder %s13, 1
    %p52 = por %p50, %p51
    %p53 = scmp.ne.s32.totalorder %s44, %s45
    %p54 = scmp.eq.s32.totalorder %s13, 0
    %p55 = por %p53, %p54
    %p56 = scmp.ne.s32.totalorder %s44, %s45
    %p57 = scmp.eq.s32.totalorder %s14, 1
    %p58 = por %p56, %p57
    %p60 = scmp.ne.s32.totalorder %s45, %s59
    %p61 = scmp.eq.s32.totalorder %s14, 0
    %p62 = por %p60, %p61
    %s63 = ssub.s32 %s8, %s15
    %p64 = scmp.eq.s32.totalorder %s63, 0
    %s66 = sadd.s32 %s65, 1
    %s67 = scalar_select %p64, %s65, %s66
    %p70 = pneg %p64
    %p71 = scmp.eq.s32.totalorder %s8, 1
    %p72 = por %p70, %p71
    %p73 = scmp.ne.s32.totalorder %s65, %s68
    %p74 = scmp.eq.s32.totalorder %s8, 0
    %p75 = por %p73, %p74
    %p76 = scmp.ne.s32.totalorder %s65, %s68
    %p77 = scmp.eq.s32.totalorder %s13, 1
    %p78 = por %p76, %p77
    %p79 = scmp.ne.s32.totalorder %s68, %s69
    %p80 = scmp.eq.s32.totalorder %s13, 0
    %p81 = por %p79, %p80
    %p82 = scmp.ne.s32.totalorder %s68, %s69
    %p83 = scmp.eq.s32.totalorder %s14, 1
    %p84 = por %p82, %p83
    %p86 = scmp.ne.s32.totalorder %s69, %s85
    %p87 = scmp.eq.s32.totalorder %s14, 0
    %p88 = por %p86, %p87
    %p89 = scmp.le.s32.totalorder 1, %s8
    %p90 = scmp.lt.s32.totalorder %s8, 3
    %p91 = pnand %p89, %p90
    %p92 = pneg %p91
    // Predicated region
    $region9: #{student_resnet_forward.12} parent=5 // pred_check
      _
    $region10: #{student_resnet_forward.12} parent=5 // pred_check_branch
      %94 = sbr.rel (%p91) target = $region12
    $region11: #{student_resnet_forward.12} parent=5 // pred_region
      %s95 = ssub.s32 %s8, 1
      // Predicated region
      $region13: #{student_resnet_forward.12} parent=11 // pred_check
        %p96 = pneg %p55
      $region14: #{student_resnet_forward.12} parent=11 // pred_check_branch
        %98 = sbr.rel (%p96) target = $region16
      $region15: #{student_resnet_forward.12} parent=11 // pred_region
        _
      $region16: #{student_resnet_forward.12} parent=11 // pred_fallthru
        _
    $region12: #{student_resnet_forward.12} parent=5 // pred_fallthru
      _
    %p99 = scmp.lt.s32.totalorder %s8, 2
    // Predicated region
    $region17: #{student_resnet_forward.12} parent=5 // pred_check
      %p100 = pneg %p99
    $region18: #{student_resnet_forward.12} parent=5 // pred_check_branch
      %102 = sbr.rel (%p100) target = $region20
    $region19: #{student_resnet_forward.12} parent=5 // pred_region
      // Predicated region
      $region21: #{student_resnet_forward.12} parent=19 // pred_check
        %p103 = pneg %p28
      $region22: #{student_resnet_forward.12} parent=19 // pred_check_branch
        %105 = sbr.rel (%p103) target = $region24
      $region23: #{student_resnet_forward.12} parent=19 // pred_region
        %s106 = smul.u32 32, %s8
        %p107 = scmp.lt.s32.totalorder %s106, 63
        %s108 = scalar_select %p107, %s106, 63
        %s109 = smul.addr %s108, 2
        %s110 = smul.addr %s109, 4
        %s111 = scalar_lea.vmem %s0, %s110
        %s112 = smul.u32 32, %s8
      $region24: #{student_resnet_forward.12} parent=19 // pred_fallthru
        _
    $region20: #{student_resnet_forward.12} parent=5 // pred_fallthru
      _
    %p113 = scmp.le.s32.totalorder 1, %s8
    %p114 = scmp.lt.s32.totalorder %s8, 3
    %p115 = pnand %p113, %p114
    %p116 = pneg %p115
    // Predicated region
    $region25: #{student_resnet_forward.12} parent=5 // pred_check
      _
    $region26: #{student_resnet_forward.12} parent=5 // pred_check_branch
      %118 = sbr.rel (%p115) target = $region28
    $region27: #{student_resnet_forward.12} parent=5 // pred_region
      %s119 = ssub.s32 %s8, 1
      %s120 = smul.u32 32, %s13
      %p121 = scmp.lt.s32.totalorder %s120, 63
      %s122 = scalar_select %p121, %s120, 63
      %s123 = smul.addr %s122, 2
      %s124 = smul.addr %s123, 4
      %s125 = scalar_lea.vmem %s0, %s124
      %p126 = pneg %p34
      %p127 = pneg %p31
      %p128 = pneg %p55
      %p129 = pneg %p52
      %p130 = pneg %p81
      %p131 = pneg %p78
      %s132 = smul.u32 32, %s13
      %p133 = scmp.lt.s32.totalorder %s132, 63
      %s134 = scalar_select %p133, %s132, 63
      %s135 = smul.addr %s134, 4
      %s136 = scalar_lea.vmem %s2, %s135
      %s137 = smul.u32 32, %s13
      %p138 = scmp.lt.s32.totalorder %s137, 63
      %s139 = scalar_select %p138, %s137, 63
      %s140 = smul.addr %s139, 2
      %s141 = smul.addr %s140, 4
      %s142 = scalar_lea.vmem %s0, %s141
      %s143 = smul.u32 32, %s13
      %s144 = smul.u32 32, %s13
      %p145 = scmp.lt.s32.totalorder %s144, 63
      %s146 = scalar_select %p145, %s144, 63
      %s147 = smul.addr %s146, 4
      %s148 = scalar_lea.vmem %s2, %s147
      %s149 = smul.u32 32, %s13
      %v151 = vld [vmem:[%s142] sm:$0xff]
      %v152 = vld [vmem:[%s142 + $0x8] sm:$0xff]
      %v153 = vld [vmem:[%s142 + $0x10] sm:$0xff]
      %v154 = vld [vmem:[%s142 + $0x18] sm:$0xff]
      %v155 = vld [vmem:[%s142 + $0x20] sm:$0xff]
      %v156 = vld [vmem:[%s142 + $0x28] sm:$0xff]
      %v157 = vld [vmem:[%s142 + $0x30] sm:$0xff]
      %v158 = vld [vmem:[%s142 + $0x38] sm:$0xff]
      %v159 = vld [vmem:[%s142 + $0x40] sm:$0xff]
      %v160 = vld [vmem:[%s142 + $0x48] sm:$0xff]
      %v161 = vld [vmem:[%s142 + $0x50] sm:$0xff]
      %v162 = vld [vmem:[%s142 + $0x58] sm:$0xff]
      %v163 = vld [vmem:[%s142 + $0x60] sm:$0xff]
      %v164 = vld [vmem:[%s142 + $0x68] sm:$0xff]
      %v165 = vld [vmem:[%s142 + $0x70] sm:$0xff]
      %v166 = vld [vmem:[%s142 + $0x78] sm:$0xff]
      %v167 = vld [vmem:[%s142 + $0x80] sm:$0xff]
      %v168 = vld [vmem:[%s142 + $0x88] sm:$0xff]
      %v169 = vld [vmem:[%s142 + $0x90] sm:$0xff]
      %v170 = vld [vmem:[%s142 + $0x98] sm:$0xff]
      %v171 = vld [vmem:[%s142 + $0xa0] sm:$0xff]
      %v172 = vld [vmem:[%s142 + $0xa8] sm:$0xff]
      %v173 = vld [vmem:[%s142 + $0xb0] sm:$0xff]
      %v174 = vld [vmem:[%s142 + $0xb8] sm:$0xff]
      %v175 = vld [vmem:[%s142 + $0xc0] sm:$0xff]
      %v176 = vld [vmem:[%s142 + $0xc8] sm:$0xff]
      %v177 = vld [vmem:[%s142 + $0xd0] sm:$0xff]
      %v178 = vld [vmem:[%s142 + $0xd8] sm:$0xff]
      %v179 = vld [vmem:[%s142 + $0xe0] sm:$0xff]
      %v180 = vld [vmem:[%s142 + $0xe8] sm:$0xff]
      %v181 = vld [vmem:[%s142 + $0xf0] sm:$0xff]
      %v182 = vld [vmem:[%s142 + $0xf8] sm:$0xff]
      %v183 = vld [vmem:[%s1] sm:$0xf]
      %v184 = vld [vmem:[%s1 + $0x4] sm:$0xf]
      %v185 = vld [vmem:[%s1 + $0x8] sm:$0xf]
      %v186 = vld [vmem:[%s1 + $0xc] sm:$0xf]
      %v187 = vld [vmem:[%s1 + $0x10] sm:$0xf]
      %v188 = vld [vmem:[%s1 + $0x14] sm:$0xf]
      %v189 = vld [vmem:[%s1 + $0x18] sm:$0xf]
      %v190 = vld [vmem:[%s1 + $0x1c] sm:$0xf]
      %v191 = vld [vmem:[%s1 + $0x20] sm:$0xf]
      %v192 = vld [vmem:[%s1 + $0x24] sm:$0xf]
      %v193 = vld [vmem:[%s1 + $0x28] sm:$0xf]
      %v194 = vld [vmem:[%s1 + $0x2c] sm:$0xf]
      %v195 = vld [vmem:[%s1 + $0x30] sm:$0xf]
      %v196 = vld [vmem:[%s1 + $0x34] sm:$0xf]
      %v197 = vld [vmem:[%s1 + $0x38] sm:$0xf]
      %v198 = vld [vmem:[%s1 + $0x3c] sm:$0xf]
      %v199 = vld [vmem:[%s1 + $0x40] sm:$0xf]
      %v200 = vld [vmem:[%s1 + $0x44] sm:$0xf]
      %v201 = vld [vmem:[%s1 + $0x48] sm:$0xf]
      %v202 = vld [vmem:[%s1 + $0x4c] sm:$0xf]
      %v203 = vld [vmem:[%s1 + $0x50] sm:$0xf]
      %v204 = vld [vmem:[%s1 + $0x54] sm:$0xf]
      %v205 = vld [vmem:[%s1 + $0x58] sm:$0xf]
      %v206 = vld [vmem:[%s1 + $0x5c] sm:$0xf]
      %v207 = vld [vmem:[%s1 + $0x60] sm:$0xf]
      %v208 = vld [vmem:[%s1 + $0x64] sm:$0xf]
      %v209 = vld [vmem:[%s1 + $0x68] sm:$0xf]
      %v210 = vld [vmem:[%s1 + $0x6c] sm:$0xf]
      %v211 = vld [vmem:[%s1 + $0x70] sm:$0xf]
      %v212 = vld [vmem:[%s1 + $0x74] sm:$0xf]
      %v213 = vld [vmem:[%s1 + $0x78] sm:$0xf]
      %v214 = vld [vmem:[%s1 + $0x7c] sm:$0xf]
      %v247 = vunpack.c.l.b16 %v151
      %v248 = vunpack.c.h.b16 %v151
      %v249 = vunpack.c.l.b16 %v152
      %v250 = vunpack.c.h.b16 %v152
      %v251 = vunpack.c.l.b16 %v153
      %v252 = vunpack.c.h.b16 %v153
      %v253 = vunpack.c.l.b16 %v154
      %v254 = vunpack.c.h.b16 %v154
      %v255 = vunpack.c.l.b16 %v155
      %v256 = vunpack.c.h.b16 %v155
      %v257 = vunpack.c.l.b16 %v156
      %v258 = vunpack.c.h.b16 %v156
      %v259 = vunpack.c.l.b16 %v157
      %v260 = vunpack.c.h.b16 %v157
      %v261 = vunpack.c.l.b16 %v158
      %v262 = vunpack.c.h.b16 %v158
      %v263 = vunpack.c.l.b16 %v159
      %v264 = vunpack.c.h.b16 %v159
      %v265 = vunpack.c.l.b16 %v160
      %v266 = vunpack.c.h.b16 %v160
      %v267 = vunpack.c.l.b16 %v161
      %v268 = vunpack.c.h.b16 %v161
      %v269 = vunpack.c.l.b16 %v162
      %v270 = vunpack.c.h.b16 %v162
      %v271 = vunpack.c.l.b16 %v163
      %v272 = vunpack.c.h.b16 %v163
      %v273 = vunpack.c.l.b16 %v164
      %v274 = vunpack.c.h.b16 %v164
      %v275 = vunpack.c.l.b16 %v165
      %v276 = vunpack.c.h.b16 %v165
      %v277 = vunpack.c.l.b16 %v166
      %v278 = vunpack.c.h.b16 %v166
      %v279 = vunpack.c.l.b16 %v167
      %v280 = vunpack.c.h.b16 %v167
      %v281 = vunpack.c.l.b16 %v168
      %v282 = vunpack.c.h.b16 %v168
      %v283 = vunpack.c.l.b16 %v169
      %v284 = vunpack.c.h.b16 %v169
      %v285 = vunpack.c.l.b16 %v170
      %v286 = vunpack.c.h.b16 %v170
      %v287 = vunpack.c.l.b16 %v171
      %v288 = vunpack.c.h.b16 %v171
      %v289 = vunpack.c.l.b16 %v172
      %v290 = vunpack.c.h.b16 %v172
      %v291 = vunpack.c.l.b16 %v173
      %v292 = vunpack.c.h.b16 %v173
      %v293 = vunpack.c.l.b16 %v174
      %v294 = vunpack.c.h.b16 %v174
      %v295 = vunpack.c.l.b16 %v175
      %v296 = vunpack.c.h.b16 %v175
      %v297 = vunpack.c.l.b16 %v176
      %v298 = vunpack.c.h.b16 %v176
      %v299 = vunpack.c.l.b16 %v177
      %v300 = vunpack.c.h.b16 %v177
      %v301 = vunpack.c.l.b16 %v178
      %v302 = vunpack.c.h.b16 %v178
      %v303 = vunpack.c.l.b16 %v179
      %v304 = vunpack.c.h.b16 %v179
      %v305 = vunpack.c.l.b16 %v180
      %v306 = vunpack.c.h.b16 %v180
      %v307 = vunpack.c.l.b16 %v181
      %v308 = vunpack.c.h.b16 %v181
      %v309 = vunpack.c.l.b16 %v182
      %v310 = vunpack.c.h.b16 %v182
      %v311 = vpack.c.b16 %v249, %v247
      %v312 = vpack.c.b16 %v250, %v248
      %v313 = vpack.c.b16 %v253, %v251
      %v314 = vpack.c.b16 %v254, %v252
      %v315 = vpack.c.b16 %v257, %v255
      %v316 = vpack.c.b16 %v258, %v256
      %v317 = vpack.c.b16 %v261, %v259
      %v318 = vpack.c.b16 %v262, %v260
      %v319 = vpack.c.b16 %v265, %v263
      %v320 = vpack.c.b16 %v266, %v264
      %v321 = vpack.c.b16 %v269, %v267
      %v322 = vpack.c.b16 %v270, %v268
      %v323 = vpack.c.b16 %v273, %v271
      %v324 = vpack.c.b16 %v274, %v272
      %v325 = vpack.c.b16 %v277, %v275
      %v326 = vpack.c.b16 %v278, %v276
      %v327 = vpack.c.b16 %v281, %v279
      %v328 = vpack.c.b16 %v282, %v280
      %v329 = vpack.c.b16 %v285, %v283
      %v330 = vpack.c.b16 %v286, %v284
      %v331 = vpack.c.b16 %v289, %v287
      %v332 = vpack.c.b16 %v290, %v288
      %v333 = vpack.c.b16 %v293, %v291
      %v334 = vpack.c.b16 %v294, %v292
      %v335 = vpack.c.b16 %v297, %v295
      %v336 = vpack.c.b16 %v298, %v296
      %v337 = vpack.c.b16 %v301, %v299
      %v338 = vpack.c.b16 %v302, %v300
      %v339 = vpack.c.b16 %v305, %v303
      %v340 = vpack.c.b16 %v306, %v304
      %v341 = vpack.c.b16 %v309, %v307
      %v342 = vpack.c.b16 %v310, %v308
      %v407 = vunpack.c.l.b16 %v183
      %v408 = vunpack.c.l.b16 %v184
      %v409 = vunpack.c.l.b16 %v185
      %v410 = vunpack.c.l.b16 %v186
      %v411 = vunpack.c.l.b16 %v187
      %v412 = vunpack.c.l.b16 %v188
      %v413 = vunpack.c.l.b16 %v189
      %v414 = vunpack.c.l.b16 %v190
      %v415 = vunpack.c.l.b16 %v191
      %v416 = vunpack.c.l.b16 %v192
      %v417 = vunpack.c.l.b16 %v193
      %v418 = vunpack.c.l.b16 %v194
      %v419 = vunpack.c.l.b16 %v195
      %v420 = vunpack.c.l.b16 %v196
      %v421 = vunpack.c.l.b16 %v197
      %v422 = vunpack.c.l.b16 %v198
      %v423 = vunpack.c.l.b16 %v199
      %v424 = vunpack.c.l.b16 %v200
      %v425 = vunpack.c.l.b16 %v201
      %v426 = vunpack.c.l.b16 %v202
      %v427 = vunpack.c.l.b16 %v203
      %v428 = vunpack.c.l.b16 %v204
      %v429 = vunpack.c.l.b16 %v205
      %v430 = vunpack.c.l.b16 %v206
      %v431 = vunpack.c.l.b16 %v207
      %v432 = vunpack.c.l.b16 %v208
      %v433 = vunpack.c.l.b16 %v209
      %v434 = vunpack.c.l.b16 %v210
      %v435 = vunpack.c.l.b16 %v211
      %v436 = vunpack.c.l.b16 %v212
      %v437 = vunpack.c.l.b16 %v213
      %v438 = vunpack.c.l.b16 %v214
      %v439 = vpack.c.b16 %v408, %v407
      %v440 = vpack.c.b16 %v410, %v409
      %v441 = vpack.c.b16 %v412, %v411
      %v442 = vpack.c.b16 %v414, %v413
      %v443 = vpack.c.b16 %v416, %v415
      %v444 = vpack.c.b16 %v418, %v417
      %v445 = vpack.c.b16 %v420, %v419
      %v446 = vpack.c.b16 %v422, %v421
      %v447 = vpack.c.b16 %v424, %v423
      %v448 = vpack.c.b16 %v426, %v425
      %v449 = vpack.c.b16 %v428, %v427
      %v450 = vpack.c.b16 %v430, %v429
      %v451 = vpack.c.b16 %v432, %v431
      %v452 = vpack.c.b16 %v434, %v433
      %v453 = vpack.c.b16 %v436, %v435
      %v454 = vpack.c.b16 %v438, %v437
      %471 = vmatprep.subr.bf16.mxu0 0
      %472 = vmatpush1.bf16.msra.mxu0 %v446
      %473 = vmatprep.subr.bf16.mxu0 0
      %474 = vmatpush1.bf16.msra.mxu0 %v445
      %475 = vmatprep.subr.bf16.mxu0 0
      %476 = vmatpush1.bf16.msra.mxu0 %v444
      %477 = vmatprep.subr.bf16.mxu0 0
      %478 = vmatpush1.bf16.msra.mxu0 %v443
      %479 = vmatprep.subr.bf16.mxu0 0
      %480 = vmatpush1.bf16.msra.mxu0 %v442
      %481 = vmatprep.subr.bf16.mxu0 0
      %482 = vmatpush1.bf16.msra.mxu0 %v441
      %483 = vmatprep.subr.bf16.mxu0 0
      %484 = vmatpush1.bf16.msra.mxu0 %v440
      %485 = vmatprep.subr.bf16.mxu0 0
      %486 = vmatpush1.bf16.msra.mxu0 %v439
      %487 = vmatprep.subr.bf16.mxu0 0
      %488 = vmatpush2.bf16.msra.mxu0 %v454
      %489 = vmatprep.subr.bf16.mxu0 0
      %490 = vmatpush2.bf16.msra.mxu0 %v453
      %491 = vmatprep.subr.bf16.mxu0 0
      %492 = vmatpush2.bf16.msra.mxu0 %v452
      %493 = vmatprep.subr.bf16.mxu0 0
      %494 = vmatpush2.bf16.msra.mxu0 %v451
      %495 = vmatprep.subr.bf16.mxu0 0
      %496 = vmatpush2.bf16.msra.mxu0 %v450
      %497 = vmatprep.subr.bf16.mxu0 0
      %498 = vmatpush2.bf16.msra.mxu0 %v449
      %499 = vmatprep.subr.bf16.mxu0 0
      %500 = vmatpush2.bf16.msra.mxu0 %v448
      %501 = vmatprep.subr.bf16.mxu0 0
      %502 = vmatpush2.bf16.msra.mxu0 %v447
      %503 = vmatprep.mubr.bf16.mxu0 %v312
      %504 = vmatmul.mubr.bf16.gmra.mxu0 %v311
      %v505 = vpop.f32.mrf.mxu0
      %v506 = vadd.f32 0.0, %v505
      %v507 = vpop.f32.mrf.mxu0
      %v508 = vpop.f32.mrf.mxu0
      %v509 = vadd.f32 0.0, %v508
      %v510 = vpop.f32.mrf.mxu0
      %511 = vmatprep.mubr.bf16.mxu0 %v314
      %512 = vmatmul.mubr.bf16.gmra.mxu0 %v313
      %v513 = vpop.f32.mrf.mxu0
      %v514 = vadd.f32 0.0, %v513
      %v515 = vpop.f32.mrf.mxu0
      %v516 = vpop.f32.mrf.mxu0
      %v517 = vadd.f32 0.0, %v516
      %v518 = vpop.f32.mrf.mxu0
      %519 = vmatprep.mubr.bf16.mxu0 %v316
      %520 = vmatmul.mubr.bf16.gmra.mxu0 %v315
      %v521 = vpop.f32.mrf.mxu0
      %v522 = vadd.f32 0.0, %v521
      %v523 = vpop.f32.mrf.mxu0
      %v524 = vpop.f32.mrf.mxu0
      %v525 = vadd.f32 0.0, %v524
      %v526 = vpop.f32.mrf.mxu0
      %527 = vmatprep.mubr.bf16.mxu0 %v318
      %528 = vmatmul.mubr.bf16.gmra.mxu0 %v317
      %v529 = vpop.f32.mrf.mxu0
      %v530 = vadd.f32 0.0, %v529
      %v531 = vpop.f32.mrf.mxu0
      %v532 = vpop.f32.mrf.mxu0
      %v533 = vadd.f32 0.0, %v532
      %v534 = vpop.f32.mrf.mxu0
      %535 = vmatprep.mubr.bf16.mxu0 %v320
      %536 = vmatmul.mubr.bf16.gmra.mxu0 %v319
      %v537 = vpop.f32.mrf.mxu0
      %v538 = vadd.f32 0.0, %v537
      %v539 = vpop.f32.mrf.mxu0
      %v540 = vpop.f32.mrf.mxu0
      %v541 = vadd.f32 0.0, %v540
      %v542 = vpop.f32.mrf.mxu0
      %543 = vmatprep.mubr.bf16.mxu0 %v322
      %544 = vmatmul.mubr.bf16.gmra.mxu0 %v321
      %v545 = vpop.f32.mrf.mxu0
      %v546 = vadd.f32 0.0, %v545
      %v547 = vpop.f32.mrf.mxu0
      %v548 = vpop.f32.mrf.mxu0
      %v549 = vadd.f32 0.0, %v548
      %v550 = vpop.f32.mrf.mxu0
      %551 = vmatprep.mubr.bf16.mxu0 %v324
      %552 = vmatmul.mubr.bf16.gmra.mxu0 %v323
      %v553 = vpop.f32.mrf.mxu0
      %v554 = vadd.f32 0.0, %v553
      %v555 = vpop.f32.mrf.mxu0
      %v556 = vpop.f32.mrf.mxu0
      %v557 = vadd.f32 0.0, %v556
      %v558 = vpop.f32.mrf.mxu0
      %559 = vmatprep.mubr.bf16.mxu0 %v326
      %560 = vmatmul.mubr.bf16.gmra.mxu0 %v325
      %v561 = vpop.f32.mrf.mxu0
      %v562 = vadd.f32 0.0, %v561
      %v563 = vpop.f32.mrf.mxu0
      %v564 = vpop.f32.mrf.mxu0
      %v565 = vadd.f32 0.0, %v564
      %v566 = vpop.f32.mrf.mxu0
      %567 = vmatprep.mubr.bf16.mxu0 %v328
      %568 = vmatmul.mubr.bf16.gmra.mxu0 %v327
      %v569 = vpop.f32.mrf.mxu0
      %v570 = vadd.f32 0.0, %v569
      %v571 = vpop.f32.mrf.mxu0
      %v572 = vpop.f32.mrf.mxu0
      %v573 = vadd.f32 0.0, %v572
      %v574 = vpop.f32.mrf.mxu0
      %575 = vmatprep.mubr.bf16.mxu0 %v330
      %576 = vmatmul.mubr.bf16.gmra.mxu0 %v329
      %v577 = vpop.f32.mrf.mxu0
      %v578 = vadd.f32 0.0, %v577
      %v579 = vpop.f32.mrf.mxu0
      %v580 = vpop.f32.mrf.mxu0
      %v581 = vadd.f32 0.0, %v580
      %v582 = vpop.f32.mrf.mxu0
      %583 = vmatprep.mubr.bf16.mxu0 %v332
      %584 = vmatmul.mubr.bf16.gmra.mxu0 %v331
      %v585 = vpop.f32.mrf.mxu0
      %v586 = vadd.f32 0.0, %v585
      %v587 = vpop.f32.mrf.mxu0
      %v588 = vpop.f32.mrf.mxu0
      %v589 = vadd.f32 0.0, %v588
      %v590 = vpop.f32.mrf.mxu0
      %591 = vmatprep.mubr.bf16.mxu0 %v334
      %592 = vmatmul.mubr.bf16.gmra.mxu0 %v333
      %v593 = vpop.f32.mrf.mxu0
      %v594 = vadd.f32 0.0, %v593
      %v595 = vpop.f32.mrf.mxu0
      %v596 = vpop.f32.mrf.mxu0
      %v597 = vadd.f32 0.0, %v596
      %v598 = vpop.f32.mrf.mxu0
      %599 = vmatprep.mubr.bf16.mxu0 %v336
      %600 = vmatmul.mubr.bf16.gmra.mxu0 %v335
      %v601 = vpop.f32.mrf.mxu0
      %v602 = vadd.f32 0.0, %v601
      %v603 = vpop.f32.mrf.mxu0
      %v604 = vpop.f32.mrf.mxu0
      %v605 = vadd.f32 0.0, %v604
      %v606 = vpop.f32.mrf.mxu0
      %607 = vmatprep.mubr.bf16.mxu0 %v338
      %608 = vmatmul.mubr.bf16.gmra.mxu0 %v337
      %v609 = vpop.f32.mrf.mxu0
      %v610 = vadd.f32 0.0, %v609
      %v611 = vpop.f32.mrf.mxu0
      %v612 = vpop.f32.mrf.mxu0
      %v613 = vadd.f32 0.0, %v612
      %v614 = vpop.f32.mrf.mxu0
      %615 = vmatprep.mubr.bf16.mxu0 %v340
      %616 = vmatmul.mubr.bf16.gmra.mxu0 %v339
      %v617 = vpop.f32.mrf.mxu0
      %v618 = vadd.f32 0.0, %v617
      %v619 = vpop.f32.mrf.mxu0
      %v620 = vpop.f32.mrf.mxu0
      %v621 = vadd.f32 0.0, %v620
      %v622 = vpop.f32.mrf.mxu0
      %623 = vmatprep.mubr.bf16.mxu0 %v342
      %624 = vmatmul.mubr.bf16.gmra.mxu0 %v341
      %v625 = vpop.f32.mrf.mxu0
      %v626 = vadd.f32 0.0, %v625
      %v627 = vpop.f32.mrf.mxu0
      %v628 = vpop.f32.mrf.mxu0
      %v629 = vadd.f32 0.0, %v628
      %v630 = vpop.f32.mrf.mxu0
      %631 = vdwg.mxu0
      %v632 = vmax.f32 %v506, 0.0
      %v633 = vmax.f32 %v509, 0.0
      %v634 = vmax.f32 %v514, 0.0
      %v635 = vmax.f32 %v517, 0.0
      %v636 = vmax.f32 %v522, 0.0
      %v637 = vmax.f32 %v525, 0.0
      %v638 = vmax.f32 %v530, 0.0
      %v639 = vmax.f32 %v533, 0.0
      %v640 = vmax.f32 %v538, 0.0
      %v641 = vmax.f32 %v541, 0.0
      %v642 = vmax.f32 %v546, 0.0
      %v643 = vmax.f32 %v549, 0.0
      %v644 = vmax.f32 %v554, 0.0
      %v645 = vmax.f32 %v557, 0.0
      %v646 = vmax.f32 %v562, 0.0
      %v647 = vmax.f32 %v565, 0.0
      %v648 = vmax.f32 %v570, 0.0
      %v649 = vmax.f32 %v573, 0.0
      %v650 = vmax.f32 %v578, 0.0
      %v651 = vmax.f32 %v581, 0.0
      %v652 = vmax.f32 %v586, 0.0
      %v653 = vmax.f32 %v589, 0.0
      %v654 = vmax.f32 %v594, 0.0
      %v655 = vmax.f32 %v597, 0.0
      %v656 = vmax.f32 %v602, 0.0
      %v657 = vmax.f32 %v605, 0.0
      %v658 = vmax.f32 %v610, 0.0
      %v659 = vmax.f32 %v613, 0.0
      %v660 = vmax.f32 %v618, 0.0
      %v661 = vmax.f32 %v621, 0.0
      %v662 = vmax.f32 %v626, 0.0
      %v663 = vmax.f32 %v629, 0.0
      %v664 = vpack.c.bf16 %v633, %v632
      %v665 = vpack.c.bf16 %v635, %v634
      %v666 = vpack.c.bf16 %v637, %v636
      %v667 = vpack.c.bf16 %v639, %v638
      %v668 = vpack.c.bf16 %v641, %v640
      %v669 = vpack.c.bf16 %v643, %v642
      %v670 = vpack.c.bf16 %v645, %v644
      %v671 = vpack.c.bf16 %v647, %v646
      %v672 = vpack.c.bf16 %v649, %v648
      %v673 = vpack.c.bf16 %v651, %v650
      %v674 = vpack.c.bf16 %v653, %v652
      %v675 = vpack.c.bf16 %v655, %v654
      %v676 = vpack.c.bf16 %v657, %v656
      %v677 = vpack.c.bf16 %v659, %v658
      %v678 = vpack.c.bf16 %v661, %v660
      %v679 = vpack.c.bf16 %v663, %v662
      %v696 = vunpack.c.l.b16 %v664
      %v697 = vunpack.c.h.b16 %v664
      %v698 = vunpack.c.l.b16 %v665
      %v699 = vunpack.c.h.b16 %v665
      %v700 = vunpack.c.l.b16 %v666
      %v701 = vunpack.c.h.b16 %v666
      %v702 = vunpack.c.l.b16 %v667
      %v703 = vunpack.c.h.b16 %v667
      %v704 = vunpack.c.l.b16 %v668
      %v705 = vunpack.c.h.b16 %v668
      %v706 = vunpack.c.l.b16 %v669
      %v707 = vunpack.c.h.b16 %v669
      %v708 = vunpack.c.l.b16 %v670
      %v709 = vunpack.c.h.b16 %v670
      %v710 = vunpack.c.l.b16 %v671
      %v711 = vunpack.c.h.b16 %v671
      %v712 = vunpack.c.l.b16 %v672
      %v713 = vunpack.c.h.b16 %v672
      %v714 = vunpack.c.l.b16 %v673
      %v715 = vunpack.c.h.b16 %v673
      %v716 = vunpack.c.l.b16 %v674
      %v717 = vunpack.c.h.b16 %v674
      %v718 = vunpack.c.l.b16 %v675
      %v719 = vunpack.c.h.b16 %v675
      %v720 = vunpack.c.l.b16 %v676
      %v721 = vunpack.c.h.b16 %v676
      %v722 = vunpack.c.l.b16 %v677
      %v723 = vunpack.c.h.b16 %v677
      %v724 = vunpack.c.l.b16 %v678
      %v725 = vunpack.c.h.b16 %v678
      %v726 = vunpack.c.l.b16 %v679
      %v727 = vunpack.c.h.b16 %v679
      %v728 = vpack.c.b16 %v696, %v696
      %v729 = vpack.c.b16 %v697, %v697
      %v730 = vpack.c.b16 %v698, %v698
      %v731 = vpack.c.b16 %v699, %v699
      %v732 = vpack.c.b16 %v700, %v700
      %v733 = vpack.c.b16 %v701, %v701
      %v734 = vpack.c.b16 %v702, %v702
      %v735 = vpack.c.b16 %v703, %v703
      %v736 = vpack.c.b16 %v704, %v704
      %v737 = vpack.c.b16 %v705, %v705
      %v738 = vpack.c.b16 %v706, %v706
      %v739 = vpack.c.b16 %v707, %v707
      %v740 = vpack.c.b16 %v708, %v708
      %v741 = vpack.c.b16 %v709, %v709
      %v742 = vpack.c.b16 %v710, %v710
      %v743 = vpack.c.b16 %v711, %v711
      %v744 = vpack.c.b16 %v712, %v712
      %v745 = vpack.c.b16 %v713, %v713
      %v746 = vpack.c.b16 %v714, %v714
      %v747 = vpack.c.b16 %v715, %v715
      %v748 = vpack.c.b16 %v716, %v716
      %v749 = vpack.c.b16 %v717, %v717
      %v750 = vpack.c.b16 %v718, %v718
      %v751 = vpack.c.b16 %v719, %v719
      %v752 = vpack.c.b16 %v720, %v720
      %v753 = vpack.c.b16 %v721, %v721
      %v754 = vpack.c.b16 %v722, %v722
      %v755 = vpack.c.b16 %v723, %v723
      %v756 = vpack.c.b16 %v724, %v724
      %v757 = vpack.c.b16 %v725, %v725
      %v758 = vpack.c.b16 %v726, %v726
      %v759 = vpack.c.b16 %v727, %v727
      %792 = vst [vmem:[%s148] sm:$0xf] %v728
      %793 = vst [vmem:[%s148 + $0x4] sm:$0xf] %v729
      %794 = vst [vmem:[%s148 + $0x8] sm:$0xf] %v730
      %795 = vst [vmem:[%s148 + $0xc] sm:$0xf] %v731
      %796 = vst [vmem:[%s148 + $0x10] sm:$0xf] %v732
      %797 = vst [vmem:[%s148 + $0x14] sm:$0xf] %v733
      %798 = vst [vmem:[%s148 + $0x18] sm:$0xf] %v734
      %799 = vst [vmem:[%s148 + $0x1c] sm:$0xf] %v735
      %800 = vst [vmem:[%s148 + $0x20] sm:$0xf] %v736
      %801 = vst [vmem:[%s148 + $0x24] sm:$0xf] %v737
      %802 = vst [vmem:[%s148 + $0x28] sm:$0xf] %v738
      %803 = vst [vmem:[%s148 + $0x2c] sm:$0xf] %v739
      %804 = vst [vmem:[%s148 + $0x30] sm:$0xf] %v740
      %805 = vst [vmem:[%s148 + $0x34] sm:$0xf] %v741
      %806 = vst [vmem:[%s148 + $0x38] sm:$0xf] %v742
      %807 = vst [vmem:[%s148 + $0x3c] sm:$0xf] %v743
      %808 = vst [vmem:[%s148 + $0x40] sm:$0xf] %v744
      %809 = vst [vmem:[%s148 + $0x44] sm:$0xf] %v745
      %810 = vst [vmem:[%s148 + $0x48] sm:$0xf] %v746
      %811 = vst [vmem:[%s148 + $0x4c] sm:$0xf] %v747
      %812 = vst [vmem:[%s148 + $0x50] sm:$0xf] %v748
      %813 = vst [vmem:[%s148 + $0x54] sm:$0xf] %v749
      %814 = vst [vmem:[%s148 + $0x58] sm:$0xf] %v750
      %815 = vst [vmem:[%s148 + $0x5c] sm:$0xf] %v751
      %816 = vst [vmem:[%s148 + $0x60] sm:$0xf] %v752
      %817 = vst [vmem:[%s148 + $0x64] sm:$0xf] %v753
      %818 = vst [vmem:[%s148 + $0x68] sm:$0xf] %v754
      %819 = vst [vmem:[%s148 + $0x6c] sm:$0xf] %v755
      %820 = vst [vmem:[%s148 + $0x70] sm:$0xf] %v756
      %821 = vst [vmem:[%s148 + $0x74] sm:$0xf] %v757
      %822 = vst [vmem:[%s148 + $0x78] sm:$0xf] %v758
      %823 = vst [vmem:[%s148 + $0x7c] sm:$0xf] %v759
      %s824 = smul.u32 32, %s13
      %p825 = scmp.lt.s32.totalorder %s824, 63
      %s826 = scalar_select %p825, %s824, 63
      %s827 = smul.addr %s826, 4
      %s828 = scalar_lea.vmem %s2, %s827
      // Predicated region
      $region29: #{student_resnet_forward.12} parent=27 // pred_check
        %p829 = pneg %p78
      $region30: #{student_resnet_forward.12} parent=27 // pred_check_branch
        %831 = sbr.rel (%p829) target = $region32
      $region31: #{student_resnet_forward.12} parent=27 // pred_region
        %s832 = smul.u32 32, %s13
      $region32: #{student_resnet_forward.12} parent=27 // pred_fallthru
        _
    $region28: #{student_resnet_forward.12} parent=5 // pred_fallthru
      _
    %p833 = scmp.le.s32.totalorder 2, %s8
    // Predicated region
    $region33: #{student_resnet_forward.12} parent=5 // pred_check
      %p834 = pneg %p833
    $region34: #{student_resnet_forward.12} parent=5 // pred_check_branch
      %836 = sbr.rel (%p834) target = $region36
    $region35: #{student_resnet_forward.12} parent=5 // pred_region
      %s837 = ssub.s32 %s8, 2
      // Predicated region
      $region37: #{student_resnet_forward.12} parent=35 // pred_check
        %p838 = pneg %p84
      $region38: #{student_resnet_forward.12} parent=35 // pred_check_branch
        %840 = sbr.rel (%p838) target = $region40
      $region39: #{student_resnet_forward.12} parent=35 // pred_region
        %s841 = smul.u32 32, %s14
        %p842 = scmp.lt.s32.totalorder %s841, 63
        %s843 = scalar_select %p842, %s841, 63
        %s844 = smul.addr %s843, 4
        %s845 = scalar_lea.vmem %s2, %s844
      $region40: #{student_resnet_forward.12} parent=35 // pred_fallthru
        _
    $region36: #{student_resnet_forward.12} parent=5 // pred_fallthru
      _
  $region6: #{student_resnet_forward.12} parent=0 // loop_footer
    %s12 = sadd.s32 1, %s8
  $region7: #{student_resnet_forward.12} parent=0 // loop_footer_branch
    %7 = sbr.rel target = $region3
  $region8: #{student_resnet_forward.12} parent=0 // loop_exit
    _

// kernel: student_resnet_forward.13
$region0: #{student_resnet_forward.13}
  #allocation0 [shape = 'u32[]', space=smem, size = 0x4, offset = 0x4, fixed_abs, tag = 'smem constant byte address 0x4 - core index']
  #allocation1 [shape = 'u32[144,128]{1,0:T(1,128)}', space=vmem, size = 0x12000, scoped, tag = 'internal scratch']
  %s0 = inlined_call_operand.vmem [shape: bf16[18,18,2,64], index: 0, kind: input, shape index: {}]
  %s1 = inlined_call_operand.vmem [shape: bf16[8,8,2,64], index: 1, kind: output, shape index: {}]
  %s2 = sld [smem:[#allocation0]]
  $region14: #{student_resnet_forward.13} parent=0
    _
  %s4 = ssub.s32 1, %s2
  %s5 = scalar_select 0, %s4, %s2
  // Predicated region
  $region2: #{student_resnet_forward.13} parent=0 // pred_check
    _
  $region3: #{student_resnet_forward.13} parent=0 // pred_check_branch
    %7 = sbr.rel (0) target = $region5
  $region4: #{student_resnet_forward.13} parent=0 // pred_region
    _
  $region5: #{student_resnet_forward.13} parent=0 // pred_fallthru
    _
  %v8 = vld [vmem:[%s0] sm:$0x1]
  %v9 = vld [vmem:[%s0 + $0x1] sm:$0x1]
  %v10 = vld [vmem:[%s0 + $0x2] sm:$0x1]
  %v11 = vld [vmem:[%s0 + $0x3] sm:$0x1]
  %v12 = vld [vmem:[%s0 + $0x4] sm:$0x1]
  %v13 = vld [vmem:[%s0 + $0x5] sm:$0x1]
  %v14 = vld [vmem:[%s0 + $0x6] sm:$0x1]
  %v15 = vld [vmem:[%s0 + $0x7] sm:$0x1]
  %v16 = vld [vmem:[%s0 + $0x8] sm:$0x1]
  %v17 = vld [vmem:[%s0 + $0x9] sm:$0x1]
  %v18 = vld [vmem:[%s0 + $0xa] sm:$0x1]
  %v19 = vld [vmem:[%s0 + $0xb] sm:$0x1]
  %v20 = vld [vmem:[%s0 + $0xc] sm:$0x1]
  %v21 = vld [vmem:[%s0 + $0xd] sm:$0x1]
  %v22 = vld [vmem:[%s0 + $0xe] sm:$0x1]
  %v23 = vld [vmem:[%s0 + $0xf] sm:$0x1]
  %v24 = vld [vmem:[%s0 + $0x10] sm:$0x1]
  %v25 = vld [vmem:[%s0 + $0x12] sm:$0x1]
  %v26 = vld [vmem:[%s0 + $0x13] sm:$0x1]
  %v27 = vld [vmem:[%s0 + $0x14] sm:$0x1]
  %v28 = vld [vmem:[%s0 + $0x15] sm:$0x1]
  %v29 = vld [vmem:[%s0 + $0x16] sm:$0x1]
  %v30 = vld [vmem:[%s0 + $0x17] sm:$0x1]
  %v31 = vld [vmem:[%s0 + $0x18] sm:$0x1]
  %v32 = vld [vmem:[%s0 + $0x19] sm:$0x1]
  %v33 = vld [vmem:[%s0 + $0x1a] sm:$0x1]
  %v34 = vld [vmem:[%s0 + $0x1b] sm:$0x1]
  %v35 = vld [vmem:[%s0 + $0x1c] sm:$0x1]
  %v36 = vld [vmem:[%s0 + $0x1d] sm:$0x1]
  %v37 = vld [vmem:[%s0 + $0x1e] sm:$0x1]
  %v38 = vld [vmem:[%s0 + $0x1f] sm:$0x1]
  %v39 = vld [vmem:[%s0 + $0x20] sm:$0x1]
  %v40 = vld [vmem:[%s0 + $0x21] sm:$0x1]
  %v41 = vld [vmem:[%s0 + $0x22] sm:$0x1]
  %v42 = vld [vmem:[%s0 + $0x24] sm:$0x1]
  %v43 = vld [vmem:[%s0 + $0x25] sm:$0x1]
  %v44 = vld [vmem:[%s0 + $0x26] sm:$0x1]
  %v45 = vld [vmem:[%s0 + $0x27] sm:$0x1]
  %v46 = vld [vmem:[%s0 + $0x28] sm:$0x1]
  %v47 = vld [vmem:[%s0 + $0x29] sm:$0x1]
  %v48 = vld [vmem:[%s0 + $0x2a] sm:$0x1]
  %v49 = vld [vmem:[%s0 + $0x2b] sm:$0x1]
  %v50 = vld [vmem:[%s0 + $0x2c] sm:$0x1]
  %v51 = vld [vmem:[%s0 + $0x2d] sm:$0x1]
  %v52 = vld [vmem:[%s0 + $0x2e] sm:$0x1]
  %v53 = vld [vmem:[%s0 + $0x2f] sm:$0x1]
  %v54 = vld [vmem:[%s0 + $0x30] sm:$0x1]
  %v55 = vld [vmem:[%s0 + $0x31] sm:$0x1]
  %v56 = vld [vmem:[%s0 + $0x32] sm:$0x1]
  %v57 = vld [vmem:[%s0 + $0x33] sm:$0x1]
  %v58 = vld [vmem:[%s0 + $0x34] sm:$0x1]
  %v59 = vld [vmem:[%s0 + $0x36] sm:$0x1]
  %v60 = vld [vmem:[%s0 + $0x37] sm:$0x1]
  %v61 = vld [vmem:[%s0 + $0x38] sm:$0x1]
  %v62 = vld [vmem:[%s0 + $0x39] sm:$0x1]
  %v63 = vld [vmem:[%s0 + $0x3a] sm:$0x1]
  %v64 = vld [vmem:[%s0 + $0x3b] sm:$0x1]
  %v65 = vld [vmem:[%s0 + $0x3c] sm:$0x1]
  %v66 = vld [vmem:[%s0 + $0x3d] sm:$0x1]
  %v67 = vld [vmem:[%s0 + $0x3e] sm:$0x1]
  %v68 = vld [vmem:[%s0 + $0x3f] sm:$0x1]
  %v69 = vld [vmem:[%s0 + $0x40] sm:$0x1]
  %v70 = vld [vmem:[%s0 + $0x41] sm:$0x1]
  %v71 = vld [vmem:[%s0 + $0x42] sm:$0x1]
  %v72 = vld [vmem:[%s0 + $0x43] sm:$0x1]
  %v73 = vld [vmem:[%s0 + $0x44] sm:$0x1]
  %v74 = vld [vmem:[%s0 + $0x45] sm:$0x1]
  %v75 = vld [vmem:[%s0 + $0x46] sm:$0x1]
  %v76 = vld [vmem:[%s0 + $0x48] sm:$0x1]
  %v77 = vld [vmem:[%s0 + $0x49] sm:$0x1]
  %v78 = vld [vmem:[%s0 + $0x4a] sm:$0x1]
  %v79 = vld [vmem:[%s0 + $0x4b] sm:$0x1]
  %v80 = vld [vmem:[%s0 + $0x4c] sm:$0x1]
  %v81 = vld [vmem:[%s0 + $0x4d] sm:$0x1]
  %v82 = vld [vmem:[%s0 + $0x4e] sm:$0x1]
  %v83 = vld [vmem:[%s0 + $0x4f] sm:$0x1]
  %v84 = vld [vmem:[%s0 + $0x50] sm:$0x1]
  %v85 = vld [vmem:[%s0 + $0x51] sm:$0x1]
  %v86 = vld [vmem:[%s0 + $0x52] sm:$0x1]
  %v87 = vld [vmem:[%s0 + $0x53] sm:$0x1]
  %v88 = vld [vmem:[%s0 + $0x54] sm:$0x1]
  %v89 = vld [vmem:[%s0 + $0x55] sm:$0x1]
  %v90 = vld [vmem:[%s0 + $0x56] sm:$0x1]
  %v91 = vld [vmem:[%s0 + $0x57] sm:$0x1]
  %v92 = vld [vmem:[%s0 + $0x58] sm:$0x1]
  %v93 = vld [vmem:[%s0 + $0x5a] sm:$0x1]
  %v94 = vld [vmem:[%s0 + $0x5b] sm:$0x1]
  %v95 = vld [vmem:[%s0 + $0x5c] sm:$0x1]
  %v96 = vld [vmem:[%s0 + $0x5d] sm:$0x1]
  %v97 = vld [vmem:[%s0 + $0x5e] sm:$0x1]
  %v98 = vld [vmem:[%s0 + $0x5f] sm:$0x1]
  %v99 = vld [vmem:[%s0 + $0x60] sm:$0x1]
  %v100 = vld [vmem:[%s0 + $0x61] sm:$0x1]
  %v101 = vld [vmem:[%s0 + $0x62] sm:$0x1]
  %v102 = vld [vmem:[%s0 + $0x63] sm:$0x1]
  %v103 = vld [vmem:[%s0 + $0x64] sm:$0x1]
  %v104 = vld [vmem:[%s0 + $0x65] sm:$0x1]
  %v105 = vld [vmem:[%s0 + $0x66] sm:$0x1]
  %v106 = vld [vmem:[%s0 + $0x67] sm:$0x1]
  %v107 = vld [vmem:[%s0 + $0x68] sm:$0x1]
  %v108 = vld [vmem:[%s0 + $0x69] sm:$0x1]
  %v109 = vld [vmem:[%s0 + $0x6a] sm:$0x1]
  %v110 = vld [vmem:[%s0 + $0x6c] sm:$0x1]
  %v111 = vld [vmem:[%s0 + $0x6d] sm:$0x1]
  %v112 = vld [vmem:[%s0 + $0x6e] sm:$0x1]
  %v113 = vld [vmem:[%s0 + $0x6f] sm:$0x1]
  %v114 = vld [vmem:[%s0 + $0x70] sm:$0x1]
  %v115 = vld [vmem:[%s0 + $0x71] sm:$0x1]
  %v116 = vld [vmem:[%s0 + $0x72] sm:$0x1]
  %v117 = vld [vmem:[%s0 + $0x73] sm:$0x1]
  %v118 = vld [vmem:[%s0 + $0x74] sm:$0x1]
  %v119 = vld [vmem:[%s0 + $0x75] sm:$0x1]
  %v120 = vld [vmem:[%s0 + $0x76] sm:$0x1]
  %v121 = vld [vmem:[%s0 + $0x77] sm:$0x1]
  %v122 = vld [vmem:[%s0 + $0x78] sm:$0x1]
  %v123 = vld [vmem:[%s0 + $0x79] sm:$0x1]
  %v124 = vld [vmem:[%s0 + $0x7a] sm:$0x1]
  %v125 = vld [vmem:[%s0 + $0x7b] sm:$0x1]
  %v126 = vld [vmem:[%s0 + $0x7c] sm:$0x1]
  %v127 = vld [vmem:[%s0 + $0x7e] sm:$0x1]
  %v128 = vld [vmem:[%s0 + $0x7f] sm:$0x1]
  %v129 = vld [vmem:[%s0 + $0x80] sm:$0x1]
  %v130 = vld [vmem:[%s0 + $0x81] sm:$0x1]
  %v131 = vld [vmem:[%s0 + $0x82] sm:$0x1]
  %v132 = vld [vmem:[%s0 + $0x83] sm:$0x1]
  %v133 = vld [vmem:[%s0 + $0x84] sm:$0x1]
  %v134 = vld [vmem:[%s0 + $0x85] sm:$0x1]
  %v135 = vld [vmem:[%s0 + $0x86] sm:$0x1]
  %v136 = vld [vmem:[%s0 + $0x87] sm:$0x1]
  %v137 = vld [vmem:[%s0 + $0x88] sm:$0x1]
  %v138 = vld [vmem:[%s0 + $0x89] sm:$0x1]
  %v139 = vld [vmem:[%s0 + $0x8a] sm:$0x1]
  %v140 = vld [vmem:[%s0 + $0x8b] sm:$0x1]
  %v141 = vld [vmem:[%s0 + $0x8c] sm:$0x1]
  %v142 = vld [vmem:[%s0 + $0x8d] sm:$0x1]
  %v143 = vld [vmem:[%s0 + $0x8e] sm:$0x1]
  %v144 = vld [vmem:[%s0 + $0x90] sm:$0x1]
  %v145 = vld [vmem:[%s0 + $0x91] sm:$0x1]
  %v146 = vld [vmem:[%s0 + $0x92] sm:$0x1]
  %v147 = vld [vmem:[%s0 + $0x93] sm:$0x1]
  %v148 = vld [vmem:[%s0 + $0x94] sm:$0x1]
  %v149 = vld [vmem:[%s0 + $0x95] sm:$0x1]
  %v150 = vld [vmem:[%s0 + $0x96] sm:$0x1]
  %v151 = vld [vmem:[%s0 + $0x97] sm:$0x1]
  %v152 = vld [vmem:[%s0 + $0x98] sm:$0x1]
  %v153 = vld [vmem:[%s0 + $0x99] sm:$0x1]
  %v154 = vld [vmem:[%s0 + $0x9a] sm:$0x1]
  %v155 = vld [vmem:[%s0 + $0x9b] sm:$0x1]
  %v156 = vld [vmem:[%s0 + $0x9c] sm:$0x1]
  %v157 = vld [vmem:[%s0 + $0x9d] sm:$0x1]
  %v158 = vld [vmem:[%s0 + $0x9e] sm:$0x1]
  %v159 = vld [vmem:[%s0 + $0x9f] sm:$0x1]
  %v160 = vld [vmem:[%s0 + $0xa0] sm:$0x1]
  %v161 = vld [vmem:[%s0 + $0xa2] sm:$0x1]
  %v162 = vld [vmem:[%s0 + $0xa3] sm:$0x1]
  %v163 = vld [vmem:[%s0 + $0xa4] sm:$0x1]
  %v164 = vld [vmem:[%s0 + $0xa5] sm:$0x1]
  %v165 = vld [vmem:[%s0 + $0xa6] sm:$0x1]
  %v166 = vld [vmem:[%s0 + $0xa7] sm:$0x1]
  %v167 = vld [vmem:[%s0 + $0xa8] sm:$0x1]
  %v168 = vld [vmem:[%s0 + $0xa9] sm:$0x1]
  %v169 = vld [vmem:[%s0 + $0xaa] sm:$0x1]
  %v170 = vld [vmem:[%s0 + $0xab] sm:$0x1]
  %v171 = vld [vmem:[%s0 + $0xac] sm:$0x1]
  %v172 = vld [vmem:[%s0 + $0xad] sm:$0x1]
  %v173 = vld [vmem:[%s0 + $0xae] sm:$0x1]
  %v174 = vld [vmem:[%s0 + $0xaf] sm:$0x1]
  %v175 = vld [vmem:[%s0 + $0xb0] sm:$0x1]
  %v176 = vld [vmem:[%s0 + $0xb1] sm:$0x1]
  %v177 = vld [vmem:[%s0 + $0xb2] sm:$0x1]
  %v178 = vld [vmem:[%s0 + $0xb4] sm:$0x1]
  %v179 = vld [vmem:[%s0 + $0xb5] sm:$0x1]
  %v180 = vld [vmem:[%s0 + $0xb6] sm:$0x1]
  %v181 = vld [vmem:[%s0 + $0xb7] sm:$0x1]
  %v182 = vld [vmem:[%s0 + $0xb8] sm:$0x1]
  %v183 = vld [vmem:[%s0 + $0xb9] sm:$0x1]
  %v184 = vld [vmem:[%s0 + $0xba] sm:$0x1]
  %v185 = vld [vmem:[%s0 + $0xbb] sm:$0x1]
  %v186 = vld [vmem:[%s0 + $0xbc] sm:$0x1]
  %v187 = vld [vmem:[%s0 + $0xbd] sm:$0x1]
  %v188 = vld [vmem:[%s0 + $0xbe] sm:$0x1]
  %v189 = vld [vmem:[%s0 + $0xbf] sm:$0x1]
  %v190 = vld [vmem:[%s0 + $0xc0] sm:$0x1]
  %v191 = vld [vmem:[%s0 + $0xc1] sm:$0x1]
  %v192 = vld [vmem:[%s0 + $0xc2] sm:$0x1]
  %v193 = vld [vmem:[%s0 + $0xc3] sm:$0x1]
  %v194 = vld [vmem:[%s0 + $0xc4] sm:$0x1]
  %v195 = vld [vmem:[%s0 + $0xc6] sm:$0x1]
  %v196 = vld [vmem:[%s0 + $0xc7] sm:$0x1]
  %v197 = vld [vmem:[%s0 + $0xc8] sm:$0x1]
  %v198 = vld [vmem:[%s0 + $0xc9] sm:$0x1]
  %v199 = vld [vmem:[%s0 + $0xca] sm:$0x1]
  %v200 = vld [vmem:[%s0 + $0xcb] sm:$0x1]
  %v201 = vld [vmem:[%s0 + $0xcc] sm:$0x1]
  %v202 = vld [vmem:[%s0 + $0xcd] sm:$0x1]
  %v203 = vld [vmem:[%s0 + $0xce] sm:$0x1]
  %v204 = vld [vmem:[%s0 + $0xcf] sm:$0x1]
  %v205 = vld [vmem:[%s0 + $0xd0] sm:$0x1]
  %v206 = vld [vmem:[%s0 + $0xd1] sm:$0x1]
  %v207 = vld [vmem:[%s0 + $0xd2] sm:$0x1]
  %v208 = vld [vmem:[%s0 + $0xd3] sm:$0x1]
  %v209 = vld [vmem:[%s0 + $0xd4] sm:$0x1]
  %v210 = vld [vmem:[%s0 + $0xd5] sm:$0x1]
  %v211 = vld [vmem:[%s0 + $0xd6] sm:$0x1]
  %v212 = vld [vmem:[%s0 + $0xd8] sm:$0x1]
  %v213 = vld [vmem:[%s0 + $0xd9] sm:$0x1]
  %v214 = vld [vmem:[%s0 + $0xda] sm:$0x1]
  %v215 = vld [vmem:[%s0 + $0xdb] sm:$0x1]
  %v216 = vld [vmem:[%s0 + $0xdc] sm:$0x1]
  %v217 = vld [vmem:[%s0 + $0xdd] sm:$0x1]
  %v218 = vld [vmem:[%s0 + $0xde] sm:$0x1]
  %v219 = vld [vmem:[%s0 + $0xdf] sm:$0x1]
  %v220 = vld [vmem:[%s0 + $0xe0] sm:$0x1]
  %v221 = vld [vmem:[%s0 + $0xe1] sm:$0x1]
  %v222 = vld [vmem:[%s0 + $0xe2] sm:$0x1]
  %v223 = vld [vmem:[%s0 + $0xe3] sm:$0x1]
  %v224 = vld [vmem:[%s0 + $0xe4] sm:$0x1]
  %v225 = vld [vmem:[%s0 + $0xe5] sm:$0x1]
  %v226 = vld [vmem:[%s0 + $0xe6] sm:$0x1]
  %v227 = vld [vmem:[%s0 + $0xe7] sm:$0x1]
  %v228 = vld [vmem:[%s0 + $0xe8] sm:$0x1]
  %v229 = vld [vmem:[%s0 + $0xea] sm:$0x1]
  %v230 = vld [vmem:[%s0 + $0xeb] sm:$0x1]
  %v231 = vld [vmem:[%s0 + $0xec] sm:$0x1]
  %v232 = vld [vmem:[%s0 + $0xed] sm:$0x1]
  %v233 = vld [vmem:[%s0 + $0xee] sm:$0x1]
  %v234 = vld [vmem:[%s0 + $0xef] sm:$0x1]
  %v235 = vld [vmem:[%s0 + $0xf0] sm:$0x1]
  %v236 = vld [vmem:[%s0 + $0xf1] sm:$0x1]
  %v237 = vld [vmem:[%s0 + $0xf2] sm:$0x1]
  %v238 = vld [vmem:[%s0 + $0xf3] sm:$0x1]
  %v239 = vld [vmem:[%s0 + $0xf4] sm:$0x1]
  %v240 = vld [vmem:[%s0 + $0xf5] sm:$0x1]
  %v241 = vld [vmem:[%s0 + $0xf6] sm:$0x1]
  %v242 = vld [vmem:[%s0 + $0xf7] sm:$0x1]
  %v243 = vld [vmem:[%s0 + $0xf8] sm:$0x1]
  %v244 = vld [vmem:[%s0 + $0xf9] sm:$0x1]
  %v245 = vld [vmem:[%s0 + $0xfa] sm:$0x1]
  %v246 = vld [vmem:[%s0 + $0xfc] sm:$0x1]
  %v247 = vld [vmem:[%s0 + $0xfd] sm:$0x1]
  %v248 = vld [vmem:[%s0 + $0xfe] sm:$0x1]
  %v249 = vld [vmem:[%s0 + $0xff] sm:$0x1]
  %v250 = vld [vmem:[%s0 + $0x100] sm:$0x1]
  %v251 = vld [vmem:[%s0 + $0x101] sm:$0x1]
  %v252 = vld [vmem:[%s0 + $0x102] sm:$0x1]
  %v253 = vld [vmem:[%s0 + $0x103] sm:$0x1]
  %v254 = vld [vmem:[%s0 + $0x104] sm:$0x1]
  %v255 = vld [vmem:[%s0 + $0x105] sm:$0x1]
  %v256 = vld [vmem:[%s0 + $0x106] sm:$0x1]
  %v257 = vld [vmem:[%s0 + $0x107] sm:$0x1]
  %v258 = vld [vmem:[%s0 + $0x108] sm:$0x1]
  %v259 = vld [vmem:[%s0 + $0x109] sm:$0x1]
  %v260 = vld [vmem:[%s0 + $0x10a] sm:$0x1]
  %v261 = vld [vmem:[%s0 + $0x10b] sm:$0x1]
  %v262 = vld [vmem:[%s0 + $0x10c] sm:$0x1]
  %v263 = vld [vmem:[%s0 + $0x10e] sm:$0x1]
  %v264 = vld [vmem:[%s0 + $0x10f] sm:$0x1]
  %v265 = vld [vmem:[%s0 + $0x110] sm:$0x1]
  %v266 = vld [vmem:[%s0 + $0x111] sm:$0x1]
  %v267 = vld [vmem:[%s0 + $0x112] sm:$0x1]
  %v268 = vld [vmem:[%s0 + $0x113] sm:$0x1]
  %v269 = vld [vmem:[%s0 + $0x114] sm:$0x1]
  %v270 = vld [vmem:[%s0 + $0x115] sm:$0x1]
  %v271 = vld [vmem:[%s0 + $0x116] sm:$0x1]
  %v272 = vld [vmem:[%s0 + $0x117] sm:$0x1]
  %v273 = vld [vmem:[%s0 + $0x118] sm:$0x1]
  %v274 = vld [vmem:[%s0 + $0x119] sm:$0x1]
  %v275 = vld [vmem:[%s0 + $0x11a] sm:$0x1]
  %v276 = vld [vmem:[%s0 + $0x11b] sm:$0x1]
  %v277 = vld [vmem:[%s0 + $0x11c] sm:$0x1]
  %v278 = vld [vmem:[%s0 + $0x11d] sm:$0x1]
  %v279 = vld [vmem:[%s0 + $0x11e] sm:$0x1]
  %v280 = vld [vmem:[%s0 + $0x120] sm:$0x1]
  %v281 = vld [vmem:[%s0 + $0x121] sm:$0x1]
  %v282 = vld [vmem:[%s0 + $0x122] sm:$0x1]
  %v283 = vld [vmem:[%s0 + $0x123] sm:$0x1]
  %v284 = vld [vmem:[%s0 + $0x124] sm:$0x1]
  %v285 = vld [vmem:[%s0 + $0x125] sm:$0x1]
  %v286 = vld [vmem:[%s0 + $0x126] sm:$0x1]
  %v287 = vld [vmem:[%s0 + $0x127] sm:$0x1]
  %v288 = vld [vmem:[%s0 + $0x128] sm:$0x1]
  %v289 = vld [vmem:[%s0 + $0x129] sm:$0x1]
  %v290 = vld [vmem:[%s0 + $0x12a] sm:$0x1]
  %v291 = vld [vmem:[%s0 + $0x12b] sm:$0x1]
  %v292 = vld [vmem:[%s0 + $0x12c] sm:$0x1]
  %v293 = vld [vmem:[%s0 + $0x12d] sm:$0x1]
  %v294 = vld [vmem:[%s0 + $0x12e] sm:$0x1]
  %v295 = vld [vmem:[%s0 + $0x12f] sm:$0x1]
  %v296 = vld [vmem:[%s0 + $0x130] sm:$0x1]
  %v297 = vmax.bf16 %v8, %v9
  %v298 = vmax.bf16 %v10, %v11
  %v299 = vmax.bf16 %v12, %v13
  %v300 = vmax.bf16 %v14, %v15
  %v301 = vmax.bf16 %v16, %v17
  %v302 = vmax.bf16 %v18, %v19
  %v303 = vmax.bf16 %v20, %v21
  %v304 = vmax.bf16 %v22, %v23
  %v305 = vmax.bf16 %v25, %v26
  %v306 = vmax.bf16 %v27, %v28
  %v307 = vmax.bf16 %v29, %v30
  %v308 = vmax.bf16 %v31, %v32
  %v309 = vmax.bf16 %v33, %v34
  %v310 = vmax.bf16 %v35, %v36
  %v311 = vmax.bf16 %v37, %v38
  %v312 = vmax.bf16 %v39, %v40
  %v313 = vmax.bf16 %v42, %v43
  %v314 = vmax.bf16 %v44, %v45
  %v315 = vmax.bf16 %v46, %v47
  %v316 = vmax.bf16 %v48, %v49
  %v317 = vmax.bf16 %v50, %v51
  %v318 = vmax.bf16 %v52, %v53
  %v319 = vmax.bf16 %v54, %v55
  %v320 = vmax.bf16 %v56, %v57
  %v321 = vmax.bf16 %v59, %v60
  %v322 = vmax.bf16 %v61, %v62
  %v323 = vmax.bf16 %v63, %v64
  %v324 = vmax.bf16 %v65, %v66
  %v325 = vmax.bf16 %v67, %v68
  %v326 = vmax.bf16 %v69, %v70
  %v327 = vmax.bf16 %v71, %v72
  %v328 = vmax.bf16 %v73, %v74
  %v329 = vmax.bf16 %v76, %v77
  %v330 = vmax.bf16 %v78, %v79
  %v331 = vmax.bf16 %v80, %v81
  %v332 = vmax.bf16 %v82, %v83
  %v333 = vmax.bf16 %v84, %v85
  %v334 = vmax.bf16 %v86, %v87
  %v335 = vmax.bf16 %v88, %v89
  %v336 = vmax.bf16 %v90, %v91
  %v337 = vmax.bf16 %v93, %v94
  %v338 = vmax.bf16 %v95, %v96
  %v339 = vmax.bf16 %v97, %v98
  %v340 = vmax.bf16 %v99, %v100
  %v341 = vmax.bf16 %v101, %v102
  %v342 = vmax.bf16 %v103, %v104
  %v343 = vmax.bf16 %v105, %v106
  %v344 = vmax.bf16 %v107, %v108
  %v345 = vmax.bf16 %v110, %v111
  %v346 = vmax.bf16 %v112, %v113
  %v347 = vmax.bf16 %v114, %v115
  %v348 = vmax.bf16 %v116, %v117
  %v349 = vmax.bf16 %v118, %v119
  %v350 = vmax.bf16 %v120, %v121
  %v351 = vmax.bf16 %v122, %v123
  %v352 = vmax.bf16 %v124, %v125
  %v353 = vmax.bf16 %v127, %v128
  %v354 = vmax.bf16 %v129, %v130
  %v355 = vmax.bf16 %v131, %v132
  %v356 = vmax.bf16 %v133, %v134
  %v357 = vmax.bf16 %v135, %v136
  %v358 = vmax.bf16 %v137, %v138
  %v359 = vmax.bf16 %v139, %v140
  %v360 = vmax.bf16 %v141, %v142
  %v361 = vmax.bf16 %v144, %v145
  %v362 = vmax.bf16 %v146, %v147
  %v363 = vmax.bf16 %v148, %v149
  %v364 = vmax.bf16 %v150, %v151
  %v365 = vmax.bf16 %v152, %v153
  %v366 = vmax.bf16 %v154, %v155
  %v367 = vmax.bf16 %v156, %v157
  %v368 = vmax.bf16 %v158, %v159
  %v369 = vmax.bf16 %v161, %v162
  %v370 = vmax.bf16 %v163, %v164
  %v371 = vmax.bf16 %v165, %v166
  %v372 = vmax.bf16 %v167, %v168
  %v373 = vmax.bf16 %v169, %v170
  %v374 = vmax.bf16 %v171, %v172
  %v375 = vmax.bf16 %v173, %v174
  %v376 = vmax.bf16 %v175, %v176
  %v377 = vmax.bf16 %v178, %v179
  %v378 = vmax.bf16 %v180, %v181
  %v379 = vmax.bf16 %v182, %v183
  %v380 = vmax.bf16 %v184, %v185
  %v381 = vmax.bf16 %v186, %v187
  %v382 = vmax.bf16 %v188, %v189
  %v383 = vmax.bf16 %v190, %v191
  %v384 = vmax.bf16 %v192, %v193
  %v385 = vmax.bf16 %v195, %v196
  %v386 = vmax.bf16 %v197, %v198
  %v387 = vmax.bf16 %v199, %v200
  %v388 = vmax.bf16 %v201, %v202
  %v389 = vmax.bf16 %v203, %v204
  %v390 = vmax.bf16 %v205, %v206
  %v391 = vmax.bf16 %v207, %v208
  %v392 = vmax.bf16 %v209, %v210
  %v393 = vmax.bf16 %v212, %v213
  %v394 = vmax.bf16 %v214, %v215
  %v395 = vmax.bf16 %v216, %v217
  %v396 = vmax.bf16 %v218, %v219
  %v397 = vmax.bf16 %v220, %v221
  %v398 = vmax.bf16 %v222, %v223
  %v399 = vmax.bf16 %v224, %v225
  %v400 = vmax.bf16 %v226, %v227
  %v401 = vmax.bf16 %v229, %v230
  %v402 = vmax.bf16 %v231, %v232
  %v403 = vmax.bf16 %v233, %v234
  %v404 = vmax.bf16 %v235, %v236
  %v405 = vmax.bf16 %v237, %v238
  %v406 = vmax.bf16 %v239, %v240
  %v407 = vmax.bf16 %v241, %v242
  %v408 = vmax.bf16 %v243, %v244
  %v409 = vmax.bf16 %v246, %v247
  %v410 = vmax.bf16 %v248, %v249
  %v411 = vmax.bf16 %v250, %v251
  %v412 = vmax.bf16 %v252, %v253
  %v413 = vmax.bf16 %v254, %v255
  %v414 = vmax.bf16 %v256, %v257
  %v415 = vmax.bf16 %v258, %v259
  %v416 = vmax.bf16 %v260, %v261
  %v417 = vmax.bf16 %v263, %v264
  %v418 = vmax.bf16 %v265, %v266
  %v419 = vmax.bf16 %v267, %v268
  %v420 = vmax.bf16 %v269, %v270
  %v421 = vmax.bf16 %v271, %v272
  %v422 = vmax.bf16 %v273, %v274
  %v423 = vmax.bf16 %v275, %v276
  %v424 = vmax.bf16 %v277, %v278
  %v425 = vmax.bf16 %v280, %v281
  %v426 = vmax.bf16 %v282, %v283
  %v427 = vmax.bf16 %v284, %v285
  %v428 = vmax.bf16 %v286, %v287
  %v429 = vmax.bf16 %v288, %v289
  %v430 = vmax.bf16 %v290, %v291
  %v431 = vmax.bf16 %v292, %v293
  %v432 = vmax.bf16 %v294, %v295
  %v433 = vmax.bf16 %v297, %v10
  %v434 = vmax.bf16 %v298, %v12
  %v435 = vmax.bf16 %v299, %v14
  %v436 = vmax.bf16 %v300, %v16
  %v437 = vmax.bf16 %v301, %v18
  %v438 = vmax.bf16 %v302, %v20
  %v439 = vmax.bf16 %v303, %v22
  %v440 = vmax.bf16 %v304, %v24
  %v441 = vmax.bf16 %v305, %v27
  %v442 = vmax.bf16 %v306, %v29
  %v443 = vmax.bf16 %v307, %v31
  %v444 = vmax.bf16 %v308, %v33
  %v445 = vmax.bf16 %v309, %v35
  %v446 = vmax.bf16 %v310, %v37
  %v447 = vmax.bf16 %v311, %v39
  %v448 = vmax.bf16 %v312, %v41
  %v449 = vmax.bf16 %v313, %v44
  %v450 = vmax.bf16 %v314, %v46
  %v451 = vmax.bf16 %v315, %v48
  %v452 = vmax.bf16 %v316, %v50
  %v453 = vmax.bf16 %v317, %v52
  %v454 = vmax.bf16 %v318, %v54
  %v455 = vmax.bf16 %v319, %v56
  %v456 = vmax.bf16 %v320, %v58
  %v457 = vmax.bf16 %v321, %v61
  %v458 = vmax.bf16 %v322, %v63
  %v459 = vmax.bf16 %v323, %v65
  %v460 = vmax.bf16 %v324, %v67
  %v461 = vmax.bf16 %v325, %v69
  %v462 = vmax.bf16 %v326, %v71
  %v463 = vmax.bf16 %v327, %v73
  %v464 = vmax.bf16 %v328, %v75
  %v465 = vmax.bf16 %v329, %v78
  %v466 = vmax.bf16 %v330, %v80
  %v467 = vmax.bf16 %v331, %v82
  %v468 = vmax.bf16 %v332, %v84
  %v469 = vmax.bf16 %v333, %v86
  %v470 = vmax.bf16 %v334, %v88
  %v471 = vmax.bf16 %v335, %v90
  %v472 = vmax.bf16 %v336, %v92
  %v473 = vmax.bf16 %v337, %v95
  %v474 = vmax.bf16 %v338, %v97
  %v475 = vmax.bf16 %v339, %v99
  %v476 = vmax.bf16 %v340, %v101
  %v477 = vmax.bf16 %v341, %v103
  %v478 = vmax.bf16 %v342, %v105
  %v479 = vmax.bf16 %v343, %v107
  %v480 = vmax.bf16 %v344, %v109
  %v481 = vmax.bf16 %v345, %v112
  %v482 = vmax.bf16 %v346, %v114
  %v483 = vmax.bf16 %v347, %v116
  %v484 = vmax.bf16 %v348, %v118
  %v485 = vmax.bf16 %v349, %v120
  %v486 = vmax.bf16 %v350, %v122
  %v487 = vmax.bf16 %v351, %v124
  %v488 = vmax.bf16 %v352, %v126
  %v489 = vmax.bf16 %v353, %v129
  %v490 = vmax.bf16 %v354, %v131
  %v491 = vmax.bf16 %v355, %v133
  %v492 = vmax.bf16 %v356, %v135
  %v493 = vmax.bf16 %v357, %v137
  %v494 = vmax.bf16 %v358, %v139
  %v495 = vmax.bf16 %v359, %v141
  %v496 = vmax.bf16 %v360, %v143
  %v497 = vmax.bf16 %v361, %v146
  %v498 = vmax.bf16 %v362, %v148
  %v499 = vmax.bf16 %v363, %v150
  %v500 = vmax.bf16 %v364, %v152
  %v501 = vmax.bf16 %v365, %v154
  %v502 = vmax.bf16 %v366, %v156
  %v503 = vmax.bf16 %v367, %v158
  %v504 = vmax.bf16 %v368, %v160
  %v505 = vmax.bf16 %v369, %v163
  %v506 = vmax.bf16 %v370, %v165
  %v507 = vmax.bf16 %v371, %v167
  %v508 = vmax.bf16 %v372, %v169
  %v509 = vmax.bf16 %v373, %v171
  %v510 = vmax.bf16 %v374, %v173
  %v511 = vmax.bf16 %v375, %v175
  %v512 = vmax.bf16 %v376, %v177
  %v513 = vmax.bf16 %v377, %v180
  %v514 = vmax.bf16 %v378, %v182
  %v515 = vmax.bf16 %v379, %v184
  %v516 = vmax.bf16 %v380, %v186
  %v517 = vmax.bf16 %v381, %v188
  %v518 = vmax.bf16 %v382, %v190
  %v519 = vmax.bf16 %v383, %v192
  %v520 = vmax.bf16 %v384, %v194
  %v521 = vmax.bf16 %v385, %v197
  %v522 = vmax.bf16 %v386, %v199
  %v523 = vmax.bf16 %v387, %v201
  %v524 = vmax.bf16 %v388, %v203
  %v525 = vmax.bf16 %v389, %v205
  %v526 = vmax.bf16 %v390, %v207
  %v527 = vmax.bf16 %v391, %v209
  %v528 = vmax.bf16 %v392, %v211
  %v529 = vmax.bf16 %v393, %v214
  %v530 = vmax.bf16 %v394, %v216
  %v531 = vmax.bf16 %v395, %v218
  %v532 = vmax.bf16 %v396, %v220
  %v533 = vmax.bf16 %v397, %v222
  %v534 = vmax.bf16 %v398, %v224
  %v535 = vmax.bf16 %v399, %v226
  %v536 = vmax.bf16 %v400, %v228
  %v537 = vmax.bf16 %v401, %v231
  %v538 = vmax.bf16 %v402, %v233
  %v539 = vmax.bf16 %v403, %v235
  %v540 = vmax.bf16 %v404, %v237
  %v541 = vmax.bf16 %v405, %v239
  %v542 = vmax.bf16 %v406, %v241
  %v543 = vmax.bf16 %v407, %v243
  %v544 = vmax.bf16 %v408, %v245
  %v545 = vmax.bf16 %v409, %v248
  %v546 = vmax.bf16 %v410, %v250
  %v547 = vmax.bf16 %v411, %v252
  %v548 = vmax.bf16 %v412, %v254
  %v549 = vmax.bf16 %v413, %v256
  %v550 = vmax.bf16 %v414, %v258
  %v551 = vmax.bf16 %v415, %v260
  %v552 = vmax.bf16 %v416, %v262
  %v553 = vmax.bf16 %v417, %v265
  %v554 = vmax.bf16 %v418, %v267
  %v555 = vmax.bf16 %v419, %v269
  %v556 = vmax.bf16 %v420, %v271
  %v557 = vmax.bf16 %v421, %v273
  %v558 = vmax.bf16 %v422, %v275
  %v559 = vmax.bf16 %v423, %v277
  %v560 = vmax.bf16 %v424, %v279
  %v561 = vmax.bf16 %v425, %v282
  %v562 = vmax.bf16 %v426, %v284
  %v563 = vmax.bf16 %v427, %v286
  %v564 = vmax.bf16 %v428, %v288
  %v565 = vmax.bf16 %v429, %v290
  %v566 = vmax.bf16 %v430, %v292
  %v567 = vmax.bf16 %v431, %v294
  %v568 = vmax.bf16 %v432, %v296
  %v569 = vmax.bf16 %v433, %v441
  %v570 = vmax.bf16 %v434, %v442
  %v571 = vmax.bf16 %v435, %v443
  %v572 = vmax.bf16 %v436, %v444
  %v573 = vmax.bf16 %v437, %v445
  %v574 = vmax.bf16 %v438, %v446
  %v575 = vmax.bf16 %v439, %v447
  %v576 = vmax.bf16 %v440, %v448
  %v577 = vmax.bf16 %v449, %v457
  %v578 = vmax.bf16 %v450, %v458
  %v579 = vmax.bf16 %v451, %v459
  %v580 = vmax.bf16 %v452, %v460
  %v581 = vmax.bf16 %v453, %v461
  %v582 = vmax.bf16 %v454, %v462
  %v583 = vmax.bf16 %v455, %v463
  %v584 = vmax.bf16 %v456, %v464
  %v585 = vmax.bf16 %v465, %v473
  %v586 = vmax.bf16 %v466, %v474
  %v587 = vmax.bf16 %v467, %v475
  %v588 = vmax.bf16 %v468, %v476
  %v589 = vmax.bf16 %v469, %v477
  %v590 = vmax.bf16 %v470, %v478
  %v591 = vmax.bf16 %v471, %v479
  %v592 = vmax.bf16 %v472, %v480
  %v593 = vmax.bf16 %v481, %v489
  %v594 = vmax.bf16 %v482, %v490
  %v595 = vmax.bf16 %v483, %v491
  %v596 = vmax.bf16 %v484, %v492
  %v597 = vmax.bf16 %v485, %v493
  %v598 = vmax.bf16 %v486, %v494
  %v599 = vmax.bf16 %v487, %v495
  %v600 = vmax.bf16 %v488, %v496
  %v601 = vmax.bf16 %v497, %v505
  %v602 = vmax.bf16 %v498, %v506
  %v603 = vmax.bf16 %v499, %v507
  %v604 = vmax.bf16 %v500, %v508
  %v605 = vmax.bf16 %v501, %v509
  %v606 = vmax.bf16 %v502, %v510
  %v607 = vmax.bf16 %v503, %v511
  %v608 = vmax.bf16 %v504, %v512
  %v609 = vmax.bf16 %v513, %v521
  %v610 = vmax.bf16 %v514, %v522
  %v611 = vmax.bf16 %v515, %v523
  %v612 = vmax.bf16 %v516, %v524
  %v613 = vmax.bf16 %v517, %v525
  %v614 = vmax.bf16 %v518, %v526
  %v615 = vmax.bf16 %v519, %v527
  %v616 = vmax.bf16 %v520, %v528
  %v617 = vmax.bf16 %v529, %v537
  %v618 = vmax.bf16 %v530, %v538
  %v619 = vmax.bf16 %v531, %v539
  %v620 = vmax.bf16 %v532, %v540
  %v621 = vmax.bf16 %v533, %v541
  %v622 = vmax.bf16 %v534, %v542
  %v623 = vmax.bf16 %v535, %v543
  %v624 = vmax.bf16 %v536, %v544
  %v625 = vmax.bf16 %v545, %v553
  %v626 = vmax.bf16 %v546, %v554
  %v627 = vmax.bf16 %v547, %v555
  %v628 = vmax.bf16 %v548, %v556
  %v629 = vmax.bf16 %v549, %v557
  %v630 = vmax.bf16 %v550, %v558
  %v631 = vmax.bf16 %v551, %v559
  %v632 = vmax.bf16 %v552, %v560
  %v633 = vmax.bf16 %v569, %v449
  %v634 = vmax.bf16 %v570, %v450
  %v635 = vmax.bf16 %v571, %v451
  %v636 = vmax.bf16 %v572, %v452
  %v637 = vmax.bf16 %v573, %v453
  %v638 = vmax.bf16 %v574, %v454
  %v639 = vmax.bf16 %v575, %v455
  %v640 = vmax.bf16 %v576, %v456
  %v641 = vmax.bf16 %v577, %v465
  %v642 = vmax.bf16 %v578, %v466
  %v643 = vmax.bf16 %v579, %v467
  %v644 = vmax.bf16 %v580, %v468
  %v645 = vmax.bf16 %v581, %v469
  %v646 = vmax.bf16 %v582, %v470
  %v647 = vmax.bf16 %v583, %v471
  %v648 = vmax.bf16 %v584, %v472
  %v649 = vmax.bf16 %v585, %v481
  %v650 = vmax.bf16 %v586, %v482
  %v651 = vmax.bf16 %v587, %v483
  %v652 = vmax.bf16 %v588, %v484
  %v653 = vmax.bf16 %v589, %v485
  %v654 = vmax.bf16 %v590, %v486
  %v655 = vmax.bf16 %v591, %v487
  %v656 = vmax.bf16 %v592, %v488
  %v657 = vmax.bf16 %v593, %v497
  %v658 = vmax.bf16 %v594, %v498
  %v659 = vmax.bf16 %v595, %v499
  %v660 = vmax.bf16 %v596, %v500
  %v661 = vmax.bf16 %v597, %v501
  %v662 = vmax.bf16 %v598, %v502
  %v663 = vmax.bf16 %v599, %v503
  %v664 = vmax.bf16 %v600, %v504
  %v665 = vmax.bf16 %v601, %v513
  %v666 = vmax.bf16 %v602, %v514
  %v667 = vmax.bf16 %v603, %v515
  %v668 = vmax.bf16 %v604, %v516
  %v669 = vmax.bf16 %v605, %v517
  %v670 = vmax.bf16 %v606, %v518
  %v671 = vmax.bf16 %v607, %v519
  %v672 = vmax.bf16 %v608, %v520
  %v673 = vmax.bf16 %v609, %v529
  %v674 = vmax.bf16 %v610, %v530
  %v675 = vmax.bf16 %v611, %v531
  %v676 = vmax.bf16 %v612, %v532
  %v677 = vmax.bf16 %v613, %v533
  %v678 = vmax.bf16 %v614, %v534
  %v679 = vmax.bf16 %v615, %v535
  %v680 = vmax.bf16 %v616, %v536
  %v681 = vmax.bf16 %v617, %v545
  %v682 = vmax.bf16 %v618, %v546
  %v683 = vmax.bf16 %v619, %v547
  %v684 = vmax.bf16 %v620, %v548
  %v685 = vmax.bf16 %v621, %v549
  %v686 = vmax.bf16 %v622, %v550
  %v687 = vmax.bf16 %v623, %v551
  %v688 = vmax.bf16 %v624, %v552
  %v689 = vmax.bf16 %v625, %v561
  %v690 = vmax.bf16 %v626, %v562
  %v691 = vmax.bf16 %v627, %v563
  %v692 = vmax.bf16 %v628, %v564
  %v693 = vmax.bf16 %v629, %v565
  %v694 = vmax.bf16 %v630, %v566
  %v695 = vmax.bf16 %v631, %v567
  %v696 = vmax.bf16 %v632, %v568
  %vm697 = vcmask 516096
  %698 = vst.msk [vmem:[%s1] sm:$0x1] %vm697, %v633
  %699 = vst.msk [vmem:[%s1 + $0x1] sm:$0x1] %vm697, %v634
  %700 = vst.msk [vmem:[%s1 + $0x2] sm:$0x1] %vm697, %v635
  %701 = vst.msk [vmem:[%s1 + $0x3] sm:$0x1] %vm697, %v636
  %702 = vst.msk [vmem:[%s1 + $0x4] sm:$0x1] %vm697, %v637
  %703 = vst.msk [vmem:[%s1 + $0x5] sm:$0x1] %vm697, %v638
  %704 = vst.msk [vmem:[%s1 + $0x6] sm:$0x1] %vm697, %v639
  %705 = vst.msk [vmem:[%s1 + $0x7] sm:$0x1] %vm697, %v640
  %706 = vst.msk [vmem:[%s1 + $0x8] sm:$0x1] %vm697, %v641
  %707 = vst.msk [vmem:[%s1 + $0x9] sm:$0x1] %vm697, %v642
  %708 = vst.msk [vmem:[%s1 + $0xa] sm:$0x1] %vm697, %v643
  %709 = vst.msk [vmem:[%s1 + $0xb] sm:$0x1] %vm697, %v644
  %710 = vst.msk [vmem:[%s1 + $0xc] sm:$0x1] %vm697, %v645
  %711 = vst.msk [vmem:[%s1 + $0xd] sm:$0x1] %vm697, %v646
  %712 = vst.msk [vmem:[%s1 + $0xe] sm:$0x1] %vm697, %v647
  %713 = vst.msk [vmem:[%s1 + $0xf] sm:$0x1] %vm697, %v648
  %714 = vst.msk [vmem:[%s1 + $0x10] sm:$0x1] %vm697, %v649
  %715 = vst.msk [vmem:[%s1 + $0x11] sm:$0x1] %vm697, %v650
  %716 = vst.msk [vmem:[%s1 + $0x12] sm:$0x1] %vm697, %v651
  %717 = vst.msk [vmem:[%s1 + $0x13] sm:$0x1] %vm697, %v652
  %718 = vst.msk [vmem:[%s1 + $0x14] sm:$0x1] %vm697, %v653
  %719 = vst.msk [vmem:[%s1 + $0x15] sm:$0x1] %vm697, %v654
  %720 = vst.msk [vmem:[%s1 + $0x16] sm:$0x1] %vm697, %v655
  %721 = vst.msk [vmem:[%s1 + $0x17] sm:$0x1] %vm697, %v656
  %722 = vst.msk [vmem:[%s1 + $0x18] sm:$0x1] %vm697, %v657
  %723 = vst.msk [vmem:[%s1 + $0x19] sm:$0x1] %vm697, %v658
  %724 = vst.msk [vmem:[%s1 + $0x1a] sm:$0x1] %vm697, %v659
  %725 = vst.msk [vmem:[%s1 + $0x1b] sm:$0x1] %vm697, %v660
  %726 = vst.msk [vmem:[%s1 + $0x1c] sm:$0x1] %vm697, %v661
  %727 = vst.msk [vmem:[%s1 + $0x1d] sm:$0x1] %vm697, %v662
  %728 = vst.msk [vmem:[%s1 + $0x1e] sm:$0x1] %vm697, %v663
  %729 = vst.msk [vmem:[%s1 + $0x1f] sm:$0x1] %vm697, %v664
  %730 = vst.msk [vmem:[%s1 + $0x20] sm:$0x1] %vm697, %v665
  %731 = vst.msk [vmem:[%s1 + $0x21] sm:$0x1] %vm697, %v666
  %732 = vst.msk [vmem:[%s1 + $0x22] sm:$0x1] %vm697, %v667
  %733 = vst.msk [vmem:[%s1 + $0x23] sm:$0x1] %vm697, %v668
  %734 = vst.msk [vmem:[%s1 + $0x24] sm:$0x1] %vm697, %v669
  %735 = vst.msk [vmem:[%s1 + $0x25] sm:$0x1] %vm697, %v670
  %736 = vst.msk [vmem:[%s1 + $0x26] sm:$0x1] %vm697, %v671
  %737 = vst.msk [vmem:[%s1 + $0x27] sm:$0x1] %vm697, %v672
  %738 = vst.msk [vmem:[%s1 + $0x28] sm:$0x1] %vm697, %v673
  %739 = vst.msk [vmem:[%s1 + $0x29] sm:$0x1] %vm697, %v674
  %740 = vst.msk [vmem:[%s1 + $0x2a] sm:$0x1] %vm697, %v675
  %741 = vst.msk [vmem:[%s1 + $0x2b] sm:$0x1] %vm697, %v676
  %742 = vst.msk [vmem:[%s1 + $0x2c] sm:$0x1] %vm697, %v677
  %743 = vst.msk [vmem:[%s1 + $0x2d] sm:$0x1] %vm697, %v678
  %744 = vst.msk [vmem:[%s1 + $0x2e] sm:$0x1] %vm697, %v679
  %745 = vst.msk [vmem:[%s1 + $0x2f] sm:$0x1] %vm697, %v680
  %746 = vst.msk [vmem:[%s1 + $0x30] sm:$0x1] %vm697, %v681
  %747 = vst.msk [vmem:[%s1 + $0x31] sm:$0x1] %vm697, %v682
  %748 = vst.msk [vmem:[%s1 + $0x32] sm:$0x1] %vm697, %v683
  %749 = vst.msk [vmem:[%s1 + $0x33] sm:$0x1] %vm697, %v684
  %750 = vst.msk [vmem:[%s1 + $0x34] sm:$0x1] %vm697, %v685
  %751 = vst.msk [vmem:[%s1 + $0x35] sm:$0x1] %vm697, %v686
  %752 = vst.msk [vmem:[%s1 + $0x36] sm:$0x1] %vm697, %v687
  %753 = vst.msk [vmem:[%s1 + $0x37] sm:$0x1] %vm697, %v688
  %754 = vst.msk [vmem:[%s1 + $0x38] sm:$0x1] %vm697, %v689
  %755 = vst.msk [vmem:[%s1 + $0x39] sm:$0x1] %vm697, %v690
  %756 = vst.msk [vmem:[%s1 + $0x3a] sm:$0x1] %vm697, %v691
  %757 = vst.msk [vmem:[%s1 + $0x3b] sm:$0x1] %vm697, %v692
  %758 = vst.msk [vmem:[%s1 + $0x3c] sm:$0x1] %vm697, %v693
  %759 = vst.msk [vmem:[%s1 + $0x3d] sm:$0x1] %vm697, %v694
  %760 = vst.msk [vmem:[%s1 + $0x3e] sm:$0x1] %vm697, %v695
  %761 = vst.msk [vmem:[%s1 + $0x3f] sm:$0x1] %vm697, %v696
  // Predicated region
  $region6: #{student_resnet_forward.13} parent=0 // pred_check
    _
  $region7: #{student_resnet_forward.13} parent=0 // pred_check_branch
    %763 = sbr.rel (0) target = $region9
  $region8: #{student_resnet_forward.13} parent=0 // pred_region
    _
  $region9: #{student_resnet_forward.13} parent=0 // pred_fallthru
    _
  // Predicated region
  $region10: #{student_resnet_forward.13} parent=0 // pred_check
    _
  $region11: #{student_resnet_forward.13} parent=0 // pred_check_branch
    %765 = sbr.rel (0) target = $region13
  $region12: #{student_resnet_forward.13} parent=0 // pred_region
    _
  $region13: #{student_resnet_forward.13} parent=0 // pred_fallthru
    _

// kernel: student_resnet_forward.14
$region0: #{student_resnet_forward.14}
  #allocation0 [shape = 'u32[]', space=smem, size = 0x4, offset = 0x4, fixed_abs, tag = 'smem constant byte address 0x4 - core index']
  #allocation1 [shape = 'u32[144,128]{1,0:T(1,128)}', space=vmem, size = 0x12000, scoped, tag = 'internal scratch']
  %s0 = inlined_call_operand.vmem [shape: bf16[128,640], index: 0, kind: input, shape index: {}]
  %s1 = inlined_call_operand.vmem [shape: bf16[640,128], index: 1, kind: input, shape index: {}]
  %s2 = inlined_call_operand.vmem [shape: bf16[128,128], index: 2, kind: output, shape index: {}]
  %s3 = sld [smem:[#allocation0]]
  $region18: #{student_resnet_forward.14} parent=0
    _
  %s5 = ssub.s32 1, %s3
  %s6 = scalar_select 0, %s5, %s3
  // Predicated region
  $region2: #{student_resnet_forward.14} parent=0 // pred_check
    _
  $region3: #{student_resnet_forward.14} parent=0 // pred_check_branch
    %8 = sbr.rel (0) target = $region5
  $region4: #{student_resnet_forward.14} parent=0 // pred_region
    _
  $region5: #{student_resnet_forward.14} parent=0 // pred_fallthru
    _
  // Predicated region
  $region6: #{student_resnet_forward.14} parent=0 // pred_check
    _
  $region7: #{student_resnet_forward.14} parent=0 // pred_check_branch
    %10 = sbr.rel (0) target = $region9
  $region8: #{student_resnet_forward.14} parent=0 // pred_region
    _
  $region9: #{student_resnet_forward.14} parent=0 // pred_fallthru
    _
  %v12 = vld [vmem:[%s0] sm:$0xff]
  %v13 = vld [vmem:[%s0 + $0x8] sm:$0xff]
  %v14 = vld [vmem:[%s0 + $0x10] sm:$0xf]
  %v15 = vld [vmem:[%s0 + $0x14] sm:$0xff]
  %v16 = vld [vmem:[%s0 + $0x1c] sm:$0xff]
  %v17 = vld [vmem:[%s0 + $0x24] sm:$0xf]
  %v18 = vld [vmem:[%s0 + $0x28] sm:$0xff]
  %v19 = vld [vmem:[%s0 + $0x30] sm:$0xff]
  %v20 = vld [vmem:[%s0 + $0x38] sm:$0xf]
  %v21 = vld [vmem:[%s0 + $0x3c] sm:$0xff]
  %v22 = vld [vmem:[%s0 + $0x44] sm:$0xff]
  %v23 = vld [vmem:[%s0 + $0x4c] sm:$0xf]
  %v24 = vld [vmem:[%s0 + $0x50] sm:$0xff]
  %v25 = vld [vmem:[%s0 + $0x58] sm:$0xff]
  %v26 = vld [vmem:[%s0 + $0x60] sm:$0xf]
  %v27 = vld [vmem:[%s0 + $0x64] sm:$0xff]
  %v28 = vld [vmem:[%s0 + $0x6c] sm:$0xff]
  %v29 = vld [vmem:[%s0 + $0x74] sm:$0xf]
  %v30 = vld [vmem:[%s0 + $0x78] sm:$0xff]
  %v31 = vld [vmem:[%s0 + $0x80] sm:$0xff]
  %v32 = vld [vmem:[%s0 + $0x88] sm:$0xf]
  %v33 = vld [vmem:[%s0 + $0x8c] sm:$0xff]
  %v34 = vld [vmem:[%s0 + $0x94] sm:$0xff]
  %v35 = vld [vmem:[%s0 + $0x9c] sm:$0xf]
  %v36 = vld [vmem:[%s0 + $0xa0] sm:$0xff]
  %v37 = vld [vmem:[%s0 + $0xa8] sm:$0xff]
  %v38 = vld [vmem:[%s0 + $0xb0] sm:$0xf]
  %v39 = vld [vmem:[%s0 + $0xb4] sm:$0xff]
  %v40 = vld [vmem:[%s0 + $0xbc] sm:$0xff]
  %v41 = vld [vmem:[%s0 + $0xc4] sm:$0xf]
  %v42 = vld [vmem:[%s0 + $0xc8] sm:$0xff]
  %v43 = vld [vmem:[%s0 + $0xd0] sm:$0xff]
  %v44 = vld [vmem:[%s0 + $0xd8] sm:$0xf]
  %v45 = vld [vmem:[%s0 + $0xdc] sm:$0xff]
  %v46 = vld [vmem:[%s0 + $0xe4] sm:$0xff]
  %v47 = vld [vmem:[%s0 + $0xec] sm:$0xf]
  %v48 = vld [vmem:[%s0 + $0xf0] sm:$0xff]
  %v49 = vld [vmem:[%s0 + $0xf8] sm:$0xff]
  %v50 = vld [vmem:[%s0 + $0x100] sm:$0xf]
  %v51 = vld [vmem:[%s0 + $0x104] sm:$0xff]
  %v52 = vld [vmem:[%s0 + $0x10c] sm:$0xff]
  %v53 = vld [vmem:[%s0 + $0x114] sm:$0xf]
  %v54 = vld [vmem:[%s0 + $0x118] sm:$0xff]
  %v55 = vld [vmem:[%s0 + $0x120] sm:$0xff]
  %v56 = vld [vmem:[%s0 + $0x128] sm:$0xf]
  %v57 = vld [vmem:[%s0 + $0x12c] sm:$0xff]
  %v58 = vld [vmem:[%s0 + $0x134] sm:$0xff]
  %v59 = vld [vmem:[%s0 + $0x13c] sm:$0xf]
  %v60 = vld [vmem:[%s1] sm:$0xf]
  %v61 = vld [vmem:[%s1 + $0x4] sm:$0xf]
  %v62 = vld [vmem:[%s1 + $0x8] sm:$0xf]
  %v63 = vld [vmem:[%s1 + $0xc] sm:$0xf]
  %v64 = vld [vmem:[%s1 + $0x10] sm:$0xf]
  %v65 = vld [vmem:[%s1 + $0x14] sm:$0xf]
  %v66 = vld [vmem:[%s1 + $0x18] sm:$0xf]
  %v67 = vld [vmem:[%s1 + $0x1c] sm:$0xf]
  %v68 = vld [vmem:[%s1 + $0x20] sm:$0xf]
  %v69 = vld [vmem:[%s1 + $0x24] sm:$0xf]
  %v70 = vld [vmem:[%s1 + $0x28] sm:$0xf]
  %v71 = vld [vmem:[%s1 + $0x2c] sm:$0xf]
  %v72 = vld [vmem:[%s1 + $0x30] sm:$0xf]
  %v73 = vld [vmem:[%s1 + $0x34] sm:$0xf]
  %v74 = vld [vmem:[%s1 + $0x38] sm:$0xf]
  %v75 = vld [vmem:[%s1 + $0x3c] sm:$0xf]
  %v76 = vld [vmem:[%s1 + $0x40] sm:$0xf]
  %v77 = vld [vmem:[%s1 + $0x44] sm:$0xf]
  %v78 = vld [vmem:[%s1 + $0x48] sm:$0xf]
  %v79 = vld [vmem:[%s1 + $0x4c] sm:$0xf]
  %v80 = vld [vmem:[%s1 + $0x50] sm:$0xf]
  %v81 = vld [vmem:[%s1 + $0x54] sm:$0xf]
  %v82 = vld [vmem:[%s1 + $0x58] sm:$0xf]
  %v83 = vld [vmem:[%s1 + $0x5c] sm:$0xf]
  %v84 = vld [vmem:[%s1 + $0x60] sm:$0xf]
  %v85 = vld [vmem:[%s1 + $0x64] sm:$0xf]
  %v86 = vld [vmem:[%s1 + $0x68] sm:$0xf]
  %v87 = vld [vmem:[%s1 + $0x6c] sm:$0xf]
  %v88 = vld [vmem:[%s1 + $0x70] sm:$0xf]
  %v89 = vld [vmem:[%s1 + $0x74] sm:$0xf]
  %v90 = vld [vmem:[%s1 + $0x78] sm:$0xf]
  %v91 = vld [vmem:[%s1 + $0x7c] sm:$0xf]
  %v92 = vld [vmem:[%s1 + $0x80] sm:$0xf]
  %v93 = vld [vmem:[%s1 + $0x84] sm:$0xf]
  %v94 = vld [vmem:[%s1 + $0x88] sm:$0xf]
  %v95 = vld [vmem:[%s1 + $0x8c] sm:$0xf]
  %v96 = vld [vmem:[%s1 + $0x90] sm:$0xf]
  %v97 = vld [vmem:[%s1 + $0x94] sm:$0xf]
  %v98 = vld [vmem:[%s1 + $0x98] sm:$0xf]
  %v99 = vld [vmem:[%s1 + $0x9c] sm:$0xf]
  %v100 = vld [vmem:[%s1 + $0xa0] sm:$0xf]
  %v101 = vld [vmem:[%s1 + $0xa4] sm:$0xf]
  %v102 = vld [vmem:[%s1 + $0xa8] sm:$0xf]
  %v103 = vld [vmem:[%s1 + $0xac] sm:$0xf]
  %v104 = vld [vmem:[%s1 + $0xb0] sm:$0xf]
  %v105 = vld [vmem:[%s1 + $0xb4] sm:$0xf]
  %v106 = vld [vmem:[%s1 + $0xb8] sm:$0xf]
  %v107 = vld [vmem:[%s1 + $0xbc] sm:$0xf]
  %v108 = vld [vmem:[%s1 + $0xc0] sm:$0xf]
  %v109 = vld [vmem:[%s1 + $0xc4] sm:$0xf]
  %v110 = vld [vmem:[%s1 + $0xc8] sm:$0xf]
  %v111 = vld [vmem:[%s1 + $0xcc] sm:$0xf]
  %v112 = vld [vmem:[%s1 + $0xd0] sm:$0xf]
  %v113 = vld [vmem:[%s1 + $0xd4] sm:$0xf]
  %v114 = vld [vmem:[%s1 + $0xd8] sm:$0xf]
  %v115 = vld [vmem:[%s1 + $0xdc] sm:$0xf]
  %v116 = vld [vmem:[%s1 + $0xe0] sm:$0xf]
  %v117 = vld [vmem:[%s1 + $0xe4] sm:$0xf]
  %v118 = vld [vmem:[%s1 + $0xe8] sm:$0xf]
  %v119 = vld [vmem:[%s1 + $0xec] sm:$0xf]
  %v120 = vld [vmem:[%s1 + $0xf0] sm:$0xf]
  %v121 = vld [vmem:[%s1 + $0xf4] sm:$0xf]
  %v122 = vld [vmem:[%s1 + $0xf8] sm:$0xf]
  %v123 = vld [vmem:[%s1 + $0xfc] sm:$0xf]
  %v124 = vld [vmem:[%s1 + $0x100] sm:$0xf]
  %v125 = vld [vmem:[%s1 + $0x104] sm:$0xf]
  %v126 = vld [vmem:[%s1 + $0x108] sm:$0xf]
  %v127 = vld [vmem:[%s1 + $0x10c] sm:$0xf]
  %v128 = vld [vmem:[%s1 + $0x110] sm:$0xf]
  %v129 = vld [vmem:[%s1 + $0x114] sm:$0xf]
  %v130 = vld [vmem:[%s1 + $0x118] sm:$0xf]
  %v131 = vld [vmem:[%s1 + $0x11c] sm:$0xf]
  %v132 = vld [vmem:[%s1 + $0x120] sm:$0xf]
  %v133 = vld [vmem:[%s1 + $0x124] sm:$0xf]
  %v134 = vld [vmem:[%s1 + $0x128] sm:$0xf]
  %v135 = vld [vmem:[%s1 + $0x12c] sm:$0xf]
  %v136 = vld [vmem:[%s1 + $0x130] sm:$0xf]
  %v137 = vld [vmem:[%s1 + $0x134] sm:$0xf]
  %v138 = vld [vmem:[%s1 + $0x138] sm:$0xf]
  %v139 = vld [vmem:[%s1 + $0x13c] sm:$0xf]
  %v188 = vunpack.c.l.b16 %v12
  %v189 = vunpack.c.h.b16 %v12
  %v190 = vunpack.c.l.b16 %v13
  %v191 = vunpack.c.h.b16 %v13
  %v192 = vunpack.c.l.b16 %v14
  %v193 = vunpack.c.l.b16 %v15
  %v194 = vunpack.c.h.b16 %v15
  %v195 = vunpack.c.l.b16 %v16
  %v196 = vunpack.c.h.b16 %v16
  %v197 = vunpack.c.l.b16 %v17
  %v198 = vunpack.c.l.b16 %v18
  %v199 = vunpack.c.h.b16 %v18
  %v200 = vunpack.c.l.b16 %v19
  %v201 = vunpack.c.h.b16 %v19
  %v202 = vunpack.c.l.b16 %v20
  %v203 = vunpack.c.l.b16 %v21
  %v204 = vunpack.c.h.b16 %v21
  %v205 = vunpack.c.l.b16 %v22
  %v206 = vunpack.c.h.b16 %v22
  %v207 = vunpack.c.l.b16 %v23
  %v208 = vunpack.c.l.b16 %v24
  %v209 = vunpack.c.h.b16 %v24
  %v210 = vunpack.c.l.b16 %v25
  %v211 = vunpack.c.h.b16 %v25
  %v212 = vunpack.c.l.b16 %v26
  %v213 = vunpack.c.l.b16 %v27
  %v214 = vunpack.c.h.b16 %v27
  %v215 = vunpack.c.l.b16 %v28
  %v216 = vunpack.c.h.b16 %v28
  %v217 = vunpack.c.l.b16 %v29
  %v218 = vunpack.c.l.b16 %v30
  %v219 = vunpack.c.h.b16 %v30
  %v220 = vunpack.c.l.b16 %v31
  %v221 = vunpack.c.h.b16 %v31
  %v222 = vunpack.c.l.b16 %v32
  %v223 = vunpack.c.l.b16 %v33
  %v224 = vunpack.c.h.b16 %v33
  %v225 = vunpack.c.l.b16 %v34
  %v226 = vunpack.c.h.b16 %v34
  %v227 = vunpack.c.l.b16 %v35
  %v228 = vunpack.c.l.b16 %v36
  %v229 = vunpack.c.h.b16 %v36
  %v230 = vunpack.c.l.b16 %v37
  %v231 = vunpack.c.h.b16 %v37
  %v232 = vunpack.c.l.b16 %v38
  %v233 = vunpack.c.l.b16 %v39
  %v234 = vunpack.c.h.b16 %v39
  %v235 = vunpack.c.l.b16 %v40
  %v236 = vunpack.c.h.b16 %v40
  %v237 = vunpack.c.l.b16 %v41
  %v238 = vunpack.c.l.b16 %v42
  %v239 = vunpack.c.h.b16 %v42
  %v240 = vunpack.c.l.b16 %v43
  %v241 = vunpack.c.h.b16 %v43
  %v242 = vunpack.c.l.b16 %v44
  %v243 = vunpack.c.l.b16 %v45
  %v244 = vunpack.c.h.b16 %v45
  %v245 = vunpack.c.l.b16 %v46
  %v246 = vunpack.c.h.b16 %v46
  %v247 = vunpack.c.l.b16 %v47
  %v248 = vunpack.c.l.b16 %v48
  %v249 = vunpack.c.h.b16 %v48
  %v250 = vunpack.c.l.b16 %v49
  %v251 = vunpack.c.h.b16 %v49
  %v252 = vunpack.c.l.b16 %v50
  %v253 = vunpack.c.l.b16 %v51
  %v254 = vunpack.c.h.b16 %v51
  %v255 = vunpack.c.l.b16 %v52
  %v256 = vunpack.c.h.b16 %v52
  %v257 = vunpack.c.l.b16 %v53
  %v258 = vunpack.c.l.b16 %v54
  %v259 = vunpack.c.h.b16 %v54
  %v260 = vunpack.c.l.b16 %v55
  %v261 = vunpack.c.h.b16 %v55
  %v262 = vunpack.c.l.b16 %v56
  %v263 = vunpack.c.l.b16 %v57
  %v264 = vunpack.c.h.b16 %v57
  %v265 = vunpack.c.l.b16 %v58
  %v266 = vunpack.c.h.b16 %v58
  %v267 = vunpack.c.l.b16 %v59
  %v268 = vpack.c.b16 %v193, %v188
  %v269 = vpack.c.b16 %v194, %v189
  %v270 = vpack.c.b16 %v195, %v190
  %v271 = vpack.c.b16 %v196, %v191
  %v272 = vpack.c.b16 %v197, %v192
  %v273 = vpack.c.b16 %v203, %v198
  %v274 = vpack.c.b16 %v204, %v199
  %v275 = vpack.c.b16 %v205, %v200
  %v276 = vpack.c.b16 %v206, %v201
  %v277 = vpack.c.b16 %v207, %v202
  %v278 = vpack.c.b16 %v213, %v208
  %v279 = vpack.c.b16 %v214, %v209
  %v280 = vpack.c.b16 %v215, %v210
  %v281 = vpack.c.b16 %v216, %v211
  %v282 = vpack.c.b16 %v217, %v212
  %v283 = vpack.c.b16 %v223, %v218
  %v284 = vpack.c.b16 %v224, %v219
  %v285 = vpack.c.b16 %v225, %v220
  %v286 = vpack.c.b16 %v226, %v221
  %v287 = vpack.c.b16 %v227, %v222
  %v288 = vpack.c.b16 %v233, %v228
  %v289 = vpack.c.b16 %v234, %v229
  %v290 = vpack.c.b16 %v235, %v230
  %v291 = vpack.c.b16 %v236, %v231
  %v292 = vpack.c.b16 %v237, %v232
  %v293 = vpack.c.b16 %v243, %v238
  %v294 = vpack.c.b16 %v244, %v239
  %v295 = vpack.c.b16 %v245, %v240
  %v296 = vpack.c.b16 %v246, %v241
  %v297 = vpack.c.b16 %v247, %v242
  %v298 = vpack.c.b16 %v253, %v248
  %v299 = vpack.c.b16 %v254, %v249
  %v300 = vpack.c.b16 %v255, %v250
  %v301 = vpack.c.b16 %v256, %v251
  %v302 = vpack.c.b16 %v257, %v252
  %v303 = vpack.c.b16 %v263, %v258
  %v304 = vpack.c.b16 %v264, %v259
  %v305 = vpack.c.b16 %v265, %v260
  %v306 = vpack.c.b16 %v266, %v261
  %v307 = vpack.c.b16 %v267, %v262
  %v428 = vunpack.c.l.b16 %v60
  %v429 = vunpack.c.l.b16 %v61
  %v430 = vunpack.c.l.b16 %v62
  %v431 = vunpack.c.l.b16 %v63
  %v432 = vunpack.c.l.b16 %v64
  %v433 = vunpack.c.l.b16 %v65
  %v434 = vunpack.c.l.b16 %v66
  %v435 = vunpack.c.l.b16 %v67
  %v436 = vunpack.c.l.b16 %v68
  %v437 = vunpack.c.l.b16 %v69
  %v438 = vunpack.c.l.b16 %v70
  %v439 = vunpack.c.l.b16 %v71
  %v440 = vunpack.c.l.b16 %v72
  %v441 = vunpack.c.l.b16 %v73
  %v442 = vunpack.c.l.b16 %v74
  %v443 = vunpack.c.l.b16 %v75
  %v444 = vunpack.c.l.b16 %v76
  %v445 = vunpack.c.l.b16 %v77
  %v446 = vunpack.c.l.b16 %v78
  %v447 = vunpack.c.l.b16 %v79
  %v448 = vunpack.c.l.b16 %v80
  %v449 = vunpack.c.l.b16 %v81
  %v450 = vunpack.c.l.b16 %v82
  %v451 = vunpack.c.l.b16 %v83
  %v452 = vunpack.c.l.b16 %v84
  %v453 = vunpack.c.l.b16 %v85
  %v454 = vunpack.c.l.b16 %v86
  %v455 = vunpack.c.l.b16 %v87
  %v456 = vunpack.c.l.b16 %v88
  %v457 = vunpack.c.l.b16 %v89
  %v458 = vunpack.c.l.b16 %v90
  %v459 = vunpack.c.l.b16 %v91
  %v460 = vunpack.c.l.b16 %v92
  %v461 = vunpack.c.l.b16 %v93
  %v462 = vunpack.c.l.b16 %v94
  %v463 = vunpack.c.l.b16 %v95
  %v464 = vunpack.c.l.b16 %v96
  %v465 = vunpack.c.l.b16 %v97
  %v466 = vunpack.c.l.b16 %v98
  %v467 = vunpack.c.l.b16 %v99
  %v468 = vunpack.c.l.b16 %v100
  %v469 = vunpack.c.l.b16 %v101
  %v470 = vunpack.c.l.b16 %v102
  %v471 = vunpack.c.l.b16 %v103
  %v472 = vunpack.c.l.b16 %v104
  %v473 = vunpack.c.l.b16 %v105
  %v474 = vunpack.c.l.b16 %v106
  %v475 = vunpack.c.l.b16 %v107
  %v476 = vunpack.c.l.b16 %v108
  %v477 = vunpack.c.l.b16 %v109
  %v478 = vunpack.c.l.b16 %v110
  %v479 = vunpack.c.l.b16 %v111
  %v480 = vunpack.c.l.b16 %v112
  %v481 = vunpack.c.l.b16 %v113
  %v482 = vunpack.c.l.b16 %v114
  %v483 = vunpack.c.l.b16 %v115
  %v484 = vunpack.c.l.b16 %v116
  %v485 = vunpack.c.l.b16 %v117
  %v486 = vunpack.c.l.b16 %v118
  %v487 = vunpack.c.l.b16 %v119
  %v488 = vunpack.c.l.b16 %v120
  %v489 = vunpack.c.l.b16 %v121
  %v490 = vunpack.c.l.b16 %v122
  %v491 = vunpack.c.l.b16 %v123
  %v492 = vunpack.c.l.b16 %v124
  %v493 = vunpack.c.l.b16 %v125
  %v494 = vunpack.c.l.b16 %v126
  %v495 = vunpack.c.l.b16 %v127
  %v496 = vunpack.c.l.b16 %v128
  %v497 = vunpack.c.l.b16 %v129
  %v498 = vunpack.c.l.b16 %v130
  %v499 = vunpack.c.l.b16 %v131
  %v500 = vunpack.c.l.b16 %v132
  %v501 = vunpack.c.l.b16 %v133
  %v502 = vunpack.c.l.b16 %v134
  %v503 = vunpack.c.l.b16 %v135
  %v504 = vunpack.c.l.b16 %v136
  %v505 = vunpack.c.l.b16 %v137
  %v506 = vunpack.c.l.b16 %v138
  %v507 = vunpack.c.l.b16 %v139
  %v508 = vpack.c.b16 %v429, %v428
  %v509 = vpack.c.b16 %v431, %v430
  %v510 = vpack.c.b16 %v433, %v432
  %v511 = vpack.c.b16 %v435, %v434
  %v512 = vpack.c.b16 %v437, %v436
  %v513 = vpack.c.b16 %v439, %v438
  %v514 = vpack.c.b16 %v441, %v440
  %v515 = vpack.c.b16 %v443, %v442
  %v516 = vpack.c.b16 %v445, %v444
  %v517 = vpack.c.b16 %v447, %v446
  %v518 = vpack.c.b16 %v449, %v448
  %v519 = vpack.c.b16 %v451, %v450
  %v520 = vpack.c.b16 %v453, %v452
  %v521 = vpack.c.b16 %v455, %v454
  %v522 = vpack.c.b16 %v457, %v456
  %v523 = vpack.c.b16 %v459, %v458
  %v524 = vpack.c.b16 %v461, %v460
  %v525 = vpack.c.b16 %v463, %v462
  %v526 = vpack.c.b16 %v465, %v464
  %v527 = vpack.c.b16 %v467, %v466
  %v528 = vpack.c.b16 %v469, %v468
  %v529 = vpack.c.b16 %v471, %v470
  %v530 = vpack.c.b16 %v473, %v472
  %v531 = vpack.c.b16 %v475, %v474
  %v532 = vpack.c.b16 %v477, %v476
  %v533 = vpack.c.b16 %v479, %v478
  %v534 = vpack.c.b16 %v481, %v480
  %v535 = vpack.c.b16 %v483, %v482
  %v536 = vpack.c.b16 %v485, %v484
  %v537 = vpack.c.b16 %v487, %v486
  %v538 = vpack.c.b16 %v489, %v488
  %v539 = vpack.c.b16 %v491, %v490
  %v540 = vpack.c.b16 %v493, %v492
  %v541 = vpack.c.b16 %v495, %v494
  %v542 = vpack.c.b16 %v497, %v496
  %v543 = vpack.c.b16 %v499, %v498
  %v544 = vpack.c.b16 %v501, %v500
  %v545 = vpack.c.b16 %v503, %v502
  %v546 = vpack.c.b16 %v505, %v504
  %v547 = vpack.c.b16 %v507, %v506
  %588 = vmatprep.subr.bf16.mxu0 0
  %589 = vmatpush1.bf16.msra.mxu0 %v515
  %590 = vmatprep.subr.bf16.mxu0 0
  %591 = vmatpush1.bf16.msra.mxu0 %v514
  %592 = vmatprep.subr.bf16.mxu0 0
  %593 = vmatpush1.bf16.msra.mxu0 %v513
  %594 = vmatprep.subr.bf16.mxu0 0
  %595 = vmatpush1.bf16.msra.mxu0 %v512
  %596 = vmatprep.subr.bf16.mxu0 0
  %597 = vmatpush1.bf16.msra.mxu0 %v511
  %598 = vmatprep.subr.bf16.mxu0 0
  %599 = vmatpush1.bf16.msra.mxu0 %v510
  %600 = vmatprep.subr.bf16.mxu0 0
  %601 = vmatpush1.bf16.msra.mxu0 %v509
  %602 = vmatprep.subr.bf16.mxu0 0
  %603 = vmatpush1.bf16.msra.mxu0 %v508
  %604 = vmatprep.subr.bf16.mxu0 0
  %605 = vmatpush2.bf16.msra.mxu0 %v523
  %606 = vmatprep.subr.bf16.mxu0 0
  %607 = vmatpush2.bf16.msra.mxu0 %v522
  %608 = vmatprep.subr.bf16.mxu0 0
  %609 = vmatpush2.bf16.msra.mxu0 %v521
  %610 = vmatprep.subr.bf16.mxu0 0
  %611 = vmatpush2.bf16.msra.mxu0 %v520
  %612 = vmatprep.subr.bf16.mxu0 0
  %613 = vmatpush2.bf16.msra.mxu0 %v519
  %614 = vmatprep.subr.bf16.mxu0 0
  %615 = vmatpush2.bf16.msra.mxu0 %v518
  %616 = vmatprep.subr.bf16.mxu0 0
  %617 = vmatpush2.bf16.msra.mxu0 %v517
  %618 = vmatprep.subr.bf16.mxu0 0
  %619 = vmatpush2.bf16.msra.mxu0 %v516
  %620 = vmatprep.mubr.bf16.mxu0 %v269
  %621 = vmatmul.mubr.bf16.gmra.mxu0 %v268
  %v622 = vpop.f32.mrf.mxu0
  %v623 = vadd.f32 0.0, %v622
  %v624 = vpop.f32.mrf.mxu0
  %v625 = vpop.f32.mrf.mxu0
  %v626 = vadd.f32 0.0, %v625
  %v627 = vpop.f32.mrf.mxu0
  %628 = vmatprep.mubr.bf16.mxu0 %v274
  %629 = vmatmul.mubr.bf16.gmra.mxu0 %v273
  %v630 = vpop.f32.mrf.mxu0
  %v631 = vadd.f32 0.0, %v630
  %v632 = vpop.f32.mrf.mxu0
  %v633 = vpop.f32.mrf.mxu0
  %v634 = vadd.f32 0.0, %v633
  %v635 = vpop.f32.mrf.mxu0
  %636 = vmatprep.mubr.bf16.mxu0 %v279
  %637 = vmatmul.mubr.bf16.gmra.mxu0 %v278
  %v638 = vpop.f32.mrf.mxu0
  %v639 = vadd.f32 0.0, %v638
  %v640 = vpop.f32.mrf.mxu0
  %v641 = vpop.f32.mrf.mxu0
  %v642 = vadd.f32 0.0, %v641
  %v643 = vpop.f32.mrf.mxu0
  %644 = vmatprep.mubr.bf16.mxu0 %v284
  %645 = vmatmul.mubr.bf16.gmra.mxu0 %v283
  %v646 = vpop.f32.mrf.mxu0
  %v647 = vadd.f32 0.0, %v646
  %v648 = vpop.f32.mrf.mxu0
  %v649 = vpop.f32.mrf.mxu0
  %v650 = vadd.f32 0.0, %v649
  %v651 = vpop.f32.mrf.mxu0
  %652 = vmatprep.mubr.bf16.mxu0 %v289
  %653 = vmatmul.mubr.bf16.gmra.mxu0 %v288
  %v654 = vpop.f32.mrf.mxu0
  %v655 = vadd.f32 0.0, %v654
  %v656 = vpop.f32.mrf.mxu0
  %v657 = vpop.f32.mrf.mxu0
  %v658 = vadd.f32 0.0, %v657
  %v659 = vpop.f32.mrf.mxu0
  %660 = vmatprep.mubr.bf16.mxu0 %v294
  %661 = vmatmul.mubr.bf16.gmra.mxu0 %v293
  %v662 = vpop.f32.mrf.mxu0
  %v663 = vadd.f32 0.0, %v662
  %v664 = vpop.f32.mrf.mxu0
  %v665 = vpop.f32.mrf.mxu0
  %v666 = vadd.f32 0.0, %v665
  %v667 = vpop.f32.mrf.mxu0
  %668 = vmatprep.mubr.bf16.mxu0 %v299
  %669 = vmatmul.mubr.bf16.gmra.mxu0 %v298
  %v670 = vpop.f32.mrf.mxu0
  %v671 = vadd.f32 0.0, %v670
  %v672 = vpop.f32.mrf.mxu0
  %v673 = vpop.f32.mrf.mxu0
  %v674 = vadd.f32 0.0, %v673
  %v675 = vpop.f32.mrf.mxu0
  %676 = vmatprep.mubr.bf16.mxu0 %v304
  %677 = vmatmul.mubr.bf16.gmra.mxu0 %v303
  %v678 = vpop.f32.mrf.mxu0
  %v679 = vadd.f32 0.0, %v678
  %v680 = vpop.f32.mrf.mxu0
  %v681 = vpop.f32.mrf.mxu0
  %v682 = vadd.f32 0.0, %v681
  %v683 = vpop.f32.mrf.mxu0
  %684 = vdwg.mxu0
  %685 = vmatprep.subr.bf16.mxu0 0
  %686 = vmatpush1.bf16.msra.mxu0 %v531
  %687 = vmatprep.subr.bf16.mxu0 0
  %688 = vmatpush1.bf16.msra.mxu0 %v530
  %689 = vmatprep.subr.bf16.mxu0 0
  %690 = vmatpush1.bf16.msra.mxu0 %v529
  %691 = vmatprep.subr.bf16.mxu0 0
  %692 = vmatpush1.bf16.msra.mxu0 %v528
  %693 = vmatprep.subr.bf16.mxu0 0
  %694 = vmatpush1.bf16.msra.mxu0 %v527
  %695 = vmatprep.subr.bf16.mxu0 0
  %696 = vmatpush1.bf16.msra.mxu0 %v526
  %697 = vmatprep.subr.bf16.mxu0 0
  %698 = vmatpush1.bf16.msra.mxu0 %v525
  %699 = vmatprep.subr.bf16.mxu0 0
  %700 = vmatpush1.bf16.msra.mxu0 %v524
  %701 = vmatprep.subr.bf16.mxu0 0
  %702 = vmatpush2.bf16.msra.mxu0 %v539
  %703 = vmatprep.subr.bf16.mxu0 0
  %704 = vmatpush2.bf16.msra.mxu0 %v538
  %705 = vmatprep.subr.bf16.mxu0 0
  %706 = vmatpush2.bf16.msra.mxu0 %v537
  %707 = vmatprep.subr.bf16.mxu0 0
  %708 = vmatpush2.bf16.msra.mxu0 %v536
  %709 = vmatprep.subr.bf16.mxu0 0
  %710 = vmatpush2.bf16.msra.mxu0 %v535
  %711 = vmatprep.subr.bf16.mxu0 0
  %712 = vmatpush2.bf16.msra.mxu0 %v534
  %713 = vmatprep.subr.bf16.mxu0 0
  %714 = vmatpush2.bf16.msra.mxu0 %v533
  %715 = vmatprep.subr.bf16.mxu0 0
  %716 = vmatpush2.bf16.msra.mxu0 %v532
  %717 = vmatprep.mubr.bf16.mxu0 %v271
  %718 = vmatmul.mubr.bf16.gmra.mxu0 %v270
  %v719 = vpop.f32.mrf.mxu0
  %v720 = vadd.f32 %v623, %v719
  %v721 = vpop.f32.mrf.mxu0
  %v722 = vpop.f32.mrf.mxu0
  %v723 = vadd.f32 %v626, %v722
  %v724 = vpop.f32.mrf.mxu0
  %725 = vmatprep.mubr.bf16.mxu0 %v276
  %726 = vmatmul.mubr.bf16.gmra.mxu0 %v275
  %v727 = vpop.f32.mrf.mxu0
  %v728 = vadd.f32 %v631, %v727
  %v729 = vpop.f32.mrf.mxu0
  %v730 = vpop.f32.mrf.mxu0
  %v731 = vadd.f32 %v634, %v730
  %v732 = vpop.f32.mrf.mxu0
  %733 = vmatprep.mubr.bf16.mxu0 %v281
  %734 = vmatmul.mubr.bf16.gmra.mxu0 %v280
  %v735 = vpop.f32.mrf.mxu0
  %v736 = vadd.f32 %v639, %v735
  %v737 = vpop.f32.mrf.mxu0
  %v738 = vpop.f32.mrf.mxu0
  %v739 = vadd.f32 %v642, %v738
  %v740 = vpop.f32.mrf.mxu0
  %741 = vmatprep.mubr.bf16.mxu0 %v286
  %742 = vmatmul.mubr.bf16.gmra.mxu0 %v285
  %v743 = vpop.f32.mrf.mxu0
  %v744 = vadd.f32 %v647, %v743
  %v745 = vpop.f32.mrf.mxu0
  %v746 = vpop.f32.mrf.mxu0
  %v747 = vadd.f32 %v650, %v746
  %v748 = vpop.f32.mrf.mxu0
  %749 = vmatprep.mubr.bf16.mxu0 %v291
  %750 = vmatmul.mubr.bf16.gmra.mxu0 %v290
  %v751 = vpop.f32.mrf.mxu0
  %v752 = vadd.f32 %v655, %v751
  %v753 = vpop.f32.mrf.mxu0
  %v754 = vpop.f32.mrf.mxu0
  %v755 = vadd.f32 %v658, %v754
  %v756 = vpop.f32.mrf.mxu0
  %757 = vmatprep.mubr.bf16.mxu0 %v296
  %758 = vmatmul.mubr.bf16.gmra.mxu0 %v295
  %v759 = vpop.f32.mrf.mxu0
  %v760 = vadd.f32 %v663, %v759
  %v761 = vpop.f32.mrf.mxu0
  %v762 = vpop.f32.mrf.mxu0
  %v763 = vadd.f32 %v666, %v762
  %v764 = vpop.f32.mrf.mxu0
  %765 = vmatprep.mubr.bf16.mxu0 %v301
  %766 = vmatmul.mubr.bf16.gmra.mxu0 %v300
  %v767 = vpop.f32.mrf.mxu0
  %v768 = vadd.f32 %v671, %v767
  %v769 = vpop.f32.mrf.mxu0
  %v770 = vpop.f32.mrf.mxu0
  %v771 = vadd.f32 %v674, %v770
  %v772 = vpop.f32.mrf.mxu0
  %773 = vmatprep.mubr.bf16.mxu0 %v306
  %774 = vmatmul.mubr.bf16.gmra.mxu0 %v305
  %v775 = vpop.f32.mrf.mxu0
  %v776 = vadd.f32 %v679, %v775
  %v777 = vpop.f32.mrf.mxu0
  %v778 = vpop.f32.mrf.mxu0
  %v779 = vadd.f32 %v682, %v778
  %v780 = vpop.f32.mrf.mxu0
  %781 = vdwg.mxu0
  %782 = vmatprep.subr.bf16.mxu0 0
  %783 = vmatpush1.bf16.msra.mxu0 %v547
  %784 = vmatprep.subr.bf16.mxu0 0
  %785 = vmatpush1.bf16.msra.mxu0 %v546
  %786 = vmatprep.subr.bf16.mxu0 0
  %787 = vmatpush1.bf16.msra.mxu0 %v545
  %788 = vmatprep.subr.bf16.mxu0 0
  %789 = vmatpush1.bf16.msra.mxu0 %v544
  %790 = vmatprep.subr.bf16.mxu0 0
  %791 = vmatpush1.bf16.msra.mxu0 %v543
  %792 = vmatprep.subr.bf16.mxu0 0
  %793 = vmatpush1.bf16.msra.mxu0 %v542
  %794 = vmatprep.subr.bf16.mxu0 0
  %795 = vmatpush1.bf16.msra.mxu0 %v541
  %796 = vmatprep.subr.bf16.mxu0 0
  %797 = vmatpush1.bf16.msra.mxu0 %v540
  %798 = vmatprep.subr.bf16.mxu0 0
  %799 = vmatpush2.bf16.msra.mxu0 0
  %800 = vmatprep.subr.bf16.mxu0 0
  %801 = vmatpush2.bf16.msra.mxu0 0
  %802 = vmatprep.subr.bf16.mxu0 0
  %803 = vmatpush2.bf16.msra.mxu0 0
  %804 = vmatprep.subr.bf16.mxu0 0
  %805 = vmatpush2.bf16.msra.mxu0 0
  %806 = vmatprep.subr.bf16.mxu0 0
  %807 = vmatpush2.bf16.msra.mxu0 0
  %808 = vmatprep.subr.bf16.mxu0 0
  %809 = vmatpush2.bf16.msra.mxu0 0
  %810 = vmatprep.subr.bf16.mxu0 0
  %811 = vmatpush2.bf16.msra.mxu0 0
  %812 = vmatprep.subr.bf16.mxu0 0
  %813 = vmatpush2.bf16.msra.mxu0 0
  %814 = vmatprep.mubr.bf16.mxu0 0
  %815 = vmatmul.mubr.bf16.gmra.mxu0 %v272
  %v816 = vpop.f32.mrf.mxu0
  %v817 = vadd.f32 %v720, %v816
  %v818 = vpop.f32.mrf.mxu0
  %v819 = vpop.f32.mrf.mxu0
  %v820 = vadd.f32 %v723, %v819
  %v821 = vpop.f32.mrf.mxu0
  %822 = vmatprep.mubr.bf16.mxu0 0
  %823 = vmatmul.mubr.bf16.gmra.mxu0 %v277
  %v824 = vpop.f32.mrf.mxu0
  %v825 = vadd.f32 %v728, %v824
  %v826 = vpop.f32.mrf.mxu0
  %v827 = vpop.f32.mrf.mxu0
  %v828 = vadd.f32 %v731, %v827
  %v829 = vpop.f32.mrf.mxu0
  %830 = vmatprep.mubr.bf16.mxu0 0
  %831 = vmatmul.mubr.bf16.gmra.mxu0 %v282
  %v832 = vpop.f32.mrf.mxu0
  %v833 = vadd.f32 %v736, %v832
  %v834 = vpop.f32.mrf.mxu0
  %v835 = vpop.f32.mrf.mxu0
  %v836 = vadd.f32 %v739, %v835
  %v837 = vpop.f32.mrf.mxu0
  %838 = vmatprep.mubr.bf16.mxu0 0
  %839 = vmatmul.mubr.bf16.gmra.mxu0 %v287
  %v840 = vpop.f32.mrf.mxu0
  %v841 = vadd.f32 %v744, %v840
  %v842 = vpop.f32.mrf.mxu0
  %v843 = vpop.f32.mrf.mxu0
  %v844 = vadd.f32 %v747, %v843
  %v845 = vpop.f32.mrf.mxu0
  %846 = vmatprep.mubr.bf16.mxu0 0
  %847 = vmatmul.mubr.bf16.gmra.mxu0 %v292
  %v848 = vpop.f32.mrf.mxu0
  %v849 = vadd.f32 %v752, %v848
  %v850 = vpop.f32.mrf.mxu0
  %v851 = vpop.f32.mrf.mxu0
  %v852 = vadd.f32 %v755, %v851
  %v853 = vpop.f32.mrf.mxu0
  %854 = vmatprep.mubr.bf16.mxu0 0
  %855 = vmatmul.mubr.bf16.gmra.mxu0 %v297
  %v856 = vpop.f32.mrf.mxu0
  %v857 = vadd.f32 %v760, %v856
  %v858 = vpop.f32.mrf.mxu0
  %v859 = vpop.f32.mrf.mxu0
  %v860 = vadd.f32 %v763, %v859
  %v861 = vpop.f32.mrf.mxu0
  %862 = vmatprep.mubr.bf16.mxu0 0
  %863 = vmatmul.mubr.bf16.gmra.mxu0 %v302
  %v864 = vpop.f32.mrf.mxu0
  %v865 = vadd.f32 %v768, %v864
  %v866 = vpop.f32.mrf.mxu0
  %v867 = vpop.f32.mrf.mxu0
  %v868 = vadd.f32 %v771, %v867
  %v869 = vpop.f32.mrf.mxu0
  %870 = vmatprep.mubr.bf16.mxu0 0
  %871 = vmatmul.mubr.bf16.gmra.mxu0 %v307
  %v872 = vpop.f32.mrf.mxu0
  %v873 = vadd.f32 %v776, %v872
  %v874 = vpop.f32.mrf.mxu0
  %v875 = vpop.f32.mrf.mxu0
  %v876 = vadd.f32 %v779, %v875
  %v877 = vpop.f32.mrf.mxu0
  %878 = vdwg.mxu0
  %v879 = vmax.f32 %v817, 0.0
  %v880 = vmax.f32 %v820, 0.0
  %v881 = vmax.f32 %v825, 0.0
  %v882 = vmax.f32 %v828, 0.0
  %v883 = vmax.f32 %v833, 0.0
  %v884 = vmax.f32 %v836, 0.0
  %v885 = vmax.f32 %v841, 0.0
  %v886 = vmax.f32 %v844, 0.0
  %v887 = vmax.f32 %v849, 0.0
  %v888 = vmax.f32 %v852, 0.0
  %v889 = vmax.f32 %v857, 0.0
  %v890 = vmax.f32 %v860, 0.0
  %v891 = vmax.f32 %v865, 0.0
  %v892 = vmax.f32 %v868, 0.0
  %v893 = vmax.f32 %v873, 0.0
  %v894 = vmax.f32 %v876, 0.0
  %v895 = vpack.c.bf16 %v880, %v879
  %v896 = vpack.c.bf16 %v882, %v881
  %v897 = vpack.c.bf16 %v884, %v883
  %v898 = vpack.c.bf16 %v886, %v885
  %v899 = vpack.c.bf16 %v888, %v887
  %v900 = vpack.c.bf16 %v890, %v889
  %v901 = vpack.c.bf16 %v892, %v891
  %v902 = vpack.c.bf16 %v894, %v893
  %v911 = vunpack.c.l.b16 %v895
  %v912 = vunpack.c.h.b16 %v895
  %v913 = vunpack.c.l.b16 %v896
  %v914 = vunpack.c.h.b16 %v896
  %v915 = vunpack.c.l.b16 %v897
  %v916 = vunpack.c.h.b16 %v897
  %v917 = vunpack.c.l.b16 %v898
  %v918 = vunpack.c.h.b16 %v898
  %v919 = vunpack.c.l.b16 %v899
  %v920 = vunpack.c.h.b16 %v899
  %v921 = vunpack.c.l.b16 %v900
  %v922 = vunpack.c.h.b16 %v900
  %v923 = vunpack.c.l.b16 %v901
  %v924 = vunpack.c.h.b16 %v901
  %v925 = vunpack.c.l.b16 %v902
  %v926 = vunpack.c.h.b16 %v902
  %v927 = vpack.c.b16 %v911, %v911
  %v928 = vpack.c.b16 %v912, %v912
  %v929 = vpack.c.b16 %v913, %v913
  %v930 = vpack.c.b16 %v914, %v914
  %v931 = vpack.c.b16 %v915, %v915
  %v932 = vpack.c.b16 %v916, %v916
  %v933 = vpack.c.b16 %v917, %v917
  %v934 = vpack.c.b16 %v918, %v918
  %v935 = vpack.c.b16 %v919, %v919
  %v936 = vpack.c.b16 %v920, %v920
  %v937 = vpack.c.b16 %v921, %v921
  %v938 = vpack.c.b16 %v922, %v922
  %v939 = vpack.c.b16 %v923, %v923
  %v940 = vpack.c.b16 %v924, %v924
  %v941 = vpack.c.b16 %v925, %v925
  %v942 = vpack.c.b16 %v926, %v926
  %959 = vst [vmem:[%s2] sm:$0xf] %v927
  %960 = vst [vmem:[%s2 + $0x4] sm:$0xf] %v928
  %961 = vst [vmem:[%s2 + $0x8] sm:$0xf] %v929
  %962 = vst [vmem:[%s2 + $0xc] sm:$0xf] %v930
  %963 = vst [vmem:[%s2 + $0x10] sm:$0xf] %v931
  %964 = vst [vmem:[%s2 + $0x14] sm:$0xf] %v932
  %965 = vst [vmem:[%s2 + $0x18] sm:$0xf] %v933
  %966 = vst [vmem:[%s2 + $0x1c] sm:$0xf] %v934
  %967 = vst [vmem:[%s2 + $0x20] sm:$0xf] %v935
  %968 = vst [vmem:[%s2 + $0x24] sm:$0xf] %v936
  %969 = vst [vmem:[%s2 + $0x28] sm:$0xf] %v937
  %970 = vst [vmem:[%s2 + $0x2c] sm:$0xf] %v938
  %971 = vst [vmem:[%s2 + $0x30] sm:$0xf] %v939
  %972 = vst [vmem:[%s2 + $0x34] sm:$0xf] %v940
  %973 = vst [vmem:[%s2 + $0x38] sm:$0xf] %v941
  %974 = vst [vmem:[%s2 + $0x3c] sm:$0xf] %v942
  // Predicated region
  $region10: #{student_resnet_forward.14} parent=0 // pred_check
    _
  $region11: #{student_resnet_forward.14} parent=0 // pred_check_branch
    %976 = sbr.rel (0) target = $region13
  $region12: #{student_resnet_forward.14} parent=0 // pred_region
    _
  $region13: #{student_resnet_forward.14} parent=0 // pred_fallthru
    _
  // Predicated region
  $region14: #{student_resnet_forward.14} parent=0 // pred_check
    _
  $region15: #{student_resnet_forward.14} parent=0 // pred_check_branch
    %978 = sbr.rel (0) target = $region17
  $region16: #{student_resnet_forward.14} parent=0 // pred_region
    _
  $region17: #{student_resnet_forward.14} parent=0 // pred_fallthru
    _

// kernel: student_resnet_forward.15
$region0: #{student_resnet_forward.15}
  #allocation0 [shape = 'u32[]', space=smem, size = 0x4, offset = 0x4, fixed_abs, tag = 'smem constant byte address 0x4 - core index']
  #allocation1 [shape = 'u32[144,128]{1,0:T(1,128)}', space=vmem, size = 0x12000, scoped, tag = 'internal scratch']
  %s0 = inlined_call_operand.vmem [shape: bf16[128,640], index: 0, kind: input, shape index: {}]
  %s1 = inlined_call_operand.vmem [shape: bf16[640,128], index: 1, kind: input, shape index: {}]
  %s2 = inlined_call_operand.vmem [shape: bf16[128,128], index: 2, kind: input, shape index: {}]
  %s3 = inlined_call_operand.vmem [shape: bf16[128,128], index: 3, kind: output, shape index: {}]
  %s4 = sld [smem:[#allocation0]]
  $region22: #{student_resnet_forward.15} parent=0
    _
  %s6 = ssub.s32 1, %s4
  %s7 = scalar_select 0, %s6, %s4
  // Predicated region
  $region2: #{student_resnet_forward.15} parent=0 // pred_check
    _
  $region3: #{student_resnet_forward.15} parent=0 // pred_check_branch
    %9 = sbr.rel (0) target = $region5
  $region4: #{student_resnet_forward.15} parent=0 // pred_region
    _
  $region5: #{student_resnet_forward.15} parent=0 // pred_fallthru
    _
  // Predicated region
  $region6: #{student_resnet_forward.15} parent=0 // pred_check
    _
  $region7: #{student_resnet_forward.15} parent=0 // pred_check_branch
    %11 = sbr.rel (0) target = $region9
  $region8: #{student_resnet_forward.15} parent=0 // pred_region
    _
  $region9: #{student_resnet_forward.15} parent=0 // pred_fallthru
    _
  // Predicated region
  $region10: #{student_resnet_forward.15} parent=0 // pred_check
    _
  $region11: #{student_resnet_forward.15} parent=0 // pred_check_branch
    %13 = sbr.rel (0) target = $region13
  $region12: #{student_resnet_forward.15} parent=0 // pred_region
    _
  $region13: #{student_resnet_forward.15} parent=0 // pred_fallthru
    _
  %v15 = vld [vmem:[%s0] sm:$0xff]
  %v16 = vld [vmem:[%s0 + $0x8] sm:$0xff]
  %v17 = vld [vmem:[%s0 + $0x10] sm:$0xf]
  %v18 = vld [vmem:[%s0 + $0x14] sm:$0xff]
  %v19 = vld [vmem:[%s0 + $0x1c] sm:$0xff]
  %v20 = vld [vmem:[%s0 + $0x24] sm:$0xf]
  %v21 = vld [vmem:[%s0 + $0x28] sm:$0xff]
  %v22 = vld [vmem:[%s0 + $0x30] sm:$0xff]
  %v23 = vld [vmem:[%s0 + $0x38] sm:$0xf]
  %v24 = vld [vmem:[%s0 + $0x3c] sm:$0xff]
  %v25 = vld [vmem:[%s0 + $0x44] sm:$0xff]
  %v26 = vld [vmem:[%s0 + $0x4c] sm:$0xf]
  %v27 = vld [vmem:[%s0 + $0x50] sm:$0xff]
  %v28 = vld [vmem:[%s0 + $0x58] sm:$0xff]
  %v29 = vld [vmem:[%s0 + $0x60] sm:$0xf]
  %v30 = vld [vmem:[%s0 + $0x64] sm:$0xff]
  %v31 = vld [vmem:[%s0 + $0x6c] sm:$0xff]
  %v32 = vld [vmem:[%s0 + $0x74] sm:$0xf]
  %v33 = vld [vmem:[%s0 + $0x78] sm:$0xff]
  %v34 = vld [vmem:[%s0 + $0x80] sm:$0xff]
  %v35 = vld [vmem:[%s0 + $0x88] sm:$0xf]
  %v36 = vld [vmem:[%s0 + $0x8c] sm:$0xff]
  %v37 = vld [vmem:[%s0 + $0x94] sm:$0xff]
  %v38 = vld [vmem:[%s0 + $0x9c] sm:$0xf]
  %v39 = vld [vmem:[%s0 + $0xa0] sm:$0xff]
  %v40 = vld [vmem:[%s0 + $0xa8] sm:$0xff]
  %v41 = vld [vmem:[%s0 + $0xb0] sm:$0xf]
  %v42 = vld [vmem:[%s0 + $0xb4] sm:$0xff]
  %v43 = vld [vmem:[%s0 + $0xbc] sm:$0xff]
  %v44 = vld [vmem:[%s0 + $0xc4] sm:$0xf]
  %v45 = vld [vmem:[%s0 + $0xc8] sm:$0xff]
  %v46 = vld [vmem:[%s0 + $0xd0] sm:$0xff]
  %v47 = vld [vmem:[%s0 + $0xd8] sm:$0xf]
  %v48 = vld [vmem:[%s0 + $0xdc] sm:$0xff]
  %v49 = vld [vmem:[%s0 + $0xe4] sm:$0xff]
  %v50 = vld [vmem:[%s0 + $0xec] sm:$0xf]
  %v51 = vld [vmem:[%s0 + $0xf0] sm:$0xff]
  %v52 = vld [vmem:[%s0 + $0xf8] sm:$0xff]
  %v53 = vld [vmem:[%s0 + $0x100] sm:$0xf]
  %v54 = vld [vmem:[%s0 + $0x104] sm:$0xff]
  %v55 = vld [vmem:[%s0 + $0x10c] sm:$0xff]
  %v56 = vld [vmem:[%s0 + $0x114] sm:$0xf]
  %v57 = vld [vmem:[%s0 + $0x118] sm:$0xff]
  %v58 = vld [vmem:[%s0 + $0x120] sm:$0xff]
  %v59 = vld [vmem:[%s0 + $0x128] sm:$0xf]
  %v60 = vld [vmem:[%s0 + $0x12c] sm:$0xff]
  %v61 = vld [vmem:[%s0 + $0x134] sm:$0xff]
  %v62 = vld [vmem:[%s0 + $0x13c] sm:$0xf]
  %v63 = vld [vmem:[%s1] sm:$0xf]
  %v64 = vld [vmem:[%s1 + $0x4] sm:$0xf]
  %v65 = vld [vmem:[%s1 + $0x8] sm:$0xf]
  %v66 = vld [vmem:[%s1 + $0xc] sm:$0xf]
  %v67 = vld [vmem:[%s1 + $0x10] sm:$0xf]
  %v68 = vld [vmem:[%s1 + $0x14] sm:$0xf]
  %v69 = vld [vmem:[%s1 + $0x18] sm:$0xf]
  %v70 = vld [vmem:[%s1 + $0x1c] sm:$0xf]
  %v71 = vld [vmem:[%s1 + $0x20] sm:$0xf]
  %v72 = vld [vmem:[%s1 + $0x24] sm:$0xf]
  %v73 = vld [vmem:[%s1 + $0x28] sm:$0xf]
  %v74 = vld [vmem:[%s1 + $0x2c] sm:$0xf]
  %v75 = vld [vmem:[%s1 + $0x30] sm:$0xf]
  %v76 = vld [vmem:[%s1 + $0x34] sm:$0xf]
  %v77 = vld [vmem:[%s1 + $0x38] sm:$0xf]
  %v78 = vld [vmem:[%s1 + $0x3c] sm:$0xf]
  %v79 = vld [vmem:[%s1 + $0x40] sm:$0xf]
  %v80 = vld [vmem:[%s1 + $0x44] sm:$0xf]
  %v81 = vld [vmem:[%s1 + $0x48] sm:$0xf]
  %v82 = vld [vmem:[%s1 + $0x4c] sm:$0xf]
  %v83 = vld [vmem:[%s1 + $0x50] sm:$0xf]
  %v84 = vld [vmem:[%s1 + $0x54] sm:$0xf]
  %v85 = vld [vmem:[%s1 + $0x58] sm:$0xf]
  %v86 = vld [vmem:[%s1 + $0x5c] sm:$0xf]
  %v87 = vld [vmem:[%s1 + $0x60] sm:$0xf]
  %v88 = vld [vmem:[%s1 + $0x64] sm:$0xf]
  %v89 = vld [vmem:[%s1 + $0x68] sm:$0xf]
  %v90 = vld [vmem:[%s1 + $0x6c] sm:$0xf]
  %v91 = vld [vmem:[%s1 + $0x70] sm:$0xf]
  %v92 = vld [vmem:[%s1 + $0x74] sm:$0xf]
  %v93 = vld [vmem:[%s1 + $0x78] sm:$0xf]
  %v94 = vld [vmem:[%s1 + $0x7c] sm:$0xf]
  %v95 = vld [vmem:[%s1 + $0x80] sm:$0xf]
  %v96 = vld [vmem:[%s1 + $0x84] sm:$0xf]
  %v97 = vld [vmem:[%s1 + $0x88] sm:$0xf]
  %v98 = vld [vmem:[%s1 + $0x8c] sm:$0xf]
  %v99 = vld [vmem:[%s1 + $0x90] sm:$0xf]
  %v100 = vld [vmem:[%s1 + $0x94] sm:$0xf]
  %v101 = vld [vmem:[%s1 + $0x98] sm:$0xf]
  %v102 = vld [vmem:[%s1 + $0x9c] sm:$0xf]
  %v103 = vld [vmem:[%s1 + $0xa0] sm:$0xf]
  %v104 = vld [vmem:[%s1 + $0xa4] sm:$0xf]
  %v105 = vld [vmem:[%s1 + $0xa8] sm:$0xf]
  %v106 = vld [vmem:[%s1 + $0xac] sm:$0xf]
  %v107 = vld [vmem:[%s1 + $0xb0] sm:$0xf]
  %v108 = vld [vmem:[%s1 + $0xb4] sm:$0xf]
  %v109 = vld [vmem:[%s1 + $0xb8] sm:$0xf]
  %v110 = vld [vmem:[%s1 + $0xbc] sm:$0xf]
  %v111 = vld [vmem:[%s1 + $0xc0] sm:$0xf]
  %v112 = vld [vmem:[%s1 + $0xc4] sm:$0xf]
  %v113 = vld [vmem:[%s1 + $0xc8] sm:$0xf]
  %v114 = vld [vmem:[%s1 + $0xcc] sm:$0xf]
  %v115 = vld [vmem:[%s1 + $0xd0] sm:$0xf]
  %v116 = vld [vmem:[%s1 + $0xd4] sm:$0xf]
  %v117 = vld [vmem:[%s1 + $0xd8] sm:$0xf]
  %v118 = vld [vmem:[%s1 + $0xdc] sm:$0xf]
  %v119 = vld [vmem:[%s1 + $0xe0] sm:$0xf]
  %v120 = vld [vmem:[%s1 + $0xe4] sm:$0xf]
  %v121 = vld [vmem:[%s1 + $0xe8] sm:$0xf]
  %v122 = vld [vmem:[%s1 + $0xec] sm:$0xf]
  %v123 = vld [vmem:[%s1 + $0xf0] sm:$0xf]
  %v124 = vld [vmem:[%s1 + $0xf4] sm:$0xf]
  %v125 = vld [vmem:[%s1 + $0xf8] sm:$0xf]
  %v126 = vld [vmem:[%s1 + $0xfc] sm:$0xf]
  %v127 = vld [vmem:[%s1 + $0x100] sm:$0xf]
  %v128 = vld [vmem:[%s1 + $0x104] sm:$0xf]
  %v129 = vld [vmem:[%s1 + $0x108] sm:$0xf]
  %v130 = vld [vmem:[%s1 + $0x10c] sm:$0xf]
  %v131 = vld [vmem:[%s1 + $0x110] sm:$0xf]
  %v132 = vld [vmem:[%s1 + $0x114] sm:$0xf]
  %v133 = vld [vmem:[%s1 + $0x118] sm:$0xf]
  %v134 = vld [vmem:[%s1 + $0x11c] sm:$0xf]
  %v135 = vld [vmem:[%s1 + $0x120] sm:$0xf]
  %v136 = vld [vmem:[%s1 + $0x124] sm:$0xf]
  %v137 = vld [vmem:[%s1 + $0x128] sm:$0xf]
  %v138 = vld [vmem:[%s1 + $0x12c] sm:$0xf]
  %v139 = vld [vmem:[%s1 + $0x130] sm:$0xf]
  %v140 = vld [vmem:[%s1 + $0x134] sm:$0xf]
  %v141 = vld [vmem:[%s1 + $0x138] sm:$0xf]
  %v142 = vld [vmem:[%s1 + $0x13c] sm:$0xf]
  %v143 = vld [vmem:[%s2] sm:$0xf]
  %v144 = vld [vmem:[%s2 + $0x4] sm:$0xf]
  %v145 = vld [vmem:[%s2 + $0x8] sm:$0xf]
  %v146 = vld [vmem:[%s2 + $0xc] sm:$0xf]
  %v147 = vld [vmem:[%s2 + $0x10] sm:$0xf]
  %v148 = vld [vmem:[%s2 + $0x14] sm:$0xf]
  %v149 = vld [vmem:[%s2 + $0x18] sm:$0xf]
  %v150 = vld [vmem:[%s2 + $0x1c] sm:$0xf]
  %v151 = vld [vmem:[%s2 + $0x20] sm:$0xf]
  %v152 = vld [vmem:[%s2 + $0x24] sm:$0xf]
  %v153 = vld [vmem:[%s2 + $0x28] sm:$0xf]
  %v154 = vld [vmem:[%s2 + $0x2c] sm:$0xf]
  %v155 = vld [vmem:[%s2 + $0x30] sm:$0xf]
  %v156 = vld [vmem:[%s2 + $0x34] sm:$0xf]
  %v157 = vld [vmem:[%s2 + $0x38] sm:$0xf]
  %v158 = vld [vmem:[%s2 + $0x3c] sm:$0xf]
  %v159 = vunpack.c.l.bf16 %v143
  %v160 = vunpack.c.l.bf16 %v144
  %v161 = vunpack.c.l.bf16 %v145
  %v162 = vunpack.c.l.bf16 %v146
  %v163 = vunpack.c.l.bf16 %v147
  %v164 = vunpack.c.l.bf16 %v148
  %v165 = vunpack.c.l.bf16 %v149
  %v166 = vunpack.c.l.bf16 %v150
  %v167 = vunpack.c.l.bf16 %v151
  %v168 = vunpack.c.l.bf16 %v152
  %v169 = vunpack.c.l.bf16 %v153
  %v170 = vunpack.c.l.bf16 %v154
  %v171 = vunpack.c.l.bf16 %v155
  %v172 = vunpack.c.l.bf16 %v156
  %v173 = vunpack.c.l.bf16 %v157
  %v174 = vunpack.c.l.bf16 %v158
  %v223 = vunpack.c.l.b16 %v15
  %v224 = vunpack.c.h.b16 %v15
  %v225 = vunpack.c.l.b16 %v16
  %v226 = vunpack.c.h.b16 %v16
  %v227 = vunpack.c.l.b16 %v17
  %v228 = vunpack.c.l.b16 %v18
  %v229 = vunpack.c.h.b16 %v18
  %v230 = vunpack.c.l.b16 %v19
  %v231 = vunpack.c.h.b16 %v19
  %v232 = vunpack.c.l.b16 %v20
  %v233 = vunpack.c.l.b16 %v21
  %v234 = vunpack.c.h.b16 %v21
  %v235 = vunpack.c.l.b16 %v22
  %v236 = vunpack.c.h.b16 %v22
  %v237 = vunpack.c.l.b16 %v23
  %v238 = vunpack.c.l.b16 %v24
  %v239 = vunpack.c.h.b16 %v24
  %v240 = vunpack.c.l.b16 %v25
  %v241 = vunpack.c.h.b16 %v25
  %v242 = vunpack.c.l.b16 %v26
  %v243 = vunpack.c.l.b16 %v27
  %v244 = vunpack.c.h.b16 %v27
  %v245 = vunpack.c.l.b16 %v28
  %v246 = vunpack.c.h.b16 %v28
  %v247 = vunpack.c.l.b16 %v29
  %v248 = vunpack.c.l.b16 %v30
  %v249 = vunpack.c.h.b16 %v30
  %v250 = vunpack.c.l.b16 %v31
  %v251 = vunpack.c.h.b16 %v31
  %v252 = vunpack.c.l.b16 %v32
  %v253 = vunpack.c.l.b16 %v33
  %v254 = vunpack.c.h.b16 %v33
  %v255 = vunpack.c.l.b16 %v34
  %v256 = vunpack.c.h.b16 %v34
  %v257 = vunpack.c.l.b16 %v35
  %v258 = vunpack.c.l.b16 %v36
  %v259 = vunpack.c.h.b16 %v36
  %v260 = vunpack.c.l.b16 %v37
  %v261 = vunpack.c.h.b16 %v37
  %v262 = vunpack.c.l.b16 %v38
  %v263 = vunpack.c.l.b16 %v39
  %v264 = vunpack.c.h.b16 %v39
  %v265 = vunpack.c.l.b16 %v40
  %v266 = vunpack.c.h.b16 %v40
  %v267 = vunpack.c.l.b16 %v41
  %v268 = vunpack.c.l.b16 %v42
  %v269 = vunpack.c.h.b16 %v42
  %v270 = vunpack.c.l.b16 %v43
  %v271 = vunpack.c.h.b16 %v43
  %v272 = vunpack.c.l.b16 %v44
  %v273 = vunpack.c.l.b16 %v45
  %v274 = vunpack.c.h.b16 %v45
  %v275 = vunpack.c.l.b16 %v46
  %v276 = vunpack.c.h.b16 %v46
  %v277 = vunpack.c.l.b16 %v47
  %v278 = vunpack.c.l.b16 %v48
  %v279 = vunpack.c.h.b16 %v48
  %v280 = vunpack.c.l.b16 %v49
  %v281 = vunpack.c.h.b16 %v49
  %v282 = vunpack.c.l.b16 %v50
  %v283 = vunpack.c.l.b16 %v51
  %v284 = vunpack.c.h.b16 %v51
  %v285 = vunpack.c.l.b16 %v52
  %v286 = vunpack.c.h.b16 %v52
  %v287 = vunpack.c.l.b16 %v53
  %v288 = vunpack.c.l.b16 %v54
  %v289 = vunpack.c.h.b16 %v54
  %v290 = vunpack.c.l.b16 %v55
  %v291 = vunpack.c.h.b16 %v55
  %v292 = vunpack.c.l.b16 %v56
  %v293 = vunpack.c.l.b16 %v57
  %v294 = vunpack.c.h.b16 %v57
  %v295 = vunpack.c.l.b16 %v58
  %v296 = vunpack.c.h.b16 %v58
  %v297 = vunpack.c.l.b16 %v59
  %v298 = vunpack.c.l.b16 %v60
  %v299 = vunpack.c.h.b16 %v60
  %v300 = vunpack.c.l.b16 %v61
  %v301 = vunpack.c.h.b16 %v61
  %v302 = vunpack.c.l.b16 %v62
  %v303 = vpack.c.b16 %v228, %v223
  %v304 = vpack.c.b16 %v229, %v224
  %v305 = vpack.c.b16 %v230, %v225
  %v306 = vpack.c.b16 %v231, %v226
  %v307 = vpack.c.b16 %v232, %v227
  %v308 = vpack.c.b16 %v238, %v233
  %v309 = vpack.c.b16 %v239, %v234
  %v310 = vpack.c.b16 %v240, %v235
  %v311 = vpack.c.b16 %v241, %v236
  %v312 = vpack.c.b16 %v242, %v237
  %v313 = vpack.c.b16 %v248, %v243
  %v314 = vpack.c.b16 %v249, %v244
  %v315 = vpack.c.b16 %v250, %v245
  %v316 = vpack.c.b16 %v251, %v246
  %v317 = vpack.c.b16 %v252, %v247
  %v318 = vpack.c.b16 %v258, %v253
  %v319 = vpack.c.b16 %v259, %v254
  %v320 = vpack.c.b16 %v260, %v255
  %v321 = vpack.c.b16 %v261, %v256
  %v322 = vpack.c.b16 %v262, %v257
  %v323 = vpack.c.b16 %v268, %v263
  %v324 = vpack.c.b16 %v269, %v264
  %v325 = vpack.c.b16 %v270, %v265
  %v326 = vpack.c.b16 %v271, %v266
  %v327 = vpack.c.b16 %v272, %v267
  %v328 = vpack.c.b16 %v278, %v273
  %v329 = vpack.c.b16 %v279, %v274
  %v330 = vpack.c.b16 %v280, %v275
  %v331 = vpack.c.b16 %v281, %v276
  %v332 = vpack.c.b16 %v282, %v277
  %v333 = vpack.c.b16 %v288, %v283
  %v334 = vpack.c.b16 %v289, %v284
  %v335 = vpack.c.b16 %v290, %v285
  %v336 = vpack.c.b16 %v291, %v286
  %v337 = vpack.c.b16 %v292, %v287
  %v338 = vpack.c.b16 %v298, %v293
  %v339 = vpack.c.b16 %v299, %v294
  %v340 = vpack.c.b16 %v300, %v295
  %v341 = vpack.c.b16 %v301, %v296
  %v342 = vpack.c.b16 %v302, %v297
  %v463 = vunpack.c.l.b16 %v63
  %v464 = vunpack.c.l.b16 %v64
  %v465 = vunpack.c.l.b16 %v65
  %v466 = vunpack.c.l.b16 %v66
  %v467 = vunpack.c.l.b16 %v67
  %v468 = vunpack.c.l.b16 %v68
  %v469 = vunpack.c.l.b16 %v69
  %v470 = vunpack.c.l.b16 %v70
  %v471 = vunpack.c.l.b16 %v71
  %v472 = vunpack.c.l.b16 %v72
  %v473 = vunpack.c.l.b16 %v73
  %v474 = vunpack.c.l.b16 %v74
  %v475 = vunpack.c.l.b16 %v75
  %v476 = vunpack.c.l.b16 %v76
  %v477 = vunpack.c.l.b16 %v77
  %v478 = vunpack.c.l.b16 %v78
  %v479 = vunpack.c.l.b16 %v79
  %v480 = vunpack.c.l.b16 %v80
  %v481 = vunpack.c.l.b16 %v81
  %v482 = vunpack.c.l.b16 %v82
  %v483 = vunpack.c.l.b16 %v83
  %v484 = vunpack.c.l.b16 %v84
  %v485 = vunpack.c.l.b16 %v85
  %v486 = vunpack.c.l.b16 %v86
  %v487 = vunpack.c.l.b16 %v87
  %v488 = vunpack.c.l.b16 %v88
  %v489 = vunpack.c.l.b16 %v89
  %v490 = vunpack.c.l.b16 %v90
  %v491 = vunpack.c.l.b16 %v91
  %v492 = vunpack.c.l.b16 %v92
  %v493 = vunpack.c.l.b16 %v93
  %v494 = vunpack.c.l.b16 %v94
  %v495 = vunpack.c.l.b16 %v95
  %v496 = vunpack.c.l.b16 %v96
  %v497 = vunpack.c.l.b16 %v97
  %v498 = vunpack.c.l.b16 %v98
  %v499 = vunpack.c.l.b16 %v99
  %v500 = vunpack.c.l.b16 %v100
  %v501 = vunpack.c.l.b16 %v101
  %v502 = vunpack.c.l.b16 %v102
  %v503 = vunpack.c.l.b16 %v103
  %v504 = vunpack.c.l.b16 %v104
  %v505 = vunpack.c.l.b16 %v105
  %v506 = vunpack.c.l.b16 %v106
  %v507 = vunpack.c.l.b16 %v107
  %v508 = vunpack.c.l.b16 %v108
  %v509 = vunpack.c.l.b16 %v109
  %v510 = vunpack.c.l.b16 %v110
  %v511 = vunpack.c.l.b16 %v111
  %v512 = vunpack.c.l.b16 %v112
  %v513 = vunpack.c.l.b16 %v113
  %v514 = vunpack.c.l.b16 %v114
  %v515 = vunpack.c.l.b16 %v115
  %v516 = vunpack.c.l.b16 %v116
  %v517 = vunpack.c.l.b16 %v117
  %v518 = vunpack.c.l.b16 %v118
  %v519 = vunpack.c.l.b16 %v119
  %v520 = vunpack.c.l.b16 %v120
  %v521 = vunpack.c.l.b16 %v121
  %v522 = vunpack.c.l.b16 %v122
  %v523 = vunpack.c.l.b16 %v123
  %v524 = vunpack.c.l.b16 %v124
  %v525 = vunpack.c.l.b16 %v125
  %v526 = vunpack.c.l.b16 %v126
  %v527 = vunpack.c.l.b16 %v127
  %v528 = vunpack.c.l.b16 %v128
  %v529 = vunpack.c.l.b16 %v129
  %v530 = vunpack.c.l.b16 %v130
  %v531 = vunpack.c.l.b16 %v131
  %v532 = vunpack.c.l.b16 %v132
  %v533 = vunpack.c.l.b16 %v133
  %v534 = vunpack.c.l.b16 %v134
  %v535 = vunpack.c.l.b16 %v135
  %v536 = vunpack.c.l.b16 %v136
  %v537 = vunpack.c.l.b16 %v137
  %v538 = vunpack.c.l.b16 %v138
  %v539 = vunpack.c.l.b16 %v139
  %v540 = vunpack.c.l.b16 %v140
  %v541 = vunpack.c.l.b16 %v141
  %v542 = vunpack.c.l.b16 %v142
  %v543 = vpack.c.b16 %v464, %v463
  %v544 = vpack.c.b16 %v466, %v465
  %v545 = vpack.c.b16 %v468, %v467
  %v546 = vpack.c.b16 %v470, %v469
  %v547 = vpack.c.b16 %v472, %v471
  %v548 = vpack.c.b16 %v474, %v473
  %v549 = vpack.c.b16 %v476, %v475
  %v550 = vpack.c.b16 %v478, %v477
  %v551 = vpack.c.b16 %v480, %v479
  %v552 = vpack.c.b16 %v482, %v481
  %v553 = vpack.c.b16 %v484, %v483
  %v554 = vpack.c.b16 %v486, %v485
  %v555 = vpack.c.b16 %v488, %v487
  %v556 = vpack.c.b16 %v490, %v489
  %v557 = vpack.c.b16 %v492, %v491
  %v558 = vpack.c.b16 %v494, %v493
  %v559 = vpack.c.b16 %v496, %v495
  %v560 = vpack.c.b16 %v498, %v497
  %v561 = vpack.c.b16 %v500, %v499
  %v562 = vpack.c.b16 %v502, %v501
  %v563 = vpack.c.b16 %v504, %v503
  %v564 = vpack.c.b16 %v506, %v505
  %v565 = vpack.c.b16 %v508, %v507
  %v566 = vpack.c.b16 %v510, %v509
  %v567 = vpack.c.b16 %v512, %v511
  %v568 = vpack.c.b16 %v514, %v513
  %v569 = vpack.c.b16 %v516, %v515
  %v570 = vpack.c.b16 %v518, %v517
  %v571 = vpack.c.b16 %v520, %v519
  %v572 = vpack.c.b16 %v522, %v521
  %v573 = vpack.c.b16 %v524, %v523
  %v574 = vpack.c.b16 %v526, %v525
  %v575 = vpack.c.b16 %v528, %v527
  %v576 = vpack.c.b16 %v530, %v529
  %v577 = vpack.c.b16 %v532, %v531
  %v578 = vpack.c.b16 %v534, %v533
  %v579 = vpack.c.b16 %v536, %v535
  %v580 = vpack.c.b16 %v538, %v537
  %v581 = vpack.c.b16 %v540, %v539
  %v582 = vpack.c.b16 %v542, %v541
  %623 = vmatprep.subr.bf16.mxu0 0
  %624 = vmatpush1.bf16.msra.mxu0 %v550
  %625 = vmatprep.subr.bf16.mxu0 0
  %626 = vmatpush1.bf16.msra.mxu0 %v549
  %627 = vmatprep.subr.bf16.mxu0 0
  %628 = vmatpush1.bf16.msra.mxu0 %v548
  %629 = vmatprep.subr.bf16.mxu0 0
  %630 = vmatpush1.bf16.msra.mxu0 %v547
  %631 = vmatprep.subr.bf16.mxu0 0
  %632 = vmatpush1.bf16.msra.mxu0 %v546
  %633 = vmatprep.subr.bf16.mxu0 0
  %634 = vmatpush1.bf16.msra.mxu0 %v545
  %635 = vmatprep.subr.bf16.mxu0 0
  %636 = vmatpush1.bf16.msra.mxu0 %v544
  %637 = vmatprep.subr.bf16.mxu0 0
  %638 = vmatpush1.bf16.msra.mxu0 %v543
  %639 = vmatprep.subr.bf16.mxu0 0
  %640 = vmatpush2.bf16.msra.mxu0 %v558
  %641 = vmatprep.subr.bf16.mxu0 0
  %642 = vmatpush2.bf16.msra.mxu0 %v557
  %643 = vmatprep.subr.bf16.mxu0 0
  %644 = vmatpush2.bf16.msra.mxu0 %v556
  %645 = vmatprep.subr.bf16.mxu0 0
  %646 = vmatpush2.bf16.msra.mxu0 %v555
  %647 = vmatprep.subr.bf16.mxu0 0
  %648 = vmatpush2.bf16.msra.mxu0 %v554
  %649 = vmatprep.subr.bf16.mxu0 0
  %650 = vmatpush2.bf16.msra.mxu0 %v553
  %651 = vmatprep.subr.bf16.mxu0 0
  %652 = vmatpush2.bf16.msra.mxu0 %v552
  %653 = vmatprep.subr.bf16.mxu0 0
  %654 = vmatpush2.bf16.msra.mxu0 %v551
  %655 = vmatprep.mubr.bf16.mxu0 %v304
  %656 = vmatmul.mubr.bf16.gmra.mxu0 %v303
  %v657 = vpop.f32.mrf.mxu0
  %v658 = vadd.f32 %v159, %v657
  %v659 = vpop.f32.mrf.mxu0
  %v660 = vpop.f32.mrf.mxu0
  %v661 = vadd.f32 %v160, %v660
  %v662 = vpop.f32.mrf.mxu0
  %663 = vmatprep.mubr.bf16.mxu0 %v309
  %664 = vmatmul.mubr.bf16.gmra.mxu0 %v308
  %v665 = vpop.f32.mrf.mxu0
  %v666 = vadd.f32 %v161, %v665
  %v667 = vpop.f32.mrf.mxu0
  %v668 = vpop.f32.mrf.mxu0
  %v669 = vadd.f32 %v162, %v668
  %v670 = vpop.f32.mrf.mxu0
  %671 = vmatprep.mubr.bf16.mxu0 %v314
  %672 = vmatmul.mubr.bf16.gmra.mxu0 %v313
  %v673 = vpop.f32.mrf.mxu0
  %v674 = vadd.f32 %v163, %v673
  %v675 = vpop.f32.mrf.mxu0
  %v676 = vpop.f32.mrf.mxu0
  %v677 = vadd.f32 %v164, %v676
  %v678 = vpop.f32.mrf.mxu0
  %679 = vmatprep.mubr.bf16.mxu0 %v319
  %680 = vmatmul.mubr.bf16.gmra.mxu0 %v318
  %v681 = vpop.f32.mrf.mxu0
  %v682 = vadd.f32 %v165, %v681
  %v683 = vpop.f32.mrf.mxu0
  %v684 = vpop.f32.mrf.mxu0
  %v685 = vadd.f32 %v166, %v684
  %v686 = vpop.f32.mrf.mxu0
  %687 = vmatprep.mubr.bf16.mxu0 %v324
  %688 = vmatmul.mubr.bf16.gmra.mxu0 %v323
  %v689 = vpop.f32.mrf.mxu0
  %v690 = vadd.f32 %v167, %v689
  %v691 = vpop.f32.mrf.mxu0
  %v692 = vpop.f32.mrf.mxu0
  %v693 = vadd.f32 %v168, %v692
  %v694 = vpop.f32.mrf.mxu0
  %695 = vmatprep.mubr.bf16.mxu0 %v329
  %696 = vmatmul.mubr.bf16.gmra.mxu0 %v328
  %v697 = vpop.f32.mrf.mxu0
  %v698 = vadd.f32 %v169, %v697
  %v699 = vpop.f32.mrf.mxu0
  %v700 = vpop.f32.mrf.mxu0
  %v701 = vadd.f32 %v170, %v700
  %v702 = vpop.f32.mrf.mxu0
  %703 = vmatprep.mubr.bf16.mxu0 %v334
  %704 = vmatmul.mubr.bf16.gmra.mxu0 %v333
  %v705 = vpop.f32.mrf.mxu0
  %v706 = vadd.f32 %v171, %v705
  %v707 = vpop.f32.mrf.mxu0
  %v708 = vpop.f32.mrf.mxu0
  %v709 = vadd.f32 %v172, %v708
  %v710 = vpop.f32.mrf.mxu0
  %711 = vmatprep.mubr.bf16.mxu0 %v339
  %712 = vmatmul.mubr.bf16.gmra.mxu0 %v338
  %v713 = vpop.f32.mrf.mxu0
  %v714 = vadd.f32 %v173, %v713
  %v715 = vpop.f32.mrf.mxu0
  %v716 = vpop.f32.mrf.mxu0
  %v717 = vadd.f32 %v174, %v716
  %v718 = vpop.f32.mrf.mxu0
  %719 = vdwg.mxu0
  %720 = vmatprep.subr.bf16.mxu0 0
  %721 = vmatpush1.bf16.msra.mxu0 %v566
  %722 = vmatprep.subr.bf16.mxu0 0
  %723 = vmatpush1.bf16.msra.mxu0 %v565
  %724 = vmatprep.subr.bf16.mxu0 0
  %725 = vmatpush1.bf16.msra.mxu0 %v564
  %726 = vmatprep.subr.bf16.mxu0 0
  %727 = vmatpush1.bf16.msra.mxu0 %v563
  %728 = vmatprep.subr.bf16.mxu0 0
  %729 = vmatpush1.bf16.msra.mxu0 %v562
  %730 = vmatprep.subr.bf16.mxu0 0
  %731 = vmatpush1.bf16.msra.mxu0 %v561
  %732 = vmatprep.subr.bf16.mxu0 0
  %733 = vmatpush1.bf16.msra.mxu0 %v560
  %734 = vmatprep.subr.bf16.mxu0 0
  %735 = vmatpush1.bf16.msra.mxu0 %v559
  %736 = vmatprep.subr.bf16.mxu0 0
  %737 = vmatpush2.bf16.msra.mxu0 %v574
  %738 = vmatprep.subr.bf16.mxu0 0
  %739 = vmatpush2.bf16.msra.mxu0 %v573
  %740 = vmatprep.subr.bf16.mxu0 0
  %741 = vmatpush2.bf16.msra.mxu0 %v572
  %742 = vmatprep.subr.bf16.mxu0 0
  %743 = vmatpush2.bf16.msra.mxu0 %v571
  %744 = vmatprep.subr.bf16.mxu0 0
  %745 = vmatpush2.bf16.msra.mxu0 %v570
  %746 = vmatprep.subr.bf16.mxu0 0
  %747 = vmatpush2.bf16.msra.mxu0 %v569
  %748 = vmatprep.subr.bf16.mxu0 0
  %749 = vmatpush2.bf16.msra.mxu0 %v568
  %750 = vmatprep.subr.bf16.mxu0 0
  %751 = vmatpush2.bf16.msra.mxu0 %v567
  %752 = vmatprep.mubr.bf16.mxu0 %v306
  %753 = vmatmul.mubr.bf16.gmra.mxu0 %v305
  %v754 = vpop.f32.mrf.mxu0
  %v755 = vadd.f32 %v658, %v754
  %v756 = vpop.f32.mrf.mxu0
  %v757 = vpop.f32.mrf.mxu0
  %v758 = vadd.f32 %v661, %v757
  %v759 = vpop.f32.mrf.mxu0
  %760 = vmatprep.mubr.bf16.mxu0 %v311
  %761 = vmatmul.mubr.bf16.gmra.mxu0 %v310
  %v762 = vpop.f32.mrf.mxu0
  %v763 = vadd.f32 %v666, %v762
  %v764 = vpop.f32.mrf.mxu0
  %v765 = vpop.f32.mrf.mxu0
  %v766 = vadd.f32 %v669, %v765
  %v767 = vpop.f32.mrf.mxu0
  %768 = vmatprep.mubr.bf16.mxu0 %v316
  %769 = vmatmul.mubr.bf16.gmra.mxu0 %v315
  %v770 = vpop.f32.mrf.mxu0
  %v771 = vadd.f32 %v674, %v770
  %v772 = vpop.f32.mrf.mxu0
  %v773 = vpop.f32.mrf.mxu0
  %v774 = vadd.f32 %v677, %v773
  %v775 = vpop.f32.mrf.mxu0
  %776 = vmatprep.mubr.bf16.mxu0 %v321
  %777 = vmatmul.mubr.bf16.gmra.mxu0 %v320
  %v778 = vpop.f32.mrf.mxu0
  %v779 = vadd.f32 %v682, %v778
  %v780 = vpop.f32.mrf.mxu0
  %v781 = vpop.f32.mrf.mxu0
  %v782 = vadd.f32 %v685, %v781
  %v783 = vpop.f32.mrf.mxu0
  %784 = vmatprep.mubr.bf16.mxu0 %v326
  %785 = vmatmul.mubr.bf16.gmra.mxu0 %v325
  %v786 = vpop.f32.mrf.mxu0
  %v787 = vadd.f32 %v690, %v786
  %v788 = vpop.f32.mrf.mxu0
  %v789 = vpop.f32.mrf.mxu0
  %v790 = vadd.f32 %v693, %v789
  %v791 = vpop.f32.mrf.mxu0
  %792 = vmatprep.mubr.bf16.mxu0 %v331
  %793 = vmatmul.mubr.bf16.gmra.mxu0 %v330
  %v794 = vpop.f32.mrf.mxu0
  %v795 = vadd.f32 %v698, %v794
  %v796 = vpop.f32.mrf.mxu0
  %v797 = vpop.f32.mrf.mxu0
  %v798 = vadd.f32 %v701, %v797
  %v799 = vpop.f32.mrf.mxu0
  %800 = vmatprep.mubr.bf16.mxu0 %v336
  %801 = vmatmul.mubr.bf16.gmra.mxu0 %v335
  %v802 = vpop.f32.mrf.mxu0
  %v803 = vadd.f32 %v706, %v802
  %v804 = vpop.f32.mrf.mxu0
  %v805 = vpop.f32.mrf.mxu0
  %v806 = vadd.f32 %v709, %v805
  %v807 = vpop.f32.mrf.mxu0
  %808 = vmatprep.mubr.bf16.mxu0 %v341
  %809 = vmatmul.mubr.bf16.gmra.mxu0 %v340
  %v810 = vpop.f32.mrf.mxu0
  %v811 = vadd.f32 %v714, %v810
  %v812 = vpop.f32.mrf.mxu0
  %v813 = vpop.f32.mrf.mxu0
  %v814 = vadd.f32 %v717, %v813
  %v815 = vpop.f32.mrf.mxu0
  %816 = vdwg.mxu0
  %817 = vmatprep.subr.bf16.mxu0 0
  %818 = vmatpush1.bf16.msra.mxu0 %v582
  %819 = vmatprep.subr.bf16.mxu0 0
  %820 = vmatpush1.bf16.msra.mxu0 %v581
  %821 = vmatprep.subr.bf16.mxu0 0
  %822 = vmatpush1.bf16.msra.mxu0 %v580
  %823 = vmatprep.subr.bf16.mxu0 0
  %824 = vmatpush1.bf16.msra.mxu0 %v579
  %825 = vmatprep.subr.bf16.mxu0 0
  %826 = vmatpush1.bf16.msra.mxu0 %v578
  %827 = vmatprep.subr.bf16.mxu0 0
  %828 = vmatpush1.bf16.msra.mxu0 %v577
  %829 = vmatprep.subr.bf16.mxu0 0
  %830 = vmatpush1.bf16.msra.mxu0 %v576
  %831 = vmatprep.subr.bf16.mxu0 0
  %832 = vmatpush1.bf16.msra.mxu0 %v575
  %833 = vmatprep.subr.bf16.mxu0 0
  %834 = vmatpush2.bf16.msra.mxu0 0
  %835 = vmatprep.subr.bf16.mxu0 0
  %836 = vmatpush2.bf16.msra.mxu0 0
  %837 = vmatprep.subr.bf16.mxu0 0
  %838 = vmatpush2.bf16.msra.mxu0 0
  %839 = vmatprep.subr.bf16.mxu0 0
  %840 = vmatpush2.bf16.msra.mxu0 0
  %841 = vmatprep.subr.bf16.mxu0 0
  %842 = vmatpush2.bf16.msra.mxu0 0
  %843 = vmatprep.subr.bf16.mxu0 0
  %844 = vmatpush2.bf16.msra.mxu0 0
  %845 = vmatprep.subr.bf16.mxu0 0
  %846 = vmatpush2.bf16.msra.mxu0 0
  %847 = vmatprep.subr.bf16.mxu0 0
  %848 = vmatpush2.bf16.msra.mxu0 0
  %849 = vmatprep.mubr.bf16.mxu0 0
  %850 = vmatmul.mubr.bf16.gmra.mxu0 %v307
  %v851 = vpop.f32.mrf.mxu0
  %v852 = vadd.f32 %v755, %v851
  %v853 = vpop.f32.mrf.mxu0
  %v854 = vpop.f32.mrf.mxu0
  %v855 = vadd.f32 %v758, %v854
  %v856 = vpop.f32.mrf.mxu0
  %857 = vmatprep.mubr.bf16.mxu0 0
  %858 = vmatmul.mubr.bf16.gmra.mxu0 %v312
  %v859 = vpop.f32.mrf.mxu0
  %v860 = vadd.f32 %v763, %v859
  %v861 = vpop.f32.mrf.mxu0
  %v862 = vpop.f32.mrf.mxu0
  %v863 = vadd.f32 %v766, %v862
  %v864 = vpop.f32.mrf.mxu0
  %865 = vmatprep.mubr.bf16.mxu0 0
  %866 = vmatmul.mubr.bf16.gmra.mxu0 %v317
  %v867 = vpop.f32.mrf.mxu0
  %v868 = vadd.f32 %v771, %v867
  %v869 = vpop.f32.mrf.mxu0
  %v870 = vpop.f32.mrf.mxu0
  %v871 = vadd.f32 %v774, %v870
  %v872 = vpop.f32.mrf.mxu0
  %873 = vmatprep.mubr.bf16.mxu0 0
  %874 = vmatmul.mubr.bf16.gmra.mxu0 %v322
  %v875 = vpop.f32.mrf.mxu0
  %v876 = vadd.f32 %v779, %v875
  %v877 = vpop.f32.mrf.mxu0
  %v878 = vpop.f32.mrf.mxu0
  %v879 = vadd.f32 %v782, %v878
  %v880 = vpop.f32.mrf.mxu0
  %881 = vmatprep.mubr.bf16.mxu0 0
  %882 = vmatmul.mubr.bf16.gmra.mxu0 %v327
  %v883 = vpop.f32.mrf.mxu0
  %v884 = vadd.f32 %v787, %v883
  %v885 = vpop.f32.mrf.mxu0
  %v886 = vpop.f32.mrf.mxu0
  %v887 = vadd.f32 %v790, %v886
  %v888 = vpop.f32.mrf.mxu0
  %889 = vmatprep.mubr.bf16.mxu0 0
  %890 = vmatmul.mubr.bf16.gmra.mxu0 %v332
  %v891 = vpop.f32.mrf.mxu0
  %v892 = vadd.f32 %v795, %v891
  %v893 = vpop.f32.mrf.mxu0
  %v894 = vpop.f32.mrf.mxu0
  %v895 = vadd.f32 %v798, %v894
  %v896 = vpop.f32.mrf.mxu0
  %897 = vmatprep.mubr.bf16.mxu0 0
  %898 = vmatmul.mubr.bf16.gmra.mxu0 %v337
  %v899 = vpop.f32.mrf.mxu0
  %v900 = vadd.f32 %v803, %v899
  %v901 = vpop.f32.mrf.mxu0
  %v902 = vpop.f32.mrf.mxu0
  %v903 = vadd.f32 %v806, %v902
  %v904 = vpop.f32.mrf.mxu0
  %905 = vmatprep.mubr.bf16.mxu0 0
  %906 = vmatmul.mubr.bf16.gmra.mxu0 %v342
  %v907 = vpop.f32.mrf.mxu0
  %v908 = vadd.f32 %v811, %v907
  %v909 = vpop.f32.mrf.mxu0
  %v910 = vpop.f32.mrf.mxu0
  %v911 = vadd.f32 %v814, %v910
  %v912 = vpop.f32.mrf.mxu0
  %913 = vdwg.mxu0
  %v914 = vmax.f32 %v852, 0.0
  %v915 = vmax.f32 %v855, 0.0
  %v916 = vmax.f32 %v860, 0.0
  %v917 = vmax.f32 %v863, 0.0
  %v918 = vmax.f32 %v868, 0.0
  %v919 = vmax.f32 %v871, 0.0
  %v920 = vmax.f32 %v876, 0.0
  %v921 = vmax.f32 %v879, 0.0
  %v922 = vmax.f32 %v884, 0.0
  %v923 = vmax.f32 %v887, 0.0
  %v924 = vmax.f32 %v892, 0.0
  %v925 = vmax.f32 %v895, 0.0
  %v926 = vmax.f32 %v900, 0.0
  %v927 = vmax.f32 %v903, 0.0
  %v928 = vmax.f32 %v908, 0.0
  %v929 = vmax.f32 %v911, 0.0
  %v930 = vpack.c.bf16 %v915, %v914
  %v931 = vpack.c.bf16 %v917, %v916
  %v932 = vpack.c.bf16 %v919, %v918
  %v933 = vpack.c.bf16 %v921, %v920
  %v934 = vpack.c.bf16 %v923, %v922
  %v935 = vpack.c.bf16 %v925, %v924
  %v936 = vpack.c.bf16 %v927, %v926
  %v937 = vpack.c.bf16 %v929, %v928
  %v946 = vunpack.c.l.b16 %v930
  %v947 = vunpack.c.h.b16 %v930
  %v948 = vunpack.c.l.b16 %v931
  %v949 = vunpack.c.h.b16 %v931
  %v950 = vunpack.c.l.b16 %v932
  %v951 = vunpack.c.h.b16 %v932
  %v952 = vunpack.c.l.b16 %v933
  %v953 = vunpack.c.h.b16 %v933
  %v954 = vunpack.c.l.b16 %v934
  %v955 = vunpack.c.h.b16 %v934
  %v956 = vunpack.c.l.b16 %v935
  %v957 = vunpack.c.h.b16 %v935
  %v958 = vunpack.c.l.b16 %v936
  %v959 = vunpack.c.h.b16 %v936
  %v960 = vunpack.c.l.b16 %v937
  %v961 = vunpack.c.h.b16 %v937
  %v962 = vpack.c.b16 %v946, %v946
  %v963 = vpack.c.b16 %v947, %v947
  %v964 = vpack.c.b16 %v948, %v948
  %v965 = vpack.c.b16 %v949, %v949
  %v966 = vpack.c.b16 %v950, %v950
  %v967 = vpack.c.b16 %v951, %v951
  %v968 = vpack.c.b16 %v952, %v952
  %v969 = vpack.c.b16 %v953, %v953
  %v970 = vpack.c.b16 %v954, %v954
  %v971 = vpack.c.b16 %v955, %v955
  %v972 = vpack.c.b16 %v956, %v956
  %v973 = vpack.c.b16 %v957, %v957
  %v974 = vpack.c.b16 %v958, %v958
  %v975 = vpack.c.b16 %v959, %v959
  %v976 = vpack.c.b16 %v960, %v960
  %v977 = vpack.c.b16 %v961, %v961
  %994 = vst [vmem:[%s3] sm:$0xf] %v962
  %995 = vst [vmem:[%s3 + $0x4] sm:$0xf] %v963
  %996 = vst [vmem:[%s3 + $0x8] sm:$0xf] %v964
  %997 = vst [vmem:[%s3 + $0xc] sm:$0xf] %v965
  %998 = vst [vmem:[%s3 + $0x10] sm:$0xf] %v966
  %999 = vst [vmem:[%s3 + $0x14] sm:$0xf] %v967
  %1000 = vst [vmem:[%s3 + $0x18] sm:$0xf] %v968
  %1001 = vst [vmem:[%s3 + $0x1c] sm:$0xf] %v969
  %1002 = vst [vmem:[%s3 + $0x20] sm:$0xf] %v970
  %1003 = vst [vmem:[%s3 + $0x24] sm:$0xf] %v971
  %1004 = vst [vmem:[%s3 + $0x28] sm:$0xf] %v972
  %1005 = vst [vmem:[%s3 + $0x2c] sm:$0xf] %v973
  %1006 = vst [vmem:[%s3 + $0x30] sm:$0xf] %v974
  %1007 = vst [vmem:[%s3 + $0x34] sm:$0xf] %v975
  %1008 = vst [vmem:[%s3 + $0x38] sm:$0xf] %v976
  %1009 = vst [vmem:[%s3 + $0x3c] sm:$0xf] %v977
  // Predicated region
  $region14: #{student_resnet_forward.15} parent=0 // pred_check
    _
  $region15: #{student_resnet_forward.15} parent=0 // pred_check_branch
    %1011 = sbr.rel (0) target = $region17
  $region16: #{student_resnet_forward.15} parent=0 // pred_region
    _
  $region17: #{student_resnet_forward.15} parent=0 // pred_fallthru
    _
  // Predicated region
  $region18: #{student_resnet_forward.15} parent=0 // pred_check
    _
  $region19: #{student_resnet_forward.15} parent=0 // pred_check_branch
    %1013 = sbr.rel (0) target = $region21
  $region20: #{student_resnet_forward.15} parent=0 // pred_region
    _
  $region21: #{student_resnet_forward.15} parent=0 // pred_fallthru
    _

// kernel: student_resnet_forward.16
$region0: #{student_resnet_forward.16}
  #allocation0 [shape = 'u32[]', space=smem, size = 0x4, offset = 0x4, fixed_abs, tag = 'smem constant byte address 0x4 - core index']
  #allocation1 [shape = 'u32[144,128]{1,0:T(1,128)}', space=vmem, size = 0x12000, scoped, tag = 'internal scratch']
  %s0 = inlined_call_operand.vmem [shape: bf16[32,640], index: 0, kind: input, shape index: {}]
  %s1 = inlined_call_operand.vmem [shape: bf16[640,128], index: 1, kind: input, shape index: {}]
  %s2 = inlined_call_operand.vmem [shape: bf16[32,128], index: 2, kind: output, shape index: {}]
  %s3 = sld [smem:[#allocation0]]
  $region18: #{student_resnet_forward.16} parent=0
    _
  %s5 = ssub.s32 1, %s3
  %s6 = scalar_select 0, %s5, %s3
  // Predicated region
  $region2: #{student_resnet_forward.16} parent=0 // pred_check
    _
  $region3: #{student_resnet_forward.16} parent=0 // pred_check_branch
    %8 = sbr.rel (0) target = $region5
  $region4: #{student_resnet_forward.16} parent=0 // pred_region
    _
  $region5: #{student_resnet_forward.16} parent=0 // pred_fallthru
    _
  // Predicated region
  $region6: #{student_resnet_forward.16} parent=0 // pred_check
    _
  $region7: #{student_resnet_forward.16} parent=0 // pred_check_branch
    %10 = sbr.rel (0) target = $region9
  $region8: #{student_resnet_forward.16} parent=0 // pred_region
    _
  $region9: #{student_resnet_forward.16} parent=0 // pred_fallthru
    _
  %v12 = vld [vmem:[%s0] sm:$0xff]
  %v13 = vld [vmem:[%s0 + $0x8] sm:$0xff]
  %v14 = vld [vmem:[%s0 + $0x10] sm:$0xf]
  %v15 = vld [vmem:[%s0 + $0x14] sm:$0xff]
  %v16 = vld [vmem:[%s0 + $0x1c] sm:$0xff]
  %v17 = vld [vmem:[%s0 + $0x24] sm:$0xf]
  %v18 = vld [vmem:[%s0 + $0x28] sm:$0xff]
  %v19 = vld [vmem:[%s0 + $0x30] sm:$0xff]
  %v20 = vld [vmem:[%s0 + $0x38] sm:$0xf]
  %v21 = vld [vmem:[%s0 + $0x3c] sm:$0xff]
  %v22 = vld [vmem:[%s0 + $0x44] sm:$0xff]
  %v23 = vld [vmem:[%s0 + $0x4c] sm:$0xf]
  %v24 = vld [vmem:[%s1] sm:$0xf]
  %v25 = vld [vmem:[%s1 + $0x4] sm:$0xf]
  %v26 = vld [vmem:[%s1 + $0x8] sm:$0xf]
  %v27 = vld [vmem:[%s1 + $0xc] sm:$0xf]
  %v28 = vld [vmem:[%s1 + $0x10] sm:$0xf]
  %v29 = vld [vmem:[%s1 + $0x14] sm:$0xf]
  %v30 = vld [vmem:[%s1 + $0x18] sm:$0xf]
  %v31 = vld [vmem:[%s1 + $0x1c] sm:$0xf]
  %v32 = vld [vmem:[%s1 + $0x20] sm:$0xf]
  %v33 = vld [vmem:[%s1 + $0x24] sm:$0xf]
  %v34 = vld [vmem:[%s1 + $0x28] sm:$0xf]
  %v35 = vld [vmem:[%s1 + $0x2c] sm:$0xf]
  %v36 = vld [vmem:[%s1 + $0x30] sm:$0xf]
  %v37 = vld [vmem:[%s1 + $0x34] sm:$0xf]
  %v38 = vld [vmem:[%s1 + $0x38] sm:$0xf]
  %v39 = vld [vmem:[%s1 + $0x3c] sm:$0xf]
  %v40 = vld [vmem:[%s1 + $0x40] sm:$0xf]
  %v41 = vld [vmem:[%s1 + $0x44] sm:$0xf]
  %v42 = vld [vmem:[%s1 + $0x48] sm:$0xf]
  %v43 = vld [vmem:[%s1 + $0x4c] sm:$0xf]
  %v44 = vld [vmem:[%s1 + $0x50] sm:$0xf]
  %v45 = vld [vmem:[%s1 + $0x54] sm:$0xf]
  %v46 = vld [vmem:[%s1 + $0x58] sm:$0xf]
  %v47 = vld [vmem:[%s1 + $0x5c] sm:$0xf]
  %v48 = vld [vmem:[%s1 + $0x60] sm:$0xf]
  %v49 = vld [vmem:[%s1 + $0x64] sm:$0xf]
  %v50 = vld [vmem:[%s1 + $0x68] sm:$0xf]
  %v51 = vld [vmem:[%s1 + $0x6c] sm:$0xf]
  %v52 = vld [vmem:[%s1 + $0x70] sm:$0xf]
  %v53 = vld [vmem:[%s1 + $0x74] sm:$0xf]
  %v54 = vld [vmem:[%s1 + $0x78] sm:$0xf]
  %v55 = vld [vmem:[%s1 + $0x7c] sm:$0xf]
  %v56 = vld [vmem:[%s1 + $0x80] sm:$0xf]
  %v57 = vld [vmem:[%s1 + $0x84] sm:$0xf]
  %v58 = vld [vmem:[%s1 + $0x88] sm:$0xf]
  %v59 = vld [vmem:[%s1 + $0x8c] sm:$0xf]
  %v60 = vld [vmem:[%s1 + $0x90] sm:$0xf]
  %v61 = vld [vmem:[%s1 + $0x94] sm:$0xf]
  %v62 = vld [vmem:[%s1 + $0x98] sm:$0xf]
  %v63 = vld [vmem:[%s1 + $0x9c] sm:$0xf]
  %v64 = vld [vmem:[%s1 + $0xa0] sm:$0xf]
  %v65 = vld [vmem:[%s1 + $0xa4] sm:$0xf]
  %v66 = vld [vmem:[%s1 + $0xa8] sm:$0xf]
  %v67 = vld [vmem:[%s1 + $0xac] sm:$0xf]
  %v68 = vld [vmem:[%s1 + $0xb0] sm:$0xf]
  %v69 = vld [vmem:[%s1 + $0xb4] sm:$0xf]
  %v70 = vld [vmem:[%s1 + $0xb8] sm:$0xf]
  %v71 = vld [vmem:[%s1 + $0xbc] sm:$0xf]
  %v72 = vld [vmem:[%s1 + $0xc0] sm:$0xf]
  %v73 = vld [vmem:[%s1 + $0xc4] sm:$0xf]
  %v74 = vld [vmem:[%s1 + $0xc8] sm:$0xf]
  %v75 = vld [vmem:[%s1 + $0xcc] sm:$0xf]
  %v76 = vld [vmem:[%s1 + $0xd0] sm:$0xf]
  %v77 = vld [vmem:[%s1 + $0xd4] sm:$0xf]
  %v78 = vld [vmem:[%s1 + $0xd8] sm:$0xf]
  %v79 = vld [vmem:[%s1 + $0xdc] sm:$0xf]
  %v80 = vld [vmem:[%s1 + $0xe0] sm:$0xf]
  %v81 = vld [vmem:[%s1 + $0xe4] sm:$0xf]
  %v82 = vld [vmem:[%s1 + $0xe8] sm:$0xf]
  %v83 = vld [vmem:[%s1 + $0xec] sm:$0xf]
  %v84 = vld [vmem:[%s1 + $0xf0] sm:$0xf]
  %v85 = vld [vmem:[%s1 + $0xf4] sm:$0xf]
  %v86 = vld [vmem:[%s1 + $0xf8] sm:$0xf]
  %v87 = vld [vmem:[%s1 + $0xfc] sm:$0xf]
  %v88 = vld [vmem:[%s1 + $0x100] sm:$0xf]
  %v89 = vld [vmem:[%s1 + $0x104] sm:$0xf]
  %v90 = vld [vmem:[%s1 + $0x108] sm:$0xf]
  %v91 = vld [vmem:[%s1 + $0x10c] sm:$0xf]
  %v92 = vld [vmem:[%s1 + $0x110] sm:$0xf]
  %v93 = vld [vmem:[%s1 + $0x114] sm:$0xf]
  %v94 = vld [vmem:[%s1 + $0x118] sm:$0xf]
  %v95 = vld [vmem:[%s1 + $0x11c] sm:$0xf]
  %v96 = vld [vmem:[%s1 + $0x120] sm:$0xf]
  %v97 = vld [vmem:[%s1 + $0x124] sm:$0xf]
  %v98 = vld [vmem:[%s1 + $0x128] sm:$0xf]
  %v99 = vld [vmem:[%s1 + $0x12c] sm:$0xf]
  %v100 = vld [vmem:[%s1 + $0x130] sm:$0xf]
  %v101 = vld [vmem:[%s1 + $0x134] sm:$0xf]
  %v102 = vld [vmem:[%s1 + $0x138] sm:$0xf]
  %v103 = vld [vmem:[%s1 + $0x13c] sm:$0xf]
  %v116 = vunpack.c.l.b16 %v12
  %v117 = vunpack.c.h.b16 %v12
  %v118 = vunpack.c.l.b16 %v13
  %v119 = vunpack.c.h.b16 %v13
  %v120 = vunpack.c.l.b16 %v14
  %v121 = vunpack.c.l.b16 %v15
  %v122 = vunpack.c.h.b16 %v15
  %v123 = vunpack.c.l.b16 %v16
  %v124 = vunpack.c.h.b16 %v16
  %v125 = vunpack.c.l.b16 %v17
  %v126 = vunpack.c.l.b16 %v18
  %v127 = vunpack.c.h.b16 %v18
  %v128 = vunpack.c.l.b16 %v19
  %v129 = vunpack.c.h.b16 %v19
  %v130 = vunpack.c.l.b16 %v20
  %v131 = vunpack.c.l.b16 %v21
  %v132 = vunpack.c.h.b16 %v21
  %v133 = vunpack.c.l.b16 %v22
  %v134 = vunpack.c.h.b16 %v22
  %v135 = vunpack.c.l.b16 %v23
  %v136 = vpack.c.b16 %v121, %v116
  %v137 = vpack.c.b16 %v122, %v117
  %v138 = vpack.c.b16 %v123, %v118
  %v139 = vpack.c.b16 %v124, %v119
  %v140 = vpack.c.b16 %v125, %v120
  %v141 = vpack.c.b16 %v131, %v126
  %v142 = vpack.c.b16 %v132, %v127
  %v143 = vpack.c.b16 %v133, %v128
  %v144 = vpack.c.b16 %v134, %v129
  %v145 = vpack.c.b16 %v135, %v130
  %v236 = vunpack.c.l.b16 %v24
  %v237 = vunpack.c.l.b16 %v25
  %v238 = vunpack.c.l.b16 %v26
  %v239 = vunpack.c.l.b16 %v27
  %v240 = vunpack.c.l.b16 %v28
  %v241 = vunpack.c.l.b16 %v29
  %v242 = vunpack.c.l.b16 %v30
  %v243 = vunpack.c.l.b16 %v31
  %v244 = vunpack.c.l.b16 %v32
  %v245 = vunpack.c.l.b16 %v33
  %v246 = vunpack.c.l.b16 %v34
  %v247 = vunpack.c.l.b16 %v35
  %v248 = vunpack.c.l.b16 %v36
  %v249 = vunpack.c.l.b16 %v37
  %v250 = vunpack.c.l.b16 %v38
  %v251 = vunpack.c.l.b16 %v39
  %v252 = vunpack.c.l.b16 %v40
  %v253 = vunpack.c.l.b16 %v41
  %v254 = vunpack.c.l.b16 %v42
  %v255 = vunpack.c.l.b16 %v43
  %v256 = vunpack.c.l.b16 %v44
  %v257 = vunpack.c.l.b16 %v45
  %v258 = vunpack.c.l.b16 %v46
  %v259 = vunpack.c.l.b16 %v47
  %v260 = vunpack.c.l.b16 %v48
  %v261 = vunpack.c.l.b16 %v49
  %v262 = vunpack.c.l.b16 %v50
  %v263 = vunpack.c.l.b16 %v51
  %v264 = vunpack.c.l.b16 %v52
  %v265 = vunpack.c.l.b16 %v53
  %v266 = vunpack.c.l.b16 %v54
  %v267 = vunpack.c.l.b16 %v55
  %v268 = vunpack.c.l.b16 %v56
  %v269 = vunpack.c.l.b16 %v57
  %v270 = vunpack.c.l.b16 %v58
  %v271 = vunpack.c.l.b16 %v59
  %v272 = vunpack.c.l.b16 %v60
  %v273 = vunpack.c.l.b16 %v61
  %v274 = vunpack.c.l.b16 %v62
  %v275 = vunpack.c.l.b16 %v63
  %v276 = vunpack.c.l.b16 %v64
  %v277 = vunpack.c.l.b16 %v65
  %v278 = vunpack.c.l.b16 %v66
  %v279 = vunpack.c.l.b16 %v67
  %v280 = vunpack.c.l.b16 %v68
  %v281 = vunpack.c.l.b16 %v69
  %v282 = vunpack.c.l.b16 %v70
  %v283 = vunpack.c.l.b16 %v71
  %v284 = vunpack.c.l.b16 %v72
  %v285 = vunpack.c.l.b16 %v73
  %v286 = vunpack.c.l.b16 %v74
  %v287 = vunpack.c.l.b16 %v75
  %v288 = vunpack.c.l.b16 %v76
  %v289 = vunpack.c.l.b16 %v77
  %v290 = vunpack.c.l.b16 %v78
  %v291 = vunpack.c.l.b16 %v79
  %v292 = vunpack.c.l.b16 %v80
  %v293 = vunpack.c.l.b16 %v81
  %v294 = vunpack.c.l.b16 %v82
  %v295 = vunpack.c.l.b16 %v83
  %v296 = vunpack.c.l.b16 %v84
  %v297 = vunpack.c.l.b16 %v85
  %v298 = vunpack.c.l.b16 %v86
  %v299 = vunpack.c.l.b16 %v87
  %v300 = vunpack.c.l.b16 %v88
  %v301 = vunpack.c.l.b16 %v89
  %v302 = vunpack.c.l.b16 %v90
  %v303 = vunpack.c.l.b16 %v91
  %v304 = vunpack.c.l.b16 %v92
  %v305 = vunpack.c.l.b16 %v93
  %v306 = vunpack.c.l.b16 %v94
  %v307 = vunpack.c.l.b16 %v95
  %v308 = vunpack.c.l.b16 %v96
  %v309 = vunpack.c.l.b16 %v97
  %v310 = vunpack.c.l.b16 %v98
  %v311 = vunpack.c.l.b16 %v99
  %v312 = vunpack.c.l.b16 %v100
  %v313 = vunpack.c.l.b16 %v101
  %v314 = vunpack.c.l.b16 %v102
  %v315 = vunpack.c.l.b16 %v103
  %v316 = vpack.c.b16 %v237, %v236
  %v317 = vpack.c.b16 %v239, %v238
  %v318 = vpack.c.b16 %v241, %v240
  %v319 = vpack.c.b16 %v243, %v242
  %v320 = vpack.c.b16 %v245, %v244
  %v321 = vpack.c.b16 %v247, %v246
  %v322 = vpack.c.b16 %v249, %v248
  %v323 = vpack.c.b16 %v251, %v250
  %v324 = vpack.c.b16 %v253, %v252
  %v325 = vpack.c.b16 %v255, %v254
  %v326 = vpack.c.b16 %v257, %v256
  %v327 = vpack.c.b16 %v259, %v258
  %v328 = vpack.c.b16 %v261, %v260
  %v329 = vpack.c.b16 %v263, %v262
  %v330 = vpack.c.b16 %v265, %v264
  %v331 = vpack.c.b16 %v267, %v266
  %v332 = vpack.c.b16 %v269, %v268
  %v333 = vpack.c.b16 %v271, %v270
  %v334 = vpack.c.b16 %v273, %v272
  %v335 = vpack.c.b16 %v275, %v274
  %v336 = vpack.c.b16 %v277, %v276
  %v337 = vpack.c.b16 %v279, %v278
  %v338 = vpack.c.b16 %v281, %v280
  %v339 = vpack.c.b16 %v283, %v282
  %v340 = vpack.c.b16 %v285, %v284
  %v341 = vpack.c.b16 %v287, %v286
  %v342 = vpack.c.b16 %v289, %v288
  %v343 = vpack.c.b16 %v291, %v290
  %v344 = vpack.c.b16 %v293, %v292
  %v345 = vpack.c.b16 %v295, %v294
  %v346 = vpack.c.b16 %v297, %v296
  %v347 = vpack.c.b16 %v299, %v298
  %v348 = vpack.c.b16 %v301, %v300
  %v349 = vpack.c.b16 %v303, %v302
  %v350 = vpack.c.b16 %v305, %v304
  %v351 = vpack.c.b16 %v307, %v306
  %v352 = vpack.c.b16 %v309, %v308
  %v353 = vpack.c.b16 %v311, %v310
  %v354 = vpack.c.b16 %v313, %v312
  %v355 = vpack.c.b16 %v315, %v314
  %396 = vmatprep.subr.bf16.mxu0 0
  %397 = vmatpush1.bf16.msra.mxu0 %v323
  %398 = vmatprep.subr.bf16.mxu0 0
  %399 = vmatpush1.bf16.msra.mxu0 %v322
  %400 = vmatprep.subr.bf16.mxu0 0
  %401 = vmatpush1.bf16.msra.mxu0 %v321
  %402 = vmatprep.subr.bf16.mxu0 0
  %403 = vmatpush1.bf16.msra.mxu0 %v320
  %404 = vmatprep.subr.bf16.mxu0 0
  %405 = vmatpush1.bf16.msra.mxu0 %v319
  %406 = vmatprep.subr.bf16.mxu0 0
  %407 = vmatpush1.bf16.msra.mxu0 %v318
  %408 = vmatprep.subr.bf16.mxu0 0
  %409 = vmatpush1.bf16.msra.mxu0 %v317
  %410 = vmatprep.subr.bf16.mxu0 0
  %411 = vmatpush1.bf16.msra.mxu0 %v316
  %412 = vmatprep.subr.bf16.mxu0 0
  %413 = vmatpush2.bf16.msra.mxu0 %v331
  %414 = vmatprep.subr.bf16.mxu0 0
  %415 = vmatpush2.bf16.msra.mxu0 %v330
  %416 = vmatprep.subr.bf16.mxu0 0
  %417 = vmatpush2.bf16.msra.mxu0 %v329
  %418 = vmatprep.subr.bf16.mxu0 0
  %419 = vmatpush2.bf16.msra.mxu0 %v328
  %420 = vmatprep.subr.bf16.mxu0 0
  %421 = vmatpush2.bf16.msra.mxu0 %v327
  %422 = vmatprep.subr.bf16.mxu0 0
  %423 = vmatpush2.bf16.msra.mxu0 %v326
  %424 = vmatprep.subr.bf16.mxu0 0
  %425 = vmatpush2.bf16.msra.mxu0 %v325
  %426 = vmatprep.subr.bf16.mxu0 0
  %427 = vmatpush2.bf16.msra.mxu0 %v324
  %428 = vmatprep.mubr.bf16.mxu0 %v137
  %429 = vmatmul.mubr.bf16.gmra.mxu0 %v136
  %v430 = vpop.f32.mrf.mxu0
  %v431 = vadd.f32 0.0, %v430
  %v432 = vpop.f32.mrf.mxu0
  %v433 = vpop.f32.mrf.mxu0
  %v434 = vadd.f32 0.0, %v433
  %v435 = vpop.f32.mrf.mxu0
  %436 = vmatprep.mubr.bf16.mxu0 %v142
  %437 = vmatmul.mubr.bf16.gmra.mxu0 %v141
  %v438 = vpop.f32.mrf.mxu0
  %v439 = vadd.f32 0.0, %v438
  %v440 = vpop.f32.mrf.mxu0
  %v441 = vpop.f32.mrf.mxu0
  %v442 = vadd.f32 0.0, %v441
  %v443 = vpop.f32.mrf.mxu0
  %444 = vdwg.mxu0
  %445 = vmatprep.subr.bf16.mxu0 0
  %446 = vmatpush1.bf16.msra.mxu0 %v339
  %447 = vmatprep.subr.bf16.mxu0 0
  %448 = vmatpush1.bf16.msra.mxu0 %v338
  %449 = vmatprep.subr.bf16.mxu0 0
  %450 = vmatpush1.bf16.msra.mxu0 %v337
  %451 = vmatprep.subr.bf16.mxu0 0
  %452 = vmatpush1.bf16.msra.mxu0 %v336
  %453 = vmatprep.subr.bf16.mxu0 0
  %454 = vmatpush1.bf16.msra.mxu0 %v335
  %455 = vmatprep.subr.bf16.mxu0 0
  %456 = vmatpush1.bf16.msra.mxu0 %v334
  %457 = vmatprep.subr.bf16.mxu0 0
  %458 = vmatpush1.bf16.msra.mxu0 %v333
  %459 = vmatprep.subr.bf16.mxu0 0
  %460 = vmatpush1.bf16.msra.mxu0 %v332
  %461 = vmatprep.subr.bf16.mxu0 0
  %462 = vmatpush2.bf16.msra.mxu0 %v347
  %463 = vmatprep.subr.bf16.mxu0 0
  %464 = vmatpush2.bf16.msra.mxu0 %v346
  %465 = vmatprep.subr.bf16.mxu0 0
  %466 = vmatpush2.bf16.msra.mxu0 %v345
  %467 = vmatprep.subr.bf16.mxu0 0
  %468 = vmatpush2.bf16.msra.mxu0 %v344
  %469 = vmatprep.subr.bf16.mxu0 0
  %470 = vmatpush2.bf16.msra.mxu0 %v343
  %471 = vmatprep.subr.bf16.mxu0 0
  %472 = vmatpush2.bf16.msra.mxu0 %v342
  %473 = vmatprep.subr.bf16.mxu0 0
  %474 = vmatpush2.bf16.msra.mxu0 %v341
  %475 = vmatprep.subr.bf16.mxu0 0
  %476 = vmatpush2.bf16.msra.mxu0 %v340
  %477 = vmatprep.mubr.bf16.mxu0 %v139
  %478 = vmatmul.mubr.bf16.gmra.mxu0 %v138
  %v479 = vpop.f32.mrf.mxu0
  %v480 = vadd.f32 %v431, %v479
  %v481 = vpop.f32.mrf.mxu0
  %v482 = vpop.f32.mrf.mxu0
  %v483 = vadd.f32 %v434, %v482
  %v484 = vpop.f32.mrf.mxu0
  %485 = vmatprep.mubr.bf16.mxu0 %v144
  %486 = vmatmul.mubr.bf16.gmra.mxu0 %v143
  %v487 = vpop.f32.mrf.mxu0
  %v488 = vadd.f32 %v439, %v487
  %v489 = vpop.f32.mrf.mxu0
  %v490 = vpop.f32.mrf.mxu0
  %v491 = vadd.f32 %v442, %v490
  %v492 = vpop.f32.mrf.mxu0
  %493 = vdwg.mxu0
  %494 = vmatprep.subr.bf16.mxu0 0
  %495 = vmatpush1.bf16.msra.mxu0 %v355
  %496 = vmatprep.subr.bf16.mxu0 0
  %497 = vmatpush1.bf16.msra.mxu0 %v354
  %498 = vmatprep.subr.bf16.mxu0 0
  %499 = vmatpush1.bf16.msra.mxu0 %v353
  %500 = vmatprep.subr.bf16.mxu0 0
  %501 = vmatpush1.bf16.msra.mxu0 %v352
  %502 = vmatprep.subr.bf16.mxu0 0
  %503 = vmatpush1.bf16.msra.mxu0 %v351
  %504 = vmatprep.subr.bf16.mxu0 0
  %505 = vmatpush1.bf16.msra.mxu0 %v350
  %506 = vmatprep.subr.bf16.mxu0 0
  %507 = vmatpush1.bf16.msra.mxu0 %v349
  %508 = vmatprep.subr.bf16.mxu0 0
  %509 = vmatpush1.bf16.msra.mxu0 %v348
  %510 = vmatprep.subr.bf16.mxu0 0
  %511 = vmatpush2.bf16.msra.mxu0 0
  %512 = vmatprep.subr.bf16.mxu0 0
  %513 = vmatpush2.bf16.msra.mxu0 0
  %514 = vmatprep.subr.bf16.mxu0 0
  %515 = vmatpush2.bf16.msra.mxu0 0
  %516 = vmatprep.subr.bf16.mxu0 0
  %517 = vmatpush2.bf16.msra.mxu0 0
  %518 = vmatprep.subr.bf16.mxu0 0
  %519 = vmatpush2.bf16.msra.mxu0 0
  %520 = vmatprep.subr.bf16.mxu0 0
  %521 = vmatpush2.bf16.msra.mxu0 0
  %522 = vmatprep.subr.bf16.mxu0 0
  %523 = vmatpush2.bf16.msra.mxu0 0
  %524 = vmatprep.subr.bf16.mxu0 0
  %525 = vmatpush2.bf16.msra.mxu0 0
  %526 = vmatprep.mubr.bf16.mxu0 0
  %527 = vmatmul.mubr.bf16.gmra.mxu0 %v140
  %v528 = vpop.f32.mrf.mxu0
  %v529 = vadd.f32 %v480, %v528
  %v530 = vpop.f32.mrf.mxu0
  %v531 = vpop.f32.mrf.mxu0
  %v532 = vadd.f32 %v483, %v531
  %v533 = vpop.f32.mrf.mxu0
  %534 = vmatprep.mubr.bf16.mxu0 0
  %535 = vmatmul.mubr.bf16.gmra.mxu0 %v145
  %v536 = vpop.f32.mrf.mxu0
  %v537 = vadd.f32 %v488, %v536
  %v538 = vpop.f32.mrf.mxu0
  %v539 = vpop.f32.mrf.mxu0
  %v540 = vadd.f32 %v491, %v539
  %v541 = vpop.f32.mrf.mxu0
  %542 = vdwg.mxu0
  %v543 = vlaneseq
  %v544 = vand.u32 %v543, 127
  %vm545 = vcmp.lt.s32.totalorder %v544, 64
  %v546 = vmax.f32 %v529, 0.0
  %v547 = vmax.f32 %v532, 0.0
  %v548 = vmax.f32 %v537, 0.0
  %v549 = vmax.f32 %v540, 0.0
  %v550 = vsel %vm545, %v546, %v529
  %v551 = vsel %vm545, %v547, %v532
  %v552 = vsel %vm545, %v548, %v537
  %v553 = vsel %vm545, %v549, %v540
  %v554 = vpack.c.bf16 %v551, %v550
  %v555 = vpack.c.bf16 %v553, %v552
  %v558 = vunpack.c.l.b16 %v554
  %v559 = vunpack.c.h.b16 %v554
  %v560 = vunpack.c.l.b16 %v555
  %v561 = vunpack.c.h.b16 %v555
  %v562 = vpack.c.b16 %v558, %v558
  %v563 = vpack.c.b16 %v559, %v559
  %v564 = vpack.c.b16 %v560, %v560
  %v565 = vpack.c.b16 %v561, %v561
  %570 = vst [vmem:[%s2] sm:$0xf] %v562
  %571 = vst [vmem:[%s2 + $0x4] sm:$0xf] %v563
  %572 = vst [vmem:[%s2 + $0x8] sm:$0xf] %v564
  %573 = vst [vmem:[%s2 + $0xc] sm:$0xf] %v565
  // Predicated region
  $region10: #{student_resnet_forward.16} parent=0 // pred_check
    _
  $region11: #{student_resnet_forward.16} parent=0 // pred_check_branch
    %575 = sbr.rel (0) target = $region13
  $region12: #{student_resnet_forward.16} parent=0 // pred_region
    _
  $region13: #{student_resnet_forward.16} parent=0 // pred_fallthru
    _
  // Predicated region
  $region14: #{student_resnet_forward.16} parent=0 // pred_check
    _
  $region15: #{student_resnet_forward.16} parent=0 // pred_check_branch
    %577 = sbr.rel (0) target = $region17
  $region16: #{student_resnet_forward.16} parent=0 // pred_region
    _
  $region17: #{student_resnet_forward.16} parent=0 // pred_fallthru
    _

// kernel: student_resnet_forward.17
$region0: #{student_resnet_forward.17}
  #allocation0 [shape = 'u32[]', space=smem, size = 0x4, offset = 0x4, fixed_abs, tag = 'smem constant byte address 0x4 - core index']
  #allocation1 [shape = 'u32[144,128]{1,0:T(1,128)}', space=vmem, size = 0x12000, scoped, tag = 'internal scratch']
  %s0 = inlined_call_operand.vmem [shape: bf16[32,640], index: 0, kind: input, shape index: {}]
  %s1 = inlined_call_operand.vmem [shape: bf16[640,128], index: 1, kind: input, shape index: {}]
  %s2 = inlined_call_operand.vmem [shape: bf16[32,128], index: 2, kind: input, shape index: {}]
  %s3 = inlined_call_operand.vmem [shape: bf16[32,128], index: 3, kind: output, shape index: {}]
  %s4 = sld [smem:[#allocation0]]
  $region22: #{student_resnet_forward.17} parent=0
    _
  %s6 = ssub.s32 1, %s4
  %s7 = scalar_select 0, %s6, %s4
  // Predicated region
  $region2: #{student_resnet_forward.17} parent=0 // pred_check
    _
  $region3: #{student_resnet_forward.17} parent=0 // pred_check_branch
    %9 = sbr.rel (0) target = $region5
  $region4: #{student_resnet_forward.17} parent=0 // pred_region
    _
  $region5: #{student_resnet_forward.17} parent=0 // pred_fallthru
    _
  // Predicated region
  $region6: #{student_resnet_forward.17} parent=0 // pred_check
    _
  $region7: #{student_resnet_forward.17} parent=0 // pred_check_branch
    %11 = sbr.rel (0) target = $region9
  $region8: #{student_resnet_forward.17} parent=0 // pred_region
    _
  $region9: #{student_resnet_forward.17} parent=0 // pred_fallthru
    _
  // Predicated region
  $region10: #{student_resnet_forward.17} parent=0 // pred_check
    _
  $region11: #{student_resnet_forward.17} parent=0 // pred_check_branch
    %13 = sbr.rel (0) target = $region13
  $region12: #{student_resnet_forward.17} parent=0 // pred_region
    _
  $region13: #{student_resnet_forward.17} parent=0 // pred_fallthru
    _
  %v15 = vld [vmem:[%s0] sm:$0xff]
  %v16 = vld [vmem:[%s0 + $0x8] sm:$0xff]
  %v17 = vld [vmem:[%s0 + $0x10] sm:$0xf]
  %v18 = vld [vmem:[%s0 + $0x14] sm:$0xff]
  %v19 = vld [vmem:[%s0 + $0x1c] sm:$0xff]
  %v20 = vld [vmem:[%s0 + $0x24] sm:$0xf]
  %v21 = vld [vmem:[%s0 + $0x28] sm:$0xff]
  %v22 = vld [vmem:[%s0 + $0x30] sm:$0xff]
  %v23 = vld [vmem:[%s0 + $0x38] sm:$0xf]
  %v24 = vld [vmem:[%s0 + $0x3c] sm:$0xff]
  %v25 = vld [vmem:[%s0 + $0x44] sm:$0xff]
  %v26 = vld [vmem:[%s0 + $0x4c] sm:$0xf]
  %v27 = vld [vmem:[%s1] sm:$0xf]
  %v28 = vld [vmem:[%s1 + $0x4] sm:$0xf]
  %v29 = vld [vmem:[%s1 + $0x8] sm:$0xf]
  %v30 = vld [vmem:[%s1 + $0xc] sm:$0xf]
  %v31 = vld [vmem:[%s1 + $0x10] sm:$0xf]
  %v32 = vld [vmem:[%s1 + $0x14] sm:$0xf]
  %v33 = vld [vmem:[%s1 + $0x18] sm:$0xf]
  %v34 = vld [vmem:[%s1 + $0x1c] sm:$0xf]
  %v35 = vld [vmem:[%s1 + $0x20] sm:$0xf]
  %v36 = vld [vmem:[%s1 + $0x24] sm:$0xf]
  %v37 = vld [vmem:[%s1 + $0x28] sm:$0xf]
  %v38 = vld [vmem:[%s1 + $0x2c] sm:$0xf]
  %v39 = vld [vmem:[%s1 + $0x30] sm:$0xf]
  %v40 = vld [vmem:[%s1 + $0x34] sm:$0xf]
  %v41 = vld [vmem:[%s1 + $0x38] sm:$0xf]
  %v42 = vld [vmem:[%s1 + $0x3c] sm:$0xf]
  %v43 = vld [vmem:[%s1 + $0x40] sm:$0xf]
  %v44 = vld [vmem:[%s1 + $0x44] sm:$0xf]
  %v45 = vld [vmem:[%s1 + $0x48] sm:$0xf]
  %v46 = vld [vmem:[%s1 + $0x4c] sm:$0xf]
  %v47 = vld [vmem:[%s1 + $0x50] sm:$0xf]
  %v48 = vld [vmem:[%s1 + $0x54] sm:$0xf]
  %v49 = vld [vmem:[%s1 + $0x58] sm:$0xf]
  %v50 = vld [vmem:[%s1 + $0x5c] sm:$0xf]
  %v51 = vld [vmem:[%s1 + $0x60] sm:$0xf]
  %v52 = vld [vmem:[%s1 + $0x64] sm:$0xf]
  %v53 = vld [vmem:[%s1 + $0x68] sm:$0xf]
  %v54 = vld [vmem:[%s1 + $0x6c] sm:$0xf]
  %v55 = vld [vmem:[%s1 + $0x70] sm:$0xf]
  %v56 = vld [vmem:[%s1 + $0x74] sm:$0xf]
  %v57 = vld [vmem:[%s1 + $0x78] sm:$0xf]
  %v58 = vld [vmem:[%s1 + $0x7c] sm:$0xf]
  %v59 = vld [vmem:[%s1 + $0x80] sm:$0xf]
  %v60 = vld [vmem:[%s1 + $0x84] sm:$0xf]
  %v61 = vld [vmem:[%s1 + $0x88] sm:$0xf]
  %v62 = vld [vmem:[%s1 + $0x8c] sm:$0xf]
  %v63 = vld [vmem:[%s1 + $0x90] sm:$0xf]
  %v64 = vld [vmem:[%s1 + $0x94] sm:$0xf]
  %v65 = vld [vmem:[%s1 + $0x98] sm:$0xf]
  %v66 = vld [vmem:[%s1 + $0x9c] sm:$0xf]
  %v67 = vld [vmem:[%s1 + $0xa0] sm:$0xf]
  %v68 = vld [vmem:[%s1 + $0xa4] sm:$0xf]
  %v69 = vld [vmem:[%s1 + $0xa8] sm:$0xf]
  %v70 = vld [vmem:[%s1 + $0xac] sm:$0xf]
  %v71 = vld [vmem:[%s1 + $0xb0] sm:$0xf]
  %v72 = vld [vmem:[%s1 + $0xb4] sm:$0xf]
  %v73 = vld [vmem:[%s1 + $0xb8] sm:$0xf]
  %v74 = vld [vmem:[%s1 + $0xbc] sm:$0xf]
  %v75 = vld [vmem:[%s1 + $0xc0] sm:$0xf]
  %v76 = vld [vmem:[%s1 + $0xc4] sm:$0xf]
  %v77 = vld [vmem:[%s1 + $0xc8] sm:$0xf]
  %v78 = vld [vmem:[%s1 + $0xcc] sm:$0xf]
  %v79 = vld [vmem:[%s1 + $0xd0] sm:$0xf]
  %v80 = vld [vmem:[%s1 + $0xd4] sm:$0xf]
  %v81 = vld [vmem:[%s1 + $0xd8] sm:$0xf]
  %v82 = vld [vmem:[%s1 + $0xdc] sm:$0xf]
  %v83 = vld [vmem:[%s1 + $0xe0] sm:$0xf]
  %v84 = vld [vmem:[%s1 + $0xe4] sm:$0xf]
  %v85 = vld [vmem:[%s1 + $0xe8] sm:$0xf]
  %v86 = vld [vmem:[%s1 + $0xec] sm:$0xf]
  %v87 = vld [vmem:[%s1 + $0xf0] sm:$0xf]
  %v88 = vld [vmem:[%s1 + $0xf4] sm:$0xf]
  %v89 = vld [vmem:[%s1 + $0xf8] sm:$0xf]
  %v90 = vld [vmem:[%s1 + $0xfc] sm:$0xf]
  %v91 = vld [vmem:[%s1 + $0x100] sm:$0xf]
  %v92 = vld [vmem:[%s1 + $0x104] sm:$0xf]
  %v93 = vld [vmem:[%s1 + $0x108] sm:$0xf]
  %v94 = vld [vmem:[%s1 + $0x10c] sm:$0xf]
  %v95 = vld [vmem:[%s1 + $0x110] sm:$0xf]
  %v96 = vld [vmem:[%s1 + $0x114] sm:$0xf]
  %v97 = vld [vmem:[%s1 + $0x118] sm:$0xf]
  %v98 = vld [vmem:[%s1 + $0x11c] sm:$0xf]
  %v99 = vld [vmem:[%s1 + $0x120] sm:$0xf]
  %v100 = vld [vmem:[%s1 + $0x124] sm:$0xf]
  %v101 = vld [vmem:[%s1 + $0x128] sm:$0xf]
  %v102 = vld [vmem:[%s1 + $0x12c] sm:$0xf]
  %v103 = vld [vmem:[%s1 + $0x130] sm:$0xf]
  %v104 = vld [vmem:[%s1 + $0x134] sm:$0xf]
  %v105 = vld [vmem:[%s1 + $0x138] sm:$0xf]
  %v106 = vld [vmem:[%s1 + $0x13c] sm:$0xf]
  %v107 = vld [vmem:[%s2] sm:$0xf]
  %v108 = vld [vmem:[%s2 + $0x4] sm:$0xf]
  %v109 = vld [vmem:[%s2 + $0x8] sm:$0xf]
  %v110 = vld [vmem:[%s2 + $0xc] sm:$0xf]
  %v111 = vunpack.c.l.bf16 %v107
  %v112 = vunpack.c.l.bf16 %v108
  %v113 = vunpack.c.l.bf16 %v109
  %v114 = vunpack.c.l.bf16 %v110
  %v127 = vunpack.c.l.b16 %v15
  %v128 = vunpack.c.h.b16 %v15
  %v129 = vunpack.c.l.b16 %v16
  %v130 = vunpack.c.h.b16 %v16
  %v131 = vunpack.c.l.b16 %v17
  %v132 = vunpack.c.l.b16 %v18
  %v133 = vunpack.c.h.b16 %v18
  %v134 = vunpack.c.l.b16 %v19
  %v135 = vunpack.c.h.b16 %v19
  %v136 = vunpack.c.l.b16 %v20
  %v137 = vunpack.c.l.b16 %v21
  %v138 = vunpack.c.h.b16 %v21
  %v139 = vunpack.c.l.b16 %v22
  %v140 = vunpack.c.h.b16 %v22
  %v141 = vunpack.c.l.b16 %v23
  %v142 = vunpack.c.l.b16 %v24
  %v143 = vunpack.c.h.b16 %v24
  %v144 = vunpack.c.l.b16 %v25
  %v145 = vunpack.c.h.b16 %v25
  %v146 = vunpack.c.l.b16 %v26
  %v147 = vpack.c.b16 %v132, %v127
  %v148 = vpack.c.b16 %v133, %v128
  %v149 = vpack.c.b16 %v134, %v129
  %v150 = vpack.c.b16 %v135, %v130
  %v151 = vpack.c.b16 %v136, %v131
  %v152 = vpack.c.b16 %v142, %v137
  %v153 = vpack.c.b16 %v143, %v138
  %v154 = vpack.c.b16 %v144, %v139
  %v155 = vpack.c.b16 %v145, %v140
  %v156 = vpack.c.b16 %v146, %v141
  %v247 = vunpack.c.l.b16 %v27
  %v248 = vunpack.c.l.b16 %v28
  %v249 = vunpack.c.l.b16 %v29
  %v250 = vunpack.c.l.b16 %v30
  %v251 = vunpack.c.l.b16 %v31
  %v252 = vunpack.c.l.b16 %v32
  %v253 = vunpack.c.l.b16 %v33
  %v254 = vunpack.c.l.b16 %v34
  %v255 = vunpack.c.l.b16 %v35
  %v256 = vunpack.c.l.b16 %v36
  %v257 = vunpack.c.l.b16 %v37
  %v258 = vunpack.c.l.b16 %v38
  %v259 = vunpack.c.l.b16 %v39
  %v260 = vunpack.c.l.b16 %v40
  %v261 = vunpack.c.l.b16 %v41
  %v262 = vunpack.c.l.b16 %v42
  %v263 = vunpack.c.l.b16 %v43
  %v264 = vunpack.c.l.b16 %v44
  %v265 = vunpack.c.l.b16 %v45
  %v266 = vunpack.c.l.b16 %v46
  %v267 = vunpack.c.l.b16 %v47
  %v268 = vunpack.c.l.b16 %v48
  %v269 = vunpack.c.l.b16 %v49
  %v270 = vunpack.c.l.b16 %v50
  %v271 = vunpack.c.l.b16 %v51
  %v272 = vunpack.c.l.b16 %v52
  %v273 = vunpack.c.l.b16 %v53
  %v274 = vunpack.c.l.b16 %v54
  %v275 = vunpack.c.l.b16 %v55
  %v276 = vunpack.c.l.b16 %v56
  %v277 = vunpack.c.l.b16 %v57
  %v278 = vunpack.c.l.b16 %v58
  %v279 = vunpack.c.l.b16 %v59
  %v280 = vunpack.c.l.b16 %v60
  %v281 = vunpack.c.l.b16 %v61
  %v282 = vunpack.c.l.b16 %v62
  %v283 = vunpack.c.l.b16 %v63
  %v284 = vunpack.c.l.b16 %v64
  %v285 = vunpack.c.l.b16 %v65
  %v286 = vunpack.c.l.b16 %v66
  %v287 = vunpack.c.l.b16 %v67
  %v288 = vunpack.c.l.b16 %v68
  %v289 = vunpack.c.l.b16 %v69
  %v290 = vunpack.c.l.b16 %v70
  %v291 = vunpack.c.l.b16 %v71
  %v292 = vunpack.c.l.b16 %v72
  %v293 = vunpack.c.l.b16 %v73
  %v294 = vunpack.c.l.b16 %v74
  %v295 = vunpack.c.l.b16 %v75
  %v296 = vunpack.c.l.b16 %v76
  %v297 = vunpack.c.l.b16 %v77
  %v298 = vunpack.c.l.b16 %v78
  %v299 = vunpack.c.l.b16 %v79
  %v300 = vunpack.c.l.b16 %v80
  %v301 = vunpack.c.l.b16 %v81
  %v302 = vunpack.c.l.b16 %v82
  %v303 = vunpack.c.l.b16 %v83
  %v304 = vunpack.c.l.b16 %v84
  %v305 = vunpack.c.l.b16 %v85
  %v306 = vunpack.c.l.b16 %v86
  %v307 = vunpack.c.l.b16 %v87
  %v308 = vunpack.c.l.b16 %v88
  %v309 = vunpack.c.l.b16 %v89
  %v310 = vunpack.c.l.b16 %v90
  %v311 = vunpack.c.l.b16 %v91
  %v312 = vunpack.c.l.b16 %v92
  %v313 = vunpack.c.l.b16 %v93
  %v314 = vunpack.c.l.b16 %v94
  %v315 = vunpack.c.l.b16 %v95
  %v316 = vunpack.c.l.b16 %v96
  %v317 = vunpack.c.l.b16 %v97
  %v318 = vunpack.c.l.b16 %v98
  %v319 = vunpack.c.l.b16 %v99
  %v320 = vunpack.c.l.b16 %v100
  %v321 = vunpack.c.l.b16 %v101
  %v322 = vunpack.c.l.b16 %v102
  %v323 = vunpack.c.l.b16 %v103
  %v324 = vunpack.c.l.b16 %v104
  %v325 = vunpack.c.l.b16 %v105
  %v326 = vunpack.c.l.b16 %v106
  %v327 = vpack.c.b16 %v248, %v247
  %v328 = vpack.c.b16 %v250, %v249
  %v329 = vpack.c.b16 %v252, %v251
  %v330 = vpack.c.b16 %v254, %v253
  %v331 = vpack.c.b16 %v256, %v255
  %v332 = vpack.c.b16 %v258, %v257
  %v333 = vpack.c.b16 %v260, %v259
  %v334 = vpack.c.b16 %v262, %v261
  %v335 = vpack.c.b16 %v264, %v263
  %v336 = vpack.c.b16 %v266, %v265
  %v337 = vpack.c.b16 %v268, %v267
  %v338 = vpack.c.b16 %v270, %v269
  %v339 = vpack.c.b16 %v272, %v271
  %v340 = vpack.c.b16 %v274, %v273
  %v341 = vpack.c.b16 %v276, %v275
  %v342 = vpack.c.b16 %v278, %v277
  %v343 = vpack.c.b16 %v280, %v279
  %v344 = vpack.c.b16 %v282, %v281
  %v345 = vpack.c.b16 %v284, %v283
  %v346 = vpack.c.b16 %v286, %v285
  %v347 = vpack.c.b16 %v288, %v287
  %v348 = vpack.c.b16 %v290, %v289
  %v349 = vpack.c.b16 %v292, %v291
  %v350 = vpack.c.b16 %v294, %v293
  %v351 = vpack.c.b16 %v296, %v295
  %v352 = vpack.c.b16 %v298, %v297
  %v353 = vpack.c.b16 %v300, %v299
  %v354 = vpack.c.b16 %v302, %v301
  %v355 = vpack.c.b16 %v304, %v303
  %v356 = vpack.c.b16 %v306, %v305
  %v357 = vpack.c.b16 %v308, %v307
  %v358 = vpack.c.b16 %v310, %v309
  %v359 = vpack.c.b16 %v312, %v311
  %v360 = vpack.c.b16 %v314, %v313
  %v361 = vpack.c.b16 %v316, %v315
  %v362 = vpack.c.b16 %v318, %v317
  %v363 = vpack.c.b16 %v320, %v319
  %v364 = vpack.c.b16 %v322, %v321
  %v365 = vpack.c.b16 %v324, %v323
  %v366 = vpack.c.b16 %v326, %v325
  %407 = vmatprep.subr.bf16.mxu0 0
  %408 = vmatpush1.bf16.msra.mxu0 %v334
  %409 = vmatprep.subr.bf16.mxu0 0
  %410 = vmatpush1.bf16.msra.mxu0 %v333
  %411 = vmatprep.subr.bf16.mxu0 0
  %412 = vmatpush1.bf16.msra.mxu0 %v332
  %413 = vmatprep.subr.bf16.mxu0 0
  %414 = vmatpush1.bf16.msra.mxu0 %v331
  %415 = vmatprep.subr.bf16.mxu0 0
  %416 = vmatpush1.bf16.msra.mxu0 %v330
  %417 = vmatprep.subr.bf16.mxu0 0
  %418 = vmatpush1.bf16.msra.mxu0 %v329
  %419 = vmatprep.subr.bf16.mxu0 0
  %420 = vmatpush1.bf16.msra.mxu0 %v328
  %421 = vmatprep.subr.bf16.mxu0 0
  %422 = vmatpush1.bf16.msra.mxu0 %v327
  %423 = vmatprep.subr.bf16.mxu0 0
  %424 = vmatpush2.bf16.msra.mxu0 %v342
  %425 = vmatprep.subr.bf16.mxu0 0
  %426 = vmatpush2.bf16.msra.mxu0 %v341
  %427 = vmatprep.subr.bf16.mxu0 0
  %428 = vmatpush2.bf16.msra.mxu0 %v340
  %429 = vmatprep.subr.bf16.mxu0 0
  %430 = vmatpush2.bf16.msra.mxu0 %v339
  %431 = vmatprep.subr.bf16.mxu0 0
  %432 = vmatpush2.bf16.msra.mxu0 %v338
  %433 = vmatprep.subr.bf16.mxu0 0
  %434 = vmatpush2.bf16.msra.mxu0 %v337
  %435 = vmatprep.subr.bf16.mxu0 0
  %436 = vmatpush2.bf16.msra.mxu0 %v336
  %437 = vmatprep.subr.bf16.mxu0 0
  %438 = vmatpush2.bf16.msra.mxu0 %v335
  %439 = vmatprep.mubr.bf16.mxu0 %v148
  %440 = vmatmul.mubr.bf16.gmra.mxu0 %v147
  %v441 = vpop.f32.mrf.mxu0
  %v442 = vadd.f32 %v111, %v441
  %v443 = vpop.f32.mrf.mxu0
  %v444 = vpop.f32.mrf.mxu0
  %v445 = vadd.f32 %v112, %v444
  %v446 = vpop.f32.mrf.mxu0
  %447 = vmatprep.mubr.bf16.mxu0 %v153
  %448 = vmatmul.mubr.bf16.gmra.mxu0 %v152
  %v449 = vpop.f32.mrf.mxu0
  %v450 = vadd.f32 %v113, %v449
  %v451 = vpop.f32.mrf.mxu0
  %v452 = vpop.f32.mrf.mxu0
  %v453 = vadd.f32 %v114, %v452
  %v454 = vpop.f32.mrf.mxu0
  %455 = vdwg.mxu0
  %456 = vmatprep.subr.bf16.mxu0 0
  %457 = vmatpush1.bf16.msra.mxu0 %v350
  %458 = vmatprep.subr.bf16.mxu0 0
  %459 = vmatpush1.bf16.msra.mxu0 %v349
  %460 = vmatprep.subr.bf16.mxu0 0
  %461 = vmatpush1.bf16.msra.mxu0 %v348
  %462 = vmatprep.subr.bf16.mxu0 0
  %463 = vmatpush1.bf16.msra.mxu0 %v347
  %464 = vmatprep.subr.bf16.mxu0 0
  %465 = vmatpush1.bf16.msra.mxu0 %v346
  %466 = vmatprep.subr.bf16.mxu0 0
  %467 = vmatpush1.bf16.msra.mxu0 %v345
  %468 = vmatprep.subr.bf16.mxu0 0
  %469 = vmatpush1.bf16.msra.mxu0 %v344
  %470 = vmatprep.subr.bf16.mxu0 0
  %471 = vmatpush1.bf16.msra.mxu0 %v343
  %472 = vmatprep.subr.bf16.mxu0 0
  %473 = vmatpush2.bf16.msra.mxu0 %v358
  %474 = vmatprep.subr.bf16.mxu0 0
  %475 = vmatpush2.bf16.msra.mxu0 %v357
  %476 = vmatprep.subr.bf16.mxu0 0
  %477 = vmatpush2.bf16.msra.mxu0 %v356
  %478 = vmatprep.subr.bf16.mxu0 0
  %479 = vmatpush2.bf16.msra.mxu0 %v355
  %480 = vmatprep.subr.bf16.mxu0 0
  %481 = vmatpush2.bf16.msra.mxu0 %v354
  %482 = vmatprep.subr.bf16.mxu0 0
  %483 = vmatpush2.bf16.msra.mxu0 %v353
  %484 = vmatprep.subr.bf16.mxu0 0
  %485 = vmatpush2.bf16.msra.mxu0 %v352
  %486 = vmatprep.subr.bf16.mxu0 0
  %487 = vmatpush2.bf16.msra.mxu0 %v351
  %488 = vmatprep.mubr.bf16.mxu0 %v150
  %489 = vmatmul.mubr.bf16.gmra.mxu0 %v149
  %v490 = vpop.f32.mrf.mxu0
  %v491 = vadd.f32 %v442, %v490
  %v492 = vpop.f32.mrf.mxu0
  %v493 = vpop.f32.mrf.mxu0
  %v494 = vadd.f32 %v445, %v493
  %v495 = vpop.f32.mrf.mxu0
  %496 = vmatprep.mubr.bf16.mxu0 %v155
  %497 = vmatmul.mubr.bf16.gmra.mxu0 %v154
  %v498 = vpop.f32.mrf.mxu0
  %v499 = vadd.f32 %v450, %v498
  %v500 = vpop.f32.mrf.mxu0
  %v501 = vpop.f32.mrf.mxu0
  %v502 = vadd.f32 %v453, %v501
  %v503 = vpop.f32.mrf.mxu0
  %504 = vdwg.mxu0
  %505 = vmatprep.subr.bf16.mxu0 0
  %506 = vmatpush1.bf16.msra.mxu0 %v366
  %507 = vmatprep.subr.bf16.mxu0 0
  %508 = vmatpush1.bf16.msra.mxu0 %v365
  %509 = vmatprep.subr.bf16.mxu0 0
  %510 = vmatpush1.bf16.msra.mxu0 %v364
  %511 = vmatprep.subr.bf16.mxu0 0
  %512 = vmatpush1.bf16.msra.mxu0 %v363
  %513 = vmatprep.subr.bf16.mxu0 0
  %514 = vmatpush1.bf16.msra.mxu0 %v362
  %515 = vmatprep.subr.bf16.mxu0 0
  %516 = vmatpush1.bf16.msra.mxu0 %v361
  %517 = vmatprep.subr.bf16.mxu0 0
  %518 = vmatpush1.bf16.msra.mxu0 %v360
  %519 = vmatprep.subr.bf16.mxu0 0
  %520 = vmatpush1.bf16.msra.mxu0 %v359
  %521 = vmatprep.subr.bf16.mxu0 0
  %522 = vmatpush2.bf16.msra.mxu0 0
  %523 = vmatprep.subr.bf16.mxu0 0
  %524 = vmatpush2.bf16.msra.mxu0 0
  %525 = vmatprep.subr.bf16.mxu0 0
  %526 = vmatpush2.bf16.msra.mxu0 0
  %527 = vmatprep.subr.bf16.mxu0 0
  %528 = vmatpush2.bf16.msra.mxu0 0
  %529 = vmatprep.subr.bf16.mxu0 0
  %530 = vmatpush2.bf16.msra.mxu0 0
  %531 = vmatprep.subr.bf16.mxu0 0
  %532 = vmatpush2.bf16.msra.mxu0 0
  %533 = vmatprep.subr.bf16.mxu0 0
  %534 = vmatpush2.bf16.msra.mxu0 0
  %535 = vmatprep.subr.bf16.mxu0 0
  %536 = vmatpush2.bf16.msra.mxu0 0
  %537 = vmatprep.mubr.bf16.mxu0 0
  %538 = vmatmul.mubr.bf16.gmra.mxu0 %v151
  %v539 = vpop.f32.mrf.mxu0
  %v540 = vadd.f32 %v491, %v539
  %v541 = vpop.f32.mrf.mxu0
  %v542 = vpop.f32.mrf.mxu0
  %v543 = vadd.f32 %v494, %v542
  %v544 = vpop.f32.mrf.mxu0
  %545 = vmatprep.mubr.bf16.mxu0 0
  %546 = vmatmul.mubr.bf16.gmra.mxu0 %v156
  %v547 = vpop.f32.mrf.mxu0
  %v548 = vadd.f32 %v499, %v547
  %v549 = vpop.f32.mrf.mxu0
  %v550 = vpop.f32.mrf.mxu0
  %v551 = vadd.f32 %v502, %v550
  %v552 = vpop.f32.mrf.mxu0
  %553 = vdwg.mxu0
  %v554 = vmax.f32 %v540, 0.0
  %v555 = vmax.f32 %v543, 0.0
  %v556 = vmax.f32 %v548, 0.0
  %v557 = vmax.f32 %v551, 0.0
  %v558 = vpack.c.bf16 %v555, %v554
  %v559 = vpack.c.bf16 %v557, %v556
  %v562 = vunpack.c.l.b16 %v558
  %v563 = vunpack.c.h.b16 %v558
  %v564 = vunpack.c.l.b16 %v559
  %v565 = vunpack.c.h.b16 %v559
  %v566 = vpack.c.b16 %v562, %v562
  %v567 = vpack.c.b16 %v563, %v563
  %v568 = vpack.c.b16 %v564, %v564
  %v569 = vpack.c.b16 %v565, %v565
  %574 = vst [vmem:[%s3] sm:$0xf] %v566
  %575 = vst [vmem:[%s3 + $0x4] sm:$0xf] %v567
  %576 = vst [vmem:[%s3 + $0x8] sm:$0xf] %v568
  %577 = vst [vmem:[%s3 + $0xc] sm:$0xf] %v569
  // Predicated region
  $region14: #{student_resnet_forward.17} parent=0 // pred_check
    _
  $region15: #{student_resnet_forward.17} parent=0 // pred_check_branch
    %579 = sbr.rel (0) target = $region17
  $region16: #{student_resnet_forward.17} parent=0 // pred_region
    _
  $region17: #{student_resnet_forward.17} parent=0 // pred_fallthru
    _
  // Predicated region
  $region18: #{student_resnet_forward.17} parent=0 // pred_check
    _
  $region19: #{student_resnet_forward.17} parent=0 // pred_check_branch
    %581 = sbr.rel (0) target = $region21
  $region20: #{student_resnet_forward.17} parent=0 // pred_region
    _
  $region21: #{student_resnet_forward.17} parent=0 // pred_fallthru
    _

// kernel: student_resnet_forward.18
$region0: #{student_resnet_forward.18}
  #allocation0 [shape = 'u32[]', space=smem, size = 0x4, offset = 0x4, fixed_abs, tag = 'smem constant byte address 0x4 - core index']
  #allocation1 [shape = 'u32[144,128]{1,0:T(1,128)}', space=vmem, size = 0x12000, scoped, tag = 'internal scratch']
  %s0 = inlined_call_operand.vmem [shape: bf16[16,640], index: 0, kind: input, shape index: {}]
  %s1 = inlined_call_operand.vmem [shape: bf16[640,256], index: 1, kind: input, shape index: {}]
  %s2 = inlined_call_operand.vmem [shape: bf16[16,256], index: 2, kind: output, shape index: {}]
  %s3 = sld [smem:[#allocation0]]
  $region18: #{student_resnet_forward.18} parent=0
    _
  %s5 = ssub.s32 1, %s3
  %s6 = scalar_select 0, %s5, %s3
  // Predicated region
  $region2: #{student_resnet_forward.18} parent=0 // pred_check
    _
  $region3: #{student_resnet_forward.18} parent=0 // pred_check_branch
    %8 = sbr.rel (0) target = $region5
  $region4: #{student_resnet_forward.18} parent=0 // pred_region
    _
  $region5: #{student_resnet_forward.18} parent=0 // pred_fallthru
    _
  // Predicated region
  $region6: #{student_resnet_forward.18} parent=0 // pred_check
    _
  $region7: #{student_resnet_forward.18} parent=0 // pred_check_branch
    %10 = sbr.rel (0) target = $region9
  $region8: #{student_resnet_forward.18} parent=0 // pred_region
    _
  $region9: #{student_resnet_forward.18} parent=0 // pred_fallthru
    _
  %v12 = vld [vmem:[%s0] sm:$0xff]
  %v13 = vld [vmem:[%s0 + $0x8] sm:$0xff]
  %v14 = vld [vmem:[%s0 + $0x10] sm:$0xf]
  %v15 = vld [vmem:[%s0 + $0x14] sm:$0xff]
  %v16 = vld [vmem:[%s0 + $0x1c] sm:$0xff]
  %v17 = vld [vmem:[%s0 + $0x24] sm:$0xf]
  %v18 = vld [vmem:[%s1] sm:$0xff]
  %v19 = vld [vmem:[%s1 + $0x8] sm:$0xff]
  %v20 = vld [vmem:[%s1 + $0x10] sm:$0xff]
  %v21 = vld [vmem:[%s1 + $0x18] sm:$0xff]
  %v22 = vld [vmem:[%s1 + $0x20] sm:$0xff]
  %v23 = vld [vmem:[%s1 + $0x28] sm:$0xff]
  %v24 = vld [vmem:[%s1 + $0x30] sm:$0xff]
  %v25 = vld [vmem:[%s1 + $0x38] sm:$0xff]
  %v26 = vld [vmem:[%s1 + $0x40] sm:$0xff]
  %v27 = vld [vmem:[%s1 + $0x48] sm:$0xff]
  %v28 = vld [vmem:[%s1 + $0x50] sm:$0xff]
  %v29 = vld [vmem:[%s1 + $0x58] sm:$0xff]
  %v30 = vld [vmem:[%s1 + $0x60] sm:$0xff]
  %v31 = vld [vmem:[%s1 + $0x68] sm:$0xff]
  %v32 = vld [vmem:[%s1 + $0x70] sm:$0xff]
  %v33 = vld [vmem:[%s1 + $0x78] sm:$0xff]
  %v34 = vld [vmem:[%s1 + $0x80] sm:$0xff]
  %v35 = vld [vmem:[%s1 + $0x88] sm:$0xff]
  %v36 = vld [vmem:[%s1 + $0x90] sm:$0xff]
  %v37 = vld [vmem:[%s1 + $0x98] sm:$0xff]
  %v38 = vld [vmem:[%s1 + $0xa0] sm:$0xff]
  %v39 = vld [vmem:[%s1 + $0xa8] sm:$0xff]
  %v40 = vld [vmem:[%s1 + $0xb0] sm:$0xff]
  %v41 = vld [vmem:[%s1 + $0xb8] sm:$0xff]
  %v42 = vld [vmem:[%s1 + $0xc0] sm:$0xff]
  %v43 = vld [vmem:[%s1 + $0xc8] sm:$0xff]
  %v44 = vld [vmem:[%s1 + $0xd0] sm:$0xff]
  %v45 = vld [vmem:[%s1 + $0xd8] sm:$0xff]
  %v46 = vld [vmem:[%s1 + $0xe0] sm:$0xff]
  %v47 = vld [vmem:[%s1 + $0xe8] sm:$0xff]
  %v48 = vld [vmem:[%s1 + $0xf0] sm:$0xff]
  %v49 = vld [vmem:[%s1 + $0xf8] sm:$0xff]
  %v50 = vld [vmem:[%s1 + $0x100] sm:$0xff]
  %v51 = vld [vmem:[%s1 + $0x108] sm:$0xff]
  %v52 = vld [vmem:[%s1 + $0x110] sm:$0xff]
  %v53 = vld [vmem:[%s1 + $0x118] sm:$0xff]
  %v54 = vld [vmem:[%s1 + $0x120] sm:$0xff]
  %v55 = vld [vmem:[%s1 + $0x128] sm:$0xff]
  %v56 = vld [vmem:[%s1 + $0x130] sm:$0xff]
  %v57 = vld [vmem:[%s1 + $0x138] sm:$0xff]
  %v58 = vld [vmem:[%s1 + $0x140] sm:$0xff]
  %v59 = vld [vmem:[%s1 + $0x148] sm:$0xff]
  %v60 = vld [vmem:[%s1 + $0x150] sm:$0xff]
  %v61 = vld [vmem:[%s1 + $0x158] sm:$0xff]
  %v62 = vld [vmem:[%s1 + $0x160] sm:$0xff]
  %v63 = vld [vmem:[%s1 + $0x168] sm:$0xff]
  %v64 = vld [vmem:[%s1 + $0x170] sm:$0xff]
  %v65 = vld [vmem:[%s1 + $0x178] sm:$0xff]
  %v66 = vld [vmem:[%s1 + $0x180] sm:$0xff]
  %v67 = vld [vmem:[%s1 + $0x188] sm:$0xff]
  %v68 = vld [vmem:[%s1 + $0x190] sm:$0xff]
  %v69 = vld [vmem:[%s1 + $0x198] sm:$0xff]
  %v70 = vld [vmem:[%s1 + $0x1a0] sm:$0xff]
  %v71 = vld [vmem:[%s1 + $0x1a8] sm:$0xff]
  %v72 = vld [vmem:[%s1 + $0x1b0] sm:$0xff]
  %v73 = vld [vmem:[%s1 + $0x1b8] sm:$0xff]
  %v74 = vld [vmem:[%s1 + $0x1c0] sm:$0xff]
  %v75 = vld [vmem:[%s1 + $0x1c8] sm:$0xff]
  %v76 = vld [vmem:[%s1 + $0x1d0] sm:$0xff]
  %v77 = vld [vmem:[%s1 + $0x1d8] sm:$0xff]
  %v78 = vld [vmem:[%s1 + $0x1e0] sm:$0xff]
  %v79 = vld [vmem:[%s1 + $0x1e8] sm:$0xff]
  %v80 = vld [vmem:[%s1 + $0x1f0] sm:$0xff]
  %v81 = vld [vmem:[%s1 + $0x1f8] sm:$0xff]
  %v82 = vld [vmem:[%s1 + $0x200] sm:$0xff]
  %v83 = vld [vmem:[%s1 + $0x208] sm:$0xff]
  %v84 = vld [vmem:[%s1 + $0x210] sm:$0xff]
  %v85 = vld [vmem:[%s1 + $0x218] sm:$0xff]
  %v86 = vld [vmem:[%s1 + $0x220] sm:$0xff]
  %v87 = vld [vmem:[%s1 + $0x228] sm:$0xff]
  %v88 = vld [vmem:[%s1 + $0x230] sm:$0xff]
  %v89 = vld [vmem:[%s1 + $0x238] sm:$0xff]
  %v90 = vld [vmem:[%s1 + $0x240] sm:$0xff]
  %v91 = vld [vmem:[%s1 + $0x248] sm:$0xff]
  %v92 = vld [vmem:[%s1 + $0x250] sm:$0xff]
  %v93 = vld [vmem:[%s1 + $0x258] sm:$0xff]
  %v94 = vld [vmem:[%s1 + $0x260] sm:$0xff]
  %v95 = vld [vmem:[%s1 + $0x268] sm:$0xff]
  %v96 = vld [vmem:[%s1 + $0x270] sm:$0xff]
  %v97 = vld [vmem:[%s1 + $0x278] sm:$0xff]
  %v104 = vunpack.c.l.b16 %v12
  %v105 = vunpack.c.h.b16 %v12
  %v106 = vunpack.c.l.b16 %v13
  %v107 = vunpack.c.h.b16 %v13
  %v108 = vunpack.c.l.b16 %v14
  %v109 = vunpack.c.l.b16 %v15
  %v110 = vunpack.c.h.b16 %v15
  %v111 = vunpack.c.l.b16 %v16
  %v112 = vunpack.c.h.b16 %v16
  %v113 = vunpack.c.l.b16 %v17
  %v114 = vpack.c.b16 %v109, %v104
  %v115 = vpack.c.b16 %v110, %v105
  %v116 = vpack.c.b16 %v111, %v106
  %v117 = vpack.c.b16 %v112, %v107
  %v118 = vpack.c.b16 %v113, %v108
  %v204 = vunpack.c.l.b16 %v18
  %v205 = vunpack.c.h.b16 %v18
  %v206 = vunpack.c.l.b16 %v19
  %v207 = vunpack.c.h.b16 %v19
  %v208 = vunpack.c.l.b16 %v20
  %v209 = vunpack.c.h.b16 %v20
  %v210 = vunpack.c.l.b16 %v21
  %v211 = vunpack.c.h.b16 %v21
  %v212 = vunpack.c.l.b16 %v22
  %v213 = vunpack.c.h.b16 %v22
  %v214 = vunpack.c.l.b16 %v23
  %v215 = vunpack.c.h.b16 %v23
  %v216 = vunpack.c.l.b16 %v24
  %v217 = vunpack.c.h.b16 %v24
  %v218 = vunpack.c.l.b16 %v25
  %v219 = vunpack.c.h.b16 %v25
  %v220 = vunpack.c.l.b16 %v26
  %v221 = vunpack.c.h.b16 %v26
  %v222 = vunpack.c.l.b16 %v27
  %v223 = vunpack.c.h.b16 %v27
  %v224 = vunpack.c.l.b16 %v28
  %v225 = vunpack.c.h.b16 %v28
  %v226 = vunpack.c.l.b16 %v29
  %v227 = vunpack.c.h.b16 %v29
  %v228 = vunpack.c.l.b16 %v30
  %v229 = vunpack.c.h.b16 %v30
  %v230 = vunpack.c.l.b16 %v31
  %v231 = vunpack.c.h.b16 %v31
  %v232 = vunpack.c.l.b16 %v32
  %v233 = vunpack.c.h.b16 %v32
  %v234 = vunpack.c.l.b16 %v33
  %v235 = vunpack.c.h.b16 %v33
  %v236 = vunpack.c.l.b16 %v34
  %v237 = vunpack.c.h.b16 %v34
  %v238 = vunpack.c.l.b16 %v35
  %v239 = vunpack.c.h.b16 %v35
  %v240 = vunpack.c.l.b16 %v36
  %v241 = vunpack.c.h.b16 %v36
  %v242 = vunpack.c.l.b16 %v37
  %v243 = vunpack.c.h.b16 %v37
  %v244 = vunpack.c.l.b16 %v38
  %v245 = vunpack.c.h.b16 %v38
  %v246 = vunpack.c.l.b16 %v39
  %v247 = vunpack.c.h.b16 %v39
  %v248 = vunpack.c.l.b16 %v40
  %v249 = vunpack.c.h.b16 %v40
  %v250 = vunpack.c.l.b16 %v41
  %v251 = vunpack.c.h.b16 %v41
  %v252 = vunpack.c.l.b16 %v42
  %v253 = vunpack.c.h.b16 %v42
  %v254 = vunpack.c.l.b16 %v43
  %v255 = vunpack.c.h.b16 %v43
  %v256 = vunpack.c.l.b16 %v44
  %v257 = vunpack.c.h.b16 %v44
  %v258 = vunpack.c.l.b16 %v45
  %v259 = vunpack.c.h.b16 %v45
  %v260 = vunpack.c.l.b16 %v46
  %v261 = vunpack.c.h.b16 %v46
  %v262 = vunpack.c.l.b16 %v47
  %v263 = vunpack.c.h.b16 %v47
  %v264 = vunpack.c.l.b16 %v48
  %v265 = vunpack.c.h.b16 %v48
  %v266 = vunpack.c.l.b16 %v49
  %v267 = vunpack.c.h.b16 %v49
  %v268 = vunpack.c.l.b16 %v50
  %v269 = vunpack.c.h.b16 %v50
  %v270 = vunpack.c.l.b16 %v51
  %v271 = vunpack.c.h.b16 %v51
  %v272 = vunpack.c.l.b16 %v52
  %v273 = vunpack.c.h.b16 %v52
  %v274 = vunpack.c.l.b16 %v53
  %v275 = vunpack.c.h.b16 %v53
  %v276 = vunpack.c.l.b16 %v54
  %v277 = vunpack.c.h.b16 %v54
  %v278 = vunpack.c.l.b16 %v55
  %v279 = vunpack.c.h.b16 %v55
  %v280 = vunpack.c.l.b16 %v56
  %v281 = vunpack.c.h.b16 %v56
  %v282 = vunpack.c.l.b16 %v57
  %v283 = vunpack.c.h.b16 %v57
  %v284 = vunpack.c.l.b16 %v58
  %v285 = vunpack.c.h.b16 %v58
  %v286 = vunpack.c.l.b16 %v59
  %v287 = vunpack.c.h.b16 %v59
  %v288 = vunpack.c.l.b16 %v60
  %v289 = vunpack.c.h.b16 %v60
  %v290 = vunpack.c.l.b16 %v61
  %v291 = vunpack.c.h.b16 %v61
  %v292 = vunpack.c.l.b16 %v62
  %v293 = vunpack.c.h.b16 %v62
  %v294 = vunpack.c.l.b16 %v63
  %v295 = vunpack.c.h.b16 %v63
  %v296 = vunpack.c.l.b16 %v64
  %v297 = vunpack.c.h.b16 %v64
  %v298 = vunpack.c.l.b16 %v65
  %v299 = vunpack.c.h.b16 %v65
  %v300 = vunpack.c.l.b16 %v66
  %v301 = vunpack.c.h.b16 %v66
  %v302 = vunpack.c.l.b16 %v67
  %v303 = vunpack.c.h.b16 %v67
  %v304 = vunpack.c.l.b16 %v68
  %v305 = vunpack.c.h.b16 %v68
  %v306 = vunpack.c.l.b16 %v69
  %v307 = vunpack.c.h.b16 %v69
  %v308 = vunpack.c.l.b16 %v70
  %v309 = vunpack.c.h.b16 %v70
  %v310 = vunpack.c.l.b16 %v71
  %v311 = vunpack.c.h.b16 %v71
  %v312 = vunpack.c.l.b16 %v72
  %v313 = vunpack.c.h.b16 %v72
  %v314 = vunpack.c.l.b16 %v73
  %v315 = vunpack.c.h.b16 %v73
  %v316 = vunpack.c.l.b16 %v74
  %v317 = vunpack.c.h.b16 %v74
  %v318 = vunpack.c.l.b16 %v75
  %v319 = vunpack.c.h.b16 %v75
  %v320 = vunpack.c.l.b16 %v76
  %v321 = vunpack.c.h.b16 %v76
  %v322 = vunpack.c.l.b16 %v77
  %v323 = vunpack.c.h.b16 %v77
  %v324 = vunpack.c.l.b16 %v78
  %v325 = vunpack.c.h.b16 %v78
  %v326 = vunpack.c.l.b16 %v79
  %v327 = vunpack.c.h.b16 %v79
  %v328 = vunpack.c.l.b16 %v80
  %v329 = vunpack.c.h.b16 %v80
  %v330 = vunpack.c.l.b16 %v81
  %v331 = vunpack.c.h.b16 %v81
  %v332 = vunpack.c.l.b16 %v82
  %v333 = vunpack.c.h.b16 %v82
  %v334 = vunpack.c.l.b16 %v83
  %v335 = vunpack.c.h.b16 %v83
  %v336 = vunpack.c.l.b16 %v84
  %v337 = vunpack.c.h.b16 %v84
  %v338 = vunpack.c.l.b16 %v85
  %v339 = vunpack.c.h.b16 %v85
  %v340 = vunpack.c.l.b16 %v86
  %v341 = vunpack.c.h.b16 %v86
  %v342 = vunpack.c.l.b16 %v87
  %v343 = vunpack.c.h.b16 %v87
  %v344 = vunpack.c.l.b16 %v88
  %v345 = vunpack.c.h.b16 %v88
  %v346 = vunpack.c.l.b16 %v89
  %v347 = vunpack.c.h.b16 %v89
  %v348 = vunpack.c.l.b16 %v90
  %v349 = vunpack.c.h.b16 %v90
  %v350 = vunpack.c.l.b16 %v91
  %v351 = vunpack.c.h.b16 %v91
  %v352 = vunpack.c.l.b16 %v92
  %v353 = vunpack.c.h.b16 %v92
  %v354 = vunpack.c.l.b16 %v93
  %v355 = vunpack.c.h.b16 %v93
  %v356 = vunpack.c.l.b16 %v94
  %v357 = vunpack.c.h.b16 %v94
  %v358 = vunpack.c.l.b16 %v95
  %v359 = vunpack.c.h.b16 %v95
  %v360 = vunpack.c.l.b16 %v96
  %v361 = vunpack.c.h.b16 %v96
  %v362 = vunpack.c.l.b16 %v97
  %v363 = vunpack.c.h.b16 %v97
  %v364 = vpack.c.b16 %v206, %v204
  %v365 = vpack.c.b16 %v207, %v205
  %v366 = vpack.c.b16 %v210, %v208
  %v367 = vpack.c.b16 %v211, %v209
  %v368 = vpack.c.b16 %v214, %v212
  %v369 = vpack.c.b16 %v215, %v213
  %v370 = vpack.c.b16 %v218, %v216
  %v371 = vpack.c.b16 %v219, %v217
  %v372 = vpack.c.b16 %v222, %v220
  %v373 = vpack.c.b16 %v223, %v221
  %v374 = vpack.c.b16 %v226, %v224
  %v375 = vpack.c.b16 %v227, %v225
  %v376 = vpack.c.b16 %v230, %v228
  %v377 = vpack.c.b16 %v231, %v229
  %v378 = vpack.c.b16 %v234, %v232
  %v379 = vpack.c.b16 %v235, %v233
  %v380 = vpack.c.b16 %v238, %v236
  %v381 = vpack.c.b16 %v239, %v237
  %v382 = vpack.c.b16 %v242, %v240
  %v383 = vpack.c.b16 %v243, %v241
  %v384 = vpack.c.b16 %v246, %v244
  %v385 = vpack.c.b16 %v247, %v245
  %v386 = vpack.c.b16 %v250, %v248
  %v387 = vpack.c.b16 %v251, %v249
  %v388 = vpack.c.b16 %v254, %v252
  %v389 = vpack.c.b16 %v255, %v253
  %v390 = vpack.c.b16 %v258, %v256
  %v391 = vpack.c.b16 %v259, %v257
  %v392 = vpack.c.b16 %v262, %v260
  %v393 = vpack.c.b16 %v263, %v261
  %v394 = vpack.c.b16 %v266, %v264
  %v395 = vpack.c.b16 %v267, %v265
  %v396 = vpack.c.b16 %v270, %v268
  %v397 = vpack.c.b16 %v271, %v269
  %v398 = vpack.c.b16 %v274, %v272
  %v399 = vpack.c.b16 %v275, %v273
  %v400 = vpack.c.b16 %v278, %v276
  %v401 = vpack.c.b16 %v279, %v277
  %v402 = vpack.c.b16 %v282, %v280
  %v403 = vpack.c.b16 %v283, %v281
  %v404 = vpack.c.b16 %v286, %v284
  %v405 = vpack.c.b16 %v287, %v285
  %v406 = vpack.c.b16 %v290, %v288
  %v407 = vpack.c.b16 %v291, %v289
  %v408 = vpack.c.b16 %v294, %v292
  %v409 = vpack.c.b16 %v295, %v293
  %v410 = vpack.c.b16 %v298, %v296
  %v411 = vpack.c.b16 %v299, %v297
  %v412 = vpack.c.b16 %v302, %v300
  %v413 = vpack.c.b16 %v303, %v301
  %v414 = vpack.c.b16 %v306, %v304
  %v415 = vpack.c.b16 %v307, %v305
  %v416 = vpack.c.b16 %v310, %v308
  %v417 = vpack.c.b16 %v311, %v309
  %v418 = vpack.c.b16 %v314, %v312
  %v419 = vpack.c.b16 %v315, %v313
  %v420 = vpack.c.b16 %v318, %v316
  %v421 = vpack.c.b16 %v319, %v317
  %v422 = vpack.c.b16 %v322, %v320
  %v423 = vpack.c.b16 %v323, %v321
  %v424 = vpack.c.b16 %v326, %v324
  %v425 = vpack.c.b16 %v327, %v325
  %v426 = vpack.c.b16 %v330, %v328
  %v427 = vpack.c.b16 %v331, %v329
  %v428 = vpack.c.b16 %v334, %v332
  %v429 = vpack.c.b16 %v335, %v333
  %v430 = vpack.c.b16 %v338, %v336
  %v431 = vpack.c.b16 %v339, %v337
  %v432 = vpack.c.b16 %v342, %v340
  %v433 = vpack.c.b16 %v343, %v341
  %v434 = vpack.c.b16 %v346, %v344
  %v435 = vpack.c.b16 %v347, %v345
  %v436 = vpack.c.b16 %v350, %v348
  %v437 = vpack.c.b16 %v351, %v349
  %v438 = vpack.c.b16 %v354, %v352
  %v439 = vpack.c.b16 %v355, %v353
  %v440 = vpack.c.b16 %v358, %v356
  %v441 = vpack.c.b16 %v359, %v357
  %v442 = vpack.c.b16 %v362, %v360
  %v443 = vpack.c.b16 %v363, %v361
  %524 = vmatprep.subr.bf16.mxu0 %v379
  %525 = vmatpush1.bf16.msra.mxu0 %v378
  %526 = vmatprep.subr.bf16.mxu0 %v377
  %527 = vmatpush1.bf16.msra.mxu0 %v376
  %528 = vmatprep.subr.bf16.mxu0 %v375
  %529 = vmatpush1.bf16.msra.mxu0 %v374
  %530 = vmatprep.subr.bf16.mxu0 %v373
  %531 = vmatpush1.bf16.msra.mxu0 %v372
  %532 = vmatprep.subr.bf16.mxu0 %v371
  %533 = vmatpush1.bf16.msra.mxu0 %v370
  %534 = vmatprep.subr.bf16.mxu0 %v369
  %535 = vmatpush1.bf16.msra.mxu0 %v368
  %536 = vmatprep.subr.bf16.mxu0 %v367
  %537 = vmatpush1.bf16.msra.mxu0 %v366
  %538 = vmatprep.subr.bf16.mxu0 %v365
  %539 = vmatpush1.bf16.msra.mxu0 %v364
  %540 = vmatprep.subr.bf16.mxu0 %v395
  %541 = vmatpush2.bf16.msra.mxu0 %v394
  %542 = vmatprep.subr.bf16.mxu0 %v393
  %543 = vmatpush2.bf16.msra.mxu0 %v392
  %544 = vmatprep.subr.bf16.mxu0 %v391
  %545 = vmatpush2.bf16.msra.mxu0 %v390
  %546 = vmatprep.subr.bf16.mxu0 %v389
  %547 = vmatpush2.bf16.msra.mxu0 %v388
  %548 = vmatprep.subr.bf16.mxu0 %v387
  %549 = vmatpush2.bf16.msra.mxu0 %v386
  %550 = vmatprep.subr.bf16.mxu0 %v385
  %551 = vmatpush2.bf16.msra.mxu0 %v384
  %552 = vmatprep.subr.bf16.mxu0 %v383
  %553 = vmatpush2.bf16.msra.mxu0 %v382
  %554 = vmatprep.subr.bf16.mxu0 %v381
  %555 = vmatpush2.bf16.msra.mxu0 %v380
  %556 = vmatprep.mubr.bf16.mxu0 %v115
  %557 = vmatmul.mubr.bf16.gmra.mxu0 %v114
  %v558 = vpop.f32.mrf.mxu0
  %v559 = vadd.f32 0.0, %v558
  %v560 = vpop.f32.mrf.mxu0
  %v561 = vadd.f32 0.0, %v560
  %v562 = vpop.f32.mrf.mxu0
  %v563 = vadd.f32 0.0, %v562
  %v564 = vpop.f32.mrf.mxu0
  %v565 = vadd.f32 0.0, %v564
  %566 = vdwg.mxu0
  %567 = vmatprep.subr.bf16.mxu0 %v411
  %568 = vmatpush1.bf16.msra.mxu0 %v410
  %569 = vmatprep.subr.bf16.mxu0 %v409
  %570 = vmatpush1.bf16.msra.mxu0 %v408
  %571 = vmatprep.subr.bf16.mxu0 %v407
  %572 = vmatpush1.bf16.msra.mxu0 %v406
  %573 = vmatprep.subr.bf16.mxu0 %v405
  %574 = vmatpush1.bf16.msra.mxu0 %v404
  %575 = vmatprep.subr.bf16.mxu0 %v403
  %576 = vmatpush1.bf16.msra.mxu0 %v402
  %577 = vmatprep.subr.bf16.mxu0 %v401
  %578 = vmatpush1.bf16.msra.mxu0 %v400
  %579 = vmatprep.subr.bf16.mxu0 %v399
  %580 = vmatpush1.bf16.msra.mxu0 %v398
  %581 = vmatprep.subr.bf16.mxu0 %v397
  %582 = vmatpush1.bf16.msra.mxu0 %v396
  %583 = vmatprep.subr.bf16.mxu0 %v427
  %584 = vmatpush2.bf16.msra.mxu0 %v426
  %585 = vmatprep.subr.bf16.mxu0 %v425
  %586 = vmatpush2.bf16.msra.mxu0 %v424
  %587 = vmatprep.subr.bf16.mxu0 %v423
  %588 = vmatpush2.bf16.msra.mxu0 %v422
  %589 = vmatprep.subr.bf16.mxu0 %v421
  %590 = vmatpush2.bf16.msra.mxu0 %v420
  %591 = vmatprep.subr.bf16.mxu0 %v419
  %592 = vmatpush2.bf16.msra.mxu0 %v418
  %593 = vmatprep.subr.bf16.mxu0 %v417
  %594 = vmatpush2.bf16.msra.mxu0 %v416
  %595 = vmatprep.subr.bf16.mxu0 %v415
  %596 = vmatpush2.bf16.msra.mxu0 %v414
  %597 = vmatprep.subr.bf16.mxu0 %v413
  %598 = vmatpush2.bf16.msra.mxu0 %v412
  %599 = vmatprep.mubr.bf16.mxu0 %v117
  %600 = vmatmul.mubr.bf16.gmra.mxu0 %v116
  %v601 = vpop.f32.mrf.mxu0
  %v602 = vadd.f32 %v559, %v601
  %v603 = vpop.f32.mrf.mxu0
  %v604 = vadd.f32 %v561, %v603
  %v605 = vpop.f32.mrf.mxu0
  %v606 = vadd.f32 %v563, %v605
  %v607 = vpop.f32.mrf.mxu0
  %v608 = vadd.f32 %v565, %v607
  %609 = vdwg.mxu0
  %610 = vmatprep.subr.bf16.mxu0 %v443
  %611 = vmatpush1.bf16.msra.mxu0 %v442
  %612 = vmatprep.subr.bf16.mxu0 %v441
  %613 = vmatpush1.bf16.msra.mxu0 %v440
  %614 = vmatprep.subr.bf16.mxu0 %v439
  %615 = vmatpush1.bf16.msra.mxu0 %v438
  %616 = vmatprep.subr.bf16.mxu0 %v437
  %617 = vmatpush1.bf16.msra.mxu0 %v436
  %618 = vmatprep.subr.bf16.mxu0 %v435
  %619 = vmatpush1.bf16.msra.mxu0 %v434
  %620 = vmatprep.subr.bf16.mxu0 %v433
  %621 = vmatpush1.bf16.msra.mxu0 %v432
  %622 = vmatprep.subr.bf16.mxu0 %v431
  %623 = vmatpush1.bf16.msra.mxu0 %v430
  %624 = vmatprep.subr.bf16.mxu0 %v429
  %625 = vmatpush1.bf16.msra.mxu0 %v428
  %626 = vmatprep.subr.bf16.mxu0 0
  %627 = vmatpush2.bf16.msra.mxu0 0
  %628 = vmatprep.subr.bf16.mxu0 0
  %629 = vmatpush2.bf16.msra.mxu0 0
  %630 = vmatprep.subr.bf16.mxu0 0
  %631 = vmatpush2.bf16.msra.mxu0 0
  %632 = vmatprep.subr.bf16.mxu0 0
  %633 = vmatpush2.bf16.msra.mxu0 0
  %634 = vmatprep.subr.bf16.mxu0 0
  %635 = vmatpush2.bf16.msra.mxu0 0
  %636 = vmatprep.subr.bf16.mxu0 0
  %637 = vmatpush2.bf16.msra.mxu0 0
  %638 = vmatprep.subr.bf16.mxu0 0
  %639 = vmatpush2.bf16.msra.mxu0 0
  %640 = vmatprep.subr.bf16.mxu0 0
  %641 = vmatpush2.bf16.msra.mxu0 0
  %642 = vmatprep.mubr.bf16.mxu0 0
  %643 = vmatmul.mubr.bf16.gmra.mxu0 %v118
  %v644 = vpop.f32.mrf.mxu0
  %v645 = vadd.f32 %v602, %v644
  %v646 = vpop.f32.mrf.mxu0
  %v647 = vadd.f32 %v604, %v646
  %v648 = vpop.f32.mrf.mxu0
  %v649 = vadd.f32 %v606, %v648
  %v650 = vpop.f32.mrf.mxu0
  %v651 = vadd.f32 %v608, %v650
  %652 = vdwg.mxu0
  %v653 = vlaneseq
  %v654 = vand.u32 %v653, 127
  %v655 = vadd.s32 %v654, 128
  %vm656 = vcmp.lt.s32.totalorder %v654, 128
  %vm657 = vcmp.lt.s32.totalorder %v655, 128
  %v658 = vmax.f32 %v645, 0.0
  %v659 = vmax.f32 %v647, 0.0
  %v660 = vmax.f32 %v649, 0.0
  %v661 = vmax.f32 %v651, 0.0
  %v662 = vsel %vm656, %v658, %v645
  %v663 = vsel %vm657, %v659, %v647
  %v664 = vsel %vm656, %v660, %v649
  %v665 = vsel %vm657, %v661, %v651
  %v666 = vpack.c.bf16 %v664, %v662
  %v667 = vpack.c.bf16 %v665, %v663
  %v670 = vunpack.c.l.b16 %v666
  %v671 = vunpack.c.l.b16 %v667
  %v672 = vunpack.c.h.b16 %v666
  %v673 = vunpack.c.h.b16 %v667
  %v674 = vpack.c.b16 %v671, %v670
  %v675 = vpack.c.b16 %v673, %v672
  %678 = vst [vmem:[%s2] sm:$0xff] %v674
  %679 = vst [vmem:[%s2 + $0x8] sm:$0xff] %v675
  // Predicated region
  $region10: #{student_resnet_forward.18} parent=0 // pred_check
    _
  $region11: #{student_resnet_forward.18} parent=0 // pred_check_branch
    %681 = sbr.rel (0) target = $region13
  $region12: #{student_resnet_forward.18} parent=0 // pred_region
    _
  $region13: #{student_resnet_forward.18} parent=0 // pred_fallthru
    _
  // Predicated region
  $region14: #{student_resnet_forward.18} parent=0 // pred_check
    _
  $region15: #{student_resnet_forward.18} parent=0 // pred_check_branch
    %683 = sbr.rel (0) target = $region17
  $region16: #{student_resnet_forward.18} parent=0 // pred_region
    _
  $region17: #{student_resnet_forward.18} parent=0 // pred_fallthru
    _

// kernel: student_resnet_forward.19
$region0: #{student_resnet_forward.19}
  #allocation0 [shape = 'u32[]', space=smem, size = 0x4, offset = 0x4, fixed_abs, tag = 'smem constant byte address 0x4 - core index']
  #allocation1 [shape = 'u32[144,128]{1,0:T(1,128)}', space=vmem, size = 0x12000, scoped, tag = 'internal scratch']
  %s0 = inlined_call_operand.vmem [shape: bf16[16,1152], index: 0, kind: input, shape index: {}]
  %s1 = inlined_call_operand.vmem [shape: bf16[1152,128], index: 1, kind: input, shape index: {}]
  %s2 = inlined_call_operand.vmem [shape: bf16[16,128], index: 2, kind: input, shape index: {}]
  %s3 = inlined_call_operand.vmem [shape: bf16[16,128], index: 3, kind: output, shape index: {}]
  %s4 = sld [smem:[#allocation0]]
  $region22: #{student_resnet_forward.19} parent=0
    _
  %s6 = ssub.s32 1, %s4
  %s7 = scalar_select 0, %s6, %s4
  // Predicated region
  $region2: #{student_resnet_forward.19} parent=0 // pred_check
    _
  $region3: #{student_resnet_forward.19} parent=0 // pred_check_branch
    %9 = sbr.rel (0) target = $region5
  $region4: #{student_resnet_forward.19} parent=0 // pred_region
    _
  $region5: #{student_resnet_forward.19} parent=0 // pred_fallthru
    _
  // Predicated region
  $region6: #{student_resnet_forward.19} parent=0 // pred_check
    _
  $region7: #{student_resnet_forward.19} parent=0 // pred_check_branch
    %11 = sbr.rel (0) target = $region9
  $region8: #{student_resnet_forward.19} parent=0 // pred_region
    _
  $region9: #{student_resnet_forward.19} parent=0 // pred_fallthru
    _
  // Predicated region
  $region10: #{student_resnet_forward.19} parent=0 // pred_check
    _
  $region11: #{student_resnet_forward.19} parent=0 // pred_check_branch
    %13 = sbr.rel (0) target = $region13
  $region12: #{student_resnet_forward.19} parent=0 // pred_region
    _
  $region13: #{student_resnet_forward.19} parent=0 // pred_fallthru
    _
  %v15 = vld [vmem:[%s0] sm:$0xff]
  %v16 = vld [vmem:[%s0 + $0x8] sm:$0xff]
  %v17 = vld [vmem:[%s0 + $0x10] sm:$0xff]
  %v18 = vld [vmem:[%s0 + $0x18] sm:$0xff]
  %v19 = vld [vmem:[%s0 + $0x20] sm:$0xf]
  %v20 = vld [vmem:[%s0 + $0x24] sm:$0xff]
  %v21 = vld [vmem:[%s0 + $0x2c] sm:$0xff]
  %v22 = vld [vmem:[%s0 + $0x34] sm:$0xff]
  %v23 = vld [vmem:[%s0 + $0x3c] sm:$0xff]
  %v24 = vld [vmem:[%s0 + $0x44] sm:$0xf]
  %v25 = vld [vmem:[%s1] sm:$0xf]
  %v26 = vld [vmem:[%s1 + $0x4] sm:$0xf]
  %v27 = vld [vmem:[%s1 + $0x8] sm:$0xf]
  %v28 = vld [vmem:[%s1 + $0xc] sm:$0xf]
  %v29 = vld [vmem:[%s1 + $0x10] sm:$0xf]
  %v30 = vld [vmem:[%s1 + $0x14] sm:$0xf]
  %v31 = vld [vmem:[%s1 + $0x18] sm:$0xf]
  %v32 = vld [vmem:[%s1 + $0x1c] sm:$0xf]
  %v33 = vld [vmem:[%s1 + $0x20] sm:$0xf]
  %v34 = vld [vmem:[%s1 + $0x24] sm:$0xf]
  %v35 = vld [vmem:[%s1 + $0x28] sm:$0xf]
  %v36 = vld [vmem:[%s1 + $0x2c] sm:$0xf]
  %v37 = vld [vmem:[%s1 + $0x30] sm:$0xf]
  %v38 = vld [vmem:[%s1 + $0x34] sm:$0xf]
  %v39 = vld [vmem:[%s1 + $0x38] sm:$0xf]
  %v40 = vld [vmem:[%s1 + $0x3c] sm:$0xf]
  %v41 = vld [vmem:[%s1 + $0x40] sm:$0xf]
  %v42 = vld [vmem:[%s1 + $0x44] sm:$0xf]
  %v43 = vld [vmem:[%s1 + $0x48] sm:$0xf]
  %v44 = vld [vmem:[%s1 + $0x4c] sm:$0xf]
  %v45 = vld [vmem:[%s1 + $0x50] sm:$0xf]
  %v46 = vld [vmem:[%s1 + $0x54] sm:$0xf]
  %v47 = vld [vmem:[%s1 + $0x58] sm:$0xf]
  %v48 = vld [vmem:[%s1 + $0x5c] sm:$0xf]
  %v49 = vld [vmem:[%s1 + $0x60] sm:$0xf]
  %v50 = vld [vmem:[%s1 + $0x64] sm:$0xf]
  %v51 = vld [vmem:[%s1 + $0x68] sm:$0xf]
  %v52 = vld [vmem:[%s1 + $0x6c] sm:$0xf]
  %v53 = vld [vmem:[%s1 + $0x70] sm:$0xf]
  %v54 = vld [vmem:[%s1 + $0x74] sm:$0xf]
  %v55 = vld [vmem:[%s1 + $0x78] sm:$0xf]
  %v56 = vld [vmem:[%s1 + $0x7c] sm:$0xf]
  %v57 = vld [vmem:[%s1 + $0x80] sm:$0xf]
  %v58 = vld [vmem:[%s1 + $0x84] sm:$0xf]
  %v59 = vld [vmem:[%s1 + $0x88] sm:$0xf]
  %v60 = vld [vmem:[%s1 + $0x8c] sm:$0xf]
  %v61 = vld [vmem:[%s1 + $0x90] sm:$0xf]
  %v62 = vld [vmem:[%s1 + $0x94] sm:$0xf]
  %v63 = vld [vmem:[%s1 + $0x98] sm:$0xf]
  %v64 = vld [vmem:[%s1 + $0x9c] sm:$0xf]
  %v65 = vld [vmem:[%s1 + $0xa0] sm:$0xf]
  %v66 = vld [vmem:[%s1 + $0xa4] sm:$0xf]
  %v67 = vld [vmem:[%s1 + $0xa8] sm:$0xf]
  %v68 = vld [vmem:[%s1 + $0xac] sm:$0xf]
  %v69 = vld [vmem:[%s1 + $0xb0] sm:$0xf]
  %v70 = vld [vmem:[%s1 + $0xb4] sm:$0xf]
  %v71 = vld [vmem:[%s1 + $0xb8] sm:$0xf]
  %v72 = vld [vmem:[%s1 + $0xbc] sm:$0xf]
  %v73 = vld [vmem:[%s1 + $0xc0] sm:$0xf]
  %v74 = vld [vmem:[%s1 + $0xc4] sm:$0xf]
  %v75 = vld [vmem:[%s1 + $0xc8] sm:$0xf]
  %v76 = vld [vmem:[%s1 + $0xcc] sm:$0xf]
  %v77 = vld [vmem:[%s1 + $0xd0] sm:$0xf]
  %v78 = vld [vmem:[%s1 + $0xd4] sm:$0xf]
  %v79 = vld [vmem:[%s1 + $0xd8] sm:$0xf]
  %v80 = vld [vmem:[%s1 + $0xdc] sm:$0xf]
  %v81 = vld [vmem:[%s1 + $0xe0] sm:$0xf]
  %v82 = vld [vmem:[%s1 + $0xe4] sm:$0xf]
  %v83 = vld [vmem:[%s1 + $0xe8] sm:$0xf]
  %v84 = vld [vmem:[%s1 + $0xec] sm:$0xf]
  %v85 = vld [vmem:[%s1 + $0xf0] sm:$0xf]
  %v86 = vld [vmem:[%s1 + $0xf4] sm:$0xf]
  %v87 = vld [vmem:[%s1 + $0xf8] sm:$0xf]
  %v88 = vld [vmem:[%s1 + $0xfc] sm:$0xf]
  %v89 = vld [vmem:[%s1 + $0x100] sm:$0xf]
  %v90 = vld [vmem:[%s1 + $0x104] sm:$0xf]
  %v91 = vld [vmem:[%s1 + $0x108] sm:$0xf]
  %v92 = vld [vmem:[%s1 + $0x10c] sm:$0xf]
  %v93 = vld [vmem:[%s1 + $0x110] sm:$0xf]
  %v94 = vld [vmem:[%s1 + $0x114] sm:$0xf]
  %v95 = vld [vmem:[%s1 + $0x118] sm:$0xf]
  %v96 = vld [vmem:[%s1 + $0x11c] sm:$0xf]
  %v97 = vld [vmem:[%s1 + $0x120] sm:$0xf]
  %v98 = vld [vmem:[%s1 + $0x124] sm:$0xf]
  %v99 = vld [vmem:[%s1 + $0x128] sm:$0xf]
  %v100 = vld [vmem:[%s1 + $0x12c] sm:$0xf]
  %v101 = vld [vmem:[%s1 + $0x130] sm:$0xf]
  %v102 = vld [vmem:[%s1 + $0x134] sm:$0xf]
  %v103 = vld [vmem:[%s1 + $0x138] sm:$0xf]
  %v104 = vld [vmem:[%s1 + $0x13c] sm:$0xf]
  %v105 = vld [vmem:[%s1 + $0x140] sm:$0xf]
  %v106 = vld [vmem:[%s1 + $0x144] sm:$0xf]
  %v107 = vld [vmem:[%s1 + $0x148] sm:$0xf]
  %v108 = vld [vmem:[%s1 + $0x14c] sm:$0xf]
  %v109 = vld [vmem:[%s1 + $0x150] sm:$0xf]
  %v110 = vld [vmem:[%s1 + $0x154] sm:$0xf]
  %v111 = vld [vmem:[%s1 + $0x158] sm:$0xf]
  %v112 = vld [vmem:[%s1 + $0x15c] sm:$0xf]
  %v113 = vld [vmem:[%s1 + $0x160] sm:$0xf]
  %v114 = vld [vmem:[%s1 + $0x164] sm:$0xf]
  %v115 = vld [vmem:[%s1 + $0x168] sm:$0xf]
  %v116 = vld [vmem:[%s1 + $0x16c] sm:$0xf]
  %v117 = vld [vmem:[%s1 + $0x170] sm:$0xf]
  %v118 = vld [vmem:[%s1 + $0x174] sm:$0xf]
  %v119 = vld [vmem:[%s1 + $0x178] sm:$0xf]
  %v120 = vld [vmem:[%s1 + $0x17c] sm:$0xf]
  %v121 = vld [vmem:[%s1 + $0x180] sm:$0xf]
  %v122 = vld [vmem:[%s1 + $0x184] sm:$0xf]
  %v123 = vld [vmem:[%s1 + $0x188] sm:$0xf]
  %v124 = vld [vmem:[%s1 + $0x18c] sm:$0xf]
  %v125 = vld [vmem:[%s1 + $0x190] sm:$0xf]
  %v126 = vld [vmem:[%s1 + $0x194] sm:$0xf]
  %v127 = vld [vmem:[%s1 + $0x198] sm:$0xf]
  %v128 = vld [vmem:[%s1 + $0x19c] sm:$0xf]
  %v129 = vld [vmem:[%s1 + $0x1a0] sm:$0xf]
  %v130 = vld [vmem:[%s1 + $0x1a4] sm:$0xf]
  %v131 = vld [vmem:[%s1 + $0x1a8] sm:$0xf]
  %v132 = vld [vmem:[%s1 + $0x1ac] sm:$0xf]
  %v133 = vld [vmem:[%s1 + $0x1b0] sm:$0xf]
  %v134 = vld [vmem:[%s1 + $0x1b4] sm:$0xf]
  %v135 = vld [vmem:[%s1 + $0x1b8] sm:$0xf]
  %v136 = vld [vmem:[%s1 + $0x1bc] sm:$0xf]
  %v137 = vld [vmem:[%s1 + $0x1c0] sm:$0xf]
  %v138 = vld [vmem:[%s1 + $0x1c4] sm:$0xf]
  %v139 = vld [vmem:[%s1 + $0x1c8] sm:$0xf]
  %v140 = vld [vmem:[%s1 + $0x1cc] sm:$0xf]
  %v141 = vld [vmem:[%s1 + $0x1d0] sm:$0xf]
  %v142 = vld [vmem:[%s1 + $0x1d4] sm:$0xf]
  %v143 = vld [vmem:[%s1 + $0x1d8] sm:$0xf]
  %v144 = vld [vmem:[%s1 + $0x1dc] sm:$0xf]
  %v145 = vld [vmem:[%s1 + $0x1e0] sm:$0xf]
  %v146 = vld [vmem:[%s1 + $0x1e4] sm:$0xf]
  %v147 = vld [vmem:[%s1 + $0x1e8] sm:$0xf]
  %v148 = vld [vmem:[%s1 + $0x1ec] sm:$0xf]
  %v149 = vld [vmem:[%s1 + $0x1f0] sm:$0xf]
  %v150 = vld [vmem:[%s1 + $0x1f4] sm:$0xf]
  %v151 = vld [vmem:[%s1 + $0x1f8] sm:$0xf]
  %v152 = vld [vmem:[%s1 + $0x1fc] sm:$0xf]
  %v153 = vld [vmem:[%s1 + $0x200] sm:$0xf]
  %v154 = vld [vmem:[%s1 + $0x204] sm:$0xf]
  %v155 = vld [vmem:[%s1 + $0x208] sm:$0xf]
  %v156 = vld [vmem:[%s1 + $0x20c] sm:$0xf]
  %v157 = vld [vmem:[%s1 + $0x210] sm:$0xf]
  %v158 = vld [vmem:[%s1 + $0x214] sm:$0xf]
  %v159 = vld [vmem:[%s1 + $0x218] sm:$0xf]
  %v160 = vld [vmem:[%s1 + $0x21c] sm:$0xf]
  %v161 = vld [vmem:[%s1 + $0x220] sm:$0xf]
  %v162 = vld [vmem:[%s1 + $0x224] sm:$0xf]
  %v163 = vld [vmem:[%s1 + $0x228] sm:$0xf]
  %v164 = vld [vmem:[%s1 + $0x22c] sm:$0xf]
  %v165 = vld [vmem:[%s1 + $0x230] sm:$0xf]
  %v166 = vld [vmem:[%s1 + $0x234] sm:$0xf]
  %v167 = vld [vmem:[%s1 + $0x238] sm:$0xf]
  %v168 = vld [vmem:[%s1 + $0x23c] sm:$0xf]
  %v169 = vld [vmem:[%s2] sm:$0xf]
  %v170 = vld [vmem:[%s2 + $0x4] sm:$0xf]
  %v171 = vunpack.c.l.bf16 %v169
  %v172 = vunpack.c.l.bf16 %v170
  %v183 = vunpack.c.l.b16 %v15
  %v184 = vunpack.c.h.b16 %v15
  %v185 = vunpack.c.l.b16 %v16
  %v186 = vunpack.c.h.b16 %v16
  %v187 = vunpack.c.l.b16 %v17
  %v188 = vunpack.c.h.b16 %v17
  %v189 = vunpack.c.l.b16 %v18
  %v190 = vunpack.c.h.b16 %v18
  %v191 = vunpack.c.l.b16 %v19
  %v192 = vunpack.c.l.b16 %v20
  %v193 = vunpack.c.h.b16 %v20
  %v194 = vunpack.c.l.b16 %v21
  %v195 = vunpack.c.h.b16 %v21
  %v196 = vunpack.c.l.b16 %v22
  %v197 = vunpack.c.h.b16 %v22
  %v198 = vunpack.c.l.b16 %v23
  %v199 = vunpack.c.h.b16 %v23
  %v200 = vunpack.c.l.b16 %v24
  %v201 = vpack.c.b16 %v192, %v183
  %v202 = vpack.c.b16 %v193, %v184
  %v203 = vpack.c.b16 %v194, %v185
  %v204 = vpack.c.b16 %v195, %v186
  %v205 = vpack.c.b16 %v196, %v187
  %v206 = vpack.c.b16 %v197, %v188
  %v207 = vpack.c.b16 %v198, %v189
  %v208 = vpack.c.b16 %v199, %v190
  %v209 = vpack.c.b16 %v200, %v191
  %v363 = vunpack.c.l.b16 %v25
  %v364 = vunpack.c.l.b16 %v26
  %v365 = vunpack.c.l.b16 %v27
  %v366 = vunpack.c.l.b16 %v28
  %v367 = vunpack.c.l.b16 %v29
  %v368 = vunpack.c.l.b16 %v30
  %v369 = vunpack.c.l.b16 %v31
  %v370 = vunpack.c.l.b16 %v32
  %v371 = vunpack.c.l.b16 %v33
  %v372 = vunpack.c.l.b16 %v34
  %v373 = vunpack.c.l.b16 %v35
  %v374 = vunpack.c.l.b16 %v36
  %v375 = vunpack.c.l.b16 %v37
  %v376 = vunpack.c.l.b16 %v38
  %v377 = vunpack.c.l.b16 %v39
  %v378 = vunpack.c.l.b16 %v40
  %v379 = vunpack.c.l.b16 %v41
  %v380 = vunpack.c.l.b16 %v42
  %v381 = vunpack.c.l.b16 %v43
  %v382 = vunpack.c.l.b16 %v44
  %v383 = vunpack.c.l.b16 %v45
  %v384 = vunpack.c.l.b16 %v46
  %v385 = vunpack.c.l.b16 %v47
  %v386 = vunpack.c.l.b16 %v48
  %v387 = vunpack.c.l.b16 %v49
  %v388 = vunpack.c.l.b16 %v50
  %v389 = vunpack.c.l.b16 %v51
  %v390 = vunpack.c.l.b16 %v52
  %v391 = vunpack.c.l.b16 %v53
  %v392 = vunpack.c.l.b16 %v54
  %v393 = vunpack.c.l.b16 %v55
  %v394 = vunpack.c.l.b16 %v56
  %v395 = vunpack.c.l.b16 %v57
  %v396 = vunpack.c.l.b16 %v58
  %v397 = vunpack.c.l.b16 %v59
  %v398 = vunpack.c.l.b16 %v60
  %v399 = vunpack.c.l.b16 %v61
  %v400 = vunpack.c.l.b16 %v62
  %v401 = vunpack.c.l.b16 %v63
  %v402 = vunpack.c.l.b16 %v64
  %v403 = vunpack.c.l.b16 %v65
  %v404 = vunpack.c.l.b16 %v66
  %v405 = vunpack.c.l.b16 %v67
  %v406 = vunpack.c.l.b16 %v68
  %v407 = vunpack.c.l.b16 %v69
  %v408 = vunpack.c.l.b16 %v70
  %v409 = vunpack.c.l.b16 %v71
  %v410 = vunpack.c.l.b16 %v72
  %v411 = vunpack.c.l.b16 %v73
  %v412 = vunpack.c.l.b16 %v74
  %v413 = vunpack.c.l.b16 %v75
  %v414 = vunpack.c.l.b16 %v76
  %v415 = vunpack.c.l.b16 %v77
  %v416 = vunpack.c.l.b16 %v78
  %v417 = vunpack.c.l.b16 %v79
  %v418 = vunpack.c.l.b16 %v80
  %v419 = vunpack.c.l.b16 %v81
  %v420 = vunpack.c.l.b16 %v82
  %v421 = vunpack.c.l.b16 %v83
  %v422 = vunpack.c.l.b16 %v84
  %v423 = vunpack.c.l.b16 %v85
  %v424 = vunpack.c.l.b16 %v86
  %v425 = vunpack.c.l.b16 %v87
  %v426 = vunpack.c.l.b16 %v88
  %v427 = vunpack.c.l.b16 %v89
  %v428 = vunpack.c.l.b16 %v90
  %v429 = vunpack.c.l.b16 %v91
  %v430 = vunpack.c.l.b16 %v92
  %v431 = vunpack.c.l.b16 %v93
  %v432 = vunpack.c.l.b16 %v94
  %v433 = vunpack.c.l.b16 %v95
  %v434 = vunpack.c.l.b16 %v96
  %v435 = vunpack.c.l.b16 %v97
  %v436 = vunpack.c.l.b16 %v98
  %v437 = vunpack.c.l.b16 %v99
  %v438 = vunpack.c.l.b16 %v100
  %v439 = vunpack.c.l.b16 %v101
  %v440 = vunpack.c.l.b16 %v102
  %v441 = vunpack.c.l.b16 %v103
  %v442 = vunpack.c.l.b16 %v104
  %v443 = vunpack.c.l.b16 %v105
  %v444 = vunpack.c.l.b16 %v106
  %v445 = vunpack.c.l.b16 %v107
  %v446 = vunpack.c.l.b16 %v108
  %v447 = vunpack.c.l.b16 %v109
  %v448 = vunpack.c.l.b16 %v110
  %v449 = vunpack.c.l.b16 %v111
  %v450 = vunpack.c.l.b16 %v112
  %v451 = vunpack.c.l.b16 %v113
  %v452 = vunpack.c.l.b16 %v114
  %v453 = vunpack.c.l.b16 %v115
  %v454 = vunpack.c.l.b16 %v116
  %v455 = vunpack.c.l.b16 %v117
  %v456 = vunpack.c.l.b16 %v118
  %v457 = vunpack.c.l.b16 %v119
  %v458 = vunpack.c.l.b16 %v120
  %v459 = vunpack.c.l.b16 %v121
  %v460 = vunpack.c.l.b16 %v122
  %v461 = vunpack.c.l.b16 %v123
  %v462 = vunpack.c.l.b16 %v124
  %v463 = vunpack.c.l.b16 %v125
  %v464 = vunpack.c.l.b16 %v126
  %v465 = vunpack.c.l.b16 %v127
  %v466 = vunpack.c.l.b16 %v128
  %v467 = vunpack.c.l.b16 %v129
  %v468 = vunpack.c.l.b16 %v130
  %v469 = vunpack.c.l.b16 %v131
  %v470 = vunpack.c.l.b16 %v132
  %v471 = vunpack.c.l.b16 %v133
  %v472 = vunpack.c.l.b16 %v134
  %v473 = vunpack.c.l.b16 %v135
  %v474 = vunpack.c.l.b16 %v136
  %v475 = vunpack.c.l.b16 %v137
  %v476 = vunpack.c.l.b16 %v138
  %v477 = vunpack.c.l.b16 %v139
  %v478 = vunpack.c.l.b16 %v140
  %v479 = vunpack.c.l.b16 %v141
  %v480 = vunpack.c.l.b16 %v142
  %v481 = vunpack.c.l.b16 %v143
  %v482 = vunpack.c.l.b16 %v144
  %v483 = vunpack.c.l.b16 %v145
  %v484 = vunpack.c.l.b16 %v146
  %v485 = vunpack.c.l.b16 %v147
  %v486 = vunpack.c.l.b16 %v148
  %v487 = vunpack.c.l.b16 %v149
  %v488 = vunpack.c.l.b16 %v150
  %v489 = vunpack.c.l.b16 %v151
  %v490 = vunpack.c.l.b16 %v152
  %v491 = vunpack.c.l.b16 %v153
  %v492 = vunpack.c.l.b16 %v154
  %v493 = vunpack.c.l.b16 %v155
  %v494 = vunpack.c.l.b16 %v156
  %v495 = vunpack.c.l.b16 %v157
  %v496 = vunpack.c.l.b16 %v158
  %v497 = vunpack.c.l.b16 %v159
  %v498 = vunpack.c.l.b16 %v160
  %v499 = vunpack.c.l.b16 %v161
  %v500 = vunpack.c.l.b16 %v162
  %v501 = vunpack.c.l.b16 %v163
  %v502 = vunpack.c.l.b16 %v164
  %v503 = vunpack.c.l.b16 %v165
  %v504 = vunpack.c.l.b16 %v166
  %v505 = vunpack.c.l.b16 %v167
  %v506 = vunpack.c.l.b16 %v168
  %v507 = vpack.c.b16 %v364, %v363
  %v508 = vpack.c.b16 %v366, %v365
  %v509 = vpack.c.b16 %v368, %v367
  %v510 = vpack.c.b16 %v370, %v369
  %v511 = vpack.c.b16 %v372, %v371
  %v512 = vpack.c.b16 %v374, %v373
  %v513 = vpack.c.b16 %v376, %v375
  %v514 = vpack.c.b16 %v378, %v377
  %v515 = vpack.c.b16 %v380, %v379
  %v516 = vpack.c.b16 %v382, %v381
  %v517 = vpack.c.b16 %v384, %v383
  %v518 = vpack.c.b16 %v386, %v385
  %v519 = vpack.c.b16 %v388, %v387
  %v520 = vpack.c.b16 %v390, %v389
  %v521 = vpack.c.b16 %v392, %v391
  %v522 = vpack.c.b16 %v394, %v393
  %v523 = vpack.c.b16 %v396, %v395
  %v524 = vpack.c.b16 %v398, %v397
  %v525 = vpack.c.b16 %v400, %v399
  %v526 = vpack.c.b16 %v402, %v401
  %v527 = vpack.c.b16 %v404, %v403
  %v528 = vpack.c.b16 %v406, %v405
  %v529 = vpack.c.b16 %v408, %v407
  %v530 = vpack.c.b16 %v410, %v409
  %v531 = vpack.c.b16 %v412, %v411
  %v532 = vpack.c.b16 %v414, %v413
  %v533 = vpack.c.b16 %v416, %v415
  %v534 = vpack.c.b16 %v418, %v417
  %v535 = vpack.c.b16 %v420, %v419
  %v536 = vpack.c.b16 %v422, %v421
  %v537 = vpack.c.b16 %v424, %v423
  %v538 = vpack.c.b16 %v426, %v425
  %v539 = vpack.c.b16 %v428, %v427
  %v540 = vpack.c.b16 %v430, %v429
  %v541 = vpack.c.b16 %v432, %v431
  %v542 = vpack.c.b16 %v434, %v433
  %v543 = vpack.c.b16 %v436, %v435
  %v544 = vpack.c.b16 %v438, %v437
  %v545 = vpack.c.b16 %v440, %v439
  %v546 = vpack.c.b16 %v442, %v441
  %v547 = vpack.c.b16 %v444, %v443
  %v548 = vpack.c.b16 %v446, %v445
  %v549 = vpack.c.b16 %v448, %v447
  %v550 = vpack.c.b16 %v450, %v449
  %v551 = vpack.c.b16 %v452, %v451
  %v552 = vpack.c.b16 %v454, %v453
  %v553 = vpack.c.b16 %v456, %v455
  %v554 = vpack.c.b16 %v458, %v457
  %v555 = vpack.c.b16 %v460, %v459
  %v556 = vpack.c.b16 %v462, %v461
  %v557 = vpack.c.b16 %v464, %v463
  %v558 = vpack.c.b16 %v466, %v465
  %v559 = vpack.c.b16 %v468, %v467
  %v560 = vpack.c.b16 %v470, %v469
  %v561 = vpack.c.b16 %v472, %v471
  %v562 = vpack.c.b16 %v474, %v473
  %v563 = vpack.c.b16 %v476, %v475
  %v564 = vpack.c.b16 %v478, %v477
  %v565 = vpack.c.b16 %v480, %v479
  %v566 = vpack.c.b16 %v482, %v481
  %v567 = vpack.c.b16 %v484, %v483
  %v568 = vpack.c.b16 %v486, %v485
  %v569 = vpack.c.b16 %v488, %v487
  %v570 = vpack.c.b16 %v490, %v489
  %v571 = vpack.c.b16 %v492, %v491
  %v572 = vpack.c.b16 %v494, %v493
  %v573 = vpack.c.b16 %v496, %v495
  %v574 = vpack.c.b16 %v498, %v497
  %v575 = vpack.c.b16 %v500, %v499
  %v576 = vpack.c.b16 %v502, %v501
  %v577 = vpack.c.b16 %v504, %v503
  %v578 = vpack.c.b16 %v506, %v505
  %651 = vmatprep.subr.bf16.mxu0 0
  %652 = vmatpush1.bf16.msra.mxu0 %v514
  %653 = vmatprep.subr.bf16.mxu0 0
  %654 = vmatpush1.bf16.msra.mxu0 %v513
  %655 = vmatprep.subr.bf16.mxu0 0
  %656 = vmatpush1.bf16.msra.mxu0 %v512
  %657 = vmatprep.subr.bf16.mxu0 0
  %658 = vmatpush1.bf16.msra.mxu0 %v511
  %659 = vmatprep.subr.bf16.mxu0 0
  %660 = vmatpush1.bf16.msra.mxu0 %v510
  %661 = vmatprep.subr.bf16.mxu0 0
  %662 = vmatpush1.bf16.msra.mxu0 %v509
  %663 = vmatprep.subr.bf16.mxu0 0
  %664 = vmatpush1.bf16.msra.mxu0 %v508
  %665 = vmatprep.subr.bf16.mxu0 0
  %666 = vmatpush1.bf16.msra.mxu0 %v507
  %667 = vmatprep.subr.bf16.mxu0 0
  %668 = vmatpush2.bf16.msra.mxu0 %v522
  %669 = vmatprep.subr.bf16.mxu0 0
  %670 = vmatpush2.bf16.msra.mxu0 %v521
  %671 = vmatprep.subr.bf16.mxu0 0
  %672 = vmatpush2.bf16.msra.mxu0 %v520
  %673 = vmatprep.subr.bf16.mxu0 0
  %674 = vmatpush2.bf16.msra.mxu0 %v519
  %675 = vmatprep.subr.bf16.mxu0 0
  %676 = vmatpush2.bf16.msra.mxu0 %v518
  %677 = vmatprep.subr.bf16.mxu0 0
  %678 = vmatpush2.bf16.msra.mxu0 %v517
  %679 = vmatprep.subr.bf16.mxu0 0
  %680 = vmatpush2.bf16.msra.mxu0 %v516
  %681 = vmatprep.subr.bf16.mxu0 0
  %682 = vmatpush2.bf16.msra.mxu0 %v515
  %683 = vmatprep.mubr.bf16.mxu0 %v202
  %684 = vmatmul.mubr.bf16.gmra.mxu0 %v201
  %v685 = vpop.f32.mrf.mxu0
  %v686 = vadd.f32 %v171, %v685
  %v687 = vpop.f32.mrf.mxu0
  %v688 = vpop.f32.mrf.mxu0
  %v689 = vadd.f32 %v172, %v688
  %v690 = vpop.f32.mrf.mxu0
  %691 = vdwg.mxu0
  %692 = vmatprep.subr.bf16.mxu0 0
  %693 = vmatpush1.bf16.msra.mxu0 %v530
  %694 = vmatprep.subr.bf16.mxu0 0
  %695 = vmatpush1.bf16.msra.mxu0 %v529
  %696 = vmatprep.subr.bf16.mxu0 0
  %697 = vmatpush1.bf16.msra.mxu0 %v528
  %698 = vmatprep.subr.bf16.mxu0 0
  %699 = vmatpush1.bf16.msra.mxu0 %v527
  %700 = vmatprep.subr.bf16.mxu0 0
  %701 = vmatpush1.bf16.msra.mxu0 %v526
  %702 = vmatprep.subr.bf16.mxu0 0
  %703 = vmatpush1.bf16.msra.mxu0 %v525
  %704 = vmatprep.subr.bf16.mxu0 0
  %705 = vmatpush1.bf16.msra.mxu0 %v524
  %706 = vmatprep.subr.bf16.mxu0 0
  %707 = vmatpush1.bf16.msra.mxu0 %v523
  %708 = vmatprep.subr.bf16.mxu0 0
  %709 = vmatpush2.bf16.msra.mxu0 %v538
  %710 = vmatprep.subr.bf16.mxu0 0
  %711 = vmatpush2.bf16.msra.mxu0 %v537
  %712 = vmatprep.subr.bf16.mxu0 0
  %713 = vmatpush2.bf16.msra.mxu0 %v536
  %714 = vmatprep.subr.bf16.mxu0 0
  %715 = vmatpush2.bf16.msra.mxu0 %v535
  %716 = vmatprep.subr.bf16.mxu0 0
  %717 = vmatpush2.bf16.msra.mxu0 %v534
  %718 = vmatprep.subr.bf16.mxu0 0
  %719 = vmatpush2.bf16.msra.mxu0 %v533
  %720 = vmatprep.subr.bf16.mxu0 0
  %721 = vmatpush2.bf16.msra.mxu0 %v532
  %722 = vmatprep.subr.bf16.mxu0 0
  %723 = vmatpush2.bf16.msra.mxu0 %v531
  %724 = vmatprep.mubr.bf16.mxu0 %v204
  %725 = vmatmul.mubr.bf16.gmra.mxu0 %v203
  %v726 = vpop.f32.mrf.mxu0
  %v727 = vadd.f32 %v686, %v726
  %v728 = vpop.f32.mrf.mxu0
  %v729 = vpop.f32.mrf.mxu0
  %v730 = vadd.f32 %v689, %v729
  %v731 = vpop.f32.mrf.mxu0
  %732 = vdwg.mxu0
  %733 = vmatprep.subr.bf16.mxu0 0
  %734 = vmatpush1.bf16.msra.mxu0 %v546
  %735 = vmatprep.subr.bf16.mxu0 0
  %736 = vmatpush1.bf16.msra.mxu0 %v545
  %737 = vmatprep.subr.bf16.mxu0 0
  %738 = vmatpush1.bf16.msra.mxu0 %v544
  %739 = vmatprep.subr.bf16.mxu0 0
  %740 = vmatpush1.bf16.msra.mxu0 %v543
  %741 = vmatprep.subr.bf16.mxu0 0
  %742 = vmatpush1.bf16.msra.mxu0 %v542
  %743 = vmatprep.subr.bf16.mxu0 0
  %744 = vmatpush1.bf16.msra.mxu0 %v541
  %745 = vmatprep.subr.bf16.mxu0 0
  %746 = vmatpush1.bf16.msra.mxu0 %v540
  %747 = vmatprep.subr.bf16.mxu0 0
  %748 = vmatpush1.bf16.msra.mxu0 %v539
  %749 = vmatprep.subr.bf16.mxu0 0
  %750 = vmatpush2.bf16.msra.mxu0 %v554
  %751 = vmatprep.subr.bf16.mxu0 0
  %752 = vmatpush2.bf16.msra.mxu0 %v553
  %753 = vmatprep.subr.bf16.mxu0 0
  %754 = vmatpush2.bf16.msra.mxu0 %v552
  %755 = vmatprep.subr.bf16.mxu0 0
  %756 = vmatpush2.bf16.msra.mxu0 %v551
  %757 = vmatprep.subr.bf16.mxu0 0
  %758 = vmatpush2.bf16.msra.mxu0 %v550
  %759 = vmatprep.subr.bf16.mxu0 0
  %760 = vmatpush2.bf16.msra.mxu0 %v549
  %761 = vmatprep.subr.bf16.mxu0 0
  %762 = vmatpush2.bf16.msra.mxu0 %v548
  %763 = vmatprep.subr.bf16.mxu0 0
  %764 = vmatpush2.bf16.msra.mxu0 %v547
  %765 = vmatprep.mubr.bf16.mxu0 %v206
  %766 = vmatmul.mubr.bf16.gmra.mxu0 %v205
  %v767 = vpop.f32.mrf.mxu0
  %v768 = vadd.f32 %v727, %v767
  %v769 = vpop.f32.mrf.mxu0
  %v770 = vpop.f32.mrf.mxu0
  %v771 = vadd.f32 %v730, %v770
  %v772 = vpop.f32.mrf.mxu0
  %773 = vdwg.mxu0
  %774 = vmatprep.subr.bf16.mxu0 0
  %775 = vmatpush1.bf16.msra.mxu0 %v562
  %776 = vmatprep.subr.bf16.mxu0 0
  %777 = vmatpush1.bf16.msra.mxu0 %v561
  %778 = vmatprep.subr.bf16.mxu0 0
  %779 = vmatpush1.bf16.msra.mxu0 %v560
  %780 = vmatprep.subr.bf16.mxu0 0
  %781 = vmatpush1.bf16.msra.mxu0 %v559
  %782 = vmatprep.subr.bf16.mxu0 0
  %783 = vmatpush1.bf16.msra.mxu0 %v558
  %784 = vmatprep.subr.bf16.mxu0 0
  %785 = vmatpush1.bf16.msra.mxu0 %v557
  %786 = vmatprep.subr.bf16.mxu0 0
  %787 = vmatpush1.bf16.msra.mxu0 %v556
  %788 = vmatprep.subr.bf16.mxu0 0
  %789 = vmatpush1.bf16.msra.mxu0 %v555
  %790 = vmatprep.subr.bf16.mxu0 0
  %791 = vmatpush2.bf16.msra.mxu0 %v570
  %792 = vmatprep.subr.bf16.mxu0 0
  %793 = vmatpush2.bf16.msra.mxu0 %v569
  %794 = vmatprep.subr.bf16.mxu0 0
  %795 = vmatpush2.bf16.msra.mxu0 %v568
  %796 = vmatprep.subr.bf16.mxu0 0
  %797 = vmatpush2.bf16.msra.mxu0 %v567
  %798 = vmatprep.subr.bf16.mxu0 0
  %799 = vmatpush2.bf16.msra.mxu0 %v566
  %800 = vmatprep.subr.bf16.mxu0 0
  %801 = vmatpush2.bf16.msra.mxu0 %v565
  %802 = vmatprep.subr.bf16.mxu0 0
  %803 = vmatpush2.bf16.msra.mxu0 %v564
  %804 = vmatprep.subr.bf16.mxu0 0
  %805 = vmatpush2.bf16.msra.mxu0 %v563
  %806 = vmatprep.mubr.bf16.mxu0 %v208
  %807 = vmatmul.mubr.bf16.gmra.mxu0 %v207
  %v808 = vpop.f32.mrf.mxu0
  %v809 = vadd.f32 %v768, %v808
  %v810 = vpop.f32.mrf.mxu0
  %v811 = vpop.f32.mrf.mxu0
  %v812 = vadd.f32 %v771, %v811
  %v813 = vpop.f32.mrf.mxu0
  %814 = vdwg.mxu0
  %815 = vmatprep.subr.bf16.mxu0 0
  %816 = vmatpush1.bf16.msra.mxu0 %v578
  %817 = vmatprep.subr.bf16.mxu0 0
  %818 = vmatpush1.bf16.msra.mxu0 %v577
  %819 = vmatprep.subr.bf16.mxu0 0
  %820 = vmatpush1.bf16.msra.mxu0 %v576
  %821 = vmatprep.subr.bf16.mxu0 0
  %822 = vmatpush1.bf16.msra.mxu0 %v575
  %823 = vmatprep.subr.bf16.mxu0 0
  %824 = vmatpush1.bf16.msra.mxu0 %v574
  %825 = vmatprep.subr.bf16.mxu0 0
  %826 = vmatpush1.bf16.msra.mxu0 %v573
  %827 = vmatprep.subr.bf16.mxu0 0
  %828 = vmatpush1.bf16.msra.mxu0 %v572
  %829 = vmatprep.subr.bf16.mxu0 0
  %830 = vmatpush1.bf16.msra.mxu0 %v571
  %831 = vmatprep.subr.bf16.mxu0 0
  %832 = vmatpush2.bf16.msra.mxu0 0
  %833 = vmatprep.subr.bf16.mxu0 0
  %834 = vmatpush2.bf16.msra.mxu0 0
  %835 = vmatprep.subr.bf16.mxu0 0
  %836 = vmatpush2.bf16.msra.mxu0 0
  %837 = vmatprep.subr.bf16.mxu0 0
  %838 = vmatpush2.bf16.msra.mxu0 0
  %839 = vmatprep.subr.bf16.mxu0 0
  %840 = vmatpush2.bf16.msra.mxu0 0
  %841 = vmatprep.subr.bf16.mxu0 0
  %842 = vmatpush2.bf16.msra.mxu0 0
  %843 = vmatprep.subr.bf16.mxu0 0
  %844 = vmatpush2.bf16.msra.mxu0 0
  %845 = vmatprep.subr.bf16.mxu0 0
  %846 = vmatpush2.bf16.msra.mxu0 0
  %847 = vmatprep.mubr.bf16.mxu0 0
  %848 = vmatmul.mubr.bf16.gmra.mxu0 %v209
  %v849 = vpop.f32.mrf.mxu0
  %v850 = vadd.f32 %v809, %v849
  %v851 = vpop.f32.mrf.mxu0
  %v852 = vpop.f32.mrf.mxu0
  %v853 = vadd.f32 %v812, %v852
  %v854 = vpop.f32.mrf.mxu0
  %855 = vdwg.mxu0
  %v856 = vmax.f32 %v850, 0.0
  %v857 = vmax.f32 %v853, 0.0
  %v858 = vpack.c.bf16 %v857, %v856
  %v860 = vunpack.c.l.b16 %v858
  %v861 = vunpack.c.h.b16 %v858
  %v862 = vpack.c.b16 %v860, %v860
  %v863 = vpack.c.b16 %v861, %v861
  %866 = vst [vmem:[%s3] sm:$0xf] %v862
  %867 = vst [vmem:[%s3 + $0x4] sm:$0xf] %v863
  // Predicated region
  $region14: #{student_resnet_forward.19} parent=0 // pred_check
    _
  $region15: #{student_resnet_forward.19} parent=0 // pred_check_branch
    %869 = sbr.rel (0) target = $region17
  $region16: #{student_resnet_forward.19} parent=0 // pred_region
    _
  $region17: #{student_resnet_forward.19} parent=0 // pred_fallthru
    _
  // Predicated region
  $region18: #{student_resnet_forward.19} parent=0 // pred_check
    _
  $region19: #{student_resnet_forward.19} parent=0 // pred_check_branch
    %871 = sbr.rel (0) target = $region21
  $region20: #{student_resnet_forward.19} parent=0 // pred_region
    _
  $region21: #{student_resnet_forward.19} parent=0 // pred_fallthru
    _

// kernel: student_resnet_forward.20
$region0: #{student_resnet_forward.20}
  #allocation0 [shape = 'u32[]', space=smem, size = 0x4, offset = 0x4, fixed_abs, tag = 'smem constant byte address 0x4 - core index']
  #allocation1 [shape = 'u32[144,128]{1,0:T(1,128)}', space=vmem, size = 0x12000, scoped, tag = 'internal scratch']
  %s0 = inlined_call_operand.vmem [shape: bf16[16,1152], index: 0, kind: input, shape index: {}]
  %s1 = inlined_call_operand.vmem [shape: bf16[1152,256], index: 1, kind: input, shape index: {}]
  %s2 = inlined_call_operand.vmem [shape: bf16[16,256], index: 2, kind: output, shape index: {}]
  %s3 = sld [smem:[#allocation0]]
  $region18: #{student_resnet_forward.20} parent=0
    _
  %s5 = ssub.s32 1, %s3
  %s6 = scalar_select 0, %s5, %s3
  // Predicated region
  $region2: #{student_resnet_forward.20} parent=0 // pred_check
    _
  $region3: #{student_resnet_forward.20} parent=0 // pred_check_branch
    %8 = sbr.rel (0) target = $region5
  $region4: #{student_resnet_forward.20} parent=0 // pred_region
    _
  $region5: #{student_resnet_forward.20} parent=0 // pred_fallthru
    _
  // Predicated region
  $region6: #{student_resnet_forward.20} parent=0 // pred_check
    _
  $region7: #{student_resnet_forward.20} parent=0 // pred_check_branch
    %10 = sbr.rel (0) target = $region9
  $region8: #{student_resnet_forward.20} parent=0 // pred_region
    _
  $region9: #{student_resnet_forward.20} parent=0 // pred_fallthru
    _
  %v12 = vld [vmem:[%s0] sm:$0xff]
  %v13 = vld [vmem:[%s0 + $0x8] sm:$0xff]
  %v14 = vld [vmem:[%s0 + $0x10] sm:$0xff]
  %v15 = vld [vmem:[%s0 + $0x18] sm:$0xff]
  %v16 = vld [vmem:[%s0 + $0x20] sm:$0xf]
  %v17 = vld [vmem:[%s0 + $0x24] sm:$0xff]
  %v18 = vld [vmem:[%s0 + $0x2c] sm:$0xff]
  %v19 = vld [vmem:[%s0 + $0x34] sm:$0xff]
  %v20 = vld [vmem:[%s0 + $0x3c] sm:$0xff]
  %v21 = vld [vmem:[%s0 + $0x44] sm:$0xf]
  %v22 = vld [vmem:[%s1] sm:$0xff]
  %v23 = vld [vmem:[%s1 + $0x8] sm:$0xff]
  %v24 = vld [vmem:[%s1 + $0x10] sm:$0xff]
  %v25 = vld [vmem:[%s1 + $0x18] sm:$0xff]
  %v26 = vld [vmem:[%s1 + $0x20] sm:$0xff]
  %v27 = vld [vmem:[%s1 + $0x28] sm:$0xff]
  %v28 = vld [vmem:[%s1 + $0x30] sm:$0xff]
  %v29 = vld [vmem:[%s1 + $0x38] sm:$0xff]
  %v30 = vld [vmem:[%s1 + $0x40] sm:$0xff]
  %v31 = vld [vmem:[%s1 + $0x48] sm:$0xff]
  %v32 = vld [vmem:[%s1 + $0x50] sm:$0xff]
  %v33 = vld [vmem:[%s1 + $0x58] sm:$0xff]
  %v34 = vld [vmem:[%s1 + $0x60] sm:$0xff]
  %v35 = vld [vmem:[%s1 + $0x68] sm:$0xff]
  %v36 = vld [vmem:[%s1 + $0x70] sm:$0xff]
  %v37 = vld [vmem:[%s1 + $0x78] sm:$0xff]
  %v38 = vld [vmem:[%s1 + $0x80] sm:$0xff]
  %v39 = vld [vmem:[%s1 + $0x88] sm:$0xff]
  %v40 = vld [vmem:[%s1 + $0x90] sm:$0xff]
  %v41 = vld [vmem:[%s1 + $0x98] sm:$0xff]
  %v42 = vld [vmem:[%s1 + $0xa0] sm:$0xff]
  %v43 = vld [vmem:[%s1 + $0xa8] sm:$0xff]
  %v44 = vld [vmem:[%s1 + $0xb0] sm:$0xff]
  %v45 = vld [vmem:[%s1 + $0xb8] sm:$0xff]
  %v46 = vld [vmem:[%s1 + $0xc0] sm:$0xff]
  %v47 = vld [vmem:[%s1 + $0xc8] sm:$0xff]
  %v48 = vld [vmem:[%s1 + $0xd0] sm:$0xff]
  %v49 = vld [vmem:[%s1 + $0xd8] sm:$0xff]
  %v50 = vld [vmem:[%s1 + $0xe0] sm:$0xff]
  %v51 = vld [vmem:[%s1 + $0xe8] sm:$0xff]
  %v52 = vld [vmem:[%s1 + $0xf0] sm:$0xff]
  %v53 = vld [vmem:[%s1 + $0xf8] sm:$0xff]
  %v54 = vld [vmem:[%s1 + $0x100] sm:$0xff]
  %v55 = vld [vmem:[%s1 + $0x108] sm:$0xff]
  %v56 = vld [vmem:[%s1 + $0x110] sm:$0xff]
  %v57 = vld [vmem:[%s1 + $0x118] sm:$0xff]
  %v58 = vld [vmem:[%s1 + $0x120] sm:$0xff]
  %v59 = vld [vmem:[%s1 + $0x128] sm:$0xff]
  %v60 = vld [vmem:[%s1 + $0x130] sm:$0xff]
  %v61 = vld [vmem:[%s1 + $0x138] sm:$0xff]
  %v62 = vld [vmem:[%s1 + $0x140] sm:$0xff]
  %v63 = vld [vmem:[%s1 + $0x148] sm:$0xff]
  %v64 = vld [vmem:[%s1 + $0x150] sm:$0xff]
  %v65 = vld [vmem:[%s1 + $0x158] sm:$0xff]
  %v66 = vld [vmem:[%s1 + $0x160] sm:$0xff]
  %v67 = vld [vmem:[%s1 + $0x168] sm:$0xff]
  %v68 = vld [vmem:[%s1 + $0x170] sm:$0xff]
  %v69 = vld [vmem:[%s1 + $0x178] sm:$0xff]
  %v70 = vld [vmem:[%s1 + $0x180] sm:$0xff]
  %v71 = vld [vmem:[%s1 + $0x188] sm:$0xff]
  %v72 = vld [vmem:[%s1 + $0x190] sm:$0xff]
  %v73 = vld [vmem:[%s1 + $0x198] sm:$0xff]
  %v74 = vld [vmem:[%s1 + $0x1a0] sm:$0xff]
  %v75 = vld [vmem:[%s1 + $0x1a8] sm:$0xff]
  %v76 = vld [vmem:[%s1 + $0x1b0] sm:$0xff]
  %v77 = vld [vmem:[%s1 + $0x1b8] sm:$0xff]
  %v78 = vld [vmem:[%s1 + $0x1c0] sm:$0xff]
  %v79 = vld [vmem:[%s1 + $0x1c8] sm:$0xff]
  %v80 = vld [vmem:[%s1 + $0x1d0] sm:$0xff]
  %v81 = vld [vmem:[%s1 + $0x1d8] sm:$0xff]
  %v82 = vld [vmem:[%s1 + $0x1e0] sm:$0xff]
  %v83 = vld [vmem:[%s1 + $0x1e8] sm:$0xff]
  %v84 = vld [vmem:[%s1 + $0x1f0] sm:$0xff]
  %v85 = vld [vmem:[%s1 + $0x1f8] sm:$0xff]
  %v86 = vld [vmem:[%s1 + $0x200] sm:$0xff]
  %v87 = vld [vmem:[%s1 + $0x208] sm:$0xff]
  %v88 = vld [vmem:[%s1 + $0x210] sm:$0xff]
  %v89 = vld [vmem:[%s1 + $0x218] sm:$0xff]
  %v90 = vld [vmem:[%s1 + $0x220] sm:$0xff]
  %v91 = vld [vmem:[%s1 + $0x228] sm:$0xff]
  %v92 = vld [vmem:[%s1 + $0x230] sm:$0xff]
  %v93 = vld [vmem:[%s1 + $0x238] sm:$0xff]
  %v94 = vld [vmem:[%s1 + $0x240] sm:$0xff]
  %v95 = vld [vmem:[%s1 + $0x248] sm:$0xff]
  %v96 = vld [vmem:[%s1 + $0x250] sm:$0xff]
  %v97 = vld [vmem:[%s1 + $0x258] sm:$0xff]
  %v98 = vld [vmem:[%s1 + $0x260] sm:$0xff]
  %v99 = vld [vmem:[%s1 + $0x268] sm:$0xff]
  %v100 = vld [vmem:[%s1 + $0x270] sm:$0xff]
  %v101 = vld [vmem:[%s1 + $0x278] sm:$0xff]
  %v102 = vld [vmem:[%s1 + $0x280] sm:$0xff]
  %v103 = vld [vmem:[%s1 + $0x288] sm:$0xff]
  %v104 = vld [vmem:[%s1 + $0x290] sm:$0xff]
  %v105 = vld [vmem:[%s1 + $0x298] sm:$0xff]
  %v106 = vld [vmem:[%s1 + $0x2a0] sm:$0xff]
  %v107 = vld [vmem:[%s1 + $0x2a8] sm:$0xff]
  %v108 = vld [vmem:[%s1 + $0x2b0] sm:$0xff]
  %v109 = vld [vmem:[%s1 + $0x2b8] sm:$0xff]
  %v110 = vld [vmem:[%s1 + $0x2c0] sm:$0xff]
  %v111 = vld [vmem:[%s1 + $0x2c8] sm:$0xff]
  %v112 = vld [vmem:[%s1 + $0x2d0] sm:$0xff]
  %v113 = vld [vmem:[%s1 + $0x2d8] sm:$0xff]
  %v114 = vld [vmem:[%s1 + $0x2e0] sm:$0xff]
  %v115 = vld [vmem:[%s1 + $0x2e8] sm:$0xff]
  %v116 = vld [vmem:[%s1 + $0x2f0] sm:$0xff]
  %v117 = vld [vmem:[%s1 + $0x2f8] sm:$0xff]
  %v118 = vld [vmem:[%s1 + $0x300] sm:$0xff]
  %v119 = vld [vmem:[%s1 + $0x308] sm:$0xff]
  %v120 = vld [vmem:[%s1 + $0x310] sm:$0xff]
  %v121 = vld [vmem:[%s1 + $0x318] sm:$0xff]
  %v122 = vld [vmem:[%s1 + $0x320] sm:$0xff]
  %v123 = vld [vmem:[%s1 + $0x328] sm:$0xff]
  %v124 = vld [vmem:[%s1 + $0x330] sm:$0xff]
  %v125 = vld [vmem:[%s1 + $0x338] sm:$0xff]
  %v126 = vld [vmem:[%s1 + $0x340] sm:$0xff]
  %v127 = vld [vmem:[%s1 + $0x348] sm:$0xff]
  %v128 = vld [vmem:[%s1 + $0x350] sm:$0xff]
  %v129 = vld [vmem:[%s1 + $0x358] sm:$0xff]
  %v130 = vld [vmem:[%s1 + $0x360] sm:$0xff]
  %v131 = vld [vmem:[%s1 + $0x368] sm:$0xff]
  %v132 = vld [vmem:[%s1 + $0x370] sm:$0xff]
  %v133 = vld [vmem:[%s1 + $0x378] sm:$0xff]
  %v134 = vld [vmem:[%s1 + $0x380] sm:$0xff]
  %v135 = vld [vmem:[%s1 + $0x388] sm:$0xff]
  %v136 = vld [vmem:[%s1 + $0x390] sm:$0xff]
  %v137 = vld [vmem:[%s1 + $0x398] sm:$0xff]
  %v138 = vld [vmem:[%s1 + $0x3a0] sm:$0xff]
  %v139 = vld [vmem:[%s1 + $0x3a8] sm:$0xff]
  %v140 = vld [vmem:[%s1 + $0x3b0] sm:$0xff]
  %v141 = vld [vmem:[%s1 + $0x3b8] sm:$0xff]
  %v142 = vld [vmem:[%s1 + $0x3c0] sm:$0xff]
  %v143 = vld [vmem:[%s1 + $0x3c8] sm:$0xff]
  %v144 = vld [vmem:[%s1 + $0x3d0] sm:$0xff]
  %v145 = vld [vmem:[%s1 + $0x3d8] sm:$0xff]
  %v146 = vld [vmem:[%s1 + $0x3e0] sm:$0xff]
  %v147 = vld [vmem:[%s1 + $0x3e8] sm:$0xff]
  %v148 = vld [vmem:[%s1 + $0x3f0] sm:$0xff]
  %v149 = vld [vmem:[%s1 + $0x3f8] sm:$0xff]
  %v150 = vld [vmem:[%s1 + $0x400] sm:$0xff]
  %v151 = vld [vmem:[%s1 + $0x408] sm:$0xff]
  %v152 = vld [vmem:[%s1 + $0x410] sm:$0xff]
  %v153 = vld [vmem:[%s1 + $0x418] sm:$0xff]
  %v154 = vld [vmem:[%s1 + $0x420] sm:$0xff]
  %v155 = vld [vmem:[%s1 + $0x428] sm:$0xff]
  %v156 = vld [vmem:[%s1 + $0x430] sm:$0xff]
  %v157 = vld [vmem:[%s1 + $0x438] sm:$0xff]
  %v158 = vld [vmem:[%s1 + $0x440] sm:$0xff]
  %v159 = vld [vmem:[%s1 + $0x448] sm:$0xff]
  %v160 = vld [vmem:[%s1 + $0x450] sm:$0xff]
  %v161 = vld [vmem:[%s1 + $0x458] sm:$0xff]
  %v162 = vld [vmem:[%s1 + $0x460] sm:$0xff]
  %v163 = vld [vmem:[%s1 + $0x468] sm:$0xff]
  %v164 = vld [vmem:[%s1 + $0x470] sm:$0xff]
  %v165 = vld [vmem:[%s1 + $0x478] sm:$0xff]
  %v176 = vunpack.c.l.b16 %v12
  %v177 = vunpack.c.h.b16 %v12
  %v178 = vunpack.c.l.b16 %v13
  %v179 = vunpack.c.h.b16 %v13
  %v180 = vunpack.c.l.b16 %v14
  %v181 = vunpack.c.h.b16 %v14
  %v182 = vunpack.c.l.b16 %v15
  %v183 = vunpack.c.h.b16 %v15
  %v184 = vunpack.c.l.b16 %v16
  %v185 = vunpack.c.l.b16 %v17
  %v186 = vunpack.c.h.b16 %v17
  %v187 = vunpack.c.l.b16 %v18
  %v188 = vunpack.c.h.b16 %v18
  %v189 = vunpack.c.l.b16 %v19
  %v190 = vunpack.c.h.b16 %v19
  %v191 = vunpack.c.l.b16 %v20
  %v192 = vunpack.c.h.b16 %v20
  %v193 = vunpack.c.l.b16 %v21
  %v194 = vpack.c.b16 %v185, %v176
  %v195 = vpack.c.b16 %v186, %v177
  %v196 = vpack.c.b16 %v187, %v178
  %v197 = vpack.c.b16 %v188, %v179
  %v198 = vpack.c.b16 %v189, %v180
  %v199 = vpack.c.b16 %v190, %v181
  %v200 = vpack.c.b16 %v191, %v182
  %v201 = vpack.c.b16 %v192, %v183
  %v202 = vpack.c.b16 %v193, %v184
  %v356 = vunpack.c.l.b16 %v22
  %v357 = vunpack.c.h.b16 %v22
  %v358 = vunpack.c.l.b16 %v23
  %v359 = vunpack.c.h.b16 %v23
  %v360 = vunpack.c.l.b16 %v24
  %v361 = vunpack.c.h.b16 %v24
  %v362 = vunpack.c.l.b16 %v25
  %v363 = vunpack.c.h.b16 %v25
  %v364 = vunpack.c.l.b16 %v26
  %v365 = vunpack.c.h.b16 %v26
  %v366 = vunpack.c.l.b16 %v27
  %v367 = vunpack.c.h.b16 %v27
  %v368 = vunpack.c.l.b16 %v28
  %v369 = vunpack.c.h.b16 %v28
  %v370 = vunpack.c.l.b16 %v29
  %v371 = vunpack.c.h.b16 %v29
  %v372 = vunpack.c.l.b16 %v30
  %v373 = vunpack.c.h.b16 %v30
  %v374 = vunpack.c.l.b16 %v31
  %v375 = vunpack.c.h.b16 %v31
  %v376 = vunpack.c.l.b16 %v32
  %v377 = vunpack.c.h.b16 %v32
  %v378 = vunpack.c.l.b16 %v33
  %v379 = vunpack.c.h.b16 %v33
  %v380 = vunpack.c.l.b16 %v34
  %v381 = vunpack.c.h.b16 %v34
  %v382 = vunpack.c.l.b16 %v35
  %v383 = vunpack.c.h.b16 %v35
  %v384 = vunpack.c.l.b16 %v36
  %v385 = vunpack.c.h.b16 %v36
  %v386 = vunpack.c.l.b16 %v37
  %v387 = vunpack.c.h.b16 %v37
  %v388 = vunpack.c.l.b16 %v38
  %v389 = vunpack.c.h.b16 %v38
  %v390 = vunpack.c.l.b16 %v39
  %v391 = vunpack.c.h.b16 %v39
  %v392 = vunpack.c.l.b16 %v40
  %v393 = vunpack.c.h.b16 %v40
  %v394 = vunpack.c.l.b16 %v41
  %v395 = vunpack.c.h.b16 %v41
  %v396 = vunpack.c.l.b16 %v42
  %v397 = vunpack.c.h.b16 %v42
  %v398 = vunpack.c.l.b16 %v43
  %v399 = vunpack.c.h.b16 %v43
  %v400 = vunpack.c.l.b16 %v44
  %v401 = vunpack.c.h.b16 %v44
  %v402 = vunpack.c.l.b16 %v45
  %v403 = vunpack.c.h.b16 %v45
  %v404 = vunpack.c.l.b16 %v46
  %v405 = vunpack.c.h.b16 %v46
  %v406 = vunpack.c.l.b16 %v47
  %v407 = vunpack.c.h.b16 %v47
  %v408 = vunpack.c.l.b16 %v48
  %v409 = vunpack.c.h.b16 %v48
  %v410 = vunpack.c.l.b16 %v49
  %v411 = vunpack.c.h.b16 %v49
  %v412 = vunpack.c.l.b16 %v50
  %v413 = vunpack.c.h.b16 %v50
  %v414 = vunpack.c.l.b16 %v51
  %v415 = vunpack.c.h.b16 %v51
  %v416 = vunpack.c.l.b16 %v52
  %v417 = vunpack.c.h.b16 %v52
  %v418 = vunpack.c.l.b16 %v53
  %v419 = vunpack.c.h.b16 %v53
  %v420 = vunpack.c.l.b16 %v54
  %v421 = vunpack.c.h.b16 %v54
  %v422 = vunpack.c.l.b16 %v55
  %v423 = vunpack.c.h.b16 %v55
  %v424 = vunpack.c.l.b16 %v56
  %v425 = vunpack.c.h.b16 %v56
  %v426 = vunpack.c.l.b16 %v57
  %v427 = vunpack.c.h.b16 %v57
  %v428 = vunpack.c.l.b16 %v58
  %v429 = vunpack.c.h.b16 %v58
  %v430 = vunpack.c.l.b16 %v59
  %v431 = vunpack.c.h.b16 %v59
  %v432 = vunpack.c.l.b16 %v60
  %v433 = vunpack.c.h.b16 %v60
  %v434 = vunpack.c.l.b16 %v61
  %v435 = vunpack.c.h.b16 %v61
  %v436 = vunpack.c.l.b16 %v62
  %v437 = vunpack.c.h.b16 %v62
  %v438 = vunpack.c.l.b16 %v63
  %v439 = vunpack.c.h.b16 %v63
  %v440 = vunpack.c.l.b16 %v64
  %v441 = vunpack.c.h.b16 %v64
  %v442 = vunpack.c.l.b16 %v65
  %v443 = vunpack.c.h.b16 %v65
  %v444 = vunpack.c.l.b16 %v66
  %v445 = vunpack.c.h.b16 %v66
  %v446 = vunpack.c.l.b16 %v67
  %v447 = vunpack.c.h.b16 %v67
  %v448 = vunpack.c.l.b16 %v68
  %v449 = vunpack.c.h.b16 %v68
  %v450 = vunpack.c.l.b16 %v69
  %v451 = vunpack.c.h.b16 %v69
  %v452 = vunpack.c.l.b16 %v70
  %v453 = vunpack.c.h.b16 %v70
  %v454 = vunpack.c.l.b16 %v71
  %v455 = vunpack.c.h.b16 %v71
  %v456 = vunpack.c.l.b16 %v72
  %v457 = vunpack.c.h.b16 %v72
  %v458 = vunpack.c.l.b16 %v73
  %v459 = vunpack.c.h.b16 %v73
  %v460 = vunpack.c.l.b16 %v74
  %v461 = vunpack.c.h.b16 %v74
  %v462 = vunpack.c.l.b16 %v75
  %v463 = vunpack.c.h.b16 %v75
  %v464 = vunpack.c.l.b16 %v76
  %v465 = vunpack.c.h.b16 %v76
  %v466 = vunpack.c.l.b16 %v77
  %v467 = vunpack.c.h.b16 %v77
  %v468 = vunpack.c.l.b16 %v78
  %v469 = vunpack.c.h.b16 %v78
  %v470 = vunpack.c.l.b16 %v79
  %v471 = vunpack.c.h.b16 %v79
  %v472 = vunpack.c.l.b16 %v80
  %v473 = vunpack.c.h.b16 %v80
  %v474 = vunpack.c.l.b16 %v81
  %v475 = vunpack.c.h.b16 %v81
  %v476 = vunpack.c.l.b16 %v82
  %v477 = vunpack.c.h.b16 %v82
  %v478 = vunpack.c.l.b16 %v83
  %v479 = vunpack.c.h.b16 %v83
  %v480 = vunpack.c.l.b16 %v84
  %v481 = vunpack.c.h.b16 %v84
  %v482 = vunpack.c.l.b16 %v85
  %v483 = vunpack.c.h.b16 %v85
  %v484 = vunpack.c.l.b16 %v86
  %v485 = vunpack.c.h.b16 %v86
  %v486 = vunpack.c.l.b16 %v87
  %v487 = vunpack.c.h.b16 %v87
  %v488 = vunpack.c.l.b16 %v88
  %v489 = vunpack.c.h.b16 %v88
  %v490 = vunpack.c.l.b16 %v89
  %v491 = vunpack.c.h.b16 %v89
  %v492 = vunpack.c.l.b16 %v90
  %v493 = vunpack.c.h.b16 %v90
  %v494 = vunpack.c.l.b16 %v91
  %v495 = vunpack.c.h.b16 %v91
  %v496 = vunpack.c.l.b16 %v92
  %v497 = vunpack.c.h.b16 %v92
  %v498 = vunpack.c.l.b16 %v93
  %v499 = vunpack.c.h.b16 %v93
  %v500 = vunpack.c.l.b16 %v94
  %v501 = vunpack.c.h.b16 %v94
  %v502 = vunpack.c.l.b16 %v95
  %v503 = vunpack.c.h.b16 %v95
  %v504 = vunpack.c.l.b16 %v96
  %v505 = vunpack.c.h.b16 %v96
  %v506 = vunpack.c.l.b16 %v97
  %v507 = vunpack.c.h.b16 %v97
  %v508 = vunpack.c.l.b16 %v98
  %v509 = vunpack.c.h.b16 %v98
  %v510 = vunpack.c.l.b16 %v99
  %v511 = vunpack.c.h.b16 %v99
  %v512 = vunpack.c.l.b16 %v100
  %v513 = vunpack.c.h.b16 %v100
  %v514 = vunpack.c.l.b16 %v101
  %v515 = vunpack.c.h.b16 %v101
  %v516 = vunpack.c.l.b16 %v102
  %v517 = vunpack.c.h.b16 %v102
  %v518 = vunpack.c.l.b16 %v103
  %v519 = vunpack.c.h.b16 %v103
  %v520 = vunpack.c.l.b16 %v104
  %v521 = vunpack.c.h.b16 %v104
  %v522 = vunpack.c.l.b16 %v105
  %v523 = vunpack.c.h.b16 %v105
  %v524 = vunpack.c.l.b16 %v106
  %v525 = vunpack.c.h.b16 %v106
  %v526 = vunpack.c.l.b16 %v107
  %v527 = vunpack.c.h.b16 %v107
  %v528 = vunpack.c.l.b16 %v108
  %v529 = vunpack.c.h.b16 %v108
  %v530 = vunpack.c.l.b16 %v109
  %v531 = vunpack.c.h.b16 %v109
  %v532 = vunpack.c.l.b16 %v110
  %v533 = vunpack.c.h.b16 %v110
  %v534 = vunpack.c.l.b16 %v111
  %v535 = vunpack.c.h.b16 %v111
  %v536 = vunpack.c.l.b16 %v112
  %v537 = vunpack.c.h.b16 %v112
  %v538 = vunpack.c.l.b16 %v113
  %v539 = vunpack.c.h.b16 %v113
  %v540 = vunpack.c.l.b16 %v114
  %v541 = vunpack.c.h.b16 %v114
  %v542 = vunpack.c.l.b16 %v115
  %v543 = vunpack.c.h.b16 %v115
  %v544 = vunpack.c.l.b16 %v116
  %v545 = vunpack.c.h.b16 %v116
  %v546 = vunpack.c.l.b16 %v117
  %v547 = vunpack.c.h.b16 %v117
  %v548 = vunpack.c.l.b16 %v118
  %v549 = vunpack.c.h.b16 %v118
  %v550 = vunpack.c.l.b16 %v119
  %v551 = vunpack.c.h.b16 %v119
  %v552 = vunpack.c.l.b16 %v120
  %v553 = vunpack.c.h.b16 %v120
  %v554 = vunpack.c.l.b16 %v121
  %v555 = vunpack.c.h.b16 %v121
  %v556 = vunpack.c.l.b16 %v122
  %v557 = vunpack.c.h.b16 %v122
  %v558 = vunpack.c.l.b16 %v123
  %v559 = vunpack.c.h.b16 %v123
  %v560 = vunpack.c.l.b16 %v124
  %v561 = vunpack.c.h.b16 %v124
  %v562 = vunpack.c.l.b16 %v125
  %v563 = vunpack.c.h.b16 %v125
  %v564 = vunpack.c.l.b16 %v126
  %v565 = vunpack.c.h.b16 %v126
  %v566 = vunpack.c.l.b16 %v127
  %v567 = vunpack.c.h.b16 %v127
  %v568 = vunpack.c.l.b16 %v128
  %v569 = vunpack.c.h.b16 %v128
  %v570 = vunpack.c.l.b16 %v129
  %v571 = vunpack.c.h.b16 %v129
  %v572 = vunpack.c.l.b16 %v130
  %v573 = vunpack.c.h.b16 %v130
  %v574 = vunpack.c.l.b16 %v131
  %v575 = vunpack.c.h.b16 %v131
  %v576 = vunpack.c.l.b16 %v132
  %v577 = vunpack.c.h.b16 %v132
  %v578 = vunpack.c.l.b16 %v133
  %v579 = vunpack.c.h.b16 %v133
  %v580 = vunpack.c.l.b16 %v134
  %v581 = vunpack.c.h.b16 %v134
  %v582 = vunpack.c.l.b16 %v135
  %v583 = vunpack.c.h.b16 %v135
  %v584 = vunpack.c.l.b16 %v136
  %v585 = vunpack.c.h.b16 %v136
  %v586 = vunpack.c.l.b16 %v137
  %v587 = vunpack.c.h.b16 %v137
  %v588 = vunpack.c.l.b16 %v138
  %v589 = vunpack.c.h.b16 %v138
  %v590 = vunpack.c.l.b16 %v139
  %v591 = vunpack.c.h.b16 %v139
  %v592 = vunpack.c.l.b16 %v140
  %v593 = vunpack.c.h.b16 %v140
  %v594 = vunpack.c.l.b16 %v141
  %v595 = vunpack.c.h.b16 %v141
  %v596 = vunpack.c.l.b16 %v142
  %v597 = vunpack.c.h.b16 %v142
  %v598 = vunpack.c.l.b16 %v143
  %v599 = vunpack.c.h.b16 %v143
  %v600 = vunpack.c.l.b16 %v144
  %v601 = vunpack.c.h.b16 %v144
  %v602 = vunpack.c.l.b16 %v145
  %v603 = vunpack.c.h.b16 %v145
  %v604 = vunpack.c.l.b16 %v146
  %v605 = vunpack.c.h.b16 %v146
  %v606 = vunpack.c.l.b16 %v147
  %v607 = vunpack.c.h.b16 %v147
  %v608 = vunpack.c.l.b16 %v148
  %v609 = vunpack.c.h.b16 %v148
  %v610 = vunpack.c.l.b16 %v149
  %v611 = vunpack.c.h.b16 %v149
  %v612 = vunpack.c.l.b16 %v150
  %v613 = vunpack.c.h.b16 %v150
  %v614 = vunpack.c.l.b16 %v151
  %v615 = vunpack.c.h.b16 %v151
  %v616 = vunpack.c.l.b16 %v152
  %v617 = vunpack.c.h.b16 %v152
  %v618 = vunpack.c.l.b16 %v153
  %v619 = vunpack.c.h.b16 %v153
  %v620 = vunpack.c.l.b16 %v154
  %v621 = vunpack.c.h.b16 %v154
  %v622 = vunpack.c.l.b16 %v155
  %v623 = vunpack.c.h.b16 %v155
  %v624 = vunpack.c.l.b16 %v156
  %v625 = vunpack.c.h.b16 %v156
  %v626 = vunpack.c.l.b16 %v157
  %v627 = vunpack.c.h.b16 %v157
  %v628 = vunpack.c.l.b16 %v158
  %v629 = vunpack.c.h.b16 %v158
  %v630 = vunpack.c.l.b16 %v159
  %v631 = vunpack.c.h.b16 %v159
  %v632 = vunpack.c.l.b16 %v160
  %v633 = vunpack.c.h.b16 %v160
  %v634 = vunpack.c.l.b16 %v161
  %v635 = vunpack.c.h.b16 %v161
  %v636 = vunpack.c.l.b16 %v162
  %v637 = vunpack.c.h.b16 %v162
  %v638 = vunpack.c.l.b16 %v163
  %v639 = vunpack.c.h.b16 %v163
  %v640 = vunpack.c.l.b16 %v164
  %v641 = vunpack.c.h.b16 %v164
  %v642 = vunpack.c.l.b16 %v165
  %v643 = vunpack.c.h.b16 %v165
  %v644 = vpack.c.b16 %v358, %v356
  %v645 = vpack.c.b16 %v359, %v357
  %v646 = vpack.c.b16 %v362, %v360
  %v647 = vpack.c.b16 %v363, %v361
  %v648 = vpack.c.b16 %v366, %v364
  %v649 = vpack.c.b16 %v367, %v365
  %v650 = vpack.c.b16 %v370, %v368
  %v651 = vpack.c.b16 %v371, %v369
  %v652 = vpack.c.b16 %v374, %v372
  %v653 = vpack.c.b16 %v375, %v373
  %v654 = vpack.c.b16 %v378, %v376
  %v655 = vpack.c.b16 %v379, %v377
  %v656 = vpack.c.b16 %v382, %v380
  %v657 = vpack.c.b16 %v383, %v381
  %v658 = vpack.c.b16 %v386, %v384
  %v659 = vpack.c.b16 %v387, %v385
  %v660 = vpack.c.b16 %v390, %v388
  %v661 = vpack.c.b16 %v391, %v389
  %v662 = vpack.c.b16 %v394, %v392
  %v663 = vpack.c.b16 %v395, %v393
  %v664 = vpack.c.b16 %v398, %v396
  %v665 = vpack.c.b16 %v399, %v397
  %v666 = vpack.c.b16 %v402, %v400
  %v667 = vpack.c.b16 %v403, %v401
  %v668 = vpack.c.b16 %v406, %v404
  %v669 = vpack.c.b16 %v407, %v405
  %v670 = vpack.c.b16 %v410, %v408
  %v671 = vpack.c.b16 %v411, %v409
  %v672 = vpack.c.b16 %v414, %v412
  %v673 = vpack.c.b16 %v415, %v413
  %v674 = vpack.c.b16 %v418, %v416
  %v675 = vpack.c.b16 %v419, %v417
  %v676 = vpack.c.b16 %v422, %v420
  %v677 = vpack.c.b16 %v423, %v421
  %v678 = vpack.c.b16 %v426, %v424
  %v679 = vpack.c.b16 %v427, %v425
  %v680 = vpack.c.b16 %v430, %v428
  %v681 = vpack.c.b16 %v431, %v429
  %v682 = vpack.c.b16 %v434, %v432
  %v683 = vpack.c.b16 %v435, %v433
  %v684 = vpack.c.b16 %v438, %v436
  %v685 = vpack.c.b16 %v439, %v437
  %v686 = vpack.c.b16 %v442, %v440
  %v687 = vpack.c.b16 %v443, %v441
  %v688 = vpack.c.b16 %v446, %v444
  %v689 = vpack.c.b16 %v447, %v445
  %v690 = vpack.c.b16 %v450, %v448
  %v691 = vpack.c.b16 %v451, %v449
  %v692 = vpack.c.b16 %v454, %v452
  %v693 = vpack.c.b16 %v455, %v453
  %v694 = vpack.c.b16 %v458, %v456
  %v695 = vpack.c.b16 %v459, %v457
  %v696 = vpack.c.b16 %v462, %v460
  %v697 = vpack.c.b16 %v463, %v461
  %v698 = vpack.c.b16 %v466, %v464
  %v699 = vpack.c.b16 %v467, %v465
  %v700 = vpack.c.b16 %v470, %v468
  %v701 = vpack.c.b16 %v471, %v469
  %v702 = vpack.c.b16 %v474, %v472
  %v703 = vpack.c.b16 %v475, %v473
  %v704 = vpack.c.b16 %v478, %v476
  %v705 = vpack.c.b16 %v479, %v477
  %v706 = vpack.c.b16 %v482, %v480
  %v707 = vpack.c.b16 %v483, %v481
  %v708 = vpack.c.b16 %v486, %v484
  %v709 = vpack.c.b16 %v487, %v485
  %v710 = vpack.c.b16 %v490, %v488
  %v711 = vpack.c.b16 %v491, %v489
  %v712 = vpack.c.b16 %v494, %v492
  %v713 = vpack.c.b16 %v495, %v493
  %v714 = vpack.c.b16 %v498, %v496
  %v715 = vpack.c.b16 %v499, %v497
  %v716 = vpack.c.b16 %v502, %v500
  %v717 = vpack.c.b16 %v503, %v501
  %v718 = vpack.c.b16 %v506, %v504
  %v719 = vpack.c.b16 %v507, %v505
  %v720 = vpack.c.b16 %v510, %v508
  %v721 = vpack.c.b16 %v511, %v509
  %v722 = vpack.c.b16 %v514, %v512
  %v723 = vpack.c.b16 %v515, %v513
  %v724 = vpack.c.b16 %v518, %v516
  %v725 = vpack.c.b16 %v519, %v517
  %v726 = vpack.c.b16 %v522, %v520
  %v727 = vpack.c.b16 %v523, %v521
  %v728 = vpack.c.b16 %v526, %v524
  %v729 = vpack.c.b16 %v527, %v525
  %v730 = vpack.c.b16 %v530, %v528
  %v731 = vpack.c.b16 %v531, %v529
  %v732 = vpack.c.b16 %v534, %v532
  %v733 = vpack.c.b16 %v535, %v533
  %v734 = vpack.c.b16 %v538, %v536
  %v735 = vpack.c.b16 %v539, %v537
  %v736 = vpack.c.b16 %v542, %v540
  %v737 = vpack.c.b16 %v543, %v541
  %v738 = vpack.c.b16 %v546, %v544
  %v739 = vpack.c.b16 %v547, %v545
  %v740 = vpack.c.b16 %v550, %v548
  %v741 = vpack.c.b16 %v551, %v549
  %v742 = vpack.c.b16 %v554, %v552
  %v743 = vpack.c.b16 %v555, %v553
  %v744 = vpack.c.b16 %v558, %v556
  %v745 = vpack.c.b16 %v559, %v557
  %v746 = vpack.c.b16 %v562, %v560
  %v747 = vpack.c.b16 %v563, %v561
  %v748 = vpack.c.b16 %v566, %v564
  %v749 = vpack.c.b16 %v567, %v565
  %v750 = vpack.c.b16 %v570, %v568
  %v751 = vpack.c.b16 %v571, %v569
  %v752 = vpack.c.b16 %v574, %v572
  %v753 = vpack.c.b16 %v575, %v573
  %v754 = vpack.c.b16 %v578, %v576
  %v755 = vpack.c.b16 %v579, %v577
  %v756 = vpack.c.b16 %v582, %v580
  %v757 = vpack.c.b16 %v583, %v581
  %v758 = vpack.c.b16 %v586, %v584
  %v759 = vpack.c.b16 %v587, %v585
  %v760 = vpack.c.b16 %v590, %v588
  %v761 = vpack.c.b16 %v591, %v589
  %v762 = vpack.c.b16 %v594, %v592
  %v763 = vpack.c.b16 %v595, %v593
  %v764 = vpack.c.b16 %v598, %v596
  %v765 = vpack.c.b16 %v599, %v597
  %v766 = vpack.c.b16 %v602, %v600
  %v767 = vpack.c.b16 %v603, %v601
  %v768 = vpack.c.b16 %v606, %v604
  %v769 = vpack.c.b16 %v607, %v605
  %v770 = vpack.c.b16 %v610, %v608
  %v771 = vpack.c.b16 %v611, %v609
  %v772 = vpack.c.b16 %v614, %v612
  %v773 = vpack.c.b16 %v615, %v613
  %v774 = vpack.c.b16 %v618, %v616
  %v775 = vpack.c.b16 %v619, %v617
  %v776 = vpack.c.b16 %v622, %v620
  %v777 = vpack.c.b16 %v623, %v621
  %v778 = vpack.c.b16 %v626, %v624
  %v779 = vpack.c.b16 %v627, %v625
  %v780 = vpack.c.b16 %v630, %v628
  %v781 = vpack.c.b16 %v631, %v629
  %v782 = vpack.c.b16 %v634, %v632
  %v783 = vpack.c.b16 %v635, %v633
  %v784 = vpack.c.b16 %v638, %v636
  %v785 = vpack.c.b16 %v639, %v637
  %v786 = vpack.c.b16 %v642, %v640
  %v787 = vpack.c.b16 %v643, %v641
  %932 = vmatprep.subr.bf16.mxu0 %v659
  %933 = vmatpush1.bf16.msra.mxu0 %v658
  %934 = vmatprep.subr.bf16.mxu0 %v657
  %935 = vmatpush1.bf16.msra.mxu0 %v656
  %936 = vmatprep.subr.bf16.mxu0 %v655
  %937 = vmatpush1.bf16.msra.mxu0 %v654
  %938 = vmatprep.subr.bf16.mxu0 %v653
  %939 = vmatpush1.bf16.msra.mxu0 %v652
  %940 = vmatprep.subr.bf16.mxu0 %v651
  %941 = vmatpush1.bf16.msra.mxu0 %v650
  %942 = vmatprep.subr.bf16.mxu0 %v649
  %943 = vmatpush1.bf16.msra.mxu0 %v648
  %944 = vmatprep.subr.bf16.mxu0 %v647
  %945 = vmatpush1.bf16.msra.mxu0 %v646
  %946 = vmatprep.subr.bf16.mxu0 %v645
  %947 = vmatpush1.bf16.msra.mxu0 %v644
  %948 = vmatprep.subr.bf16.mxu0 %v675
  %949 = vmatpush2.bf16.msra.mxu0 %v674
  %950 = vmatprep.subr.bf16.mxu0 %v673
  %951 = vmatpush2.bf16.msra.mxu0 %v672
  %952 = vmatprep.subr.bf16.mxu0 %v671
  %953 = vmatpush2.bf16.msra.mxu0 %v670
  %954 = vmatprep.subr.bf16.mxu0 %v669
  %955 = vmatpush2.bf16.msra.mxu0 %v668
  %956 = vmatprep.subr.bf16.mxu0 %v667
  %957 = vmatpush2.bf16.msra.mxu0 %v666
  %958 = vmatprep.subr.bf16.mxu0 %v665
  %959 = vmatpush2.bf16.msra.mxu0 %v664
  %960 = vmatprep.subr.bf16.mxu0 %v663
  %961 = vmatpush2.bf16.msra.mxu0 %v662
  %962 = vmatprep.subr.bf16.mxu0 %v661
  %963 = vmatpush2.bf16.msra.mxu0 %v660
  %964 = vmatprep.mubr.bf16.mxu0 %v195
  %965 = vmatmul.mubr.bf16.gmra.mxu0 %v194
  %v966 = vpop.f32.mrf.mxu0
  %v967 = vadd.f32 0.0, %v966
  %v968 = vpop.f32.mrf.mxu0
  %v969 = vadd.f32 0.0, %v968
  %v970 = vpop.f32.mrf.mxu0
  %v971 = vadd.f32 0.0, %v970
  %v972 = vpop.f32.mrf.mxu0
  %v973 = vadd.f32 0.0, %v972
  %974 = vdwg.mxu0
  %975 = vmatprep.subr.bf16.mxu0 %v691
  %976 = vmatpush1.bf16.msra.mxu0 %v690
  %977 = vmatprep.subr.bf16.mxu0 %v689
  %978 = vmatpush1.bf16.msra.mxu0 %v688
  %979 = vmatprep.subr.bf16.mxu0 %v687
  %980 = vmatpush1.bf16.msra.mxu0 %v686
  %981 = vmatprep.subr.bf16.mxu0 %v685
  %982 = vmatpush1.bf16.msra.mxu0 %v684
  %983 = vmatprep.subr.bf16.mxu0 %v683
  %984 = vmatpush1.bf16.msra.mxu0 %v682
  %985 = vmatprep.subr.bf16.mxu0 %v681
  %986 = vmatpush1.bf16.msra.mxu0 %v680
  %987 = vmatprep.subr.bf16.mxu0 %v679
  %988 = vmatpush1.bf16.msra.mxu0 %v678
  %989 = vmatprep.subr.bf16.mxu0 %v677
  %990 = vmatpush1.bf16.msra.mxu0 %v676
  %991 = vmatprep.subr.bf16.mxu0 %v707
  %992 = vmatpush2.bf16.msra.mxu0 %v706
  %993 = vmatprep.subr.bf16.mxu0 %v705
  %994 = vmatpush2.bf16.msra.mxu0 %v704
  %995 = vmatprep.subr.bf16.mxu0 %v703
  %996 = vmatpush2.bf16.msra.mxu0 %v702
  %997 = vmatprep.subr.bf16.mxu0 %v701
  %998 = vmatpush2.bf16.msra.mxu0 %v700
  %999 = vmatprep.subr.bf16.mxu0 %v699
  %1000 = vmatpush2.bf16.msra.mxu0 %v698
  %1001 = vmatprep.subr.bf16.mxu0 %v697
  %1002 = vmatpush2.bf16.msra.mxu0 %v696
  %1003 = vmatprep.subr.bf16.mxu0 %v695
  %1004 = vmatpush2.bf16.msra.mxu0 %v694
  %1005 = vmatprep.subr.bf16.mxu0 %v693
  %1006 = vmatpush2.bf16.msra.mxu0 %v692
  %1007 = vmatprep.mubr.bf16.mxu0 %v197
  %1008 = vmatmul.mubr.bf16.gmra.mxu0 %v196
  %v1009 = vpop.f32.mrf.mxu0
  %v1010 = vadd.f32 %v967, %v1009
  %v1011 = vpop.f32.mrf.mxu0
  %v1012 = vadd.f32 %v969, %v1011
  %v1013 = vpop.f32.mrf.mxu0
  %v1014 = vadd.f32 %v971, %v1013
  %v1015 = vpop.f32.mrf.mxu0
  %v1016 = vadd.f32 %v973, %v1015
  %1017 = vdwg.mxu0
  %1018 = vmatprep.subr.bf16.mxu0 %v723
  %1019 = vmatpush1.bf16.msra.mxu0 %v722
  %1020 = vmatprep.subr.bf16.mxu0 %v721
  %1021 = vmatpush1.bf16.msra.mxu0 %v720
  %1022 = vmatprep.subr.bf16.mxu0 %v719
  %1023 = vmatpush1.bf16.msra.mxu0 %v718
  %1024 = vmatprep.subr.bf16.mxu0 %v717
  %1025 = vmatpush1.bf16.msra.mxu0 %v716
  %1026 = vmatprep.subr.bf16.mxu0 %v715
  %1027 = vmatpush1.bf16.msra.mxu0 %v714
  %1028 = vmatprep.subr.bf16.mxu0 %v713
  %1029 = vmatpush1.bf16.msra.mxu0 %v712
  %1030 = vmatprep.subr.bf16.mxu0 %v711
  %1031 = vmatpush1.bf16.msra.mxu0 %v710
  %1032 = vmatprep.subr.bf16.mxu0 %v709
  %1033 = vmatpush1.bf16.msra.mxu0 %v708
  %1034 = vmatprep.subr.bf16.mxu0 %v739
  %1035 = vmatpush2.bf16.msra.mxu0 %v738
  %1036 = vmatprep.subr.bf16.mxu0 %v737
  %1037 = vmatpush2.bf16.msra.mxu0 %v736
  %1038 = vmatprep.subr.bf16.mxu0 %v735
  %1039 = vmatpush2.bf16.msra.mxu0 %v734
  %1040 = vmatprep.subr.bf16.mxu0 %v733
  %1041 = vmatpush2.bf16.msra.mxu0 %v732
  %1042 = vmatprep.subr.bf16.mxu0 %v731
  %1043 = vmatpush2.bf16.msra.mxu0 %v730
  %1044 = vmatprep.subr.bf16.mxu0 %v729
  %1045 = vmatpush2.bf16.msra.mxu0 %v728
  %1046 = vmatprep.subr.bf16.mxu0 %v727
  %1047 = vmatpush2.bf16.msra.mxu0 %v726
  %1048 = vmatprep.subr.bf16.mxu0 %v725
  %1049 = vmatpush2.bf16.msra.mxu0 %v724
  %1050 = vmatprep.mubr.bf16.mxu0 %v199
  %1051 = vmatmul.mubr.bf16.gmra.mxu0 %v198
  %v1052 = vpop.f32.mrf.mxu0
  %v1053 = vadd.f32 %v1010, %v1052
  %v1054 = vpop.f32.mrf.mxu0
  %v1055 = vadd.f32 %v1012, %v1054
  %v1056 = vpop.f32.mrf.mxu0
  %v1057 = vadd.f32 %v1014, %v1056
  %v1058 = vpop.f32.mrf.mxu0
  %v1059 = vadd.f32 %v1016, %v1058
  %1060 = vdwg.mxu0
  %1061 = vmatprep.subr.bf16.mxu0 %v755
  %1062 = vmatpush1.bf16.msra.mxu0 %v754
  %1063 = vmatprep.subr.bf16.mxu0 %v753
  %1064 = vmatpush1.bf16.msra.mxu0 %v752
  %1065 = vmatprep.subr.bf16.mxu0 %v751
  %1066 = vmatpush1.bf16.msra.mxu0 %v750
  %1067 = vmatprep.subr.bf16.mxu0 %v749
  %1068 = vmatpush1.bf16.msra.mxu0 %v748
  %1069 = vmatprep.subr.bf16.mxu0 %v747
  %1070 = vmatpush1.bf16.msra.mxu0 %v746
  %1071 = vmatprep.subr.bf16.mxu0 %v745
  %1072 = vmatpush1.bf16.msra.mxu0 %v744
  %1073 = vmatprep.subr.bf16.mxu0 %v743
  %1074 = vmatpush1.bf16.msra.mxu0 %v742
  %1075 = vmatprep.subr.bf16.mxu0 %v741
  %1076 = vmatpush1.bf16.msra.mxu0 %v740
  %1077 = vmatprep.subr.bf16.mxu0 %v771
  %1078 = vmatpush2.bf16.msra.mxu0 %v770
  %1079 = vmatprep.subr.bf16.mxu0 %v769
  %1080 = vmatpush2.bf16.msra.mxu0 %v768
  %1081 = vmatprep.subr.bf16.mxu0 %v767
  %1082 = vmatpush2.bf16.msra.mxu0 %v766
  %1083 = vmatprep.subr.bf16.mxu0 %v765
  %1084 = vmatpush2.bf16.msra.mxu0 %v764
  %1085 = vmatprep.subr.bf16.mxu0 %v763
  %1086 = vmatpush2.bf16.msra.mxu0 %v762
  %1087 = vmatprep.subr.bf16.mxu0 %v761
  %1088 = vmatpush2.bf16.msra.mxu0 %v760
  %1089 = vmatprep.subr.bf16.mxu0 %v759
  %1090 = vmatpush2.bf16.msra.mxu0 %v758
  %1091 = vmatprep.subr.bf16.mxu0 %v757
  %1092 = vmatpush2.bf16.msra.mxu0 %v756
  %1093 = vmatprep.mubr.bf16.mxu0 %v201
  %1094 = vmatmul.mubr.bf16.gmra.mxu0 %v200
  %v1095 = vpop.f32.mrf.mxu0
  %v1096 = vadd.f32 %v1053, %v1095
  %v1097 = vpop.f32.mrf.mxu0
  %v1098 = vadd.f32 %v1055, %v1097
  %v1099 = vpop.f32.mrf.mxu0
  %v1100 = vadd.f32 %v1057, %v1099
  %v1101 = vpop.f32.mrf.mxu0
  %v1102 = vadd.f32 %v1059, %v1101
  %1103 = vdwg.mxu0
  %1104 = vmatprep.subr.bf16.mxu0 %v787
  %1105 = vmatpush1.bf16.msra.mxu0 %v786
  %1106 = vmatprep.subr.bf16.mxu0 %v785
  %1107 = vmatpush1.bf16.msra.mxu0 %v784
  %1108 = vmatprep.subr.bf16.mxu0 %v783
  %1109 = vmatpush1.bf16.msra.mxu0 %v782
  %1110 = vmatprep.subr.bf16.mxu0 %v781
  %1111 = vmatpush1.bf16.msra.mxu0 %v780
  %1112 = vmatprep.subr.bf16.mxu0 %v779
  %1113 = vmatpush1.bf16.msra.mxu0 %v778
  %1114 = vmatprep.subr.bf16.mxu0 %v777
  %1115 = vmatpush1.bf16.msra.mxu0 %v776
  %1116 = vmatprep.subr.bf16.mxu0 %v775
  %1117 = vmatpush1.bf16.msra.mxu0 %v774
  %1118 = vmatprep.subr.bf16.mxu0 %v773
  %1119 = vmatpush1.bf16.msra.mxu0 %v772
  %1120 = vmatprep.subr.bf16.mxu0 0
  %1121 = vmatpush2.bf16.msra.mxu0 0
  %1122 = vmatprep.subr.bf16.mxu0 0
  %1123 = vmatpush2.bf16.msra.mxu0 0
  %1124 = vmatprep.subr.bf16.mxu0 0
  %1125 = vmatpush2.bf16.msra.mxu0 0
  %1126 = vmatprep.subr.bf16.mxu0 0
  %1127 = vmatpush2.bf16.msra.mxu0 0
  %1128 = vmatprep.subr.bf16.mxu0 0
  %1129 = vmatpush2.bf16.msra.mxu0 0
  %1130 = vmatprep.subr.bf16.mxu0 0
  %1131 = vmatpush2.bf16.msra.mxu0 0
  %1132 = vmatprep.subr.bf16.mxu0 0
  %1133 = vmatpush2.bf16.msra.mxu0 0
  %1134 = vmatprep.subr.bf16.mxu0 0
  %1135 = vmatpush2.bf16.msra.mxu0 0
  %1136 = vmatprep.mubr.bf16.mxu0 0
  %1137 = vmatmul.mubr.bf16.gmra.mxu0 %v202
  %v1138 = vpop.f32.mrf.mxu0
  %v1139 = vadd.f32 %v1096, %v1138
  %v1140 = vpop.f32.mrf.mxu0
  %v1141 = vadd.f32 %v1098, %v1140
  %v1142 = vpop.f32.mrf.mxu0
  %v1143 = vadd.f32 %v1100, %v1142
  %v1144 = vpop.f32.mrf.mxu0
  %v1145 = vadd.f32 %v1102, %v1144
  %1146 = vdwg.mxu0
  %v1147 = vlaneseq
  %v1148 = vand.u32 %v1147, 127
  %v1149 = vadd.s32 %v1148, 128
  %vm1150 = vcmp.lt.s32.totalorder %v1148, 128
  %vm1151 = vcmp.lt.s32.totalorder %v1149, 128
  %v1152 = vmax.f32 %v1139, 0.0
  %v1153 = vmax.f32 %v1141, 0.0
  %v1154 = vmax.f32 %v1143, 0.0
  %v1155 = vmax.f32 %v1145, 0.0
  %v1156 = vsel %vm1150, %v1152, %v1139
  %v1157 = vsel %vm1151, %v1153, %v1141
  %v1158 = vsel %vm1150, %v1154, %v1143
  %v1159 = vsel %vm1151, %v1155, %v1145
  %v1160 = vpack.c.bf16 %v1158, %v1156
  %v1161 = vpack.c.bf16 %v1159, %v1157
  %v1164 = vunpack.c.l.b16 %v1160
  %v1165 = vunpack.c.l.b16 %v1161
  %v1166 = vunpack.c.h.b16 %v1160
  %v1167 = vunpack.c.h.b16 %v1161
  %v1168 = vpack.c.b16 %v1165, %v1164
  %v1169 = vpack.c.b16 %v1167, %v1166
  %1172 = vst [vmem:[%s2] sm:$0xff] %v1168
  %1173 = vst [vmem:[%s2 + $0x8] sm:$0xff] %v1169
  // Predicated region
  $region10: #{student_resnet_forward.20} parent=0 // pred_check
    _
  $region11: #{student_resnet_forward.20} parent=0 // pred_check_branch
    %1175 = sbr.rel (0) target = $region13
  $region12: #{student_resnet_forward.20} parent=0 // pred_region
    _
  $region13: #{student_resnet_forward.20} parent=0 // pred_fallthru
    _
  // Predicated region
  $region14: #{student_resnet_forward.20} parent=0 // pred_check
    _
  $region15: #{student_resnet_forward.20} parent=0 // pred_check_branch
    %1177 = sbr.rel (0) target = $region17
  $region16: #{student_resnet_forward.20} parent=0 // pred_region
    _
  $region17: #{student_resnet_forward.20} parent=0 // pred_fallthru
    _

</llo_original>
